<compile_context>
chip_gen: v5e
topology: v5e:2x2
jax: 0.10.0
libtpu: 0.0.40
codegen_flags: <defaults>
</compile_context>

<pallas_src>
import functools

import jax
import jax.numpy as jnp
import numpy as np
from jax.experimental import pallas as pl
from jax.experimental.pallas import tpu as pltpu

# ---- module hyper-parameters (consistent with the torch module) ----
N_EMBD = 384                      # n_embd
NUM_HEADS = 6
HEAD_SIZE = N_EMBD // NUM_HEADS   # 64
BATCH = 2
SEQ = 128                         # T <= block_size (256)


# --------------------------------------------------------------------------
# Fused kernel: per batch element
#   qkv = x @ [Wq*scale | Wk | Wv]        (one wide bf16 MXU matmul)
#   per head: s = q_h k_h^T ; causal mask ; softmax ; o_h = s @ v_h
#   y = sum_h o_h @ Wp[h] + b             (projection fused, lane-dense out)
# --------------------------------------------------------------------------
def fused_mha_kernel(x_ref, wqkv_ref, wp_ref, bp_ref, o_ref, *,
                     num_heads, head_size):
    T = x_ref.shape[0]
    C = o_ref.shape[-1]
    Hhs = num_heads * head_size

    x = x_ref[...]                                                  # (T, C) bf16
    # All-head Q, K, V in one MXU pass (f32 accumulation).
    qkv = jnp.dot(x, wqkv_ref[...],
                  preferred_element_type=jnp.float32)               # (T, 3*H*hs)

    row = jax.lax.broadcasted_iota(jnp.int32, (T, T), 0)
    col = jax.lax.broadcasted_iota(jnp.int32, (T, T), 1)
    causal = row >= col

    acc = jnp.zeros((T, C), jnp.float32)
    for h in range(num_heads):
        base = h * head_size
        qh = qkv[:, base:base + head_size].astype(jnp.bfloat16)             # (T, hs)
        kh = qkv[:, Hhs + base:Hhs + base + head_size].astype(jnp.bfloat16)
        vh = qkv[:, 2 * Hhs + base:2 * Hhs + base + head_size].astype(jnp.bfloat16)

        # scores: contract last dim of q and k (no explicit k transpose);
        # 1/sqrt(hs) scale already folded into Wq.
        s = jax.lax.dot_general(qh, kh, (((1,), (1,)), ((), ())),
                                preferred_element_type=jnp.float32)  # (T, T)
        s = jnp.where(causal, s, -jnp.inf)
        s = s - jnp.max(s, axis=-1, keepdims=True)
        p = jnp.exp(s)
        p = p * pl.reciprocal(jnp.sum(p, axis=-1, keepdims=True), approx=True)
        # (dropout on attention weights: identity in eval mode)

        oh = jnp.dot(p.astype(jnp.bfloat16), vh,
                     preferred_element_type=jnp.float32)             # (T, hs)

        # Fused output projection: this head's rows of Wp, accumulated into
        # the lane-dense (T, C) result.
        wp_h = wp_ref[pl.ds(base, head_size), :]                     # (hs, C) bf16
        acc = acc + jnp.dot(oh.astype(jnp.bfloat16), wp_h,
                            preferred_element_type=jnp.float32)

    o_ref[...] = (acc + bp_ref[...]).astype(o_ref.dtype)


# --------------------------------------------------------------------------
# Wrapper: pack weights, fold the attention scale, cast to bf16, launch.
# --------------------------------------------------------------------------
@jax.jit
def multi_head_attention(x, wq, wk, wv, wp_t, bp):
    """x: (B, T, C); wq/wk/wv: (H, C, hs); wp_t: (H*hs, C); bp: (1, C)."""
    B, T, C = x.shape
    H, _, hs = wq.shape

    scale = hs ** -0.5
    # (H, C, hs) -> (C, H*hs); fold softmax scale into Wq (free at runtime).
    wq_f = (wq * scale).transpose(1, 0, 2).reshape(C, H * hs)
    wk_f = wk.transpose(1, 0, 2).reshape(C, H * hs)
    wv_f = wv.transpose(1, 0, 2).reshape(C, H * hs)
    wqkv = jnp.concatenate([wq_f, wk_f, wv_f], axis=-1).astype(jnp.bfloat16)

    x_bf = x.astype(jnp.bfloat16)
    wp_bf = wp_t.astype(jnp.bfloat16)

    kernel = functools.partial(fused_mha_kernel,
                               num_heads=H, head_size=hs)

    return pl.pallas_call(
        kernel,
        out_shape=jax.ShapeDtypeStruct((B, T, C), jnp.float32),
        grid=(B,),
        in_specs=[
            pl.BlockSpec((None, T, C), lambda b: (b, 0, 0)),        # x (per batch)
            pl.BlockSpec((C, 3 * H * hs), lambda b: (0, 0)),        # packed Wqkv
            pl.BlockSpec((H * hs, C), lambda b: (0, 0)),            # Wp
            pl.BlockSpec((1, C), lambda b: (0, 0)),                 # bias
        ],
        out_specs=pl.BlockSpec((None, T, C), lambda b: (b, 0, 0)),  # lane-dense
        compiler_params=pltpu.CompilerParams(
            dimension_semantics=("parallel",)),
    )(x_bf, wqkv, wp_bf, bp)


# --------------------------------------------------------------------------
# Pure-JAX f32 reference (mirrors the PyTorch forward, dropout in eval mode)
# --------------------------------------------------------------------------
def reference(x, wq, wk, wv, wp_t, bp):
    B, T, C = x.shape
    H, _, hs = wq.shape
    tril = np.tril(np.ones((T, T), dtype=bool))
    outs = []
    for h in range(H):
        q = x @ wq[h]
        k = x @ wk[h]
        v = x @ wv[h]
        wei = (q @ jnp.swapaxes(k, -1, -2)) * (hs ** -0.5)
        wei = jnp.where(tril, wei, -jnp.inf)
        wei = jax.nn.softmax(wei, axis=-1)
        outs.append(wei @ v)
    cat = jnp.concatenate(outs, axis=-1)
    return cat @ wp_t + bp[0]


if __name__ == "__main__":
    key = jax.random.PRNGKey(0)
    kx, kq, kk, kv, kp, kb = jax.random.split(key, 6)

    x = jax.random.normal(kx, (BATCH, SEQ, N_EMBD), dtype=jnp.float32)

    # deterministic synthetic parameters (pre-transposed: (in, out) layout)
    s_in = 1.0 / np.sqrt(N_EMBD)
    wq = jax.random.uniform(kq, (NUM_HEADS, N_EMBD, HEAD_SIZE), jnp.float32,
                            -s_in, s_in)
    wk = jax.random.uniform(kk, (NUM_HEADS, N_EMBD, HEAD_SIZE), jnp.float32,
                            -s_in, s_in)
    wv = jax.random.uniform(kv, (NUM_HEADS, N_EMBD, HEAD_SIZE), jnp.float32,
                            -s_in, s_in)
    s_pr = 1.0 / np.sqrt(NUM_HEADS * HEAD_SIZE)
    wp_t = jax.random.uniform(kp, (NUM_HEADS * HEAD_SIZE, N_EMBD), jnp.float32,
                              -s_pr, s_pr)
    bp = jax.random.uniform(kb, (1, N_EMBD), jnp.float32, -s_pr, s_pr)

    out = multi_head_attention(x, wq, wk, wv, wp_t, bp)
    out = jax.block_until_ready(out)

    ref = reference(x, wq, wk, wv, wp_t, bp)
    # bf16 MXU operands (f32 accumulation) -> relaxed tolerance vs f32 ref.
    np.testing.assert_allclose(np.asarray(out), np.asarray(ref),
                               rtol=2e-2, atol=2e-2)
    print("KERNEL_OK")
</pallas_src>

<mosaic_0001>
module attributes {stable_mosaic.version = 11 : i64} {
  func.func @fused_mha_kernel(%arg0: i32, %arg1: memref<1x128x384xbf16, #tpu.memory_space<vmem>>, %arg2: memref<384x1152xbf16, #tpu.memory_space<vmem>>, %arg3: memref<384x384xbf16, #tpu.memory_space<vmem>>, %arg4: memref<1x384xf32, #tpu.memory_space<vmem>>, %arg5: memref<1x128x384xf32, #tpu.memory_space<vmem>>) attributes {dimension_semantics = [#tpu.dimension_semantics<parallel>], iteration_bounds = array<i64: 2>, scalar_prefetch = 0 : i64, scratch_operands = 0 : i64, tpu.core_type = #tpu.core_type<tc>, window_params = [{transform_indices = @transform_0, window_bounds = array<i64: 1, 128, 384>}, {pipeline_mode = #tpu.pipeline_mode<synchronous>, transform_indices = @transform_1, window_bounds = array<i64: 384, 1152>}, {pipeline_mode = #tpu.pipeline_mode<synchronous>, transform_indices = @transform_2, window_bounds = array<i64: 384, 384>}, {pipeline_mode = #tpu.pipeline_mode<synchronous>, transform_indices = @transform_3, window_bounds = array<i64: 1, 384>}, {transform_indices = @transform_4, window_bounds = array<i64: 1, 128, 384>}]} {
    %c0 = arith.constant 0 : index
    %c0_0 = arith.constant 0 : index
    %c0_1 = arith.constant 0 : index
    %0 = vector.load %arg1[%c0, %c0_0, %c0_1] : memref<1x128x384xbf16, #tpu.memory_space<vmem>>, vector<1x128x384xbf16>
    %1 = vector.shape_cast %0 : vector<1x128x384xbf16> to vector<128x384xbf16>
    %c0_2 = arith.constant 0 : index
    %c0_3 = arith.constant 0 : index
    %2 = vector.load %arg2[%c0_2, %c0_3] : memref<384x1152xbf16, #tpu.memory_space<vmem>>, vector<384x1152xbf16>
    %cst = arith.constant dense<0.000000e+00> : vector<128x1152xf32>
    %3 = tpu.matmul %1, %2, %cst {dimension_numbers = #tpu.dot_dimension_numbers<[1], [0], [0], [1], [0, 0, 1, 1], [], []>} : vector<128x384xbf16>, vector<384x1152xbf16>, vector<128x1152xf32> -> vector<128x1152xf32>
    %4 = tpu.iota {dimensions = array<i32: 0>} : vector<128x128xi32>
    %5 = tpu.iota {dimensions = array<i32: 1>} : vector<128x128xi32>
    %6 = arith.cmpi sge, %4, %5 : vector<128x128xi32>
    %cst_4 = arith.constant 0.000000e+00 : f32
    %7 = vector.broadcast %cst_4 : f32 to vector<128x384xf32>
    %8 = vector.extract_strided_slice %3 {offsets = [0, 0], sizes = [128, 64], strides = [1, 1]} : vector<128x1152xf32> to vector<128x64xf32>
    %9 = arith.truncf %8 : vector<128x64xf32> to vector<128x64xbf16>
    %10 = vector.extract_strided_slice %3 {offsets = [0, 384], sizes = [128, 64], strides = [1, 1]} : vector<128x1152xf32> to vector<128x64xf32>
    %11 = arith.truncf %10 : vector<128x64xf32> to vector<128x64xbf16>
    %12 = vector.extract_strided_slice %3 {offsets = [0, 768], sizes = [128, 64], strides = [1, 1]} : vector<128x1152xf32> to vector<128x64xf32>
    %13 = arith.truncf %12 : vector<128x64xf32> to vector<128x64xbf16>
    %cst_5 = arith.constant dense<0.000000e+00> : vector<128x128xf32>
    %14 = tpu.matmul %9, %11, %cst_5 {dimension_numbers = #tpu.dot_dimension_numbers<[1], [1], [0], [0], [0, 0, 1, 0], [], []>} : vector<128x64xbf16>, vector<128x64xbf16>, vector<128x128xf32> -> vector<128x128xf32>
    %cst_6 = arith.constant 0xFF800000 : f32
    %15 = vector.broadcast %cst_6 : f32 to vector<128x128xf32>
    %16 = arith.select %6, %14, %15 : vector<128x128xi1>, vector<128x128xf32>
    %cst_7 = arith.constant dense<0xFF800000> : vector<128xf32>
    %17 = vector.multi_reduction <maximumf>, %16, %cst_7 [1] : vector<128x128xf32> to vector<128xf32>
    %18 = vector.shape_cast %17 : vector<128xf32> to vector<128x1xf32>
    %19 = vector.broadcast %18 : vector<128x1xf32> to vector<128x128xf32>
    %20 = arith.subf %16, %19 : vector<128x128xf32>
    %21 = math.exp %20 : vector<128x128xf32>
    %cst_8 = arith.constant dense<0.000000e+00> : vector<128xf32>
    %22 = vector.multi_reduction <add>, %21, %cst_8 [1] : vector<128x128xf32> to vector<128xf32>
    %23 = vector.shape_cast %22 : vector<128xf32> to vector<128x1xf32>
    %24 = tpu.reciprocal %23 {approx = true} : vector<128x1xf32> -> vector<128x1xf32>
    %25 = vector.broadcast %24 : vector<128x1xf32> to vector<128x128xf32>
    %26 = arith.mulf %21, %25 : vector<128x128xf32>
    %27 = arith.truncf %26 : vector<128x128xf32> to vector<128x128xbf16>
    %cst_9 = arith.constant dense<0.000000e+00> : vector<128x64xf32>
    %28 = tpu.matmul %27, %13, %cst_9 {dimension_numbers = #tpu.dot_dimension_numbers<[1], [0], [0], [1], [0, 0, 1, 1], [], []>} : vector<128x128xbf16>, vector<128x64xbf16>, vector<128x64xf32> -> vector<128x64xf32>
    %c0_10 = arith.constant 0 : index
    %c0_11 = arith.constant 0 : index
    %29 = vector.load %arg3[%c0_10, %c0_11] : memref<384x384xbf16, #tpu.memory_space<vmem>>, vector<64x384xbf16>
    %30 = arith.truncf %28 : vector<128x64xf32> to vector<128x64xbf16>
    %cst_12 = arith.constant dense<0.000000e+00> : vector<128x384xf32>
    %31 = tpu.matmul %30, %29, %cst_12 {dimension_numbers = #tpu.dot_dimension_numbers<[1], [0], [0], [1], [0, 0, 1, 1], [], []>} : vector<128x64xbf16>, vector<64x384xbf16>, vector<128x384xf32> -> vector<128x384xf32>
    %32 = arith.addf %7, %31 : vector<128x384xf32>
    %33 = vector.extract_strided_slice %3 {offsets = [0, 64], sizes = [128, 64], strides = [1, 1]} : vector<128x1152xf32> to vector<128x64xf32>
    %34 = arith.truncf %33 : vector<128x64xf32> to vector<128x64xbf16>
    %35 = vector.extract_strided_slice %3 {offsets = [0, 448], sizes = [128, 64], strides = [1, 1]} : vector<128x1152xf32> to vector<128x64xf32>
    %36 = arith.truncf %35 : vector<128x64xf32> to vector<128x64xbf16>
    %37 = vector.extract_strided_slice %3 {offsets = [0, 832], sizes = [128, 64], strides = [1, 1]} : vector<128x1152xf32> to vector<128x64xf32>
    %38 = arith.truncf %37 : vector<128x64xf32> to vector<128x64xbf16>
    %cst_13 = arith.constant dense<0.000000e+00> : vector<128x128xf32>
    %39 = tpu.matmul %34, %36, %cst_13 {dimension_numbers = #tpu.dot_dimension_numbers<[1], [1], [0], [0], [0, 0, 1, 0], [], []>} : vector<128x64xbf16>, vector<128x64xbf16>, vector<128x128xf32> -> vector<128x128xf32>
    %cst_14 = arith.constant 0xFF800000 : f32
    %40 = vector.broadcast %cst_14 : f32 to vector<128x128xf32>
    %41 = arith.select %6, %39, %40 : vector<128x128xi1>, vector<128x128xf32>
    %cst_15 = arith.constant dense<0xFF800000> : vector<128xf32>
    %42 = vector.multi_reduction <maximumf>, %41, %cst_15 [1] : vector<128x128xf32> to vector<128xf32>
    %43 = vector.shape_cast %42 : vector<128xf32> to vector<128x1xf32>
    %44 = vector.broadcast %43 : vector<128x1xf32> to vector<128x128xf32>
    %45 = arith.subf %41, %44 : vector<128x128xf32>
    %46 = math.exp %45 : vector<128x128xf32>
    %cst_16 = arith.constant dense<0.000000e+00> : vector<128xf32>
    %47 = vector.multi_reduction <add>, %46, %cst_16 [1] : vector<128x128xf32> to vector<128xf32>
    %48 = vector.shape_cast %47 : vector<128xf32> to vector<128x1xf32>
    %49 = tpu.reciprocal %48 {approx = true} : vector<128x1xf32> -> vector<128x1xf32>
    %50 = vector.broadcast %49 : vector<128x1xf32> to vector<128x128xf32>
    %51 = arith.mulf %46, %50 : vector<128x128xf32>
    %52 = arith.truncf %51 : vector<128x128xf32> to vector<128x128xbf16>
    %cst_17 = arith.constant dense<0.000000e+00> : vector<128x64xf32>
    %53 = tpu.matmul %52, %38, %cst_17 {dimension_numbers = #tpu.dot_dimension_numbers<[1], [0], [0], [1], [0, 0, 1, 1], [], []>} : vector<128x128xbf16>, vector<128x64xbf16>, vector<128x64xf32> -> vector<128x64xf32>
    %c64 = arith.constant 64 : index
    %c0_18 = arith.constant 0 : index
    %54 = vector.load %arg3[%c64, %c0_18] : memref<384x384xbf16, #tpu.memory_space<vmem>>, vector<64x384xbf16>
    %55 = arith.truncf %53 : vector<128x64xf32> to vector<128x64xbf16>
    %cst_19 = arith.constant dense<0.000000e+00> : vector<128x384xf32>
    %56 = tpu.matmul %55, %54, %cst_19 {dimension_numbers = #tpu.dot_dimension_numbers<[1], [0], [0], [1], [0, 0, 1, 1], [], []>} : vector<128x64xbf16>, vector<64x384xbf16>, vector<128x384xf32> -> vector<128x384xf32>
    %57 = arith.addf %32, %56 : vector<128x384xf32>
    %58 = vector.extract_strided_slice %3 {offsets = [0, 128], sizes = [128, 64], strides = [1, 1]} : vector<128x1152xf32> to vector<128x64xf32>
    %59 = arith.truncf %58 : vector<128x64xf32> to vector<128x64xbf16>
    %60 = vector.extract_strided_slice %3 {offsets = [0, 512], sizes = [128, 64], strides = [1, 1]} : vector<128x1152xf32> to vector<128x64xf32>
    %61 = arith.truncf %60 : vector<128x64xf32> to vector<128x64xbf16>
    %62 = vector.extract_strided_slice %3 {offsets = [0, 896], sizes = [128, 64], strides = [1, 1]} : vector<128x1152xf32> to vector<128x64xf32>
    %63 = arith.truncf %62 : vector<128x64xf32> to vector<128x64xbf16>
    %cst_20 = arith.constant dense<0.000000e+00> : vector<128x128xf32>
    %64 = tpu.matmul %59, %61, %cst_20 {dimension_numbers = #tpu.dot_dimension_numbers<[1], [1], [0], [0], [0, 0, 1, 0], [], []>} : vector<128x64xbf16>, vector<128x64xbf16>, vector<128x128xf32> -> vector<128x128xf32>
    %cst_21 = arith.constant 0xFF800000 : f32
    %65 = vector.broadcast %cst_21 : f32 to vector<128x128xf32>
    %66 = arith.select %6, %64, %65 : vector<128x128xi1>, vector<128x128xf32>
    %cst_22 = arith.constant dense<0xFF800000> : vector<128xf32>
    %67 = vector.multi_reduction <maximumf>, %66, %cst_22 [1] : vector<128x128xf32> to vector<128xf32>
    %68 = vector.shape_cast %67 : vector<128xf32> to vector<128x1xf32>
    %69 = vector.broadcast %68 : vector<128x1xf32> to vector<128x128xf32>
    %70 = arith.subf %66, %69 : vector<128x128xf32>
    %71 = math.exp %70 : vector<128x128xf32>
    %cst_23 = arith.constant dense<0.000000e+00> : vector<128xf32>
    %72 = vector.multi_reduction <add>, %71, %cst_23 [1] : vector<128x128xf32> to vector<128xf32>
    %73 = vector.shape_cast %72 : vector<128xf32> to vector<128x1xf32>
    %74 = tpu.reciprocal %73 {approx = true} : vector<128x1xf32> -> vector<128x1xf32>
    %75 = vector.broadcast %74 : vector<128x1xf32> to vector<128x128xf32>
    %76 = arith.mulf %71, %75 : vector<128x128xf32>
    %77 = arith.truncf %76 : vector<128x128xf32> to vector<128x128xbf16>
    %cst_24 = arith.constant dense<0.000000e+00> : vector<128x64xf32>
    %78 = tpu.matmul %77, %63, %cst_24 {dimension_numbers = #tpu.dot_dimension_numbers<[1], [0], [0], [1], [0, 0, 1, 1], [], []>} : vector<128x128xbf16>, vector<128x64xbf16>, vector<128x64xf32> -> vector<128x64xf32>
    %c128 = arith.constant 128 : index
    %c0_25 = arith.constant 0 : index
    %79 = vector.load %arg3[%c128, %c0_25] : memref<384x384xbf16, #tpu.memory_space<vmem>>, vector<64x384xbf16>
    %80 = arith.truncf %78 : vector<128x64xf32> to vector<128x64xbf16>
    %cst_26 = arith.constant dense<0.000000e+00> : vector<128x384xf32>
    %81 = tpu.matmul %80, %79, %cst_26 {dimension_numbers = #tpu.dot_dimension_numbers<[1], [0], [0], [1], [0, 0, 1, 1], [], []>} : vector<128x64xbf16>, vector<64x384xbf16>, vector<128x384xf32> -> vector<128x384xf32>
    %82 = arith.addf %57, %81 : vector<128x384xf32>
    %83 = vector.extract_strided_slice %3 {offsets = [0, 192], sizes = [128, 64], strides = [1, 1]} : vector<128x1152xf32> to vector<128x64xf32>
    %84 = arith.truncf %83 : vector<128x64xf32> to vector<128x64xbf16>
    %85 = vector.extract_strided_slice %3 {offsets = [0, 576], sizes = [128, 64], strides = [1, 1]} : vector<128x1152xf32> to vector<128x64xf32>
    %86 = arith.truncf %85 : vector<128x64xf32> to vector<128x64xbf16>
    %87 = vector.extract_strided_slice %3 {offsets = [0, 960], sizes = [128, 64], strides = [1, 1]} : vector<128x1152xf32> to vector<128x64xf32>
    %88 = arith.truncf %87 : vector<128x64xf32> to vector<128x64xbf16>
    %cst_27 = arith.constant dense<0.000000e+00> : vector<128x128xf32>
    %89 = tpu.matmul %84, %86, %cst_27 {dimension_numbers = #tpu.dot_dimension_numbers<[1], [1], [0], [0], [0, 0, 1, 0], [], []>} : vector<128x64xbf16>, vector<128x64xbf16>, vector<128x128xf32> -> vector<128x128xf32>
    %cst_28 = arith.constant 0xFF800000 : f32
    %90 = vector.broadcast %cst_28 : f32 to vector<128x128xf32>
    %91 = arith.select %6, %89, %90 : vector<128x128xi1>, vector<128x128xf32>
    %cst_29 = arith.constant dense<0xFF800000> : vector<128xf32>
    %92 = vector.multi_reduction <maximumf>, %91, %cst_29 [1] : vector<128x128xf32> to vector<128xf32>
    %93 = vector.shape_cast %92 : vector<128xf32> to vector<128x1xf32>
    %94 = vector.broadcast %93 : vector<128x1xf32> to vector<128x128xf32>
    %95 = arith.subf %91, %94 : vector<128x128xf32>
    %96 = math.exp %95 : vector<128x128xf32>
    %cst_30 = arith.constant dense<0.000000e+00> : vector<128xf32>
    %97 = vector.multi_reduction <add>, %96, %cst_30 [1] : vector<128x128xf32> to vector<128xf32>
    %98 = vector.shape_cast %97 : vector<128xf32> to vector<128x1xf32>
    %99 = tpu.reciprocal %98 {approx = true} : vector<128x1xf32> -> vector<128x1xf32>
    %100 = vector.broadcast %99 : vector<128x1xf32> to vector<128x128xf32>
    %101 = arith.mulf %96, %100 : vector<128x128xf32>
    %102 = arith.truncf %101 : vector<128x128xf32> to vector<128x128xbf16>
    %cst_31 = arith.constant dense<0.000000e+00> : vector<128x64xf32>
    %103 = tpu.matmul %102, %88, %cst_31 {dimension_numbers = #tpu.dot_dimension_numbers<[1], [0], [0], [1], [0, 0, 1, 1], [], []>} : vector<128x128xbf16>, vector<128x64xbf16>, vector<128x64xf32> -> vector<128x64xf32>
    %c192 = arith.constant 192 : index
    %c0_32 = arith.constant 0 : index
    %104 = vector.load %arg3[%c192, %c0_32] : memref<384x384xbf16, #tpu.memory_space<vmem>>, vector<64x384xbf16>
    %105 = arith.truncf %103 : vector<128x64xf32> to vector<128x64xbf16>
    %cst_33 = arith.constant dense<0.000000e+00> : vector<128x384xf32>
    %106 = tpu.matmul %105, %104, %cst_33 {dimension_numbers = #tpu.dot_dimension_numbers<[1], [0], [0], [1], [0, 0, 1, 1], [], []>} : vector<128x64xbf16>, vector<64x384xbf16>, vector<128x384xf32> -> vector<128x384xf32>
    %107 = arith.addf %82, %106 : vector<128x384xf32>
    %108 = vector.extract_strided_slice %3 {offsets = [0, 256], sizes = [128, 64], strides = [1, 1]} : vector<128x1152xf32> to vector<128x64xf32>
    %109 = arith.truncf %108 : vector<128x64xf32> to vector<128x64xbf16>
    %110 = vector.extract_strided_slice %3 {offsets = [0, 640], sizes = [128, 64], strides = [1, 1]} : vector<128x1152xf32> to vector<128x64xf32>
    %111 = arith.truncf %110 : vector<128x64xf32> to vector<128x64xbf16>
    %112 = vector.extract_strided_slice %3 {offsets = [0, 1024], sizes = [128, 64], strides = [1, 1]} : vector<128x1152xf32> to vector<128x64xf32>
    %113 = arith.truncf %112 : vector<128x64xf32> to vector<128x64xbf16>
    %cst_34 = arith.constant dense<0.000000e+00> : vector<128x128xf32>
    %114 = tpu.matmul %109, %111, %cst_34 {dimension_numbers = #tpu.dot_dimension_numbers<[1], [1], [0], [0], [0, 0, 1, 0], [], []>} : vector<128x64xbf16>, vector<128x64xbf16>, vector<128x128xf32> -> vector<128x128xf32>
    %cst_35 = arith.constant 0xFF800000 : f32
    %115 = vector.broadcast %cst_35 : f32 to vector<128x128xf32>
    %116 = arith.select %6, %114, %115 : vector<128x128xi1>, vector<128x128xf32>
    %cst_36 = arith.constant dense<0xFF800000> : vector<128xf32>
    %117 = vector.multi_reduction <maximumf>, %116, %cst_36 [1] : vector<128x128xf32> to vector<128xf32>
    %118 = vector.shape_cast %117 : vector<128xf32> to vector<128x1xf32>
    %119 = vector.broadcast %118 : vector<128x1xf32> to vector<128x128xf32>
    %120 = arith.subf %116, %119 : vector<128x128xf32>
    %121 = math.exp %120 : vector<128x128xf32>
    %cst_37 = arith.constant dense<0.000000e+00> : vector<128xf32>
    %122 = vector.multi_reduction <add>, %121, %cst_37 [1] : vector<128x128xf32> to vector<128xf32>
    %123 = vector.shape_cast %122 : vector<128xf32> to vector<128x1xf32>
    %124 = tpu.reciprocal %123 {approx = true} : vector<128x1xf32> -> vector<128x1xf32>
    %125 = vector.broadcast %124 : vector<128x1xf32> to vector<128x128xf32>
    %126 = arith.mulf %121, %125 : vector<128x128xf32>
    %127 = arith.truncf %126 : vector<128x128xf32> to vector<128x128xbf16>
    %cst_38 = arith.constant dense<0.000000e+00> : vector<128x64xf32>
    %128 = tpu.matmul %127, %113, %cst_38 {dimension_numbers = #tpu.dot_dimension_numbers<[1], [0], [0], [1], [0, 0, 1, 1], [], []>} : vector<128x128xbf16>, vector<128x64xbf16>, vector<128x64xf32> -> vector<128x64xf32>
    %c256 = arith.constant 256 : index
    %c0_39 = arith.constant 0 : index
    %129 = vector.load %arg3[%c256, %c0_39] : memref<384x384xbf16, #tpu.memory_space<vmem>>, vector<64x384xbf16>
    %130 = arith.truncf %128 : vector<128x64xf32> to vector<128x64xbf16>
    %cst_40 = arith.constant dense<0.000000e+00> : vector<128x384xf32>
    %131 = tpu.matmul %130, %129, %cst_40 {dimension_numbers = #tpu.dot_dimension_numbers<[1], [0], [0], [1], [0, 0, 1, 1], [], []>} : vector<128x64xbf16>, vector<64x384xbf16>, vector<128x384xf32> -> vector<128x384xf32>
    %132 = arith.addf %107, %131 : vector<128x384xf32>
    %133 = vector.extract_strided_slice %3 {offsets = [0, 320], sizes = [128, 64], strides = [1, 1]} : vector<128x1152xf32> to vector<128x64xf32>
    %134 = arith.truncf %133 : vector<128x64xf32> to vector<128x64xbf16>
    %135 = vector.extract_strided_slice %3 {offsets = [0, 704], sizes = [128, 64], strides = [1, 1]} : vector<128x1152xf32> to vector<128x64xf32>
    %136 = arith.truncf %135 : vector<128x64xf32> to vector<128x64xbf16>
    %137 = vector.extract_strided_slice %3 {offsets = [0, 1088], sizes = [128, 64], strides = [1, 1]} : vector<128x1152xf32> to vector<128x64xf32>
    %138 = arith.truncf %137 : vector<128x64xf32> to vector<128x64xbf16>
    %cst_41 = arith.constant dense<0.000000e+00> : vector<128x128xf32>
    %139 = tpu.matmul %134, %136, %cst_41 {dimension_numbers = #tpu.dot_dimension_numbers<[1], [1], [0], [0], [0, 0, 1, 0], [], []>} : vector<128x64xbf16>, vector<128x64xbf16>, vector<128x128xf32> -> vector<128x128xf32>
    %cst_42 = arith.constant 0xFF800000 : f32
    %140 = vector.broadcast %cst_42 : f32 to vector<128x128xf32>
    %141 = arith.select %6, %139, %140 : vector<128x128xi1>, vector<128x128xf32>
    %cst_43 = arith.constant dense<0xFF800000> : vector<128xf32>
    %142 = vector.multi_reduction <maximumf>, %141, %cst_43 [1] : vector<128x128xf32> to vector<128xf32>
    %143 = vector.shape_cast %142 : vector<128xf32> to vector<128x1xf32>
    %144 = vector.broadcast %143 : vector<128x1xf32> to vector<128x128xf32>
    %145 = arith.subf %141, %144 : vector<128x128xf32>
    %146 = math.exp %145 : vector<128x128xf32>
    %cst_44 = arith.constant dense<0.000000e+00> : vector<128xf32>
    %147 = vector.multi_reduction <add>, %146, %cst_44 [1] : vector<128x128xf32> to vector<128xf32>
    %148 = vector.shape_cast %147 : vector<128xf32> to vector<128x1xf32>
    %149 = tpu.reciprocal %148 {approx = true} : vector<128x1xf32> -> vector<128x1xf32>
    %150 = vector.broadcast %149 : vector<128x1xf32> to vector<128x128xf32>
    %151 = arith.mulf %146, %150 : vector<128x128xf32>
    %152 = arith.truncf %151 : vector<128x128xf32> to vector<128x128xbf16>
    %cst_45 = arith.constant dense<0.000000e+00> : vector<128x64xf32>
    %153 = tpu.matmul %152, %138, %cst_45 {dimension_numbers = #tpu.dot_dimension_numbers<[1], [0], [0], [1], [0, 0, 1, 1], [], []>} : vector<128x128xbf16>, vector<128x64xbf16>, vector<128x64xf32> -> vector<128x64xf32>
    %c320 = arith.constant 320 : index
    %c0_46 = arith.constant 0 : index
    %154 = vector.load %arg3[%c320, %c0_46] : memref<384x384xbf16, #tpu.memory_space<vmem>>, vector<64x384xbf16>
    %155 = arith.truncf %153 : vector<128x64xf32> to vector<128x64xbf16>
    %cst_47 = arith.constant dense<0.000000e+00> : vector<128x384xf32>
    %156 = tpu.matmul %155, %154, %cst_47 {dimension_numbers = #tpu.dot_dimension_numbers<[1], [0], [0], [1], [0, 0, 1, 1], [], []>} : vector<128x64xbf16>, vector<64x384xbf16>, vector<128x384xf32> -> vector<128x384xf32>
    %157 = arith.addf %132, %156 : vector<128x384xf32>
    %c0_48 = arith.constant 0 : index
    %c0_49 = arith.constant 0 : index
    %158 = vector.load %arg4[%c0_48, %c0_49] : memref<1x384xf32, #tpu.memory_space<vmem>>, vector<1x384xf32>
    %159 = vector.broadcast %158 : vector<1x384xf32> to vector<128x384xf32>
    %160 = arith.addf %157, %159 : vector<128x384xf32>
    %c0_50 = arith.constant 0 : index
    %c0_51 = arith.constant 0 : index
    %c0_52 = arith.constant 0 : index
    %161 = vector.load %arg5[%c0_50, %c0_51, %c0_52] : memref<1x128x384xf32, #tpu.memory_space<vmem>>, vector<1x128x384xf32>
    %162 = vector.shape_cast %161 : vector<1x128x384xf32> to vector<128x384xf32>
    %163 = vector.shape_cast %160 : vector<128x384xf32> to vector<1x128x384xf32>
    tpu.vector_store %arg5[%c0_50, %c0_51, %c0_52], %163 {strides = array<i32>} : memref<1x128x384xf32, #tpu.memory_space<vmem>>, vector<1x128x384xf32>,
    return
  }
  func.func @transform_0(%arg0: i32) -> (i32, i32, i32) {
    %c0_i32 = arith.constant 0 : i32
    %c0_i32_0 = arith.constant 0 : i32
    %c0_i32_1 = arith.constant 0 : i32
    return %arg0, %c0_i32, %c0_i32_0 : i32, i32, i32
  }
  func.func @transform_1(%arg0: i32) -> (i32, i32) {
    %c0_i32 = arith.constant 0 : i32
    %c0_i32_0 = arith.constant 0 : i32
    %c0_i32_1 = arith.constant 0 : i32
    return %c0_i32, %c0_i32_0 : i32, i32
  }
  func.func @transform_2(%arg0: i32) -> (i32, i32) {
    %c0_i32 = arith.constant 0 : i32
    %c0_i32_0 = arith.constant 0 : i32
    %c0_i32_1 = arith.constant 0 : i32
    return %c0_i32, %c0_i32_0 : i32, i32
  }
  func.func @transform_3(%arg0: i32) -> (i32, i32) {
    %c0_i32 = arith.constant 0 : i32
    %c0_i32_0 = arith.constant 0 : i32
    %c0_i32_1 = arith.constant 0 : i32
    return %c0_i32, %c0_i32_0 : i32, i32
  }
  func.func @transform_4(%arg0: i32) -> (i32, i32, i32) {
    %c0_i32 = arith.constant 0 : i32
    %c0_i32_0 = arith.constant 0 : i32
    %c0_i32_1 = arith.constant 0 : i32
    return %arg0, %c0_i32, %c0_i32_0 : i32, i32, i32
  }
}

</mosaic_0001>

<llo_original>
// kernel: multi_head_attention.1
$region0: #{multi_head_attention.1}
  #allocation0 [shape = 'u32[]', space=smem, size = 0x4, offset = 0x4, fixed_abs, tag = 'smem constant byte address 0x4 - core index']
  #allocation1 [shape = 'u32[72,128]{1,0:T(1,128)}', space=vmem, size = 0x9000, scoped, tag = 'internal scratch']
  %s0 = inlined_call_operand.vmem [shape: bf16[2,128,384], index: 0, kind: input, shape index: {}]
  %s1 = inlined_call_operand.vmem [shape: bf16[384,1152], index: 1, kind: input, shape index: {}]
  %s2 = inlined_call_operand.vmem [shape: bf16[384,384], index: 2, kind: input, shape index: {}]
  %s3 = inlined_call_operand.vmem [shape: f32[1,384], index: 3, kind: input, shape index: {}]
  %s4 = inlined_call_operand.hbm [shape: f32[2,128,384], index: 4, kind: output, shape index: {}]
  %s5 = sld [smem:[#allocation0]]
  $region49: #{multi_head_attention.1} parent=0
    _
  %s7 = ssub.s32 1, %s5
  %s8 = scalar_select 0, %s7, %s5
  $region1: #{multi_head_attention.1} parent=0
    #allocation2 [shape = 'u8[393216]{0}', space=vmem, size = 0x60000, scoped, tag = 'output window, operand 0']
    #allocation3 [shape = 's32[2]{0}', space=sflag, size = 0x8, scoped, tag = 'scoped memory for multi_head_attention.1']
    %9 = vsyncpa [#allocation3], 0
    %s10 = scalar_lea.sflag [#allocation3], 1
    %11 = vsyncpa %s10, 0
    loop: start=0, step=1, limit=4
    $region2: #{multi_head_attention.1} parent=1 // loop_pre_header
      _
    $region3: #{multi_head_attention.1} parent=1 // loop_header
      %s13 = sphi 0, %s17
      %p14 = scmp.ge.s32.totalorder %s13, 4
      %s23 = sphi 0, %s25
      %s26 = sphi 0, %s23
      %s27 = sphi 0, %s26
      %s43 = sphi 0, %s27
      %s47 = sphi 0, %s47
      %s49 = sphi 0, %s47
      %s50 = sphi 0, %s49
      %s64 = sphi 0, %s50
      %s68 = sphi 0, %s68
      %s70 = sphi 0, %s68
      %s71 = sphi 0, %s70
      %s85 = sphi 0, %s71
      %s89 = sphi 0, %s89
      %s91 = sphi 0, %s89
      %s92 = sphi 0, %s91
      %s106 = sphi 0, %s92
      %s112 = sphi 0, %s114
      %s115 = sphi 0, %s112
      %s116 = sphi 0, %s115
      %s132 = sphi 0, %s116
    $region4: #{multi_head_attention.1} parent=1 // loop_header_branch
      %16 = sbr.rel (%p14) target = $region8
    $region5: #{multi_head_attention.1} parent=1 // loop_body
      %s18 = ssub.s32 %s13, 1
      %s19 = ssub.s32 %s13, 2
      %s20 = sadd.s32 %s13, 1
      %s21 = ssub.s32 %s13, %s20
      %p22 = scmp.eq.s32.totalorder %s21, 0
      %s24 = sadd.s32 %s23, 1
      %s25 = scalar_select %p22, %s23, %s24
      %p28 = pneg %p22
      %p29 = scmp.eq.s32.totalorder %s13, 1
      %p30 = por %p28, %p29
      %p31 = scmp.ne.s32.totalorder %s23, %s26
      %p32 = scmp.eq.s32.totalorder %s13, 0
      %p33 = por %p31, %p32
      %p34 = scmp.ne.s32.totalorder %s23, %s26
      %p35 = scmp.eq.s32.totalorder %s18, 1
      %p36 = por %p34, %p35
      %p37 = scmp.ne.s32.totalorder %s26, %s27
      %p38 = scmp.eq.s32.totalorder %s18, 0
      %p39 = por %p37, %p38
      %p40 = scmp.ne.s32.totalorder %s26, %s27
      %p41 = scmp.eq.s32.totalorder %s19, 1
      %p42 = por %p40, %p41
      %p44 = scmp.ne.s32.totalorder %s27, %s43
      %p45 = scmp.eq.s32.totalorder %s19, 0
      %p46 = por %p44, %p45
      %s48 = sadd.s32 %s47, 1
      %p51 = scmp.eq.s32.totalorder %s13, 1
      %p52 = scmp.ne.s32.totalorder %s47, %s49
      %p53 = scmp.eq.s32.totalorder %s13, 0
      %p54 = por %p52, %p53
      %p55 = scmp.ne.s32.totalorder %s47, %s49
      %p56 = scmp.eq.s32.totalorder %s18, 1
      %p57 = por %p55, %p56
      %p58 = scmp.ne.s32.totalorder %s49, %s50
      %p59 = scmp.eq.s32.totalorder %s18, 0
      %p60 = por %p58, %p59
      %p61 = scmp.ne.s32.totalorder %s49, %s50
      %p62 = scmp.eq.s32.totalorder %s19, 1
      %p63 = por %p61, %p62
      %p65 = scmp.ne.s32.totalorder %s50, %s64
      %p66 = scmp.eq.s32.totalorder %s19, 0
      %p67 = por %p65, %p66
      %s69 = sadd.s32 %s68, 1
      %p72 = scmp.eq.s32.totalorder %s13, 1
      %p73 = scmp.ne.s32.totalorder %s68, %s70
      %p74 = scmp.eq.s32.totalorder %s13, 0
      %p75 = por %p73, %p74
      %p76 = scmp.ne.s32.totalorder %s68, %s70
      %p77 = scmp.eq.s32.totalorder %s18, 1
      %p78 = por %p76, %p77
      %p79 = scmp.ne.s32.totalorder %s70, %s71
      %p80 = scmp.eq.s32.totalorder %s18, 0
      %p81 = por %p79, %p80
      %p82 = scmp.ne.s32.totalorder %s70, %s71
      %p83 = scmp.eq.s32.totalorder %s19, 1
      %p84 = por %p82, %p83
      %p86 = scmp.ne.s32.totalorder %s71, %s85
      %p87 = scmp.eq.s32.totalorder %s19, 0
      %p88 = por %p86, %p87
      %s90 = sadd.s32 %s89, 1
      %p93 = scmp.eq.s32.totalorder %s13, 1
      %p94 = scmp.ne.s32.totalorder %s89, %s91
      %p95 = scmp.eq.s32.totalorder %s13, 0
      %p96 = por %p94, %p95
      %p97 = scmp.ne.s32.totalorder %s89, %s91
      %p98 = scmp.eq.s32.totalorder %s18, 1
      %p99 = por %p97, %p98
      %p100 = scmp.ne.s32.totalorder %s91, %s92
      %p101 = scmp.eq.s32.totalorder %s18, 0
      %p102 = por %p100, %p101
      %p103 = scmp.ne.s32.totalorder %s91, %s92
      %p104 = scmp.eq.s32.totalorder %s19, 1
      %p105 = por %p103, %p104
      %p107 = scmp.ne.s32.totalorder %s92, %s106
      %p108 = scmp.eq.s32.totalorder %s19, 0
      %p109 = por %p107, %p108
      %s110 = ssub.s32 %s13, %s20
      %p111 = scmp.eq.s32.totalorder %s110, 0
      %s113 = sadd.s32 %s112, 1
      %s114 = scalar_select %p111, %s112, %s113
      %p117 = pneg %p111
      %p118 = scmp.eq.s32.totalorder %s13, 1
      %p119 = por %p117, %p118
      %p120 = scmp.ne.s32.totalorder %s112, %s115
      %p121 = scmp.eq.s32.totalorder %s13, 0
      %p122 = por %p120, %p121
      %p123 = scmp.ne.s32.totalorder %s112, %s115
      %p124 = scmp.eq.s32.totalorder %s18, 1
      %p125 = por %p123, %p124
      %p126 = scmp.ne.s32.totalorder %s115, %s116
      %p127 = scmp.eq.s32.totalorder %s18, 0
      %p128 = por %p126, %p127
      %p129 = scmp.ne.s32.totalorder %s115, %s116
      %p130 = scmp.eq.s32.totalorder %s19, 1
      %p131 = por %p129, %p130
      %p133 = scmp.ne.s32.totalorder %s116, %s132
      %p134 = scmp.eq.s32.totalorder %s19, 0
      %p135 = por %p133, %p134
      %p136 = scmp.le.s32.totalorder 1, %s13
      %p137 = scmp.lt.s32.totalorder %s13, 3
      %p138 = pnand %p136, %p137
      %p139 = pneg %p138
      // Predicated region
      $region9: #{multi_head_attention.1} parent=5 // pred_check
        _
      $region10: #{multi_head_attention.1} parent=5 // pred_check_branch
        %141 = sbr.rel (%p138) target = $region12
      $region11: #{multi_head_attention.1} parent=5 // pred_region
        %s142 = ssub.s32 %s13, 1
        // Predicated region
        $region13: #{multi_head_attention.1} parent=11 // pred_check
          %p143 = pneg %p60
        $region14: #{multi_head_attention.1} parent=11 // pred_check_branch
          %145 = sbr.rel (%p143) target = $region16
        $region15: #{multi_head_attention.1} parent=11 // pred_region
          _
        $region16: #{multi_head_attention.1} parent=11 // pred_fallthru
          _
        // Predicated region
        $region17: #{multi_head_attention.1} parent=11 // pred_check
          %p146 = pneg %p81
        $region18: #{multi_head_attention.1} parent=11 // pred_check_branch
          %148 = sbr.rel (%p146) target = $region20
        $region19: #{multi_head_attention.1} parent=11 // pred_region
          _
        $region20: #{multi_head_attention.1} parent=11 // pred_fallthru
          _
        // Predicated region
        $region21: #{multi_head_attention.1} parent=11 // pred_check
          %p149 = pneg %p102
        $region22: #{multi_head_attention.1} parent=11 // pred_check_branch
          %151 = sbr.rel (%p149) target = $region24
        $region23: #{multi_head_attention.1} parent=11 // pred_region
          _
        $region24: #{multi_head_attention.1} parent=11 // pred_fallthru
          _
      $region12: #{multi_head_attention.1} parent=5 // pred_fallthru
        _
      %p152 = scmp.lt.s32.totalorder %s13, 2
      // Predicated region
      $region25: #{multi_head_attention.1} parent=5 // pred_check
        %p153 = pneg %p152
      $region26: #{multi_head_attention.1} parent=5 // pred_check_branch
        %155 = sbr.rel (%p153) target = $region28
      $region27: #{multi_head_attention.1} parent=5 // pred_region
        // Predicated region
        $region29: #{multi_head_attention.1} parent=27 // pred_check
          %p156 = pneg %p33
        $region30: #{multi_head_attention.1} parent=27 // pred_check_branch
          %158 = sbr.rel (%p156) target = $region32
        $region31: #{multi_head_attention.1} parent=27 // pred_region
          %p159 = scmp.lt.s32.totalorder %s13, 1
          %s160 = scalar_select %p159, %s13, 1
          %s161 = smul.addr %s160, 48
          %s162 = smul.addr %s161, 4
          %s163 = scalar_lea.vmem %s0, %s162
        $region32: #{multi_head_attention.1} parent=27 // pred_fallthru
          _
      $region28: #{multi_head_attention.1} parent=5 // pred_fallthru
        _
      %p164 = scmp.le.s32.totalorder 1, %s13
      %p165 = scmp.lt.s32.totalorder %s13, 3
      %p166 = pnand %p164, %p165
      %p167 = pneg %p166
      // Predicated region
      $region33: #{multi_head_attention.1} parent=5 // pred_check
        _
      $region34: #{multi_head_attention.1} parent=5 // pred_check_branch
        %169 = sbr.rel (%p166) target = $region36
      $region35: #{multi_head_attention.1} parent=5 // pred_region
        %s170 = ssub.s32 %s13, 1
        %p171 = scmp.lt.s32.totalorder %s18, 1
        %s172 = scalar_select %p171, %s18, 1
        %s173 = smul.addr %s172, 48
        %s174 = smul.addr %s173, 4
        %s175 = scalar_lea.vmem %s0, %s174
        %p176 = pneg %p39
        %p177 = pneg %p36
        %p178 = pneg %p60
        %p179 = pneg %p57
        %p180 = pneg %p81
        %p181 = pneg %p78
        %p182 = pneg %p102
        %p183 = pneg %p99
        %p184 = pneg %p128
        %p185 = pneg %p125
        %s186 = sand.u32 %s115, 1
        %s187 = scalar_lea.sflag [#allocation3], %s186
        %s188 = sand.u32 %s115, 1
        %s189 = smul.addr %s188, 384
        %s190 = scalar_lea.vmem [#allocation2], %s189
        %p191 = scmp.lt.s32.totalorder %s18, 1
        %s192 = scalar_select %p191, %s18, 1
        %s193 = smul.addr %s192, 48
        %s194 = smul.addr %s193, 4
        %s195 = scalar_lea.vmem %s0, %s194
        %v197 = vld [vmem:[%s195] sm:$0xff]
        %v198 = vld [vmem:[%s195 + $0x8] sm:$0xf]
        %v199 = vld [vmem:[%s195 + $0xc] sm:$0xff]
        %v200 = vld [vmem:[%s195 + $0x14] sm:$0xf]
        %v201 = vld [vmem:[%s195 + $0x18] sm:$0xff]
        %v202 = vld [vmem:[%s195 + $0x20] sm:$0xf]
        %v203 = vld [vmem:[%s195 + $0x24] sm:$0xff]
        %v204 = vld [vmem:[%s195 + $0x2c] sm:$0xf]
        %v205 = vld [vmem:[%s195 + $0x30] sm:$0xff]
        %v206 = vld [vmem:[%s195 + $0x38] sm:$0xf]
        %v207 = vld [vmem:[%s195 + $0x3c] sm:$0xff]
        %v208 = vld [vmem:[%s195 + $0x44] sm:$0xf]
        %v209 = vld [vmem:[%s195 + $0x48] sm:$0xff]
        %v210 = vld [vmem:[%s195 + $0x50] sm:$0xf]
        %v211 = vld [vmem:[%s195 + $0x54] sm:$0xff]
        %v212 = vld [vmem:[%s195 + $0x5c] sm:$0xf]
        %v213 = vld [vmem:[%s195 + $0x60] sm:$0xff]
        %v214 = vld [vmem:[%s195 + $0x68] sm:$0xf]
        %v215 = vld [vmem:[%s195 + $0x6c] sm:$0xff]
        %v216 = vld [vmem:[%s195 + $0x74] sm:$0xf]
        %v217 = vld [vmem:[%s195 + $0x78] sm:$0xff]
        %v218 = vld [vmem:[%s195 + $0x80] sm:$0xf]
        %v219 = vld [vmem:[%s195 + $0x84] sm:$0xff]
        %v220 = vld [vmem:[%s195 + $0x8c] sm:$0xf]
        %v221 = vld [vmem:[%s195 + $0x90] sm:$0xff]
        %v222 = vld [vmem:[%s195 + $0x98] sm:$0xf]
        %v223 = vld [vmem:[%s195 + $0x9c] sm:$0xff]
        %v224 = vld [vmem:[%s195 + $0xa4] sm:$0xf]
        %v225 = vld [vmem:[%s195 + $0xa8] sm:$0xff]
        %v226 = vld [vmem:[%s195 + $0xb0] sm:$0xf]
        %v227 = vld [vmem:[%s195 + $0xb4] sm:$0xff]
        %v228 = vld [vmem:[%s195 + $0xbc] sm:$0xf]
        %v229 = vld [vmem:[%s1] sm:$0xff]
        %v230 = vld [vmem:[%s1 + $0x8] sm:$0xff]
        %v231 = vld [vmem:[%s1 + $0x10] sm:$0xff]
        %v232 = vld [vmem:[%s1 + $0x18] sm:$0xff]
        %v233 = vld [vmem:[%s1 + $0x20] sm:$0xf]
        %v234 = vld [vmem:[%s1 + $0x24] sm:$0xff]
        %v235 = vld [vmem:[%s1 + $0x2c] sm:$0xff]
        %v236 = vld [vmem:[%s1 + $0x34] sm:$0xff]
        %v237 = vld [vmem:[%s1 + $0x3c] sm:$0xff]
        %v238 = vld [vmem:[%s1 + $0x44] sm:$0xf]
        %v239 = vld [vmem:[%s1 + $0x48] sm:$0xff]
        %v240 = vld [vmem:[%s1 + $0x50] sm:$0xff]
        %v241 = vld [vmem:[%s1 + $0x58] sm:$0xff]
        %v242 = vld [vmem:[%s1 + $0x60] sm:$0xff]
        %v243 = vld [vmem:[%s1 + $0x68] sm:$0xf]
        %v244 = vld [vmem:[%s1 + $0x6c] sm:$0xff]
        %v245 = vld [vmem:[%s1 + $0x74] sm:$0xff]
        %v246 = vld [vmem:[%s1 + $0x7c] sm:$0xff]
        %v247 = vld [vmem:[%s1 + $0x84] sm:$0xff]
        %v248 = vld [vmem:[%s1 + $0x8c] sm:$0xf]
        %v249 = vld [vmem:[%s1 + $0x90] sm:$0xff]
        %v250 = vld [vmem:[%s1 + $0x98] sm:$0xff]
        %v251 = vld [vmem:[%s1 + $0xa0] sm:$0xff]
        %v252 = vld [vmem:[%s1 + $0xa8] sm:$0xff]
        %v253 = vld [vmem:[%s1 + $0xb0] sm:$0xf]
        %v254 = vld [vmem:[%s1 + $0xb4] sm:$0xff]
        %v255 = vld [vmem:[%s1 + $0xbc] sm:$0xff]
        %v256 = vld [vmem:[%s1 + $0xc4] sm:$0xff]
        %v257 = vld [vmem:[%s1 + $0xcc] sm:$0xff]
        %v258 = vld [vmem:[%s1 + $0xd4] sm:$0xf]
        %v259 = vld [vmem:[%s1 + $0xd8] sm:$0xff]
        %v260 = vld [vmem:[%s1 + $0xe0] sm:$0xff]
        %v261 = vld [vmem:[%s1 + $0xe8] sm:$0xff]
        %v262 = vld [vmem:[%s1 + $0xf0] sm:$0xff]
        %v263 = vld [vmem:[%s1 + $0xf8] sm:$0xf]
        %v264 = vld [vmem:[%s1 + $0xfc] sm:$0xff]
        %v265 = vld [vmem:[%s1 + $0x104] sm:$0xff]
        %v266 = vld [vmem:[%s1 + $0x10c] sm:$0xff]
        %v267 = vld [vmem:[%s1 + $0x114] sm:$0xff]
        %v268 = vld [vmem:[%s1 + $0x11c] sm:$0xf]
        %v269 = vld [vmem:[%s1 + $0x120] sm:$0xff]
        %v270 = vld [vmem:[%s1 + $0x128] sm:$0xff]
        %v271 = vld [vmem:[%s1 + $0x130] sm:$0xff]
        %v272 = vld [vmem:[%s1 + $0x138] sm:$0xff]
        %v273 = vld [vmem:[%s1 + $0x140] sm:$0xf]
        %v274 = vld [vmem:[%s1 + $0x144] sm:$0xff]
        %v275 = vld [vmem:[%s1 + $0x14c] sm:$0xff]
        %v276 = vld [vmem:[%s1 + $0x154] sm:$0xff]
        %v277 = vld [vmem:[%s1 + $0x15c] sm:$0xff]
        %v278 = vld [vmem:[%s1 + $0x164] sm:$0xf]
        %v279 = vld [vmem:[%s1 + $0x168] sm:$0xff]
        %v280 = vld [vmem:[%s1 + $0x170] sm:$0xff]
        %v281 = vld [vmem:[%s1 + $0x178] sm:$0xff]
        %v282 = vld [vmem:[%s1 + $0x180] sm:$0xff]
        %v283 = vld [vmem:[%s1 + $0x188] sm:$0xf]
        %v284 = vld [vmem:[%s1 + $0x18c] sm:$0xff]
        %v285 = vld [vmem:[%s1 + $0x194] sm:$0xff]
        %v286 = vld [vmem:[%s1 + $0x19c] sm:$0xff]
        %v287 = vld [vmem:[%s1 + $0x1a4] sm:$0xff]
        %v288 = vld [vmem:[%s1 + $0x1ac] sm:$0xf]
        %v289 = vld [vmem:[%s1 + $0x1b0] sm:$0xff]
        %v290 = vld [vmem:[%s1 + $0x1b8] sm:$0xff]
        %v291 = vld [vmem:[%s1 + $0x1c0] sm:$0xff]
        %v292 = vld [vmem:[%s1 + $0x1c8] sm:$0xff]
        %v293 = vld [vmem:[%s1 + $0x1d0] sm:$0xf]
        %v294 = vld [vmem:[%s1 + $0x1d4] sm:$0xff]
        %v295 = vld [vmem:[%s1 + $0x1dc] sm:$0xff]
        %v296 = vld [vmem:[%s1 + $0x1e4] sm:$0xff]
        %v297 = vld [vmem:[%s1 + $0x1ec] sm:$0xff]
        %v298 = vld [vmem:[%s1 + $0x1f4] sm:$0xf]
        %v299 = vld [vmem:[%s1 + $0x1f8] sm:$0xff]
        %v300 = vld [vmem:[%s1 + $0x200] sm:$0xff]
        %v301 = vld [vmem:[%s1 + $0x208] sm:$0xff]
        %v302 = vld [vmem:[%s1 + $0x210] sm:$0xff]
        %v303 = vld [vmem:[%s1 + $0x218] sm:$0xf]
        %v304 = vld [vmem:[%s1 + $0x21c] sm:$0xff]
        %v305 = vld [vmem:[%s1 + $0x224] sm:$0xff]
        %v306 = vld [vmem:[%s1 + $0x22c] sm:$0xff]
        %v307 = vld [vmem:[%s1 + $0x234] sm:$0xff]
        %v308 = vld [vmem:[%s1 + $0x23c] sm:$0xf]
        %v309 = vld [vmem:[%s1 + $0x240] sm:$0xff]
        %v310 = vld [vmem:[%s1 + $0x248] sm:$0xff]
        %v311 = vld [vmem:[%s1 + $0x250] sm:$0xff]
        %v312 = vld [vmem:[%s1 + $0x258] sm:$0xff]
        %v313 = vld [vmem:[%s1 + $0x260] sm:$0xf]
        %v314 = vld [vmem:[%s1 + $0x264] sm:$0xff]
        %v315 = vld [vmem:[%s1 + $0x26c] sm:$0xff]
        %v316 = vld [vmem:[%s1 + $0x274] sm:$0xff]
        %v317 = vld [vmem:[%s1 + $0x27c] sm:$0xff]
        %v318 = vld [vmem:[%s1 + $0x284] sm:$0xf]
        %v319 = vld [vmem:[%s1 + $0x288] sm:$0xff]
        %v320 = vld [vmem:[%s1 + $0x290] sm:$0xff]
        %v321 = vld [vmem:[%s1 + $0x298] sm:$0xff]
        %v322 = vld [vmem:[%s1 + $0x2a0] sm:$0xff]
        %v323 = vld [vmem:[%s1 + $0x2a8] sm:$0xf]
        %v324 = vld [vmem:[%s1 + $0x2ac] sm:$0xff]
        %v325 = vld [vmem:[%s1 + $0x2b4] sm:$0xff]
        %v326 = vld [vmem:[%s1 + $0x2bc] sm:$0xff]
        %v327 = vld [vmem:[%s1 + $0x2c4] sm:$0xff]
        %v328 = vld [vmem:[%s1 + $0x2cc] sm:$0xf]
        %v329 = vld [vmem:[%s1 + $0x2d0] sm:$0xff]
        %v330 = vld [vmem:[%s1 + $0x2d8] sm:$0xff]
        %v331 = vld [vmem:[%s1 + $0x2e0] sm:$0xff]
        %v332 = vld [vmem:[%s1 + $0x2e8] sm:$0xff]
        %v333 = vld [vmem:[%s1 + $0x2f0] sm:$0xf]
        %v334 = vld [vmem:[%s1 + $0x2f4] sm:$0xff]
        %v335 = vld [vmem:[%s1 + $0x2fc] sm:$0xff]
        %v336 = vld [vmem:[%s1 + $0x304] sm:$0xff]
        %v337 = vld [vmem:[%s1 + $0x30c] sm:$0xff]
        %v338 = vld [vmem:[%s1 + $0x314] sm:$0xf]
        %v339 = vld [vmem:[%s1 + $0x318] sm:$0xff]
        %v340 = vld [vmem:[%s1 + $0x320] sm:$0xff]
        %v341 = vld [vmem:[%s1 + $0x328] sm:$0xff]
        %v342 = vld [vmem:[%s1 + $0x330] sm:$0xff]
        %v343 = vld [vmem:[%s1 + $0x338] sm:$0xf]
        %v344 = vld [vmem:[%s1 + $0x33c] sm:$0xff]
        %v345 = vld [vmem:[%s1 + $0x344] sm:$0xff]
        %v346 = vld [vmem:[%s1 + $0x34c] sm:$0xff]
        %v347 = vld [vmem:[%s1 + $0x354] sm:$0xff]
        %v348 = vld [vmem:[%s1 + $0x35c] sm:$0xf]
        %v349 = vld [vmem:[%s1 + $0x360] sm:$0xff]
        %v350 = vld [vmem:[%s1 + $0x368] sm:$0xff]
        %v351 = vld [vmem:[%s1 + $0x370] sm:$0xff]
        %v352 = vld [vmem:[%s1 + $0x378] sm:$0xff]
        %v353 = vld [vmem:[%s1 + $0x380] sm:$0xf]
        %v354 = vld [vmem:[%s1 + $0x384] sm:$0xff]
        %v355 = vld [vmem:[%s1 + $0x38c] sm:$0xff]
        %v356 = vld [vmem:[%s1 + $0x394] sm:$0xff]
        %v357 = vld [vmem:[%s1 + $0x39c] sm:$0xff]
        %v358 = vld [vmem:[%s1 + $0x3a4] sm:$0xf]
        %v359 = vld [vmem:[%s1 + $0x3a8] sm:$0xff]
        %v360 = vld [vmem:[%s1 + $0x3b0] sm:$0xff]
        %v361 = vld [vmem:[%s1 + $0x3b8] sm:$0xff]
        %v362 = vld [vmem:[%s1 + $0x3c0] sm:$0xff]
        %v363 = vld [vmem:[%s1 + $0x3c8] sm:$0xf]
        %v364 = vld [vmem:[%s1 + $0x3cc] sm:$0xff]
        %v365 = vld [vmem:[%s1 + $0x3d4] sm:$0xff]
        %v366 = vld [vmem:[%s1 + $0x3dc] sm:$0xff]
        %v367 = vld [vmem:[%s1 + $0x3e4] sm:$0xff]
        %v368 = vld [vmem:[%s1 + $0x3ec] sm:$0xf]
        %v369 = vld [vmem:[%s1 + $0x3f0] sm:$0xff]
        %v370 = vld [vmem:[%s1 + $0x3f8] sm:$0xff]
        %v371 = vld [vmem:[%s1 + $0x400] sm:$0xff]
        %v372 = vld [vmem:[%s1 + $0x408] sm:$0xff]
        %v373 = vld [vmem:[%s1 + $0x410] sm:$0xf]
        %v374 = vld [vmem:[%s1 + $0x414] sm:$0xff]
        %v375 = vld [vmem:[%s1 + $0x41c] sm:$0xff]
        %v376 = vld [vmem:[%s1 + $0x424] sm:$0xff]
        %v377 = vld [vmem:[%s1 + $0x42c] sm:$0xff]
        %v378 = vld [vmem:[%s1 + $0x434] sm:$0xf]
        %v379 = vld [vmem:[%s1 + $0x438] sm:$0xff]
        %v380 = vld [vmem:[%s1 + $0x440] sm:$0xff]
        %v381 = vld [vmem:[%s1 + $0x448] sm:$0xff]
        %v382 = vld [vmem:[%s1 + $0x450] sm:$0xff]
        %v383 = vld [vmem:[%s1 + $0x458] sm:$0xf]
        %v384 = vld [vmem:[%s1 + $0x45c] sm:$0xff]
        %v385 = vld [vmem:[%s1 + $0x464] sm:$0xff]
        %v386 = vld [vmem:[%s1 + $0x46c] sm:$0xff]
        %v387 = vld [vmem:[%s1 + $0x474] sm:$0xff]
        %v388 = vld [vmem:[%s1 + $0x47c] sm:$0xf]
        %v389 = vld [vmem:[%s1 + $0x480] sm:$0xff]
        %v390 = vld [vmem:[%s1 + $0x488] sm:$0xff]
        %v391 = vld [vmem:[%s1 + $0x490] sm:$0xff]
        %v392 = vld [vmem:[%s1 + $0x498] sm:$0xff]
        %v393 = vld [vmem:[%s1 + $0x4a0] sm:$0xf]
        %v394 = vld [vmem:[%s1 + $0x4a4] sm:$0xff]
        %v395 = vld [vmem:[%s1 + $0x4ac] sm:$0xff]
        %v396 = vld [vmem:[%s1 + $0x4b4] sm:$0xff]
        %v397 = vld [vmem:[%s1 + $0x4bc] sm:$0xff]
        %v398 = vld [vmem:[%s1 + $0x4c4] sm:$0xf]
        %v399 = vld [vmem:[%s1 + $0x4c8] sm:$0xff]
        %v400 = vld [vmem:[%s1 + $0x4d0] sm:$0xff]
        %v401 = vld [vmem:[%s1 + $0x4d8] sm:$0xff]
        %v402 = vld [vmem:[%s1 + $0x4e0] sm:$0xff]
        %v403 = vld [vmem:[%s1 + $0x4e8] sm:$0xf]
        %v404 = vld [vmem:[%s1 + $0x4ec] sm:$0xff]
        %v405 = vld [vmem:[%s1 + $0x4f4] sm:$0xff]
        %v406 = vld [vmem:[%s1 + $0x4fc] sm:$0xff]
        %v407 = vld [vmem:[%s1 + $0x504] sm:$0xff]
        %v408 = vld [vmem:[%s1 + $0x50c] sm:$0xf]
        %v409 = vld [vmem:[%s1 + $0x510] sm:$0xff]
        %v410 = vld [vmem:[%s1 + $0x518] sm:$0xff]
        %v411 = vld [vmem:[%s1 + $0x520] sm:$0xff]
        %v412 = vld [vmem:[%s1 + $0x528] sm:$0xff]
        %v413 = vld [vmem:[%s1 + $0x530] sm:$0xf]
        %v414 = vld [vmem:[%s1 + $0x534] sm:$0xff]
        %v415 = vld [vmem:[%s1 + $0x53c] sm:$0xff]
        %v416 = vld [vmem:[%s1 + $0x544] sm:$0xff]
        %v417 = vld [vmem:[%s1 + $0x54c] sm:$0xff]
        %v418 = vld [vmem:[%s1 + $0x554] sm:$0xf]
        %v419 = vld [vmem:[%s1 + $0x558] sm:$0xff]
        %v420 = vld [vmem:[%s1 + $0x560] sm:$0xff]
        %v421 = vld [vmem:[%s1 + $0x568] sm:$0xff]
        %v422 = vld [vmem:[%s1 + $0x570] sm:$0xff]
        %v423 = vld [vmem:[%s1 + $0x578] sm:$0xf]
        %v424 = vld [vmem:[%s1 + $0x57c] sm:$0xff]
        %v425 = vld [vmem:[%s1 + $0x584] sm:$0xff]
        %v426 = vld [vmem:[%s1 + $0x58c] sm:$0xff]
        %v427 = vld [vmem:[%s1 + $0x594] sm:$0xff]
        %v428 = vld [vmem:[%s1 + $0x59c] sm:$0xf]
        %v429 = vld [vmem:[%s1 + $0x5a0] sm:$0xff]
        %v430 = vld [vmem:[%s1 + $0x5a8] sm:$0xff]
        %v431 = vld [vmem:[%s1 + $0x5b0] sm:$0xff]
        %v432 = vld [vmem:[%s1 + $0x5b8] sm:$0xff]
        %v433 = vld [vmem:[%s1 + $0x5c0] sm:$0xf]
        %v434 = vld [vmem:[%s1 + $0x5c4] sm:$0xff]
        %v435 = vld [vmem:[%s1 + $0x5cc] sm:$0xff]
        %v436 = vld [vmem:[%s1 + $0x5d4] sm:$0xff]
        %v437 = vld [vmem:[%s1 + $0x5dc] sm:$0xff]
        %v438 = vld [vmem:[%s1 + $0x5e4] sm:$0xf]
        %v439 = vld [vmem:[%s1 + $0x5e8] sm:$0xff]
        %v440 = vld [vmem:[%s1 + $0x5f0] sm:$0xff]
        %v441 = vld [vmem:[%s1 + $0x5f8] sm:$0xff]
        %v442 = vld [vmem:[%s1 + $0x600] sm:$0xff]
        %v443 = vld [vmem:[%s1 + $0x608] sm:$0xf]
        %v444 = vld [vmem:[%s1 + $0x60c] sm:$0xff]
        %v445 = vld [vmem:[%s1 + $0x614] sm:$0xff]
        %v446 = vld [vmem:[%s1 + $0x61c] sm:$0xff]
        %v447 = vld [vmem:[%s1 + $0x624] sm:$0xff]
        %v448 = vld [vmem:[%s1 + $0x62c] sm:$0xf]
        %v449 = vld [vmem:[%s1 + $0x630] sm:$0xff]
        %v450 = vld [vmem:[%s1 + $0x638] sm:$0xff]
        %v451 = vld [vmem:[%s1 + $0x640] sm:$0xff]
        %v452 = vld [vmem:[%s1 + $0x648] sm:$0xff]
        %v453 = vld [vmem:[%s1 + $0x650] sm:$0xf]
        %v454 = vld [vmem:[%s1 + $0x654] sm:$0xff]
        %v455 = vld [vmem:[%s1 + $0x65c] sm:$0xff]
        %v456 = vld [vmem:[%s1 + $0x664] sm:$0xff]
        %v457 = vld [vmem:[%s1 + $0x66c] sm:$0xff]
        %v458 = vld [vmem:[%s1 + $0x674] sm:$0xf]
        %v459 = vld [vmem:[%s1 + $0x678] sm:$0xff]
        %v460 = vld [vmem:[%s1 + $0x680] sm:$0xff]
        %v461 = vld [vmem:[%s1 + $0x688] sm:$0xff]
        %v462 = vld [vmem:[%s1 + $0x690] sm:$0xff]
        %v463 = vld [vmem:[%s1 + $0x698] sm:$0xf]
        %v464 = vld [vmem:[%s1 + $0x69c] sm:$0xff]
        %v465 = vld [vmem:[%s1 + $0x6a4] sm:$0xff]
        %v466 = vld [vmem:[%s1 + $0x6ac] sm:$0xff]
        %v467 = vld [vmem:[%s1 + $0x6b4] sm:$0xff]
        %v468 = vld [vmem:[%s1 + $0x6bc] sm:$0xf]
        %v501 = vunpack.c.l.b16 %v197
        %v502 = vunpack.c.h.b16 %v197
        %v503 = vunpack.c.l.b16 %v198
        %v504 = vunpack.c.l.b16 %v199
        %v505 = vunpack.c.h.b16 %v199
        %v506 = vunpack.c.l.b16 %v200
        %v507 = vunpack.c.l.b16 %v201
        %v508 = vunpack.c.h.b16 %v201
        %v509 = vunpack.c.l.b16 %v202
        %v510 = vunpack.c.l.b16 %v203
        %v511 = vunpack.c.h.b16 %v203
        %v512 = vunpack.c.l.b16 %v204
        %v513 = vunpack.c.l.b16 %v205
        %v514 = vunpack.c.h.b16 %v205
        %v515 = vunpack.c.l.b16 %v206
        %v516 = vunpack.c.l.b16 %v207
        %v517 = vunpack.c.h.b16 %v207
        %v518 = vunpack.c.l.b16 %v208
        %v519 = vunpack.c.l.b16 %v209
        %v520 = vunpack.c.h.b16 %v209
        %v521 = vunpack.c.l.b16 %v210
        %v522 = vunpack.c.l.b16 %v211
        %v523 = vunpack.c.h.b16 %v211
        %v524 = vunpack.c.l.b16 %v212
        %v525 = vunpack.c.l.b16 %v213
        %v526 = vunpack.c.h.b16 %v213
        %v527 = vunpack.c.l.b16 %v214
        %v528 = vunpack.c.l.b16 %v215
        %v529 = vunpack.c.h.b16 %v215
        %v530 = vunpack.c.l.b16 %v216
        %v531 = vunpack.c.l.b16 %v217
        %v532 = vunpack.c.h.b16 %v217
        %v533 = vunpack.c.l.b16 %v218
        %v534 = vunpack.c.l.b16 %v219
        %v535 = vunpack.c.h.b16 %v219
        %v536 = vunpack.c.l.b16 %v220
        %v537 = vunpack.c.l.b16 %v221
        %v538 = vunpack.c.h.b16 %v221
        %v539 = vunpack.c.l.b16 %v222
        %v540 = vunpack.c.l.b16 %v223
        %v541 = vunpack.c.h.b16 %v223
        %v542 = vunpack.c.l.b16 %v224
        %v543 = vunpack.c.l.b16 %v225
        %v544 = vunpack.c.h.b16 %v225
        %v545 = vunpack.c.l.b16 %v226
        %v546 = vunpack.c.l.b16 %v227
        %v547 = vunpack.c.h.b16 %v227
        %v548 = vunpack.c.l.b16 %v228
        %v549 = vpack.c.b16 %v504, %v501
        %v550 = vpack.c.b16 %v505, %v502
        %v551 = vpack.c.b16 %v506, %v503
        %v552 = vpack.c.b16 %v510, %v507
        %v553 = vpack.c.b16 %v511, %v508
        %v554 = vpack.c.b16 %v512, %v509
        %v555 = vpack.c.b16 %v516, %v513
        %v556 = vpack.c.b16 %v517, %v514
        %v557 = vpack.c.b16 %v518, %v515
        %v558 = vpack.c.b16 %v522, %v519
        %v559 = vpack.c.b16 %v523, %v520
        %v560 = vpack.c.b16 %v524, %v521
        %v561 = vpack.c.b16 %v528, %v525
        %v562 = vpack.c.b16 %v529, %v526
        %v563 = vpack.c.b16 %v530, %v527
        %v564 = vpack.c.b16 %v534, %v531
        %v565 = vpack.c.b16 %v535, %v532
        %v566 = vpack.c.b16 %v536, %v533
        %v567 = vpack.c.b16 %v540, %v537
        %v568 = vpack.c.b16 %v541, %v538
        %v569 = vpack.c.b16 %v542, %v539
        %v570 = vpack.c.b16 %v546, %v543
        %v571 = vpack.c.b16 %v547, %v544
        %v572 = vpack.c.b16 %v548, %v545
        %v837 = vunpack.c.l.b16 %v229
        %v838 = vunpack.c.h.b16 %v229
        %v839 = vunpack.c.l.b16 %v230
        %v840 = vunpack.c.h.b16 %v230
        %v841 = vunpack.c.l.b16 %v231
        %v842 = vunpack.c.h.b16 %v231
        %v843 = vunpack.c.l.b16 %v232
        %v844 = vunpack.c.h.b16 %v232
        %v845 = vunpack.c.l.b16 %v233
        %v846 = vunpack.c.l.b16 %v234
        %v847 = vunpack.c.h.b16 %v234
        %v848 = vunpack.c.l.b16 %v235
        %v849 = vunpack.c.h.b16 %v235
        %v850 = vunpack.c.l.b16 %v236
        %v851 = vunpack.c.h.b16 %v236
        %v852 = vunpack.c.l.b16 %v237
        %v853 = vunpack.c.h.b16 %v237
        %v854 = vunpack.c.l.b16 %v238
        %v855 = vunpack.c.l.b16 %v239
        %v856 = vunpack.c.h.b16 %v239
        %v857 = vunpack.c.l.b16 %v240
        %v858 = vunpack.c.h.b16 %v240
        %v859 = vunpack.c.l.b16 %v241
        %v860 = vunpack.c.h.b16 %v241
        %v861 = vunpack.c.l.b16 %v242
        %v862 = vunpack.c.h.b16 %v242
        %v863 = vunpack.c.l.b16 %v243
        %v864 = vunpack.c.l.b16 %v244
        %v865 = vunpack.c.h.b16 %v244
        %v866 = vunpack.c.l.b16 %v245
        %v867 = vunpack.c.h.b16 %v245
        %v868 = vunpack.c.l.b16 %v246
        %v869 = vunpack.c.h.b16 %v246
        %v870 = vunpack.c.l.b16 %v247
        %v871 = vunpack.c.h.b16 %v247
        %v872 = vunpack.c.l.b16 %v248
        %v873 = vunpack.c.l.b16 %v249
        %v874 = vunpack.c.h.b16 %v249
        %v875 = vunpack.c.l.b16 %v250
        %v876 = vunpack.c.h.b16 %v250
        %v877 = vunpack.c.l.b16 %v251
        %v878 = vunpack.c.h.b16 %v251
        %v879 = vunpack.c.l.b16 %v252
        %v880 = vunpack.c.h.b16 %v252
        %v881 = vunpack.c.l.b16 %v253
        %v882 = vunpack.c.l.b16 %v254
        %v883 = vunpack.c.h.b16 %v254
        %v884 = vunpack.c.l.b16 %v255
        %v885 = vunpack.c.h.b16 %v255
        %v886 = vunpack.c.l.b16 %v256
        %v887 = vunpack.c.h.b16 %v256
        %v888 = vunpack.c.l.b16 %v257
        %v889 = vunpack.c.h.b16 %v257
        %v890 = vunpack.c.l.b16 %v258
        %v891 = vunpack.c.l.b16 %v259
        %v892 = vunpack.c.h.b16 %v259
        %v893 = vunpack.c.l.b16 %v260
        %v894 = vunpack.c.h.b16 %v260
        %v895 = vunpack.c.l.b16 %v261
        %v896 = vunpack.c.h.b16 %v261
        %v897 = vunpack.c.l.b16 %v262
        %v898 = vunpack.c.h.b16 %v262
        %v899 = vunpack.c.l.b16 %v263
        %v900 = vunpack.c.l.b16 %v264
        %v901 = vunpack.c.h.b16 %v264
        %v902 = vunpack.c.l.b16 %v265
        %v903 = vunpack.c.h.b16 %v265
        %v904 = vunpack.c.l.b16 %v266
        %v905 = vunpack.c.h.b16 %v266
        %v906 = vunpack.c.l.b16 %v267
        %v907 = vunpack.c.h.b16 %v267
        %v908 = vunpack.c.l.b16 %v268
        %v909 = vunpack.c.l.b16 %v269
        %v910 = vunpack.c.h.b16 %v269
        %v911 = vunpack.c.l.b16 %v270
        %v912 = vunpack.c.h.b16 %v270
        %v913 = vunpack.c.l.b16 %v271
        %v914 = vunpack.c.h.b16 %v271
        %v915 = vunpack.c.l.b16 %v272
        %v916 = vunpack.c.h.b16 %v272
        %v917 = vunpack.c.l.b16 %v273
        %v918 = vunpack.c.l.b16 %v274
        %v919 = vunpack.c.h.b16 %v274
        %v920 = vunpack.c.l.b16 %v275
        %v921 = vunpack.c.h.b16 %v275
        %v922 = vunpack.c.l.b16 %v276
        %v923 = vunpack.c.h.b16 %v276
        %v924 = vunpack.c.l.b16 %v277
        %v925 = vunpack.c.h.b16 %v277
        %v926 = vunpack.c.l.b16 %v278
        %v927 = vunpack.c.l.b16 %v279
        %v928 = vunpack.c.h.b16 %v279
        %v929 = vunpack.c.l.b16 %v280
        %v930 = vunpack.c.h.b16 %v280
        %v931 = vunpack.c.l.b16 %v281
        %v932 = vunpack.c.h.b16 %v281
        %v933 = vunpack.c.l.b16 %v282
        %v934 = vunpack.c.h.b16 %v282
        %v935 = vunpack.c.l.b16 %v283
        %v936 = vunpack.c.l.b16 %v284
        %v937 = vunpack.c.h.b16 %v284
        %v938 = vunpack.c.l.b16 %v285
        %v939 = vunpack.c.h.b16 %v285
        %v940 = vunpack.c.l.b16 %v286
        %v941 = vunpack.c.h.b16 %v286
        %v942 = vunpack.c.l.b16 %v287
        %v943 = vunpack.c.h.b16 %v287
        %v944 = vunpack.c.l.b16 %v288
        %v945 = vunpack.c.l.b16 %v289
        %v946 = vunpack.c.h.b16 %v289
        %v947 = vunpack.c.l.b16 %v290
        %v948 = vunpack.c.h.b16 %v290
        %v949 = vunpack.c.l.b16 %v291
        %v950 = vunpack.c.h.b16 %v291
        %v951 = vunpack.c.l.b16 %v292
        %v952 = vunpack.c.h.b16 %v292
        %v953 = vunpack.c.l.b16 %v293
        %v954 = vunpack.c.l.b16 %v294
        %v955 = vunpack.c.h.b16 %v294
        %v956 = vunpack.c.l.b16 %v295
        %v957 = vunpack.c.h.b16 %v295
        %v958 = vunpack.c.l.b16 %v296
        %v959 = vunpack.c.h.b16 %v296
        %v960 = vunpack.c.l.b16 %v297
        %v961 = vunpack.c.h.b16 %v297
        %v962 = vunpack.c.l.b16 %v298
        %v963 = vunpack.c.l.b16 %v299
        %v964 = vunpack.c.h.b16 %v299
        %v965 = vunpack.c.l.b16 %v300
        %v966 = vunpack.c.h.b16 %v300
        %v967 = vunpack.c.l.b16 %v301
        %v968 = vunpack.c.h.b16 %v301
        %v969 = vunpack.c.l.b16 %v302
        %v970 = vunpack.c.h.b16 %v302
        %v971 = vunpack.c.l.b16 %v303
        %v972 = vunpack.c.l.b16 %v304
        %v973 = vunpack.c.h.b16 %v304
        %v974 = vunpack.c.l.b16 %v305
        %v975 = vunpack.c.h.b16 %v305
        %v976 = vunpack.c.l.b16 %v306
        %v977 = vunpack.c.h.b16 %v306
        %v978 = vunpack.c.l.b16 %v307
        %v979 = vunpack.c.h.b16 %v307
        %v980 = vunpack.c.l.b16 %v308
        %v981 = vunpack.c.l.b16 %v309
        %v982 = vunpack.c.h.b16 %v309
        %v983 = vunpack.c.l.b16 %v310
        %v984 = vunpack.c.h.b16 %v310
        %v985 = vunpack.c.l.b16 %v311
        %v986 = vunpack.c.h.b16 %v311
        %v987 = vunpack.c.l.b16 %v312
        %v988 = vunpack.c.h.b16 %v312
        %v989 = vunpack.c.l.b16 %v313
        %v990 = vunpack.c.l.b16 %v314
        %v991 = vunpack.c.h.b16 %v314
        %v992 = vunpack.c.l.b16 %v315
        %v993 = vunpack.c.h.b16 %v315
        %v994 = vunpack.c.l.b16 %v316
        %v995 = vunpack.c.h.b16 %v316
        %v996 = vunpack.c.l.b16 %v317
        %v997 = vunpack.c.h.b16 %v317
        %v998 = vunpack.c.l.b16 %v318
        %v999 = vunpack.c.l.b16 %v319
        %v1000 = vunpack.c.h.b16 %v319
        %v1001 = vunpack.c.l.b16 %v320
        %v1002 = vunpack.c.h.b16 %v320
        %v1003 = vunpack.c.l.b16 %v321
        %v1004 = vunpack.c.h.b16 %v321
        %v1005 = vunpack.c.l.b16 %v322
        %v1006 = vunpack.c.h.b16 %v322
        %v1007 = vunpack.c.l.b16 %v323
        %v1008 = vunpack.c.l.b16 %v324
        %v1009 = vunpack.c.h.b16 %v324
        %v1010 = vunpack.c.l.b16 %v325
        %v1011 = vunpack.c.h.b16 %v325
        %v1012 = vunpack.c.l.b16 %v326
        %v1013 = vunpack.c.h.b16 %v326
        %v1014 = vunpack.c.l.b16 %v327
        %v1015 = vunpack.c.h.b16 %v327
        %v1016 = vunpack.c.l.b16 %v328
        %v1017 = vunpack.c.l.b16 %v329
        %v1018 = vunpack.c.h.b16 %v329
        %v1019 = vunpack.c.l.b16 %v330
        %v1020 = vunpack.c.h.b16 %v330
        %v1021 = vunpack.c.l.b16 %v331
        %v1022 = vunpack.c.h.b16 %v331
        %v1023 = vunpack.c.l.b16 %v332
        %v1024 = vunpack.c.h.b16 %v332
        %v1025 = vunpack.c.l.b16 %v333
        %v1026 = vunpack.c.l.b16 %v334
        %v1027 = vunpack.c.h.b16 %v334
        %v1028 = vunpack.c.l.b16 %v335
        %v1029 = vunpack.c.h.b16 %v335
        %v1030 = vunpack.c.l.b16 %v336
        %v1031 = vunpack.c.h.b16 %v336
        %v1032 = vunpack.c.l.b16 %v337
        %v1033 = vunpack.c.h.b16 %v337
        %v1034 = vunpack.c.l.b16 %v338
        %v1035 = vunpack.c.l.b16 %v339
        %v1036 = vunpack.c.h.b16 %v339
        %v1037 = vunpack.c.l.b16 %v340
        %v1038 = vunpack.c.h.b16 %v340
        %v1039 = vunpack.c.l.b16 %v341
        %v1040 = vunpack.c.h.b16 %v341
        %v1041 = vunpack.c.l.b16 %v342
        %v1042 = vunpack.c.h.b16 %v342
        %v1043 = vunpack.c.l.b16 %v343
        %v1044 = vunpack.c.l.b16 %v344
        %v1045 = vunpack.c.h.b16 %v344
        %v1046 = vunpack.c.l.b16 %v345
        %v1047 = vunpack.c.h.b16 %v345
        %v1048 = vunpack.c.l.b16 %v346
        %v1049 = vunpack.c.h.b16 %v346
        %v1050 = vunpack.c.l.b16 %v347
        %v1051 = vunpack.c.h.b16 %v347
        %v1052 = vunpack.c.l.b16 %v348
        %v1053 = vunpack.c.l.b16 %v349
        %v1054 = vunpack.c.h.b16 %v349
        %v1055 = vunpack.c.l.b16 %v350
        %v1056 = vunpack.c.h.b16 %v350
        %v1057 = vunpack.c.l.b16 %v351
        %v1058 = vunpack.c.h.b16 %v351
        %v1059 = vunpack.c.l.b16 %v352
        %v1060 = vunpack.c.h.b16 %v352
        %v1061 = vunpack.c.l.b16 %v353
        %v1062 = vunpack.c.l.b16 %v354
        %v1063 = vunpack.c.h.b16 %v354
        %v1064 = vunpack.c.l.b16 %v355
        %v1065 = vunpack.c.h.b16 %v355
        %v1066 = vunpack.c.l.b16 %v356
        %v1067 = vunpack.c.h.b16 %v356
        %v1068 = vunpack.c.l.b16 %v357
        %v1069 = vunpack.c.h.b16 %v357
        %v1070 = vunpack.c.l.b16 %v358
        %v1071 = vunpack.c.l.b16 %v359
        %v1072 = vunpack.c.h.b16 %v359
        %v1073 = vunpack.c.l.b16 %v360
        %v1074 = vunpack.c.h.b16 %v360
        %v1075 = vunpack.c.l.b16 %v361
        %v1076 = vunpack.c.h.b16 %v361
        %v1077 = vunpack.c.l.b16 %v362
        %v1078 = vunpack.c.h.b16 %v362
        %v1079 = vunpack.c.l.b16 %v363
        %v1080 = vunpack.c.l.b16 %v364
        %v1081 = vunpack.c.h.b16 %v364
        %v1082 = vunpack.c.l.b16 %v365
        %v1083 = vunpack.c.h.b16 %v365
        %v1084 = vunpack.c.l.b16 %v366
        %v1085 = vunpack.c.h.b16 %v366
        %v1086 = vunpack.c.l.b16 %v367
        %v1087 = vunpack.c.h.b16 %v367
        %v1088 = vunpack.c.l.b16 %v368
        %v1089 = vunpack.c.l.b16 %v369
        %v1090 = vunpack.c.h.b16 %v369
        %v1091 = vunpack.c.l.b16 %v370
        %v1092 = vunpack.c.h.b16 %v370
        %v1093 = vunpack.c.l.b16 %v371
        %v1094 = vunpack.c.h.b16 %v371
        %v1095 = vunpack.c.l.b16 %v372
        %v1096 = vunpack.c.h.b16 %v372
        %v1097 = vunpack.c.l.b16 %v373
        %v1098 = vunpack.c.l.b16 %v374
        %v1099 = vunpack.c.h.b16 %v374
        %v1100 = vunpack.c.l.b16 %v375
        %v1101 = vunpack.c.h.b16 %v375
        %v1102 = vunpack.c.l.b16 %v376
        %v1103 = vunpack.c.h.b16 %v376
        %v1104 = vunpack.c.l.b16 %v377
        %v1105 = vunpack.c.h.b16 %v377
        %v1106 = vunpack.c.l.b16 %v378
        %v1107 = vunpack.c.l.b16 %v379
        %v1108 = vunpack.c.h.b16 %v379
        %v1109 = vunpack.c.l.b16 %v380
        %v1110 = vunpack.c.h.b16 %v380
        %v1111 = vunpack.c.l.b16 %v381
        %v1112 = vunpack.c.h.b16 %v381
        %v1113 = vunpack.c.l.b16 %v382
        %v1114 = vunpack.c.h.b16 %v382
        %v1115 = vunpack.c.l.b16 %v383
        %v1116 = vunpack.c.l.b16 %v384
        %v1117 = vunpack.c.h.b16 %v384
        %v1118 = vunpack.c.l.b16 %v385
        %v1119 = vunpack.c.h.b16 %v385
        %v1120 = vunpack.c.l.b16 %v386
        %v1121 = vunpack.c.h.b16 %v386
        %v1122 = vunpack.c.l.b16 %v387
        %v1123 = vunpack.c.h.b16 %v387
        %v1124 = vunpack.c.l.b16 %v388
        %v1125 = vunpack.c.l.b16 %v389
        %v1126 = vunpack.c.h.b16 %v389
        %v1127 = vunpack.c.l.b16 %v390
        %v1128 = vunpack.c.h.b16 %v390
        %v1129 = vunpack.c.l.b16 %v391
        %v1130 = vunpack.c.h.b16 %v391
        %v1131 = vunpack.c.l.b16 %v392
        %v1132 = vunpack.c.h.b16 %v392
        %v1133 = vunpack.c.l.b16 %v393
        %v1134 = vunpack.c.l.b16 %v394
        %v1135 = vunpack.c.h.b16 %v394
        %v1136 = vunpack.c.l.b16 %v395
        %v1137 = vunpack.c.h.b16 %v395
        %v1138 = vunpack.c.l.b16 %v396
        %v1139 = vunpack.c.h.b16 %v396
        %v1140 = vunpack.c.l.b16 %v397
        %v1141 = vunpack.c.h.b16 %v397
        %v1142 = vunpack.c.l.b16 %v398
        %v1143 = vunpack.c.l.b16 %v399
        %v1144 = vunpack.c.h.b16 %v399
        %v1145 = vunpack.c.l.b16 %v400
        %v1146 = vunpack.c.h.b16 %v400
        %v1147 = vunpack.c.l.b16 %v401
        %v1148 = vunpack.c.h.b16 %v401
        %v1149 = vunpack.c.l.b16 %v402
        %v1150 = vunpack.c.h.b16 %v402
        %v1151 = vunpack.c.l.b16 %v403
        %v1152 = vunpack.c.l.b16 %v404
        %v1153 = vunpack.c.h.b16 %v404
        %v1154 = vunpack.c.l.b16 %v405
        %v1155 = vunpack.c.h.b16 %v405
        %v1156 = vunpack.c.l.b16 %v406
        %v1157 = vunpack.c.h.b16 %v406
        %v1158 = vunpack.c.l.b16 %v407
        %v1159 = vunpack.c.h.b16 %v407
        %v1160 = vunpack.c.l.b16 %v408
        %v1161 = vunpack.c.l.b16 %v409
        %v1162 = vunpack.c.h.b16 %v409
        %v1163 = vunpack.c.l.b16 %v410
        %v1164 = vunpack.c.h.b16 %v410
        %v1165 = vunpack.c.l.b16 %v411
        %v1166 = vunpack.c.h.b16 %v411
        %v1167 = vunpack.c.l.b16 %v412
        %v1168 = vunpack.c.h.b16 %v412
        %v1169 = vunpack.c.l.b16 %v413
        %v1170 = vunpack.c.l.b16 %v414
        %v1171 = vunpack.c.h.b16 %v414
        %v1172 = vunpack.c.l.b16 %v415
        %v1173 = vunpack.c.h.b16 %v415
        %v1174 = vunpack.c.l.b16 %v416
        %v1175 = vunpack.c.h.b16 %v416
        %v1176 = vunpack.c.l.b16 %v417
        %v1177 = vunpack.c.h.b16 %v417
        %v1178 = vunpack.c.l.b16 %v418
        %v1179 = vunpack.c.l.b16 %v419
        %v1180 = vunpack.c.h.b16 %v419
        %v1181 = vunpack.c.l.b16 %v420
        %v1182 = vunpack.c.h.b16 %v420
        %v1183 = vunpack.c.l.b16 %v421
        %v1184 = vunpack.c.h.b16 %v421
        %v1185 = vunpack.c.l.b16 %v422
        %v1186 = vunpack.c.h.b16 %v422
        %v1187 = vunpack.c.l.b16 %v423
        %v1188 = vunpack.c.l.b16 %v424
        %v1189 = vunpack.c.h.b16 %v424
        %v1190 = vunpack.c.l.b16 %v425
        %v1191 = vunpack.c.h.b16 %v425
        %v1192 = vunpack.c.l.b16 %v426
        %v1193 = vunpack.c.h.b16 %v426
        %v1194 = vunpack.c.l.b16 %v427
        %v1195 = vunpack.c.h.b16 %v427
        %v1196 = vunpack.c.l.b16 %v428
        %v1197 = vunpack.c.l.b16 %v429
        %v1198 = vunpack.c.h.b16 %v429
        %v1199 = vunpack.c.l.b16 %v430
        %v1200 = vunpack.c.h.b16 %v430
        %v1201 = vunpack.c.l.b16 %v431
        %v1202 = vunpack.c.h.b16 %v431
        %v1203 = vunpack.c.l.b16 %v432
        %v1204 = vunpack.c.h.b16 %v432
        %v1205 = vunpack.c.l.b16 %v433
        %v1206 = vunpack.c.l.b16 %v434
        %v1207 = vunpack.c.h.b16 %v434
        %v1208 = vunpack.c.l.b16 %v435
        %v1209 = vunpack.c.h.b16 %v435
        %v1210 = vunpack.c.l.b16 %v436
        %v1211 = vunpack.c.h.b16 %v436
        %v1212 = vunpack.c.l.b16 %v437
        %v1213 = vunpack.c.h.b16 %v437
        %v1214 = vunpack.c.l.b16 %v438
        %v1215 = vunpack.c.l.b16 %v439
        %v1216 = vunpack.c.h.b16 %v439
        %v1217 = vunpack.c.l.b16 %v440
        %v1218 = vunpack.c.h.b16 %v440
        %v1219 = vunpack.c.l.b16 %v441
        %v1220 = vunpack.c.h.b16 %v441
        %v1221 = vunpack.c.l.b16 %v442
        %v1222 = vunpack.c.h.b16 %v442
        %v1223 = vunpack.c.l.b16 %v443
        %v1224 = vunpack.c.l.b16 %v444
        %v1225 = vunpack.c.h.b16 %v444
        %v1226 = vunpack.c.l.b16 %v445
        %v1227 = vunpack.c.h.b16 %v445
        %v1228 = vunpack.c.l.b16 %v446
        %v1229 = vunpack.c.h.b16 %v446
        %v1230 = vunpack.c.l.b16 %v447
        %v1231 = vunpack.c.h.b16 %v447
        %v1232 = vunpack.c.l.b16 %v448
        %v1233 = vunpack.c.l.b16 %v449
        %v1234 = vunpack.c.h.b16 %v449
        %v1235 = vunpack.c.l.b16 %v450
        %v1236 = vunpack.c.h.b16 %v450
        %v1237 = vunpack.c.l.b16 %v451
        %v1238 = vunpack.c.h.b16 %v451
        %v1239 = vunpack.c.l.b16 %v452
        %v1240 = vunpack.c.h.b16 %v452
        %v1241 = vunpack.c.l.b16 %v453
        %v1242 = vunpack.c.l.b16 %v454
        %v1243 = vunpack.c.h.b16 %v454
        %v1244 = vunpack.c.l.b16 %v455
        %v1245 = vunpack.c.h.b16 %v455
        %v1246 = vunpack.c.l.b16 %v456
        %v1247 = vunpack.c.h.b16 %v456
        %v1248 = vunpack.c.l.b16 %v457
        %v1249 = vunpack.c.h.b16 %v457
        %v1250 = vunpack.c.l.b16 %v458
        %v1251 = vunpack.c.l.b16 %v459
        %v1252 = vunpack.c.h.b16 %v459
        %v1253 = vunpack.c.l.b16 %v460
        %v1254 = vunpack.c.h.b16 %v460
        %v1255 = vunpack.c.l.b16 %v461
        %v1256 = vunpack.c.h.b16 %v461
        %v1257 = vunpack.c.l.b16 %v462
        %v1258 = vunpack.c.h.b16 %v462
        %v1259 = vunpack.c.l.b16 %v463
        %v1260 = vunpack.c.l.b16 %v464
        %v1261 = vunpack.c.h.b16 %v464
        %v1262 = vunpack.c.l.b16 %v465
        %v1263 = vunpack.c.h.b16 %v465
        %v1264 = vunpack.c.l.b16 %v466
        %v1265 = vunpack.c.h.b16 %v466
        %v1266 = vunpack.c.l.b16 %v467
        %v1267 = vunpack.c.h.b16 %v467
        %v1268 = vunpack.c.l.b16 %v468
        %v1269 = vpack.c.b16 %v846, %v837
        %v1270 = vpack.c.b16 %v847, %v838
        %v1271 = vpack.c.b16 %v848, %v839
        %v1272 = vpack.c.b16 %v849, %v840
        %v1273 = vpack.c.b16 %v850, %v841
        %v1274 = vpack.c.b16 %v851, %v842
        %v1275 = vpack.c.b16 %v852, %v843
        %v1276 = vpack.c.b16 %v853, %v844
        %v1277 = vpack.c.b16 %v854, %v845
        %v1278 = vpack.c.b16 %v864, %v855
        %v1279 = vpack.c.b16 %v865, %v856
        %v1280 = vpack.c.b16 %v866, %v857
        %v1281 = vpack.c.b16 %v867, %v858
        %v1282 = vpack.c.b16 %v868, %v859
        %v1283 = vpack.c.b16 %v869, %v860
        %v1284 = vpack.c.b16 %v870, %v861
        %v1285 = vpack.c.b16 %v871, %v862
        %v1286 = vpack.c.b16 %v872, %v863
        %v1287 = vpack.c.b16 %v882, %v873
        %v1288 = vpack.c.b16 %v883, %v874
        %v1289 = vpack.c.b16 %v884, %v875
        %v1290 = vpack.c.b16 %v885, %v876
        %v1291 = vpack.c.b16 %v886, %v877
        %v1292 = vpack.c.b16 %v887, %v878
        %v1293 = vpack.c.b16 %v888, %v879
        %v1294 = vpack.c.b16 %v889, %v880
        %v1295 = vpack.c.b16 %v890, %v881
        %v1296 = vpack.c.b16 %v900, %v891
        %v1297 = vpack.c.b16 %v901, %v892
        %v1298 = vpack.c.b16 %v902, %v893
        %v1299 = vpack.c.b16 %v903, %v894
        %v1300 = vpack.c.b16 %v904, %v895
        %v1301 = vpack.c.b16 %v905, %v896
        %v1302 = vpack.c.b16 %v906, %v897
        %v1303 = vpack.c.b16 %v907, %v898
        %v1304 = vpack.c.b16 %v908, %v899
        %v1305 = vpack.c.b16 %v918, %v909
        %v1306 = vpack.c.b16 %v919, %v910
        %v1307 = vpack.c.b16 %v920, %v911
        %v1308 = vpack.c.b16 %v921, %v912
        %v1309 = vpack.c.b16 %v922, %v913
        %v1310 = vpack.c.b16 %v923, %v914
        %v1311 = vpack.c.b16 %v924, %v915
        %v1312 = vpack.c.b16 %v925, %v916
        %v1313 = vpack.c.b16 %v926, %v917
        %v1314 = vpack.c.b16 %v936, %v927
        %v1315 = vpack.c.b16 %v937, %v928
        %v1316 = vpack.c.b16 %v938, %v929
        %v1317 = vpack.c.b16 %v939, %v930
        %v1318 = vpack.c.b16 %v940, %v931
        %v1319 = vpack.c.b16 %v941, %v932
        %v1320 = vpack.c.b16 %v942, %v933
        %v1321 = vpack.c.b16 %v943, %v934
        %v1322 = vpack.c.b16 %v944, %v935
        %v1323 = vpack.c.b16 %v954, %v945
        %v1324 = vpack.c.b16 %v955, %v946
        %v1325 = vpack.c.b16 %v956, %v947
        %v1326 = vpack.c.b16 %v957, %v948
        %v1327 = vpack.c.b16 %v958, %v949
        %v1328 = vpack.c.b16 %v959, %v950
        %v1329 = vpack.c.b16 %v960, %v951
        %v1330 = vpack.c.b16 %v961, %v952
        %v1331 = vpack.c.b16 %v962, %v953
        %v1332 = vpack.c.b16 %v972, %v963
        %v1333 = vpack.c.b16 %v973, %v964
        %v1334 = vpack.c.b16 %v974, %v965
        %v1335 = vpack.c.b16 %v975, %v966
        %v1336 = vpack.c.b16 %v976, %v967
        %v1337 = vpack.c.b16 %v977, %v968
        %v1338 = vpack.c.b16 %v978, %v969
        %v1339 = vpack.c.b16 %v979, %v970
        %v1340 = vpack.c.b16 %v980, %v971
        %v1341 = vpack.c.b16 %v990, %v981
        %v1342 = vpack.c.b16 %v991, %v982
        %v1343 = vpack.c.b16 %v992, %v983
        %v1344 = vpack.c.b16 %v993, %v984
        %v1345 = vpack.c.b16 %v994, %v985
        %v1346 = vpack.c.b16 %v995, %v986
        %v1347 = vpack.c.b16 %v996, %v987
        %v1348 = vpack.c.b16 %v997, %v988
        %v1349 = vpack.c.b16 %v998, %v989
        %v1350 = vpack.c.b16 %v1008, %v999
        %v1351 = vpack.c.b16 %v1009, %v1000
        %v1352 = vpack.c.b16 %v1010, %v1001
        %v1353 = vpack.c.b16 %v1011, %v1002
        %v1354 = vpack.c.b16 %v1012, %v1003
        %v1355 = vpack.c.b16 %v1013, %v1004
        %v1356 = vpack.c.b16 %v1014, %v1005
        %v1357 = vpack.c.b16 %v1015, %v1006
        %v1358 = vpack.c.b16 %v1016, %v1007
        %v1359 = vpack.c.b16 %v1026, %v1017
        %v1360 = vpack.c.b16 %v1027, %v1018
        %v1361 = vpack.c.b16 %v1028, %v1019
        %v1362 = vpack.c.b16 %v1029, %v1020
        %v1363 = vpack.c.b16 %v1030, %v1021
        %v1364 = vpack.c.b16 %v1031, %v1022
        %v1365 = vpack.c.b16 %v1032, %v1023
        %v1366 = vpack.c.b16 %v1033, %v1024
        %v1367 = vpack.c.b16 %v1034, %v1025
        %v1368 = vpack.c.b16 %v1044, %v1035
        %v1369 = vpack.c.b16 %v1045, %v1036
        %v1370 = vpack.c.b16 %v1046, %v1037
        %v1371 = vpack.c.b16 %v1047, %v1038
        %v1372 = vpack.c.b16 %v1048, %v1039
        %v1373 = vpack.c.b16 %v1049, %v1040
        %v1374 = vpack.c.b16 %v1050, %v1041
        %v1375 = vpack.c.b16 %v1051, %v1042
        %v1376 = vpack.c.b16 %v1052, %v1043
        %v1377 = vpack.c.b16 %v1062, %v1053
        %v1378 = vpack.c.b16 %v1063, %v1054
        %v1379 = vpack.c.b16 %v1064, %v1055
        %v1380 = vpack.c.b16 %v1065, %v1056
        %v1381 = vpack.c.b16 %v1066, %v1057
        %v1382 = vpack.c.b16 %v1067, %v1058
        %v1383 = vpack.c.b16 %v1068, %v1059
        %v1384 = vpack.c.b16 %v1069, %v1060
        %v1385 = vpack.c.b16 %v1070, %v1061
        %v1386 = vpack.c.b16 %v1080, %v1071
        %v1387 = vpack.c.b16 %v1081, %v1072
        %v1388 = vpack.c.b16 %v1082, %v1073
        %v1389 = vpack.c.b16 %v1083, %v1074
        %v1390 = vpack.c.b16 %v1084, %v1075
        %v1391 = vpack.c.b16 %v1085, %v1076
        %v1392 = vpack.c.b16 %v1086, %v1077
        %v1393 = vpack.c.b16 %v1087, %v1078
        %v1394 = vpack.c.b16 %v1088, %v1079
        %v1395 = vpack.c.b16 %v1098, %v1089
        %v1396 = vpack.c.b16 %v1099, %v1090
        %v1397 = vpack.c.b16 %v1100, %v1091
        %v1398 = vpack.c.b16 %v1101, %v1092
        %v1399 = vpack.c.b16 %v1102, %v1093
        %v1400 = vpack.c.b16 %v1103, %v1094
        %v1401 = vpack.c.b16 %v1104, %v1095
        %v1402 = vpack.c.b16 %v1105, %v1096
        %v1403 = vpack.c.b16 %v1106, %v1097
        %v1404 = vpack.c.b16 %v1116, %v1107
        %v1405 = vpack.c.b16 %v1117, %v1108
        %v1406 = vpack.c.b16 %v1118, %v1109
        %v1407 = vpack.c.b16 %v1119, %v1110
        %v1408 = vpack.c.b16 %v1120, %v1111
        %v1409 = vpack.c.b16 %v1121, %v1112
        %v1410 = vpack.c.b16 %v1122, %v1113
        %v1411 = vpack.c.b16 %v1123, %v1114
        %v1412 = vpack.c.b16 %v1124, %v1115
        %v1413 = vpack.c.b16 %v1134, %v1125
        %v1414 = vpack.c.b16 %v1135, %v1126
        %v1415 = vpack.c.b16 %v1136, %v1127
        %v1416 = vpack.c.b16 %v1137, %v1128
        %v1417 = vpack.c.b16 %v1138, %v1129
        %v1418 = vpack.c.b16 %v1139, %v1130
        %v1419 = vpack.c.b16 %v1140, %v1131
        %v1420 = vpack.c.b16 %v1141, %v1132
        %v1421 = vpack.c.b16 %v1142, %v1133
        %v1422 = vpack.c.b16 %v1152, %v1143
        %v1423 = vpack.c.b16 %v1153, %v1144
        %v1424 = vpack.c.b16 %v1154, %v1145
        %v1425 = vpack.c.b16 %v1155, %v1146
        %v1426 = vpack.c.b16 %v1156, %v1147
        %v1427 = vpack.c.b16 %v1157, %v1148
        %v1428 = vpack.c.b16 %v1158, %v1149
        %v1429 = vpack.c.b16 %v1159, %v1150
        %v1430 = vpack.c.b16 %v1160, %v1151
        %v1431 = vpack.c.b16 %v1170, %v1161
        %v1432 = vpack.c.b16 %v1171, %v1162
        %v1433 = vpack.c.b16 %v1172, %v1163
        %v1434 = vpack.c.b16 %v1173, %v1164
        %v1435 = vpack.c.b16 %v1174, %v1165
        %v1436 = vpack.c.b16 %v1175, %v1166
        %v1437 = vpack.c.b16 %v1176, %v1167
        %v1438 = vpack.c.b16 %v1177, %v1168
        %v1439 = vpack.c.b16 %v1178, %v1169
        %v1440 = vpack.c.b16 %v1188, %v1179
        %v1441 = vpack.c.b16 %v1189, %v1180
        %v1442 = vpack.c.b16 %v1190, %v1181
        %v1443 = vpack.c.b16 %v1191, %v1182
        %v1444 = vpack.c.b16 %v1192, %v1183
        %v1445 = vpack.c.b16 %v1193, %v1184
        %v1446 = vpack.c.b16 %v1194, %v1185
        %v1447 = vpack.c.b16 %v1195, %v1186
        %v1448 = vpack.c.b16 %v1196, %v1187
        %v1449 = vpack.c.b16 %v1206, %v1197
        %v1450 = vpack.c.b16 %v1207, %v1198
        %v1451 = vpack.c.b16 %v1208, %v1199
        %v1452 = vpack.c.b16 %v1209, %v1200
        %v1453 = vpack.c.b16 %v1210, %v1201
        %v1454 = vpack.c.b16 %v1211, %v1202
        %v1455 = vpack.c.b16 %v1212, %v1203
        %v1456 = vpack.c.b16 %v1213, %v1204
        %v1457 = vpack.c.b16 %v1214, %v1205
        %v1458 = vpack.c.b16 %v1224, %v1215
        %v1459 = vpack.c.b16 %v1225, %v1216
        %v1460 = vpack.c.b16 %v1226, %v1217
        %v1461 = vpack.c.b16 %v1227, %v1218
        %v1462 = vpack.c.b16 %v1228, %v1219
        %v1463 = vpack.c.b16 %v1229, %v1220
        %v1464 = vpack.c.b16 %v1230, %v1221
        %v1465 = vpack.c.b16 %v1231, %v1222
        %v1466 = vpack.c.b16 %v1232, %v1223
        %v1467 = vpack.c.b16 %v1242, %v1233
        %v1468 = vpack.c.b16 %v1243, %v1234
        %v1469 = vpack.c.b16 %v1244, %v1235
        %v1470 = vpack.c.b16 %v1245, %v1236
        %v1471 = vpack.c.b16 %v1246, %v1237
        %v1472 = vpack.c.b16 %v1247, %v1238
        %v1473 = vpack.c.b16 %v1248, %v1239
        %v1474 = vpack.c.b16 %v1249, %v1240
        %v1475 = vpack.c.b16 %v1250, %v1241
        %v1476 = vpack.c.b16 %v1260, %v1251
        %v1477 = vpack.c.b16 %v1261, %v1252
        %v1478 = vpack.c.b16 %v1262, %v1253
        %v1479 = vpack.c.b16 %v1263, %v1254
        %v1480 = vpack.c.b16 %v1264, %v1255
        %v1481 = vpack.c.b16 %v1265, %v1256
        %v1482 = vpack.c.b16 %v1266, %v1257
        %v1483 = vpack.c.b16 %v1267, %v1258
        %v1484 = vpack.c.b16 %v1268, %v1259
        %1701 = vmatpush.bf16.msra.mxu0 %v1332
        %1702 = vmatpush.bf16.msra.mxu0 %v1323
        %1703 = vmatpush.bf16.msra.mxu0 %v1314
        %1704 = vmatpush.bf16.msra.mxu0 %v1305
        %1705 = vmatpush.bf16.msra.mxu0 %v1296
        %1706 = vmatpush.bf16.msra.mxu0 %v1287
        %1707 = vmatpush.bf16.msra.mxu0 %v1278
        %1708 = vmatpush.bf16.msra.mxu0 %v1269
        %1709 = vmatmul.bf16.gmra.mxu0 %v549
        %v1710 = vpop.f32.mrf.mxu0
        %v1711 = vadd.f32 0.0, %v1710
        %v1712 = vpop.f32.mrf.mxu0
        %v1713 = vadd.f32 0.0, %v1712
        %1714 = vmatmul.bf16.gmra.mxu0 %v552
        %v1715 = vpop.f32.mrf.mxu0
        %v1716 = vadd.f32 0.0, %v1715
        %v1717 = vpop.f32.mrf.mxu0
        %v1718 = vadd.f32 0.0, %v1717
        %1719 = vmatmul.bf16.gmra.mxu0 %v555
        %v1720 = vpop.f32.mrf.mxu0
        %v1721 = vadd.f32 0.0, %v1720
        %v1722 = vpop.f32.mrf.mxu0
        %v1723 = vadd.f32 0.0, %v1722
        %1724 = vmatmul.bf16.gmra.mxu0 %v558
        %v1725 = vpop.f32.mrf.mxu0
        %v1726 = vadd.f32 0.0, %v1725
        %v1727 = vpop.f32.mrf.mxu0
        %v1728 = vadd.f32 0.0, %v1727
        %1729 = vmatmul.bf16.gmra.mxu0 %v561
        %v1730 = vpop.f32.mrf.mxu0
        %v1731 = vadd.f32 0.0, %v1730
        %v1732 = vpop.f32.mrf.mxu0
        %v1733 = vadd.f32 0.0, %v1732
        %1734 = vmatmul.bf16.gmra.mxu0 %v564
        %v1735 = vpop.f32.mrf.mxu0
        %v1736 = vadd.f32 0.0, %v1735
        %v1737 = vpop.f32.mrf.mxu0
        %v1738 = vadd.f32 0.0, %v1737
        %1739 = vmatmul.bf16.gmra.mxu0 %v567
        %v1740 = vpop.f32.mrf.mxu0
        %v1741 = vadd.f32 0.0, %v1740
        %v1742 = vpop.f32.mrf.mxu0
        %v1743 = vadd.f32 0.0, %v1742
        %1744 = vmatmul.bf16.gmra.mxu0 %v570
        %v1745 = vpop.f32.mrf.mxu0
        %v1746 = vadd.f32 0.0, %v1745
        %v1747 = vpop.f32.mrf.mxu0
        %v1748 = vadd.f32 0.0, %v1747
        %1749 = vdwg.mxu0
        %1750 = vmatpush.bf16.msra.mxu0 %v1404
        %1751 = vmatpush.bf16.msra.mxu0 %v1395
        %1752 = vmatpush.bf16.msra.mxu0 %v1386
        %1753 = vmatpush.bf16.msra.mxu0 %v1377
        %1754 = vmatpush.bf16.msra.mxu0 %v1368
        %1755 = vmatpush.bf16.msra.mxu0 %v1359
        %1756 = vmatpush.bf16.msra.mxu0 %v1350
        %1757 = vmatpush.bf16.msra.mxu0 %v1341
        %1758 = vmatmul.bf16.gmra.mxu0 %v550
        %v1759 = vpop.f32.mrf.mxu0
        %v1760 = vadd.f32 %v1711, %v1759
        %v1761 = vpop.f32.mrf.mxu0
        %v1762 = vadd.f32 %v1713, %v1761
        %1763 = vmatmul.bf16.gmra.mxu0 %v553
        %v1764 = vpop.f32.mrf.mxu0
        %v1765 = vadd.f32 %v1716, %v1764
        %v1766 = vpop.f32.mrf.mxu0
        %v1767 = vadd.f32 %v1718, %v1766
        %1768 = vmatmul.bf16.gmra.mxu0 %v556
        %v1769 = vpop.f32.mrf.mxu0
        %v1770 = vadd.f32 %v1721, %v1769
        %v1771 = vpop.f32.mrf.mxu0
        %v1772 = vadd.f32 %v1723, %v1771
        %1773 = vmatmul.bf16.gmra.mxu0 %v559
        %v1774 = vpop.f32.mrf.mxu0
        %v1775 = vadd.f32 %v1726, %v1774
        %v1776 = vpop.f32.mrf.mxu0
        %v1777 = vadd.f32 %v1728, %v1776
        %1778 = vmatmul.bf16.gmra.mxu0 %v562
        %v1779 = vpop.f32.mrf.mxu0
        %v1780 = vadd.f32 %v1731, %v1779
        %v1781 = vpop.f32.mrf.mxu0
        %v1782 = vadd.f32 %v1733, %v1781
        %1783 = vmatmul.bf16.gmra.mxu0 %v565
        %v1784 = vpop.f32.mrf.mxu0
        %v1785 = vadd.f32 %v1736, %v1784
        %v1786 = vpop.f32.mrf.mxu0
        %v1787 = vadd.f32 %v1738, %v1786
        %1788 = vmatmul.bf16.gmra.mxu0 %v568
        %v1789 = vpop.f32.mrf.mxu0
        %v1790 = vadd.f32 %v1741, %v1789
        %v1791 = vpop.f32.mrf.mxu0
        %v1792 = vadd.f32 %v1743, %v1791
        %1793 = vmatmul.bf16.gmra.mxu0 %v571
        %v1794 = vpop.f32.mrf.mxu0
        %v1795 = vadd.f32 %v1746, %v1794
        %v1796 = vpop.f32.mrf.mxu0
        %v1797 = vadd.f32 %v1748, %v1796
        %1798 = vdwg.mxu0
        %1799 = vmatpush.bf16.msra.mxu0 %v1476
        %1800 = vmatpush.bf16.msra.mxu0 %v1467
        %1801 = vmatpush.bf16.msra.mxu0 %v1458
        %1802 = vmatpush.bf16.msra.mxu0 %v1449
        %1803 = vmatpush.bf16.msra.mxu0 %v1440
        %1804 = vmatpush.bf16.msra.mxu0 %v1431
        %1805 = vmatpush.bf16.msra.mxu0 %v1422
        %1806 = vmatpush.bf16.msra.mxu0 %v1413
        %1807 = vmatmul.bf16.gmra.mxu0 %v551
        %v1808 = vpop.f32.mrf.mxu0
        %v1809 = vadd.f32 %v1760, %v1808
        %v1810 = vpop.f32.mrf.mxu0
        %v1811 = vadd.f32 %v1762, %v1810
        %1812 = vmatmul.bf16.gmra.mxu0 %v554
        %v1813 = vpop.f32.mrf.mxu0
        %v1814 = vadd.f32 %v1765, %v1813
        %v1815 = vpop.f32.mrf.mxu0
        %v1816 = vadd.f32 %v1767, %v1815
        %1817 = vmatmul.bf16.gmra.mxu0 %v557
        %v1818 = vpop.f32.mrf.mxu0
        %v1819 = vadd.f32 %v1770, %v1818
        %v1820 = vpop.f32.mrf.mxu0
        %v1821 = vadd.f32 %v1772, %v1820
        %1822 = vmatmul.bf16.gmra.mxu0 %v560
        %v1823 = vpop.f32.mrf.mxu0
        %v1824 = vadd.f32 %v1775, %v1823
        %v1825 = vpop.f32.mrf.mxu0
        %v1826 = vadd.f32 %v1777, %v1825
        %1827 = vmatmul.bf16.gmra.mxu0 %v563
        %v1828 = vpop.f32.mrf.mxu0
        %v1829 = vadd.f32 %v1780, %v1828
        %v1830 = vpop.f32.mrf.mxu0
        %v1831 = vadd.f32 %v1782, %v1830
        %1832 = vmatmul.bf16.gmra.mxu0 %v566
        %v1833 = vpop.f32.mrf.mxu0
        %v1834 = vadd.f32 %v1785, %v1833
        %v1835 = vpop.f32.mrf.mxu0
        %v1836 = vadd.f32 %v1787, %v1835
        %1837 = vmatmul.bf16.gmra.mxu0 %v569
        %v1838 = vpop.f32.mrf.mxu0
        %v1839 = vadd.f32 %v1790, %v1838
        %v1840 = vpop.f32.mrf.mxu0
        %v1841 = vadd.f32 %v1792, %v1840
        %1842 = vmatmul.bf16.gmra.mxu0 %v572
        %v1843 = vpop.f32.mrf.mxu0
        %v1844 = vadd.f32 %v1795, %v1843
        %v1845 = vpop.f32.mrf.mxu0
        %v1846 = vadd.f32 %v1797, %v1845
        %1847 = vdwg.mxu0
        %1848 = vmatpush.bf16.msra.mxu0 %v1333
        %1849 = vmatpush.bf16.msra.mxu0 %v1324
        %1850 = vmatpush.bf16.msra.mxu0 %v1315
        %1851 = vmatpush.bf16.msra.mxu0 %v1306
        %1852 = vmatpush.bf16.msra.mxu0 %v1297
        %1853 = vmatpush.bf16.msra.mxu0 %v1288
        %1854 = vmatpush.bf16.msra.mxu0 %v1279
        %1855 = vmatpush.bf16.msra.mxu0 %v1270
        %1856 = vmatmul.bf16.gmra.mxu0 %v549
        %v1857 = vpop.f32.mrf.mxu0
        %v1858 = vadd.f32 0.0, %v1857
        %v1859 = vpop.f32.mrf.mxu0
        %v1860 = vadd.f32 0.0, %v1859
        %1861 = vmatmul.bf16.gmra.mxu0 %v552
        %v1862 = vpop.f32.mrf.mxu0
        %v1863 = vadd.f32 0.0, %v1862
        %v1864 = vpop.f32.mrf.mxu0
        %v1865 = vadd.f32 0.0, %v1864
        %1866 = vmatmul.bf16.gmra.mxu0 %v555
        %v1867 = vpop.f32.mrf.mxu0
        %v1868 = vadd.f32 0.0, %v1867
        %v1869 = vpop.f32.mrf.mxu0
        %v1870 = vadd.f32 0.0, %v1869
        %1871 = vmatmul.bf16.gmra.mxu0 %v558
        %v1872 = vpop.f32.mrf.mxu0
        %v1873 = vadd.f32 0.0, %v1872
        %v1874 = vpop.f32.mrf.mxu0
        %v1875 = vadd.f32 0.0, %v1874
        %1876 = vmatmul.bf16.gmra.mxu0 %v561
        %v1877 = vpop.f32.mrf.mxu0
        %v1878 = vadd.f32 0.0, %v1877
        %v1879 = vpop.f32.mrf.mxu0
        %v1880 = vadd.f32 0.0, %v1879
        %1881 = vmatmul.bf16.gmra.mxu0 %v564
        %v1882 = vpop.f32.mrf.mxu0
        %v1883 = vadd.f32 0.0, %v1882
        %v1884 = vpop.f32.mrf.mxu0
        %v1885 = vadd.f32 0.0, %v1884
        %1886 = vmatmul.bf16.gmra.mxu0 %v567
        %v1887 = vpop.f32.mrf.mxu0
        %v1888 = vadd.f32 0.0, %v1887
        %v1889 = vpop.f32.mrf.mxu0
        %v1890 = vadd.f32 0.0, %v1889
        %1891 = vmatmul.bf16.gmra.mxu0 %v570
        %v1892 = vpop.f32.mrf.mxu0
        %v1893 = vadd.f32 0.0, %v1892
        %v1894 = vpop.f32.mrf.mxu0
        %v1895 = vadd.f32 0.0, %v1894
        %1896 = vdwg.mxu0
        %1897 = vmatpush.bf16.msra.mxu0 %v1405
        %1898 = vmatpush.bf16.msra.mxu0 %v1396
        %1899 = vmatpush.bf16.msra.mxu0 %v1387
        %1900 = vmatpush.bf16.msra.mxu0 %v1378
        %1901 = vmatpush.bf16.msra.mxu0 %v1369
        %1902 = vmatpush.bf16.msra.mxu0 %v1360
        %1903 = vmatpush.bf16.msra.mxu0 %v1351
        %1904 = vmatpush.bf16.msra.mxu0 %v1342
        %1905 = vmatmul.bf16.gmra.mxu0 %v550
        %v1906 = vpop.f32.mrf.mxu0
        %v1907 = vadd.f32 %v1858, %v1906
        %v1908 = vpop.f32.mrf.mxu0
        %v1909 = vadd.f32 %v1860, %v1908
        %1910 = vmatmul.bf16.gmra.mxu0 %v553
        %v1911 = vpop.f32.mrf.mxu0
        %v1912 = vadd.f32 %v1863, %v1911
        %v1913 = vpop.f32.mrf.mxu0
        %v1914 = vadd.f32 %v1865, %v1913
        %1915 = vmatmul.bf16.gmra.mxu0 %v556
        %v1916 = vpop.f32.mrf.mxu0
        %v1917 = vadd.f32 %v1868, %v1916
        %v1918 = vpop.f32.mrf.mxu0
        %v1919 = vadd.f32 %v1870, %v1918
        %1920 = vmatmul.bf16.gmra.mxu0 %v559
        %v1921 = vpop.f32.mrf.mxu0
        %v1922 = vadd.f32 %v1873, %v1921
        %v1923 = vpop.f32.mrf.mxu0
        %v1924 = vadd.f32 %v1875, %v1923
        %1925 = vmatmul.bf16.gmra.mxu0 %v562
        %v1926 = vpop.f32.mrf.mxu0
        %v1927 = vadd.f32 %v1878, %v1926
        %v1928 = vpop.f32.mrf.mxu0
        %v1929 = vadd.f32 %v1880, %v1928
        %1930 = vmatmul.bf16.gmra.mxu0 %v565
        %v1931 = vpop.f32.mrf.mxu0
        %v1932 = vadd.f32 %v1883, %v1931
        %v1933 = vpop.f32.mrf.mxu0
        %v1934 = vadd.f32 %v1885, %v1933
        %1935 = vmatmul.bf16.gmra.mxu0 %v568
        %v1936 = vpop.f32.mrf.mxu0
        %v1937 = vadd.f32 %v1888, %v1936
        %v1938 = vpop.f32.mrf.mxu0
        %v1939 = vadd.f32 %v1890, %v1938
        %1940 = vmatmul.bf16.gmra.mxu0 %v571
        %v1941 = vpop.f32.mrf.mxu0
        %v1942 = vadd.f32 %v1893, %v1941
        %v1943 = vpop.f32.mrf.mxu0
        %v1944 = vadd.f32 %v1895, %v1943
        %1945 = vdwg.mxu0
        %1946 = vmatpush.bf16.msra.mxu0 %v1477
        %1947 = vmatpush.bf16.msra.mxu0 %v1468
        %1948 = vmatpush.bf16.msra.mxu0 %v1459
        %1949 = vmatpush.bf16.msra.mxu0 %v1450
        %1950 = vmatpush.bf16.msra.mxu0 %v1441
        %1951 = vmatpush.bf16.msra.mxu0 %v1432
        %1952 = vmatpush.bf16.msra.mxu0 %v1423
        %1953 = vmatpush.bf16.msra.mxu0 %v1414
        %1954 = vmatmul.bf16.gmra.mxu0 %v551
        %v1955 = vpop.f32.mrf.mxu0
        %v1956 = vadd.f32 %v1907, %v1955
        %v1957 = vpop.f32.mrf.mxu0
        %v1958 = vadd.f32 %v1909, %v1957
        %1959 = vmatmul.bf16.gmra.mxu0 %v554
        %v1960 = vpop.f32.mrf.mxu0
        %v1961 = vadd.f32 %v1912, %v1960
        %v1962 = vpop.f32.mrf.mxu0
        %v1963 = vadd.f32 %v1914, %v1962
        %1964 = vmatmul.bf16.gmra.mxu0 %v557
        %v1965 = vpop.f32.mrf.mxu0
        %v1966 = vadd.f32 %v1917, %v1965
        %v1967 = vpop.f32.mrf.mxu0
        %v1968 = vadd.f32 %v1919, %v1967
        %1969 = vmatmul.bf16.gmra.mxu0 %v560
        %v1970 = vpop.f32.mrf.mxu0
        %v1971 = vadd.f32 %v1922, %v1970
        %v1972 = vpop.f32.mrf.mxu0
        %v1973 = vadd.f32 %v1924, %v1972
        %1974 = vmatmul.bf16.gmra.mxu0 %v563
        %v1975 = vpop.f32.mrf.mxu0
        %v1976 = vadd.f32 %v1927, %v1975
        %v1977 = vpop.f32.mrf.mxu0
        %v1978 = vadd.f32 %v1929, %v1977
        %1979 = vmatmul.bf16.gmra.mxu0 %v566
        %v1980 = vpop.f32.mrf.mxu0
        %v1981 = vadd.f32 %v1932, %v1980
        %v1982 = vpop.f32.mrf.mxu0
        %v1983 = vadd.f32 %v1934, %v1982
        %1984 = vmatmul.bf16.gmra.mxu0 %v569
        %v1985 = vpop.f32.mrf.mxu0
        %v1986 = vadd.f32 %v1937, %v1985
        %v1987 = vpop.f32.mrf.mxu0
        %v1988 = vadd.f32 %v1939, %v1987
        %1989 = vmatmul.bf16.gmra.mxu0 %v572
        %v1990 = vpop.f32.mrf.mxu0
        %v1991 = vadd.f32 %v1942, %v1990
        %v1992 = vpop.f32.mrf.mxu0
        %v1993 = vadd.f32 %v1944, %v1992
        %1994 = vdwg.mxu0
        %1995 = vmatpush.bf16.msra.mxu0 %v1334
        %1996 = vmatpush.bf16.msra.mxu0 %v1325
        %1997 = vmatpush.bf16.msra.mxu0 %v1316
        %1998 = vmatpush.bf16.msra.mxu0 %v1307
        %1999 = vmatpush.bf16.msra.mxu0 %v1298
        %2000 = vmatpush.bf16.msra.mxu0 %v1289
        %2001 = vmatpush.bf16.msra.mxu0 %v1280
        %2002 = vmatpush.bf16.msra.mxu0 %v1271
        %2003 = vmatmul.bf16.gmra.mxu0 %v549
        %v2004 = vpop.f32.mrf.mxu0
        %v2005 = vadd.f32 0.0, %v2004
        %v2006 = vpop.f32.mrf.mxu0
        %v2007 = vadd.f32 0.0, %v2006
        %2008 = vmatmul.bf16.gmra.mxu0 %v552
        %v2009 = vpop.f32.mrf.mxu0
        %v2010 = vadd.f32 0.0, %v2009
        %v2011 = vpop.f32.mrf.mxu0
        %v2012 = vadd.f32 0.0, %v2011
        %2013 = vmatmul.bf16.gmra.mxu0 %v555
        %v2014 = vpop.f32.mrf.mxu0
        %v2015 = vadd.f32 0.0, %v2014
        %v2016 = vpop.f32.mrf.mxu0
        %v2017 = vadd.f32 0.0, %v2016
        %2018 = vmatmul.bf16.gmra.mxu0 %v558
        %v2019 = vpop.f32.mrf.mxu0
        %v2020 = vadd.f32 0.0, %v2019
        %v2021 = vpop.f32.mrf.mxu0
        %v2022 = vadd.f32 0.0, %v2021
        %2023 = vmatmul.bf16.gmra.mxu0 %v561
        %v2024 = vpop.f32.mrf.mxu0
        %v2025 = vadd.f32 0.0, %v2024
        %v2026 = vpop.f32.mrf.mxu0
        %v2027 = vadd.f32 0.0, %v2026
        %2028 = vmatmul.bf16.gmra.mxu0 %v564
        %v2029 = vpop.f32.mrf.mxu0
        %v2030 = vadd.f32 0.0, %v2029
        %v2031 = vpop.f32.mrf.mxu0
        %v2032 = vadd.f32 0.0, %v2031
        %2033 = vmatmul.bf16.gmra.mxu0 %v567
        %v2034 = vpop.f32.mrf.mxu0
        %v2035 = vadd.f32 0.0, %v2034
        %v2036 = vpop.f32.mrf.mxu0
        %v2037 = vadd.f32 0.0, %v2036
        %2038 = vmatmul.bf16.gmra.mxu0 %v570
        %v2039 = vpop.f32.mrf.mxu0
        %v2040 = vadd.f32 0.0, %v2039
        %v2041 = vpop.f32.mrf.mxu0
        %v2042 = vadd.f32 0.0, %v2041
        %2043 = vdwg.mxu0
        %2044 = vmatpush.bf16.msra.mxu0 %v1406
        %2045 = vmatpush.bf16.msra.mxu0 %v1397
        %2046 = vmatpush.bf16.msra.mxu0 %v1388
        %2047 = vmatpush.bf16.msra.mxu0 %v1379
        %2048 = vmatpush.bf16.msra.mxu0 %v1370
        %2049 = vmatpush.bf16.msra.mxu0 %v1361
        %2050 = vmatpush.bf16.msra.mxu0 %v1352
        %2051 = vmatpush.bf16.msra.mxu0 %v1343
        %2052 = vmatmul.bf16.gmra.mxu0 %v550
        %v2053 = vpop.f32.mrf.mxu0
        %v2054 = vadd.f32 %v2005, %v2053
        %v2055 = vpop.f32.mrf.mxu0
        %v2056 = vadd.f32 %v2007, %v2055
        %2057 = vmatmul.bf16.gmra.mxu0 %v553
        %v2058 = vpop.f32.mrf.mxu0
        %v2059 = vadd.f32 %v2010, %v2058
        %v2060 = vpop.f32.mrf.mxu0
        %v2061 = vadd.f32 %v2012, %v2060
        %2062 = vmatmul.bf16.gmra.mxu0 %v556
        %v2063 = vpop.f32.mrf.mxu0
        %v2064 = vadd.f32 %v2015, %v2063
        %v2065 = vpop.f32.mrf.mxu0
        %v2066 = vadd.f32 %v2017, %v2065
        %2067 = vmatmul.bf16.gmra.mxu0 %v559
        %v2068 = vpop.f32.mrf.mxu0
        %v2069 = vadd.f32 %v2020, %v2068
        %v2070 = vpop.f32.mrf.mxu0
        %v2071 = vadd.f32 %v2022, %v2070
        %2072 = vmatmul.bf16.gmra.mxu0 %v562
        %v2073 = vpop.f32.mrf.mxu0
        %v2074 = vadd.f32 %v2025, %v2073
        %v2075 = vpop.f32.mrf.mxu0
        %v2076 = vadd.f32 %v2027, %v2075
        %2077 = vmatmul.bf16.gmra.mxu0 %v565
        %v2078 = vpop.f32.mrf.mxu0
        %v2079 = vadd.f32 %v2030, %v2078
        %v2080 = vpop.f32.mrf.mxu0
        %v2081 = vadd.f32 %v2032, %v2080
        %2082 = vmatmul.bf16.gmra.mxu0 %v568
        %v2083 = vpop.f32.mrf.mxu0
        %v2084 = vadd.f32 %v2035, %v2083
        %v2085 = vpop.f32.mrf.mxu0
        %v2086 = vadd.f32 %v2037, %v2085
        %2087 = vmatmul.bf16.gmra.mxu0 %v571
        %v2088 = vpop.f32.mrf.mxu0
        %v2089 = vadd.f32 %v2040, %v2088
        %v2090 = vpop.f32.mrf.mxu0
        %v2091 = vadd.f32 %v2042, %v2090
        %2092 = vdwg.mxu0
        %2093 = vmatpush.bf16.msra.mxu0 %v1478
        %2094 = vmatpush.bf16.msra.mxu0 %v1469
        %2095 = vmatpush.bf16.msra.mxu0 %v1460
        %2096 = vmatpush.bf16.msra.mxu0 %v1451
        %2097 = vmatpush.bf16.msra.mxu0 %v1442
        %2098 = vmatpush.bf16.msra.mxu0 %v1433
        %2099 = vmatpush.bf16.msra.mxu0 %v1424
        %2100 = vmatpush.bf16.msra.mxu0 %v1415
        %2101 = vmatmul.bf16.gmra.mxu0 %v551
        %v2102 = vpop.f32.mrf.mxu0
        %v2103 = vadd.f32 %v2054, %v2102
        %v2104 = vpop.f32.mrf.mxu0
        %v2105 = vadd.f32 %v2056, %v2104
        %2106 = vmatmul.bf16.gmra.mxu0 %v554
        %v2107 = vpop.f32.mrf.mxu0
        %v2108 = vadd.f32 %v2059, %v2107
        %v2109 = vpop.f32.mrf.mxu0
        %v2110 = vadd.f32 %v2061, %v2109
        %2111 = vmatmul.bf16.gmra.mxu0 %v557
        %v2112 = vpop.f32.mrf.mxu0
        %v2113 = vadd.f32 %v2064, %v2112
        %v2114 = vpop.f32.mrf.mxu0
        %v2115 = vadd.f32 %v2066, %v2114
        %2116 = vmatmul.bf16.gmra.mxu0 %v560
        %v2117 = vpop.f32.mrf.mxu0
        %v2118 = vadd.f32 %v2069, %v2117
        %v2119 = vpop.f32.mrf.mxu0
        %v2120 = vadd.f32 %v2071, %v2119
        %2121 = vmatmul.bf16.gmra.mxu0 %v563
        %v2122 = vpop.f32.mrf.mxu0
        %v2123 = vadd.f32 %v2074, %v2122
        %v2124 = vpop.f32.mrf.mxu0
        %v2125 = vadd.f32 %v2076, %v2124
        %2126 = vmatmul.bf16.gmra.mxu0 %v566
        %v2127 = vpop.f32.mrf.mxu0
        %v2128 = vadd.f32 %v2079, %v2127
        %v2129 = vpop.f32.mrf.mxu0
        %v2130 = vadd.f32 %v2081, %v2129
        %2131 = vmatmul.bf16.gmra.mxu0 %v569
        %v2132 = vpop.f32.mrf.mxu0
        %v2133 = vadd.f32 %v2084, %v2132
        %v2134 = vpop.f32.mrf.mxu0
        %v2135 = vadd.f32 %v2086, %v2134
        %2136 = vmatmul.bf16.gmra.mxu0 %v572
        %v2137 = vpop.f32.mrf.mxu0
        %v2138 = vadd.f32 %v2089, %v2137
        %v2139 = vpop.f32.mrf.mxu0
        %v2140 = vadd.f32 %v2091, %v2139
        %2141 = vdwg.mxu0
        %2142 = vmatpush.bf16.msra.mxu0 %v1335
        %2143 = vmatpush.bf16.msra.mxu0 %v1326
        %2144 = vmatpush.bf16.msra.mxu0 %v1317
        %2145 = vmatpush.bf16.msra.mxu0 %v1308
        %2146 = vmatpush.bf16.msra.mxu0 %v1299
        %2147 = vmatpush.bf16.msra.mxu0 %v1290
        %2148 = vmatpush.bf16.msra.mxu0 %v1281
        %2149 = vmatpush.bf16.msra.mxu0 %v1272
        %2150 = vmatmul.bf16.gmra.mxu0 %v549
        %v2151 = vpop.f32.mrf.mxu0
        %v2152 = vadd.f32 0.0, %v2151
        %v2153 = vpop.f32.mrf.mxu0
        %v2154 = vadd.f32 0.0, %v2153
        %2155 = vmatmul.bf16.gmra.mxu0 %v552
        %v2156 = vpop.f32.mrf.mxu0
        %v2157 = vadd.f32 0.0, %v2156
        %v2158 = vpop.f32.mrf.mxu0
        %v2159 = vadd.f32 0.0, %v2158
        %2160 = vmatmul.bf16.gmra.mxu0 %v555
        %v2161 = vpop.f32.mrf.mxu0
        %v2162 = vadd.f32 0.0, %v2161
        %v2163 = vpop.f32.mrf.mxu0
        %v2164 = vadd.f32 0.0, %v2163
        %2165 = vmatmul.bf16.gmra.mxu0 %v558
        %v2166 = vpop.f32.mrf.mxu0
        %v2167 = vadd.f32 0.0, %v2166
        %v2168 = vpop.f32.mrf.mxu0
        %v2169 = vadd.f32 0.0, %v2168
        %2170 = vmatmul.bf16.gmra.mxu0 %v561
        %v2171 = vpop.f32.mrf.mxu0
        %v2172 = vadd.f32 0.0, %v2171
        %v2173 = vpop.f32.mrf.mxu0
        %v2174 = vadd.f32 0.0, %v2173
        %2175 = vmatmul.bf16.gmra.mxu0 %v564
        %v2176 = vpop.f32.mrf.mxu0
        %v2177 = vadd.f32 0.0, %v2176
        %v2178 = vpop.f32.mrf.mxu0
        %v2179 = vadd.f32 0.0, %v2178
        %2180 = vmatmul.bf16.gmra.mxu0 %v567
        %v2181 = vpop.f32.mrf.mxu0
        %v2182 = vadd.f32 0.0, %v2181
        %v2183 = vpop.f32.mrf.mxu0
        %v2184 = vadd.f32 0.0, %v2183
        %2185 = vmatmul.bf16.gmra.mxu0 %v570
        %v2186 = vpop.f32.mrf.mxu0
        %v2187 = vadd.f32 0.0, %v2186
        %v2188 = vpop.f32.mrf.mxu0
        %v2189 = vadd.f32 0.0, %v2188
        %2190 = vdwg.mxu0
        %2191 = vmatpush.bf16.msra.mxu0 %v1407
        %2192 = vmatpush.bf16.msra.mxu0 %v1398
        %2193 = vmatpush.bf16.msra.mxu0 %v1389
        %2194 = vmatpush.bf16.msra.mxu0 %v1380
        %2195 = vmatpush.bf16.msra.mxu0 %v1371
        %2196 = vmatpush.bf16.msra.mxu0 %v1362
        %2197 = vmatpush.bf16.msra.mxu0 %v1353
        %2198 = vmatpush.bf16.msra.mxu0 %v1344
        %2199 = vmatmul.bf16.gmra.mxu0 %v550
        %v2200 = vpop.f32.mrf.mxu0
        %v2201 = vadd.f32 %v2152, %v2200
        %v2202 = vpop.f32.mrf.mxu0
        %v2203 = vadd.f32 %v2154, %v2202
        %2204 = vmatmul.bf16.gmra.mxu0 %v553
        %v2205 = vpop.f32.mrf.mxu0
        %v2206 = vadd.f32 %v2157, %v2205
        %v2207 = vpop.f32.mrf.mxu0
        %v2208 = vadd.f32 %v2159, %v2207
        %2209 = vmatmul.bf16.gmra.mxu0 %v556
        %v2210 = vpop.f32.mrf.mxu0
        %v2211 = vadd.f32 %v2162, %v2210
        %v2212 = vpop.f32.mrf.mxu0
        %v2213 = vadd.f32 %v2164, %v2212
        %2214 = vmatmul.bf16.gmra.mxu0 %v559
        %v2215 = vpop.f32.mrf.mxu0
        %v2216 = vadd.f32 %v2167, %v2215
        %v2217 = vpop.f32.mrf.mxu0
        %v2218 = vadd.f32 %v2169, %v2217
        %2219 = vmatmul.bf16.gmra.mxu0 %v562
        %v2220 = vpop.f32.mrf.mxu0
        %v2221 = vadd.f32 %v2172, %v2220
        %v2222 = vpop.f32.mrf.mxu0
        %v2223 = vadd.f32 %v2174, %v2222
        %2224 = vmatmul.bf16.gmra.mxu0 %v565
        %v2225 = vpop.f32.mrf.mxu0
        %v2226 = vadd.f32 %v2177, %v2225
        %v2227 = vpop.f32.mrf.mxu0
        %v2228 = vadd.f32 %v2179, %v2227
        %2229 = vmatmul.bf16.gmra.mxu0 %v568
        %v2230 = vpop.f32.mrf.mxu0
        %v2231 = vadd.f32 %v2182, %v2230
        %v2232 = vpop.f32.mrf.mxu0
        %v2233 = vadd.f32 %v2184, %v2232
        %2234 = vmatmul.bf16.gmra.mxu0 %v571
        %v2235 = vpop.f32.mrf.mxu0
        %v2236 = vadd.f32 %v2187, %v2235
        %v2237 = vpop.f32.mrf.mxu0
        %v2238 = vadd.f32 %v2189, %v2237
        %2239 = vdwg.mxu0
        %2240 = vmatpush.bf16.msra.mxu0 %v1479
        %2241 = vmatpush.bf16.msra.mxu0 %v1470
        %2242 = vmatpush.bf16.msra.mxu0 %v1461
        %2243 = vmatpush.bf16.msra.mxu0 %v1452
        %2244 = vmatpush.bf16.msra.mxu0 %v1443
        %2245 = vmatpush.bf16.msra.mxu0 %v1434
        %2246 = vmatpush.bf16.msra.mxu0 %v1425
        %2247 = vmatpush.bf16.msra.mxu0 %v1416
        %2248 = vmatmul.bf16.gmra.mxu0 %v551
        %v2249 = vpop.f32.mrf.mxu0
        %v2250 = vadd.f32 %v2201, %v2249
        %v2251 = vpop.f32.mrf.mxu0
        %v2252 = vadd.f32 %v2203, %v2251
        %2253 = vmatmul.bf16.gmra.mxu0 %v554
        %v2254 = vpop.f32.mrf.mxu0
        %v2255 = vadd.f32 %v2206, %v2254
        %v2256 = vpop.f32.mrf.mxu0
        %v2257 = vadd.f32 %v2208, %v2256
        %2258 = vmatmul.bf16.gmra.mxu0 %v557
        %v2259 = vpop.f32.mrf.mxu0
        %v2260 = vadd.f32 %v2211, %v2259
        %v2261 = vpop.f32.mrf.mxu0
        %v2262 = vadd.f32 %v2213, %v2261
        %2263 = vmatmul.bf16.gmra.mxu0 %v560
        %v2264 = vpop.f32.mrf.mxu0
        %v2265 = vadd.f32 %v2216, %v2264
        %v2266 = vpop.f32.mrf.mxu0
        %v2267 = vadd.f32 %v2218, %v2266
        %2268 = vmatmul.bf16.gmra.mxu0 %v563
        %v2269 = vpop.f32.mrf.mxu0
        %v2270 = vadd.f32 %v2221, %v2269
        %v2271 = vpop.f32.mrf.mxu0
        %v2272 = vadd.f32 %v2223, %v2271
        %2273 = vmatmul.bf16.gmra.mxu0 %v566
        %v2274 = vpop.f32.mrf.mxu0
        %v2275 = vadd.f32 %v2226, %v2274
        %v2276 = vpop.f32.mrf.mxu0
        %v2277 = vadd.f32 %v2228, %v2276
        %2278 = vmatmul.bf16.gmra.mxu0 %v569
        %v2279 = vpop.f32.mrf.mxu0
        %v2280 = vadd.f32 %v2231, %v2279
        %v2281 = vpop.f32.mrf.mxu0
        %v2282 = vadd.f32 %v2233, %v2281
        %2283 = vmatmul.bf16.gmra.mxu0 %v572
        %v2284 = vpop.f32.mrf.mxu0
        %v2285 = vadd.f32 %v2236, %v2284
        %v2286 = vpop.f32.mrf.mxu0
        %v2287 = vadd.f32 %v2238, %v2286
        %2288 = vdwg.mxu0
        %2289 = vmatpush.bf16.msra.mxu0 %v1336
        %2290 = vmatpush.bf16.msra.mxu0 %v1327
        %2291 = vmatpush.bf16.msra.mxu0 %v1318
        %2292 = vmatpush.bf16.msra.mxu0 %v1309
        %2293 = vmatpush.bf16.msra.mxu0 %v1300
        %2294 = vmatpush.bf16.msra.mxu0 %v1291
        %2295 = vmatpush.bf16.msra.mxu0 %v1282
        %2296 = vmatpush.bf16.msra.mxu0 %v1273
        %2297 = vmatmul.bf16.gmra.mxu0 %v549
        %v2298 = vpop.f32.mrf.mxu0
        %v2299 = vadd.f32 0.0, %v2298
        %v2300 = vpop.f32.mrf.mxu0
        %v2301 = vadd.f32 0.0, %v2300
        %2302 = vmatmul.bf16.gmra.mxu0 %v552
        %v2303 = vpop.f32.mrf.mxu0
        %v2304 = vadd.f32 0.0, %v2303
        %v2305 = vpop.f32.mrf.mxu0
        %v2306 = vadd.f32 0.0, %v2305
        %2307 = vmatmul.bf16.gmra.mxu0 %v555
        %v2308 = vpop.f32.mrf.mxu0
        %v2309 = vadd.f32 0.0, %v2308
        %v2310 = vpop.f32.mrf.mxu0
        %v2311 = vadd.f32 0.0, %v2310
        %2312 = vmatmul.bf16.gmra.mxu0 %v558
        %v2313 = vpop.f32.mrf.mxu0
        %v2314 = vadd.f32 0.0, %v2313
        %v2315 = vpop.f32.mrf.mxu0
        %v2316 = vadd.f32 0.0, %v2315
        %2317 = vmatmul.bf16.gmra.mxu0 %v561
        %v2318 = vpop.f32.mrf.mxu0
        %v2319 = vadd.f32 0.0, %v2318
        %v2320 = vpop.f32.mrf.mxu0
        %v2321 = vadd.f32 0.0, %v2320
        %2322 = vmatmul.bf16.gmra.mxu0 %v564
        %v2323 = vpop.f32.mrf.mxu0
        %v2324 = vadd.f32 0.0, %v2323
        %v2325 = vpop.f32.mrf.mxu0
        %v2326 = vadd.f32 0.0, %v2325
        %2327 = vmatmul.bf16.gmra.mxu0 %v567
        %v2328 = vpop.f32.mrf.mxu0
        %v2329 = vadd.f32 0.0, %v2328
        %v2330 = vpop.f32.mrf.mxu0
        %v2331 = vadd.f32 0.0, %v2330
        %2332 = vmatmul.bf16.gmra.mxu0 %v570
        %v2333 = vpop.f32.mrf.mxu0
        %v2334 = vadd.f32 0.0, %v2333
        %v2335 = vpop.f32.mrf.mxu0
        %v2336 = vadd.f32 0.0, %v2335
        %2337 = vdwg.mxu0
        %2338 = vmatpush.bf16.msra.mxu0 %v1408
        %2339 = vmatpush.bf16.msra.mxu0 %v1399
        %2340 = vmatpush.bf16.msra.mxu0 %v1390
        %2341 = vmatpush.bf16.msra.mxu0 %v1381
        %2342 = vmatpush.bf16.msra.mxu0 %v1372
        %2343 = vmatpush.bf16.msra.mxu0 %v1363
        %2344 = vmatpush.bf16.msra.mxu0 %v1354
        %2345 = vmatpush.bf16.msra.mxu0 %v1345
        %2346 = vmatmul.bf16.gmra.mxu0 %v550
        %v2347 = vpop.f32.mrf.mxu0
        %v2348 = vadd.f32 %v2299, %v2347
        %v2349 = vpop.f32.mrf.mxu0
        %v2350 = vadd.f32 %v2301, %v2349
        %2351 = vmatmul.bf16.gmra.mxu0 %v553
        %v2352 = vpop.f32.mrf.mxu0
        %v2353 = vadd.f32 %v2304, %v2352
        %v2354 = vpop.f32.mrf.mxu0
        %v2355 = vadd.f32 %v2306, %v2354
        %2356 = vmatmul.bf16.gmra.mxu0 %v556
        %v2357 = vpop.f32.mrf.mxu0
        %v2358 = vadd.f32 %v2309, %v2357
        %v2359 = vpop.f32.mrf.mxu0
        %v2360 = vadd.f32 %v2311, %v2359
        %2361 = vmatmul.bf16.gmra.mxu0 %v559
        %v2362 = vpop.f32.mrf.mxu0
        %v2363 = vadd.f32 %v2314, %v2362
        %v2364 = vpop.f32.mrf.mxu0
        %v2365 = vadd.f32 %v2316, %v2364
        %2366 = vmatmul.bf16.gmra.mxu0 %v562
        %v2367 = vpop.f32.mrf.mxu0
        %v2368 = vadd.f32 %v2319, %v2367
        %v2369 = vpop.f32.mrf.mxu0
        %v2370 = vadd.f32 %v2321, %v2369
        %2371 = vmatmul.bf16.gmra.mxu0 %v565
        %v2372 = vpop.f32.mrf.mxu0
        %v2373 = vadd.f32 %v2324, %v2372
        %v2374 = vpop.f32.mrf.mxu0
        %v2375 = vadd.f32 %v2326, %v2374
        %2376 = vmatmul.bf16.gmra.mxu0 %v568
        %v2377 = vpop.f32.mrf.mxu0
        %v2378 = vadd.f32 %v2329, %v2377
        %v2379 = vpop.f32.mrf.mxu0
        %v2380 = vadd.f32 %v2331, %v2379
        %2381 = vmatmul.bf16.gmra.mxu0 %v571
        %v2382 = vpop.f32.mrf.mxu0
        %v2383 = vadd.f32 %v2334, %v2382
        %v2384 = vpop.f32.mrf.mxu0
        %v2385 = vadd.f32 %v2336, %v2384
        %2386 = vdwg.mxu0
        %2387 = vmatpush.bf16.msra.mxu0 %v1480
        %2388 = vmatpush.bf16.msra.mxu0 %v1471
        %2389 = vmatpush.bf16.msra.mxu0 %v1462
        %2390 = vmatpush.bf16.msra.mxu0 %v1453
        %2391 = vmatpush.bf16.msra.mxu0 %v1444
        %2392 = vmatpush.bf16.msra.mxu0 %v1435
        %2393 = vmatpush.bf16.msra.mxu0 %v1426
        %2394 = vmatpush.bf16.msra.mxu0 %v1417
        %2395 = vmatmul.bf16.gmra.mxu0 %v551
        %v2396 = vpop.f32.mrf.mxu0
        %v2397 = vadd.f32 %v2348, %v2396
        %v2398 = vpop.f32.mrf.mxu0
        %v2399 = vadd.f32 %v2350, %v2398
        %2400 = vmatmul.bf16.gmra.mxu0 %v554
        %v2401 = vpop.f32.mrf.mxu0
        %v2402 = vadd.f32 %v2353, %v2401
        %v2403 = vpop.f32.mrf.mxu0
        %v2404 = vadd.f32 %v2355, %v2403
        %2405 = vmatmul.bf16.gmra.mxu0 %v557
        %v2406 = vpop.f32.mrf.mxu0
        %v2407 = vadd.f32 %v2358, %v2406
        %v2408 = vpop.f32.mrf.mxu0
        %v2409 = vadd.f32 %v2360, %v2408
        %2410 = vmatmul.bf16.gmra.mxu0 %v560
        %v2411 = vpop.f32.mrf.mxu0
        %v2412 = vadd.f32 %v2363, %v2411
        %v2413 = vpop.f32.mrf.mxu0
        %v2414 = vadd.f32 %v2365, %v2413
        %2415 = vmatmul.bf16.gmra.mxu0 %v563
        %v2416 = vpop.f32.mrf.mxu0
        %v2417 = vadd.f32 %v2368, %v2416
        %v2418 = vpop.f32.mrf.mxu0
        %v2419 = vadd.f32 %v2370, %v2418
        %2420 = vmatmul.bf16.gmra.mxu0 %v566
        %v2421 = vpop.f32.mrf.mxu0
        %v2422 = vadd.f32 %v2373, %v2421
        %v2423 = vpop.f32.mrf.mxu0
        %v2424 = vadd.f32 %v2375, %v2423
        %2425 = vmatmul.bf16.gmra.mxu0 %v569
        %v2426 = vpop.f32.mrf.mxu0
        %v2427 = vadd.f32 %v2378, %v2426
        %v2428 = vpop.f32.mrf.mxu0
        %v2429 = vadd.f32 %v2380, %v2428
        %2430 = vmatmul.bf16.gmra.mxu0 %v572
        %v2431 = vpop.f32.mrf.mxu0
        %v2432 = vadd.f32 %v2383, %v2431
        %v2433 = vpop.f32.mrf.mxu0
        %v2434 = vadd.f32 %v2385, %v2433
        %2435 = vdwg.mxu0
        %2436 = vmatpush.bf16.msra.mxu0 %v1337
        %2437 = vmatpush.bf16.msra.mxu0 %v1328
        %2438 = vmatpush.bf16.msra.mxu0 %v1319
        %2439 = vmatpush.bf16.msra.mxu0 %v1310
        %2440 = vmatpush.bf16.msra.mxu0 %v1301
        %2441 = vmatpush.bf16.msra.mxu0 %v1292
        %2442 = vmatpush.bf16.msra.mxu0 %v1283
        %2443 = vmatpush.bf16.msra.mxu0 %v1274
        %2444 = vmatmul.bf16.gmra.mxu0 %v549
        %v2445 = vpop.f32.mrf.mxu0
        %v2446 = vadd.f32 0.0, %v2445
        %v2447 = vpop.f32.mrf.mxu0
        %v2448 = vadd.f32 0.0, %v2447
        %2449 = vmatmul.bf16.gmra.mxu0 %v552
        %v2450 = vpop.f32.mrf.mxu0
        %v2451 = vadd.f32 0.0, %v2450
        %v2452 = vpop.f32.mrf.mxu0
        %v2453 = vadd.f32 0.0, %v2452
        %2454 = vmatmul.bf16.gmra.mxu0 %v555
        %v2455 = vpop.f32.mrf.mxu0
        %v2456 = vadd.f32 0.0, %v2455
        %v2457 = vpop.f32.mrf.mxu0
        %v2458 = vadd.f32 0.0, %v2457
        %2459 = vmatmul.bf16.gmra.mxu0 %v558
        %v2460 = vpop.f32.mrf.mxu0
        %v2461 = vadd.f32 0.0, %v2460
        %v2462 = vpop.f32.mrf.mxu0
        %v2463 = vadd.f32 0.0, %v2462
        %2464 = vmatmul.bf16.gmra.mxu0 %v561
        %v2465 = vpop.f32.mrf.mxu0
        %v2466 = vadd.f32 0.0, %v2465
        %v2467 = vpop.f32.mrf.mxu0
        %v2468 = vadd.f32 0.0, %v2467
        %2469 = vmatmul.bf16.gmra.mxu0 %v564
        %v2470 = vpop.f32.mrf.mxu0
        %v2471 = vadd.f32 0.0, %v2470
        %v2472 = vpop.f32.mrf.mxu0
        %v2473 = vadd.f32 0.0, %v2472
        %2474 = vmatmul.bf16.gmra.mxu0 %v567
        %v2475 = vpop.f32.mrf.mxu0
        %v2476 = vadd.f32 0.0, %v2475
        %v2477 = vpop.f32.mrf.mxu0
        %v2478 = vadd.f32 0.0, %v2477
        %2479 = vmatmul.bf16.gmra.mxu0 %v570
        %v2480 = vpop.f32.mrf.mxu0
        %v2481 = vadd.f32 0.0, %v2480
        %v2482 = vpop.f32.mrf.mxu0
        %v2483 = vadd.f32 0.0, %v2482
        %2484 = vdwg.mxu0
        %2485 = vmatpush.bf16.msra.mxu0 %v1409
        %2486 = vmatpush.bf16.msra.mxu0 %v1400
        %2487 = vmatpush.bf16.msra.mxu0 %v1391
        %2488 = vmatpush.bf16.msra.mxu0 %v1382
        %2489 = vmatpush.bf16.msra.mxu0 %v1373
        %2490 = vmatpush.bf16.msra.mxu0 %v1364
        %2491 = vmatpush.bf16.msra.mxu0 %v1355
        %2492 = vmatpush.bf16.msra.mxu0 %v1346
        %2493 = vmatmul.bf16.gmra.mxu0 %v550
        %v2494 = vpop.f32.mrf.mxu0
        %v2495 = vadd.f32 %v2446, %v2494
        %v2496 = vpop.f32.mrf.mxu0
        %v2497 = vadd.f32 %v2448, %v2496
        %2498 = vmatmul.bf16.gmra.mxu0 %v553
        %v2499 = vpop.f32.mrf.mxu0
        %v2500 = vadd.f32 %v2451, %v2499
        %v2501 = vpop.f32.mrf.mxu0
        %v2502 = vadd.f32 %v2453, %v2501
        %2503 = vmatmul.bf16.gmra.mxu0 %v556
        %v2504 = vpop.f32.mrf.mxu0
        %v2505 = vadd.f32 %v2456, %v2504
        %v2506 = vpop.f32.mrf.mxu0
        %v2507 = vadd.f32 %v2458, %v2506
        %2508 = vmatmul.bf16.gmra.mxu0 %v559
        %v2509 = vpop.f32.mrf.mxu0
        %v2510 = vadd.f32 %v2461, %v2509
        %v2511 = vpop.f32.mrf.mxu0
        %v2512 = vadd.f32 %v2463, %v2511
        %2513 = vmatmul.bf16.gmra.mxu0 %v562
        %v2514 = vpop.f32.mrf.mxu0
        %v2515 = vadd.f32 %v2466, %v2514
        %v2516 = vpop.f32.mrf.mxu0
        %v2517 = vadd.f32 %v2468, %v2516
        %2518 = vmatmul.bf16.gmra.mxu0 %v565
        %v2519 = vpop.f32.mrf.mxu0
        %v2520 = vadd.f32 %v2471, %v2519
        %v2521 = vpop.f32.mrf.mxu0
        %v2522 = vadd.f32 %v2473, %v2521
        %2523 = vmatmul.bf16.gmra.mxu0 %v568
        %v2524 = vpop.f32.mrf.mxu0
        %v2525 = vadd.f32 %v2476, %v2524
        %v2526 = vpop.f32.mrf.mxu0
        %v2527 = vadd.f32 %v2478, %v2526
        %2528 = vmatmul.bf16.gmra.mxu0 %v571
        %v2529 = vpop.f32.mrf.mxu0
        %v2530 = vadd.f32 %v2481, %v2529
        %v2531 = vpop.f32.mrf.mxu0
        %v2532 = vadd.f32 %v2483, %v2531
        %2533 = vdwg.mxu0
        %2534 = vmatpush.bf16.msra.mxu0 %v1481
        %2535 = vmatpush.bf16.msra.mxu0 %v1472
        %2536 = vmatpush.bf16.msra.mxu0 %v1463
        %2537 = vmatpush.bf16.msra.mxu0 %v1454
        %2538 = vmatpush.bf16.msra.mxu0 %v1445
        %2539 = vmatpush.bf16.msra.mxu0 %v1436
        %2540 = vmatpush.bf16.msra.mxu0 %v1427
        %2541 = vmatpush.bf16.msra.mxu0 %v1418
        %2542 = vmatmul.bf16.gmra.mxu0 %v551
        %v2543 = vpop.f32.mrf.mxu0
        %v2544 = vadd.f32 %v2495, %v2543
        %v2545 = vpop.f32.mrf.mxu0
        %v2546 = vadd.f32 %v2497, %v2545
        %2547 = vmatmul.bf16.gmra.mxu0 %v554
        %v2548 = vpop.f32.mrf.mxu0
        %v2549 = vadd.f32 %v2500, %v2548
        %v2550 = vpop.f32.mrf.mxu0
        %v2551 = vadd.f32 %v2502, %v2550
        %2552 = vmatmul.bf16.gmra.mxu0 %v557
        %v2553 = vpop.f32.mrf.mxu0
        %v2554 = vadd.f32 %v2505, %v2553
        %v2555 = vpop.f32.mrf.mxu0
        %v2556 = vadd.f32 %v2507, %v2555
        %2557 = vmatmul.bf16.gmra.mxu0 %v560
        %v2558 = vpop.f32.mrf.mxu0
        %v2559 = vadd.f32 %v2510, %v2558
        %v2560 = vpop.f32.mrf.mxu0
        %v2561 = vadd.f32 %v2512, %v2560
        %2562 = vmatmul.bf16.gmra.mxu0 %v563
        %v2563 = vpop.f32.mrf.mxu0
        %v2564 = vadd.f32 %v2515, %v2563
        %v2565 = vpop.f32.mrf.mxu0
        %v2566 = vadd.f32 %v2517, %v2565
        %2567 = vmatmul.bf16.gmra.mxu0 %v566
        %v2568 = vpop.f32.mrf.mxu0
        %v2569 = vadd.f32 %v2520, %v2568
        %v2570 = vpop.f32.mrf.mxu0
        %v2571 = vadd.f32 %v2522, %v2570
        %2572 = vmatmul.bf16.gmra.mxu0 %v569
        %v2573 = vpop.f32.mrf.mxu0
        %v2574 = vadd.f32 %v2525, %v2573
        %v2575 = vpop.f32.mrf.mxu0
        %v2576 = vadd.f32 %v2527, %v2575
        %2577 = vmatmul.bf16.gmra.mxu0 %v572
        %v2578 = vpop.f32.mrf.mxu0
        %v2579 = vadd.f32 %v2530, %v2578
        %v2580 = vpop.f32.mrf.mxu0
        %v2581 = vadd.f32 %v2532, %v2580
        %2582 = vdwg.mxu0
        %2583 = vmatpush.bf16.msra.mxu0 %v1338
        %2584 = vmatpush.bf16.msra.mxu0 %v1329
        %2585 = vmatpush.bf16.msra.mxu0 %v1320
        %2586 = vmatpush.bf16.msra.mxu0 %v1311
        %2587 = vmatpush.bf16.msra.mxu0 %v1302
        %2588 = vmatpush.bf16.msra.mxu0 %v1293
        %2589 = vmatpush.bf16.msra.mxu0 %v1284
        %2590 = vmatpush.bf16.msra.mxu0 %v1275
        %2591 = vmatmul.bf16.gmra.mxu0 %v549
        %v2592 = vpop.f32.mrf.mxu0
        %v2593 = vadd.f32 0.0, %v2592
        %v2594 = vpop.f32.mrf.mxu0
        %v2595 = vadd.f32 0.0, %v2594
        %2596 = vmatmul.bf16.gmra.mxu0 %v552
        %v2597 = vpop.f32.mrf.mxu0
        %v2598 = vadd.f32 0.0, %v2597
        %v2599 = vpop.f32.mrf.mxu0
        %v2600 = vadd.f32 0.0, %v2599
        %2601 = vmatmul.bf16.gmra.mxu0 %v555
        %v2602 = vpop.f32.mrf.mxu0
        %v2603 = vadd.f32 0.0, %v2602
        %v2604 = vpop.f32.mrf.mxu0
        %v2605 = vadd.f32 0.0, %v2604
        %2606 = vmatmul.bf16.gmra.mxu0 %v558
        %v2607 = vpop.f32.mrf.mxu0
        %v2608 = vadd.f32 0.0, %v2607
        %v2609 = vpop.f32.mrf.mxu0
        %v2610 = vadd.f32 0.0, %v2609
        %2611 = vmatmul.bf16.gmra.mxu0 %v561
        %v2612 = vpop.f32.mrf.mxu0
        %v2613 = vadd.f32 0.0, %v2612
        %v2614 = vpop.f32.mrf.mxu0
        %v2615 = vadd.f32 0.0, %v2614
        %2616 = vmatmul.bf16.gmra.mxu0 %v564
        %v2617 = vpop.f32.mrf.mxu0
        %v2618 = vadd.f32 0.0, %v2617
        %v2619 = vpop.f32.mrf.mxu0
        %v2620 = vadd.f32 0.0, %v2619
        %2621 = vmatmul.bf16.gmra.mxu0 %v567
        %v2622 = vpop.f32.mrf.mxu0
        %v2623 = vadd.f32 0.0, %v2622
        %v2624 = vpop.f32.mrf.mxu0
        %v2625 = vadd.f32 0.0, %v2624
        %2626 = vmatmul.bf16.gmra.mxu0 %v570
        %v2627 = vpop.f32.mrf.mxu0
        %v2628 = vadd.f32 0.0, %v2627
        %v2629 = vpop.f32.mrf.mxu0
        %v2630 = vadd.f32 0.0, %v2629
        %2631 = vdwg.mxu0
        %2632 = vmatpush.bf16.msra.mxu0 %v1410
        %2633 = vmatpush.bf16.msra.mxu0 %v1401
        %2634 = vmatpush.bf16.msra.mxu0 %v1392
        %2635 = vmatpush.bf16.msra.mxu0 %v1383
        %2636 = vmatpush.bf16.msra.mxu0 %v1374
        %2637 = vmatpush.bf16.msra.mxu0 %v1365
        %2638 = vmatpush.bf16.msra.mxu0 %v1356
        %2639 = vmatpush.bf16.msra.mxu0 %v1347
        %2640 = vmatmul.bf16.gmra.mxu0 %v550
        %v2641 = vpop.f32.mrf.mxu0
        %v2642 = vadd.f32 %v2593, %v2641
        %v2643 = vpop.f32.mrf.mxu0
        %v2644 = vadd.f32 %v2595, %v2643
        %2645 = vmatmul.bf16.gmra.mxu0 %v553
        %v2646 = vpop.f32.mrf.mxu0
        %v2647 = vadd.f32 %v2598, %v2646
        %v2648 = vpop.f32.mrf.mxu0
        %v2649 = vadd.f32 %v2600, %v2648
        %2650 = vmatmul.bf16.gmra.mxu0 %v556
        %v2651 = vpop.f32.mrf.mxu0
        %v2652 = vadd.f32 %v2603, %v2651
        %v2653 = vpop.f32.mrf.mxu0
        %v2654 = vadd.f32 %v2605, %v2653
        %2655 = vmatmul.bf16.gmra.mxu0 %v559
        %v2656 = vpop.f32.mrf.mxu0
        %v2657 = vadd.f32 %v2608, %v2656
        %v2658 = vpop.f32.mrf.mxu0
        %v2659 = vadd.f32 %v2610, %v2658
        %2660 = vmatmul.bf16.gmra.mxu0 %v562
        %v2661 = vpop.f32.mrf.mxu0
        %v2662 = vadd.f32 %v2613, %v2661
        %v2663 = vpop.f32.mrf.mxu0
        %v2664 = vadd.f32 %v2615, %v2663
        %2665 = vmatmul.bf16.gmra.mxu0 %v565
        %v2666 = vpop.f32.mrf.mxu0
        %v2667 = vadd.f32 %v2618, %v2666
        %v2668 = vpop.f32.mrf.mxu0
        %v2669 = vadd.f32 %v2620, %v2668
        %2670 = vmatmul.bf16.gmra.mxu0 %v568
        %v2671 = vpop.f32.mrf.mxu0
        %v2672 = vadd.f32 %v2623, %v2671
        %v2673 = vpop.f32.mrf.mxu0
        %v2674 = vadd.f32 %v2625, %v2673
        %2675 = vmatmul.bf16.gmra.mxu0 %v571
        %v2676 = vpop.f32.mrf.mxu0
        %v2677 = vadd.f32 %v2628, %v2676
        %v2678 = vpop.f32.mrf.mxu0
        %v2679 = vadd.f32 %v2630, %v2678
        %2680 = vdwg.mxu0
        %2681 = vmatpush.bf16.msra.mxu0 %v1482
        %2682 = vmatpush.bf16.msra.mxu0 %v1473
        %2683 = vmatpush.bf16.msra.mxu0 %v1464
        %2684 = vmatpush.bf16.msra.mxu0 %v1455
        %2685 = vmatpush.bf16.msra.mxu0 %v1446
        %2686 = vmatpush.bf16.msra.mxu0 %v1437
        %2687 = vmatpush.bf16.msra.mxu0 %v1428
        %2688 = vmatpush.bf16.msra.mxu0 %v1419
        %2689 = vmatmul.bf16.gmra.mxu0 %v551
        %v2690 = vpop.f32.mrf.mxu0
        %v2691 = vadd.f32 %v2642, %v2690
        %v2692 = vpop.f32.mrf.mxu0
        %v2693 = vadd.f32 %v2644, %v2692
        %2694 = vmatmul.bf16.gmra.mxu0 %v554
        %v2695 = vpop.f32.mrf.mxu0
        %v2696 = vadd.f32 %v2647, %v2695
        %v2697 = vpop.f32.mrf.mxu0
        %v2698 = vadd.f32 %v2649, %v2697
        %2699 = vmatmul.bf16.gmra.mxu0 %v557
        %v2700 = vpop.f32.mrf.mxu0
        %v2701 = vadd.f32 %v2652, %v2700
        %v2702 = vpop.f32.mrf.mxu0
        %v2703 = vadd.f32 %v2654, %v2702
        %2704 = vmatmul.bf16.gmra.mxu0 %v560
        %v2705 = vpop.f32.mrf.mxu0
        %v2706 = vadd.f32 %v2657, %v2705
        %v2707 = vpop.f32.mrf.mxu0
        %v2708 = vadd.f32 %v2659, %v2707
        %2709 = vmatmul.bf16.gmra.mxu0 %v563
        %v2710 = vpop.f32.mrf.mxu0
        %v2711 = vadd.f32 %v2662, %v2710
        %v2712 = vpop.f32.mrf.mxu0
        %v2713 = vadd.f32 %v2664, %v2712
        %2714 = vmatmul.bf16.gmra.mxu0 %v566
        %v2715 = vpop.f32.mrf.mxu0
        %v2716 = vadd.f32 %v2667, %v2715
        %v2717 = vpop.f32.mrf.mxu0
        %v2718 = vadd.f32 %v2669, %v2717
        %2719 = vmatmul.bf16.gmra.mxu0 %v569
        %v2720 = vpop.f32.mrf.mxu0
        %v2721 = vadd.f32 %v2672, %v2720
        %v2722 = vpop.f32.mrf.mxu0
        %v2723 = vadd.f32 %v2674, %v2722
        %2724 = vmatmul.bf16.gmra.mxu0 %v572
        %v2725 = vpop.f32.mrf.mxu0
        %v2726 = vadd.f32 %v2677, %v2725
        %v2727 = vpop.f32.mrf.mxu0
        %v2728 = vadd.f32 %v2679, %v2727
        %2729 = vdwg.mxu0
        %2730 = vmatpush.bf16.msra.mxu0 %v1339
        %2731 = vmatpush.bf16.msra.mxu0 %v1330
        %2732 = vmatpush.bf16.msra.mxu0 %v1321
        %2733 = vmatpush.bf16.msra.mxu0 %v1312
        %2734 = vmatpush.bf16.msra.mxu0 %v1303
        %2735 = vmatpush.bf16.msra.mxu0 %v1294
        %2736 = vmatpush.bf16.msra.mxu0 %v1285
        %2737 = vmatpush.bf16.msra.mxu0 %v1276
        %2738 = vmatmul.bf16.gmra.mxu0 %v549
        %v2739 = vpop.f32.mrf.mxu0
        %v2740 = vadd.f32 0.0, %v2739
        %v2741 = vpop.f32.mrf.mxu0
        %v2742 = vadd.f32 0.0, %v2741
        %2743 = vmatmul.bf16.gmra.mxu0 %v552
        %v2744 = vpop.f32.mrf.mxu0
        %v2745 = vadd.f32 0.0, %v2744
        %v2746 = vpop.f32.mrf.mxu0
        %v2747 = vadd.f32 0.0, %v2746
        %2748 = vmatmul.bf16.gmra.mxu0 %v555
        %v2749 = vpop.f32.mrf.mxu0
        %v2750 = vadd.f32 0.0, %v2749
        %v2751 = vpop.f32.mrf.mxu0
        %v2752 = vadd.f32 0.0, %v2751
        %2753 = vmatmul.bf16.gmra.mxu0 %v558
        %v2754 = vpop.f32.mrf.mxu0
        %v2755 = vadd.f32 0.0, %v2754
        %v2756 = vpop.f32.mrf.mxu0
        %v2757 = vadd.f32 0.0, %v2756
        %2758 = vmatmul.bf16.gmra.mxu0 %v561
        %v2759 = vpop.f32.mrf.mxu0
        %v2760 = vadd.f32 0.0, %v2759
        %v2761 = vpop.f32.mrf.mxu0
        %v2762 = vadd.f32 0.0, %v2761
        %2763 = vmatmul.bf16.gmra.mxu0 %v564
        %v2764 = vpop.f32.mrf.mxu0
        %v2765 = vadd.f32 0.0, %v2764
        %v2766 = vpop.f32.mrf.mxu0
        %v2767 = vadd.f32 0.0, %v2766
        %2768 = vmatmul.bf16.gmra.mxu0 %v567
        %v2769 = vpop.f32.mrf.mxu0
        %v2770 = vadd.f32 0.0, %v2769
        %v2771 = vpop.f32.mrf.mxu0
        %v2772 = vadd.f32 0.0, %v2771
        %2773 = vmatmul.bf16.gmra.mxu0 %v570
        %v2774 = vpop.f32.mrf.mxu0
        %v2775 = vadd.f32 0.0, %v2774
        %v2776 = vpop.f32.mrf.mxu0
        %v2777 = vadd.f32 0.0, %v2776
        %2778 = vdwg.mxu0
        %2779 = vmatpush.bf16.msra.mxu0 %v1411
        %2780 = vmatpush.bf16.msra.mxu0 %v1402
        %2781 = vmatpush.bf16.msra.mxu0 %v1393
        %2782 = vmatpush.bf16.msra.mxu0 %v1384
        %2783 = vmatpush.bf16.msra.mxu0 %v1375
        %2784 = vmatpush.bf16.msra.mxu0 %v1366
        %2785 = vmatpush.bf16.msra.mxu0 %v1357
        %2786 = vmatpush.bf16.msra.mxu0 %v1348
        %2787 = vmatmul.bf16.gmra.mxu0 %v550
        %v2788 = vpop.f32.mrf.mxu0
        %v2789 = vadd.f32 %v2740, %v2788
        %v2790 = vpop.f32.mrf.mxu0
        %v2791 = vadd.f32 %v2742, %v2790
        %2792 = vmatmul.bf16.gmra.mxu0 %v553
        %v2793 = vpop.f32.mrf.mxu0
        %v2794 = vadd.f32 %v2745, %v2793
        %v2795 = vpop.f32.mrf.mxu0
        %v2796 = vadd.f32 %v2747, %v2795
        %2797 = vmatmul.bf16.gmra.mxu0 %v556
        %v2798 = vpop.f32.mrf.mxu0
        %v2799 = vadd.f32 %v2750, %v2798
        %v2800 = vpop.f32.mrf.mxu0
        %v2801 = vadd.f32 %v2752, %v2800
        %2802 = vmatmul.bf16.gmra.mxu0 %v559
        %v2803 = vpop.f32.mrf.mxu0
        %v2804 = vadd.f32 %v2755, %v2803
        %v2805 = vpop.f32.mrf.mxu0
        %v2806 = vadd.f32 %v2757, %v2805
        %2807 = vmatmul.bf16.gmra.mxu0 %v562
        %v2808 = vpop.f32.mrf.mxu0
        %v2809 = vadd.f32 %v2760, %v2808
        %v2810 = vpop.f32.mrf.mxu0
        %v2811 = vadd.f32 %v2762, %v2810
        %2812 = vmatmul.bf16.gmra.mxu0 %v565
        %v2813 = vpop.f32.mrf.mxu0
        %v2814 = vadd.f32 %v2765, %v2813
        %v2815 = vpop.f32.mrf.mxu0
        %v2816 = vadd.f32 %v2767, %v2815
        %2817 = vmatmul.bf16.gmra.mxu0 %v568
        %v2818 = vpop.f32.mrf.mxu0
        %v2819 = vadd.f32 %v2770, %v2818
        %v2820 = vpop.f32.mrf.mxu0
        %v2821 = vadd.f32 %v2772, %v2820
        %2822 = vmatmul.bf16.gmra.mxu0 %v571
        %v2823 = vpop.f32.mrf.mxu0
        %v2824 = vadd.f32 %v2775, %v2823
        %v2825 = vpop.f32.mrf.mxu0
        %v2826 = vadd.f32 %v2777, %v2825
        %2827 = vdwg.mxu0
        %2828 = vmatpush.bf16.msra.mxu0 %v1483
        %2829 = vmatpush.bf16.msra.mxu0 %v1474
        %2830 = vmatpush.bf16.msra.mxu0 %v1465
        %2831 = vmatpush.bf16.msra.mxu0 %v1456
        %2832 = vmatpush.bf16.msra.mxu0 %v1447
        %2833 = vmatpush.bf16.msra.mxu0 %v1438
        %2834 = vmatpush.bf16.msra.mxu0 %v1429
        %2835 = vmatpush.bf16.msra.mxu0 %v1420
        %2836 = vmatmul.bf16.gmra.mxu0 %v551
        %v2837 = vpop.f32.mrf.mxu0
        %v2838 = vadd.f32 %v2789, %v2837
        %v2839 = vpop.f32.mrf.mxu0
        %v2840 = vadd.f32 %v2791, %v2839
        %2841 = vmatmul.bf16.gmra.mxu0 %v554
        %v2842 = vpop.f32.mrf.mxu0
        %v2843 = vadd.f32 %v2794, %v2842
        %v2844 = vpop.f32.mrf.mxu0
        %v2845 = vadd.f32 %v2796, %v2844
        %2846 = vmatmul.bf16.gmra.mxu0 %v557
        %v2847 = vpop.f32.mrf.mxu0
        %v2848 = vadd.f32 %v2799, %v2847
        %v2849 = vpop.f32.mrf.mxu0
        %v2850 = vadd.f32 %v2801, %v2849
        %2851 = vmatmul.bf16.gmra.mxu0 %v560
        %v2852 = vpop.f32.mrf.mxu0
        %v2853 = vadd.f32 %v2804, %v2852
        %v2854 = vpop.f32.mrf.mxu0
        %v2855 = vadd.f32 %v2806, %v2854
        %2856 = vmatmul.bf16.gmra.mxu0 %v563
        %v2857 = vpop.f32.mrf.mxu0
        %v2858 = vadd.f32 %v2809, %v2857
        %v2859 = vpop.f32.mrf.mxu0
        %v2860 = vadd.f32 %v2811, %v2859
        %2861 = vmatmul.bf16.gmra.mxu0 %v566
        %v2862 = vpop.f32.mrf.mxu0
        %v2863 = vadd.f32 %v2814, %v2862
        %v2864 = vpop.f32.mrf.mxu0
        %v2865 = vadd.f32 %v2816, %v2864
        %2866 = vmatmul.bf16.gmra.mxu0 %v569
        %v2867 = vpop.f32.mrf.mxu0
        %v2868 = vadd.f32 %v2819, %v2867
        %v2869 = vpop.f32.mrf.mxu0
        %v2870 = vadd.f32 %v2821, %v2869
        %2871 = vmatmul.bf16.gmra.mxu0 %v572
        %v2872 = vpop.f32.mrf.mxu0
        %v2873 = vadd.f32 %v2824, %v2872
        %v2874 = vpop.f32.mrf.mxu0
        %v2875 = vadd.f32 %v2826, %v2874
        %2876 = vdwg.mxu0
        %2877 = vmatpush.bf16.msra.mxu0 %v1340
        %2878 = vmatpush.bf16.msra.mxu0 %v1331
        %2879 = vmatpush.bf16.msra.mxu0 %v1322
        %2880 = vmatpush.bf16.msra.mxu0 %v1313
        %2881 = vmatpush.bf16.msra.mxu0 %v1304
        %2882 = vmatpush.bf16.msra.mxu0 %v1295
        %2883 = vmatpush.bf16.msra.mxu0 %v1286
        %2884 = vmatpush.bf16.msra.mxu0 %v1277
        %2885 = vmatmul.bf16.gmra.mxu0 %v549
        %v2886 = vpop.f32.mrf.mxu0
        %v2887 = vadd.f32 0.0, %v2886
        %v2888 = vpop.f32.mrf.mxu0
        %v2889 = vadd.f32 0.0, %v2888
        %2890 = vmatmul.bf16.gmra.mxu0 %v552
        %v2891 = vpop.f32.mrf.mxu0
        %v2892 = vadd.f32 0.0, %v2891
        %v2893 = vpop.f32.mrf.mxu0
        %v2894 = vadd.f32 0.0, %v2893
        %2895 = vmatmul.bf16.gmra.mxu0 %v555
        %v2896 = vpop.f32.mrf.mxu0
        %v2897 = vadd.f32 0.0, %v2896
        %v2898 = vpop.f32.mrf.mxu0
        %v2899 = vadd.f32 0.0, %v2898
        %2900 = vmatmul.bf16.gmra.mxu0 %v558
        %v2901 = vpop.f32.mrf.mxu0
        %v2902 = vadd.f32 0.0, %v2901
        %v2903 = vpop.f32.mrf.mxu0
        %v2904 = vadd.f32 0.0, %v2903
        %2905 = vmatmul.bf16.gmra.mxu0 %v561
        %v2906 = vpop.f32.mrf.mxu0
        %v2907 = vadd.f32 0.0, %v2906
        %v2908 = vpop.f32.mrf.mxu0
        %v2909 = vadd.f32 0.0, %v2908
        %2910 = vmatmul.bf16.gmra.mxu0 %v564
        %v2911 = vpop.f32.mrf.mxu0
        %v2912 = vadd.f32 0.0, %v2911
        %v2913 = vpop.f32.mrf.mxu0
        %v2914 = vadd.f32 0.0, %v2913
        %2915 = vmatmul.bf16.gmra.mxu0 %v567
        %v2916 = vpop.f32.mrf.mxu0
        %v2917 = vadd.f32 0.0, %v2916
        %v2918 = vpop.f32.mrf.mxu0
        %v2919 = vadd.f32 0.0, %v2918
        %2920 = vmatmul.bf16.gmra.mxu0 %v570
        %v2921 = vpop.f32.mrf.mxu0
        %v2922 = vadd.f32 0.0, %v2921
        %v2923 = vpop.f32.mrf.mxu0
        %v2924 = vadd.f32 0.0, %v2923
        %2925 = vdwg.mxu0
        %2926 = vmatpush.bf16.msra.mxu0 %v1412
        %2927 = vmatpush.bf16.msra.mxu0 %v1403
        %2928 = vmatpush.bf16.msra.mxu0 %v1394
        %2929 = vmatpush.bf16.msra.mxu0 %v1385
        %2930 = vmatpush.bf16.msra.mxu0 %v1376
        %2931 = vmatpush.bf16.msra.mxu0 %v1367
        %2932 = vmatpush.bf16.msra.mxu0 %v1358
        %2933 = vmatpush.bf16.msra.mxu0 %v1349
        %2934 = vmatmul.bf16.gmra.mxu0 %v550
        %v2935 = vpop.f32.mrf.mxu0
        %v2936 = vadd.f32 %v2887, %v2935
        %v2937 = vpop.f32.mrf.mxu0
        %v2938 = vadd.f32 %v2889, %v2937
        %2939 = vmatmul.bf16.gmra.mxu0 %v553
        %v2940 = vpop.f32.mrf.mxu0
        %v2941 = vadd.f32 %v2892, %v2940
        %v2942 = vpop.f32.mrf.mxu0
        %v2943 = vadd.f32 %v2894, %v2942
        %2944 = vmatmul.bf16.gmra.mxu0 %v556
        %v2945 = vpop.f32.mrf.mxu0
        %v2946 = vadd.f32 %v2897, %v2945
        %v2947 = vpop.f32.mrf.mxu0
        %v2948 = vadd.f32 %v2899, %v2947
        %2949 = vmatmul.bf16.gmra.mxu0 %v559
        %v2950 = vpop.f32.mrf.mxu0
        %v2951 = vadd.f32 %v2902, %v2950
        %v2952 = vpop.f32.mrf.mxu0
        %v2953 = vadd.f32 %v2904, %v2952
        %2954 = vmatmul.bf16.gmra.mxu0 %v562
        %v2955 = vpop.f32.mrf.mxu0
        %v2956 = vadd.f32 %v2907, %v2955
        %v2957 = vpop.f32.mrf.mxu0
        %v2958 = vadd.f32 %v2909, %v2957
        %2959 = vmatmul.bf16.gmra.mxu0 %v565
        %v2960 = vpop.f32.mrf.mxu0
        %v2961 = vadd.f32 %v2912, %v2960
        %v2962 = vpop.f32.mrf.mxu0
        %v2963 = vadd.f32 %v2914, %v2962
        %2964 = vmatmul.bf16.gmra.mxu0 %v568
        %v2965 = vpop.f32.mrf.mxu0
        %v2966 = vadd.f32 %v2917, %v2965
        %v2967 = vpop.f32.mrf.mxu0
        %v2968 = vadd.f32 %v2919, %v2967
        %2969 = vmatmul.bf16.gmra.mxu0 %v571
        %v2970 = vpop.f32.mrf.mxu0
        %v2971 = vadd.f32 %v2922, %v2970
        %v2972 = vpop.f32.mrf.mxu0
        %v2973 = vadd.f32 %v2924, %v2972
        %2974 = vdwg.mxu0
        %2975 = vmatpush.bf16.msra.mxu0 %v1484
        %2976 = vmatpush.bf16.msra.mxu0 %v1475
        %2977 = vmatpush.bf16.msra.mxu0 %v1466
        %2978 = vmatpush.bf16.msra.mxu0 %v1457
        %2979 = vmatpush.bf16.msra.mxu0 %v1448
        %2980 = vmatpush.bf16.msra.mxu0 %v1439
        %2981 = vmatpush.bf16.msra.mxu0 %v1430
        %2982 = vmatpush.bf16.msra.mxu0 %v1421
        %2983 = vmatmul.bf16.gmra.mxu0 %v551
        %v2984 = vpop.f32.mrf.mxu0
        %v2985 = vadd.f32 %v2936, %v2984
        %v2986 = vpop.f32.mrf.mxu0
        %v2987 = vadd.f32 %v2938, %v2986
        %2988 = vmatmul.bf16.gmra.mxu0 %v554
        %v2989 = vpop.f32.mrf.mxu0
        %v2990 = vadd.f32 %v2941, %v2989
        %v2991 = vpop.f32.mrf.mxu0
        %v2992 = vadd.f32 %v2943, %v2991
        %2993 = vmatmul.bf16.gmra.mxu0 %v557
        %v2994 = vpop.f32.mrf.mxu0
        %v2995 = vadd.f32 %v2946, %v2994
        %v2996 = vpop.f32.mrf.mxu0
        %v2997 = vadd.f32 %v2948, %v2996
        %2998 = vmatmul.bf16.gmra.mxu0 %v560
        %v2999 = vpop.f32.mrf.mxu0
        %v3000 = vadd.f32 %v2951, %v2999
        %v3001 = vpop.f32.mrf.mxu0
        %v3002 = vadd.f32 %v2953, %v3001
        %3003 = vmatmul.bf16.gmra.mxu0 %v563
        %v3004 = vpop.f32.mrf.mxu0
        %v3005 = vadd.f32 %v2956, %v3004
        %v3006 = vpop.f32.mrf.mxu0
        %v3007 = vadd.f32 %v2958, %v3006
        %3008 = vmatmul.bf16.gmra.mxu0 %v566
        %v3009 = vpop.f32.mrf.mxu0
        %v3010 = vadd.f32 %v2961, %v3009
        %v3011 = vpop.f32.mrf.mxu0
        %v3012 = vadd.f32 %v2963, %v3011
        %3013 = vmatmul.bf16.gmra.mxu0 %v569
        %v3014 = vpop.f32.mrf.mxu0
        %v3015 = vadd.f32 %v2966, %v3014
        %v3016 = vpop.f32.mrf.mxu0
        %v3017 = vadd.f32 %v2968, %v3016
        %3018 = vmatmul.bf16.gmra.mxu0 %v572
        %v3019 = vpop.f32.mrf.mxu0
        %v3020 = vadd.f32 %v2971, %v3019
        %v3021 = vpop.f32.mrf.mxu0
        %v3022 = vadd.f32 %v2973, %v3021
        %3023 = vdwg.mxu0
        %v3024 = vlaneseq
        %v3025 = vshrl.u32 %v3024, 7
        %v3026 = vadd.s32 %v3025, 8
        %v3027 = vadd.s32 %v3025, 16
        %v3028 = vadd.s32 %v3025, 24
        %v3029 = vadd.s32 %v3025, 32
        %v3030 = vadd.s32 %v3025, 40
        %v3031 = vadd.s32 %v3025, 48
        %v3032 = vadd.s32 %v3025, 56
        %v3033 = vadd.s32 %v3025, 64
        %v3034 = vadd.s32 %v3025, 72
        %v3035 = vadd.s32 %v3025, 80
        %v3036 = vadd.s32 %v3025, 88
        %v3037 = vadd.s32 %v3025, 96
        %v3038 = vadd.s32 %v3025, 104
        %v3039 = vadd.s32 %v3025, 112
        %v3040 = vadd.s32 %v3025, 120
        %v3041 = vlaneseq
        %v3042 = vand.u32 %v3041, 127
        %vm3043 = vcmp.ge.s32.totalorder %v3025, %v3042
        %vm3044 = vcmp.ge.s32.totalorder %v3026, %v3042
        %vm3045 = vcmp.ge.s32.totalorder %v3027, %v3042
        %vm3046 = vcmp.ge.s32.totalorder %v3028, %v3042
        %vm3047 = vcmp.ge.s32.totalorder %v3029, %v3042
        %vm3048 = vcmp.ge.s32.totalorder %v3030, %v3042
        %vm3049 = vcmp.ge.s32.totalorder %v3031, %v3042
        %vm3050 = vcmp.ge.s32.totalorder %v3032, %v3042
        %vm3051 = vcmp.ge.s32.totalorder %v3033, %v3042
        %vm3052 = vcmp.ge.s32.totalorder %v3034, %v3042
        %vm3053 = vcmp.ge.s32.totalorder %v3035, %v3042
        %vm3054 = vcmp.ge.s32.totalorder %v3036, %v3042
        %vm3055 = vcmp.ge.s32.totalorder %v3037, %v3042
        %vm3056 = vcmp.ge.s32.totalorder %v3038, %v3042
        %vm3057 = vcmp.ge.s32.totalorder %v3039, %v3042
        %vm3058 = vcmp.ge.s32.totalorder %v3040, %v3042
        %v3059 = vpack.c.bf16 %v1811, %v1809
        %v3060 = vpack.c.bf16 %v1816, %v1814
        %v3061 = vpack.c.bf16 %v1821, %v1819
        %v3062 = vpack.c.bf16 %v1826, %v1824
        %v3063 = vpack.c.bf16 %v1831, %v1829
        %v3064 = vpack.c.bf16 %v1836, %v1834
        %v3065 = vpack.c.bf16 %v1841, %v1839
        %v3066 = vpack.c.bf16 %v1846, %v1844
        %v3067 = vpack.c.bf16 %v2252, %v2250
        %v3068 = vpack.c.bf16 %v2257, %v2255
        %v3069 = vpack.c.bf16 %v2262, %v2260
        %v3070 = vpack.c.bf16 %v2267, %v2265
        %v3071 = vpack.c.bf16 %v2272, %v2270
        %v3072 = vpack.c.bf16 %v2277, %v2275
        %v3073 = vpack.c.bf16 %v2282, %v2280
        %v3074 = vpack.c.bf16 %v2287, %v2285
        %v3075 = vpack.c.bf16 %v2693, %v2691
        %v3076 = vpack.c.bf16 %v2698, %v2696
        %v3077 = vpack.c.bf16 %v2703, %v2701
        %v3078 = vpack.c.bf16 %v2708, %v2706
        %v3079 = vpack.c.bf16 %v2713, %v2711
        %v3080 = vpack.c.bf16 %v2718, %v2716
        %v3081 = vpack.c.bf16 %v2723, %v2721
        %v3082 = vpack.c.bf16 %v2728, %v2726
        %vm3083 = vcmask 523264
        %v3085 = vsel %vm3083, %v3059, 0
        %v3088 = vsel %vm3083, %v3060, 0
        %v3091 = vsel %vm3083, %v3061, 0
        %v3094 = vsel %vm3083, %v3062, 0
        %v3097 = vsel %vm3083, %v3063, 0
        %v3100 = vsel %vm3083, %v3064, 0
        %v3103 = vsel %vm3083, %v3065, 0
        %v3106 = vsel %vm3083, %v3066, 0
        %v3109 = vsel %vm3083, %v3067, 0
        %v3112 = vsel %vm3083, %v3068, 0
        %v3115 = vsel %vm3083, %v3069, 0
        %v3118 = vsel %vm3083, %v3070, 0
        %v3121 = vsel %vm3083, %v3071, 0
        %v3124 = vsel %vm3083, %v3072, 0
        %v3127 = vsel %vm3083, %v3073, 0
        %v3130 = vsel %vm3083, %v3074, 0
        %3132 = vmatpush.bf16.xpose.msra.mxu0 %v3130
        %3133 = vmatpush.bf16.xpose.msra.mxu0 %v3127
        %3134 = vmatpush.bf16.xpose.msra.mxu0 %v3124
        %3135 = vmatpush.bf16.xpose.msra.mxu0 %v3121
        %3136 = vmatpush.bf16.xpose.msra.mxu0 %v3118
        %3137 = vmatpush.bf16.xpose.msra.mxu0 %v3115
        %3138 = vmatpush.bf16.xpose.msra.mxu0 %v3112
        %3139 = vmatpush.bf16.xpose.msra.mxu0 %v3109
        %3140 = vmatmul.bf16.gmra.mxu0 %v3085
        %v3141 = vpop.f32.mrf.mxu0
        %v3142 = vadd.f32 0.0, %v3141
        %v3143 = vpop.f32.mrf.mxu0
        %v3144 = vadd.f32 0.0, %v3143
        %3145 = vmatmul.bf16.gmra.mxu0 %v3088
        %v3146 = vpop.f32.mrf.mxu0
        %v3147 = vadd.f32 0.0, %v3146
        %v3148 = vpop.f32.mrf.mxu0
        %v3149 = vadd.f32 0.0, %v3148
        %3150 = vmatmul.bf16.gmra.mxu0 %v3091
        %v3151 = vpop.f32.mrf.mxu0
        %v3152 = vadd.f32 0.0, %v3151
        %v3153 = vpop.f32.mrf.mxu0
        %v3154 = vadd.f32 0.0, %v3153
        %3155 = vmatmul.bf16.gmra.mxu0 %v3094
        %v3156 = vpop.f32.mrf.mxu0
        %v3157 = vadd.f32 0.0, %v3156
        %v3158 = vpop.f32.mrf.mxu0
        %v3159 = vadd.f32 0.0, %v3158
        %3160 = vmatmul.bf16.gmra.mxu0 %v3097
        %v3161 = vpop.f32.mrf.mxu0
        %v3162 = vadd.f32 0.0, %v3161
        %v3163 = vpop.f32.mrf.mxu0
        %v3164 = vadd.f32 0.0, %v3163
        %3165 = vmatmul.bf16.gmra.mxu0 %v3100
        %v3166 = vpop.f32.mrf.mxu0
        %v3167 = vadd.f32 0.0, %v3166
        %v3168 = vpop.f32.mrf.mxu0
        %v3169 = vadd.f32 0.0, %v3168
        %3170 = vmatmul.bf16.gmra.mxu0 %v3103
        %v3171 = vpop.f32.mrf.mxu0
        %v3172 = vadd.f32 0.0, %v3171
        %v3173 = vpop.f32.mrf.mxu0
        %v3174 = vadd.f32 0.0, %v3173
        %3175 = vmatmul.bf16.gmra.mxu0 %v3106
        %v3176 = vpop.f32.mrf.mxu0
        %v3177 = vadd.f32 0.0, %v3176
        %v3178 = vpop.f32.mrf.mxu0
        %v3179 = vadd.f32 0.0, %v3178
        %3180 = vdwg.mxu0
        %v3181 = vsel %vm3043, %v3142, -inf
        %v3182 = vsel %vm3044, %v3144, -inf
        %v3183 = vsel %vm3045, %v3147, -inf
        %v3184 = vsel %vm3046, %v3149, -inf
        %v3185 = vsel %vm3047, %v3152, -inf
        %v3186 = vsel %vm3048, %v3154, -inf
        %v3187 = vsel %vm3049, %v3157, -inf
        %v3188 = vsel %vm3050, %v3159, -inf
        %v3189 = vsel %vm3051, %v3162, -inf
        %v3190 = vsel %vm3052, %v3164, -inf
        %v3191 = vsel %vm3053, %v3167, -inf
        %v3192 = vsel %vm3054, %v3169, -inf
        %v3193 = vsel %vm3055, %v3172, -inf
        %v3194 = vsel %vm3056, %v3174, -inf
        %v3195 = vsel %vm3057, %v3177, -inf
        %v3196 = vsel %vm3058, %v3179, -inf
        %3197 = vmax.xlane.f32.xlu0 %v3181
        %v3198 = vpop.xlane.xlu0 %3197
        %3199 = vmax.xlane.f32.xlu0 %v3182
        %v3200 = vpop.xlane.xlu0 %3199
        %3201 = vmax.xlane.f32.xlu0 %v3183
        %v3202 = vpop.xlane.xlu0 %3201
        %3203 = vmax.xlane.f32.xlu0 %v3184
        %v3204 = vpop.xlane.xlu0 %3203
        %3205 = vmax.xlane.f32.xlu0 %v3185
        %v3206 = vpop.xlane.xlu0 %3205
        %3207 = vmax.xlane.f32.xlu0 %v3186
        %v3208 = vpop.xlane.xlu0 %3207
        %3209 = vmax.xlane.f32.xlu0 %v3187
        %v3210 = vpop.xlane.xlu0 %3209
        %3211 = vmax.xlane.f32.xlu0 %v3188
        %v3212 = vpop.xlane.xlu0 %3211
        %3213 = vmax.xlane.f32.xlu0 %v3189
        %v3214 = vpop.xlane.xlu0 %3213
        %3215 = vmax.xlane.f32.xlu0 %v3190
        %v3216 = vpop.xlane.xlu0 %3215
        %3217 = vmax.xlane.f32.xlu0 %v3191
        %v3218 = vpop.xlane.xlu0 %3217
        %3219 = vmax.xlane.f32.xlu0 %v3192
        %v3220 = vpop.xlane.xlu0 %3219
        %3221 = vmax.xlane.f32.xlu0 %v3193
        %v3222 = vpop.xlane.xlu0 %3221
        %3223 = vmax.xlane.f32.xlu0 %v3194
        %v3224 = vpop.xlane.xlu0 %3223
        %3225 = vmax.xlane.f32.xlu0 %v3195
        %v3226 = vpop.xlane.xlu0 %3225
        %3227 = vmax.xlane.f32.xlu0 %v3196
        %v3228 = vpop.xlane.xlu0 %3227
        %v3229 = vsub.f32 %v3181, %v3198
        %v3230 = vsub.f32 %v3182, %v3200
        %v3231 = vsub.f32 %v3183, %v3202
        %v3232 = vsub.f32 %v3184, %v3204
        %v3233 = vsub.f32 %v3185, %v3206
        %v3234 = vsub.f32 %v3186, %v3208
        %v3235 = vsub.f32 %v3187, %v3210
        %v3236 = vsub.f32 %v3188, %v3212
        %v3237 = vsub.f32 %v3189, %v3214
        %v3238 = vsub.f32 %v3190, %v3216
        %v3239 = vsub.f32 %v3191, %v3218
        %v3240 = vsub.f32 %v3192, %v3220
        %v3241 = vsub.f32 %v3193, %v3222
        %v3242 = vsub.f32 %v3194, %v3224
        %v3243 = vsub.f32 %v3195, %v3226
        %v3244 = vsub.f32 %v3196, %v3228
        %v3245 = vmul.f32 %v3229, 1.442695
        %v3246 = vpow.pop %v3245
        %v3247 = vmul.f32 %v3230, 1.442695
        %v3248 = vpow.pop %v3247
        %v3249 = vmul.f32 %v3231, 1.442695
        %v3250 = vpow.pop %v3249
        %v3251 = vmul.f32 %v3232, 1.442695
        %v3252 = vpow.pop %v3251
        %v3253 = vmul.f32 %v3233, 1.442695
        %v3254 = vpow.pop %v3253
        %v3255 = vmul.f32 %v3234, 1.442695
        %v3256 = vpow.pop %v3255
        %v3257 = vmul.f32 %v3235, 1.442695
        %v3258 = vpow.pop %v3257
        %v3259 = vmul.f32 %v3236, 1.442695
        %v3260 = vpow.pop %v3259
        %v3261 = vmul.f32 %v3237, 1.442695
        %v3262 = vpow.pop %v3261
        %v3263 = vmul.f32 %v3238, 1.442695
        %v3264 = vpow.pop %v3263
        %v3265 = vmul.f32 %v3239, 1.442695
        %v3266 = vpow.pop %v3265
        %v3267 = vmul.f32 %v3240, 1.442695
        %v3268 = vpow.pop %v3267
        %v3269 = vmul.f32 %v3241, 1.442695
        %v3270 = vpow.pop %v3269
        %v3271 = vmul.f32 %v3242, 1.442695
        %v3272 = vpow.pop %v3271
        %v3273 = vmul.f32 %v3243, 1.442695
        %v3274 = vpow.pop %v3273
        %v3275 = vmul.f32 %v3244, 1.442695
        %v3276 = vpow.pop %v3275
        %3277 = vadd.xlane.f32.xlu0 %v3246
        %v3278 = vpop.xlane.xlu0 %3277
        %3279 = vadd.xlane.f32.xlu0 %v3248
        %v3280 = vpop.xlane.xlu0 %3279
        %3281 = vadd.xlane.f32.xlu0 %v3250
        %v3282 = vpop.xlane.xlu0 %3281
        %3283 = vadd.xlane.f32.xlu0 %v3252
        %v3284 = vpop.xlane.xlu0 %3283
        %3285 = vadd.xlane.f32.xlu0 %v3254
        %v3286 = vpop.xlane.xlu0 %3285
        %3287 = vadd.xlane.f32.xlu0 %v3256
        %v3288 = vpop.xlane.xlu0 %3287
        %3289 = vadd.xlane.f32.xlu0 %v3258
        %v3290 = vpop.xlane.xlu0 %3289
        %3291 = vadd.xlane.f32.xlu0 %v3260
        %v3292 = vpop.xlane.xlu0 %3291
        %3293 = vadd.xlane.f32.xlu0 %v3262
        %v3294 = vpop.xlane.xlu0 %3293
        %3295 = vadd.xlane.f32.xlu0 %v3264
        %v3296 = vpop.xlane.xlu0 %3295
        %3297 = vadd.xlane.f32.xlu0 %v3266
        %v3298 = vpop.xlane.xlu0 %3297
        %3299 = vadd.xlane.f32.xlu0 %v3268
        %v3300 = vpop.xlane.xlu0 %3299
        %3301 = vadd.xlane.f32.xlu0 %v3270
        %v3302 = vpop.xlane.xlu0 %3301
        %3303 = vadd.xlane.f32.xlu0 %v3272
        %v3304 = vpop.xlane.xlu0 %3303
        %3305 = vadd.xlane.f32.xlu0 %v3274
        %v3306 = vpop.xlane.xlu0 %3305
        %3307 = vadd.xlane.f32.xlu0 %v3276
        %v3308 = vpop.xlane.xlu0 %3307
        %v3309 = vrcp.pop %v3278
        %v3310 = vrcp.pop %v3280
        %v3311 = vrcp.pop %v3282
        %v3312 = vrcp.pop %v3284
        %v3313 = vrcp.pop %v3286
        %v3314 = vrcp.pop %v3288
        %v3315 = vrcp.pop %v3290
        %v3316 = vrcp.pop %v3292
        %v3317 = vrcp.pop %v3294
        %v3318 = vrcp.pop %v3296
        %v3319 = vrcp.pop %v3298
        %v3320 = vrcp.pop %v3300
        %v3321 = vrcp.pop %v3302
        %v3322 = vrcp.pop %v3304
        %v3323 = vrcp.pop %v3306
        %v3324 = vrcp.pop %v3308
        %v3325 = vmul.f32 %v3246, %v3309
        %v3326 = vmul.f32 %v3248, %v3310
        %v3327 = vmul.f32 %v3250, %v3311
        %v3328 = vmul.f32 %v3252, %v3312
        %v3329 = vmul.f32 %v3254, %v3313
        %v3330 = vmul.f32 %v3256, %v3314
        %v3331 = vmul.f32 %v3258, %v3315
        %v3332 = vmul.f32 %v3260, %v3316
        %v3333 = vmul.f32 %v3262, %v3317
        %v3334 = vmul.f32 %v3264, %v3318
        %v3335 = vmul.f32 %v3266, %v3319
        %v3336 = vmul.f32 %v3268, %v3320
        %v3337 = vmul.f32 %v3270, %v3321
        %v3338 = vmul.f32 %v3272, %v3322
        %v3339 = vmul.f32 %v3274, %v3323
        %v3340 = vmul.f32 %v3276, %v3324
        %v3341 = vpack.c.bf16 %v3326, %v3325
        %v3342 = vpack.c.bf16 %v3328, %v3327
        %v3343 = vpack.c.bf16 %v3330, %v3329
        %v3344 = vpack.c.bf16 %v3332, %v3331
        %v3345 = vpack.c.bf16 %v3334, %v3333
        %v3346 = vpack.c.bf16 %v3336, %v3335
        %v3347 = vpack.c.bf16 %v3338, %v3337
        %v3348 = vpack.c.bf16 %v3340, %v3339
        %3349 = vmatpush.bf16.msra.mxu0 %v3082
        %3350 = vmatpush.bf16.msra.mxu0 %v3081
        %3351 = vmatpush.bf16.msra.mxu0 %v3080
        %3352 = vmatpush.bf16.msra.mxu0 %v3079
        %3353 = vmatpush.bf16.msra.mxu0 %v3078
        %3354 = vmatpush.bf16.msra.mxu0 %v3077
        %3355 = vmatpush.bf16.msra.mxu0 %v3076
        %3356 = vmatpush.bf16.msra.mxu0 %v3075
        %3357 = vmatmul.bf16.gmra.mxu0 %v3341
        %v3358 = vpop.f32.mrf.mxu0
        %v3359 = vadd.f32 0.0, %v3358
        %v3360 = vpop.f32.mrf.mxu0
        %v3361 = vadd.f32 0.0, %v3360
        %3362 = vmatmul.bf16.gmra.mxu0 %v3342
        %v3363 = vpop.f32.mrf.mxu0
        %v3364 = vadd.f32 0.0, %v3363
        %v3365 = vpop.f32.mrf.mxu0
        %v3366 = vadd.f32 0.0, %v3365
        %3367 = vmatmul.bf16.gmra.mxu0 %v3343
        %v3368 = vpop.f32.mrf.mxu0
        %v3369 = vadd.f32 0.0, %v3368
        %v3370 = vpop.f32.mrf.mxu0
        %v3371 = vadd.f32 0.0, %v3370
        %3372 = vmatmul.bf16.gmra.mxu0 %v3344
        %v3373 = vpop.f32.mrf.mxu0
        %v3374 = vadd.f32 0.0, %v3373
        %v3375 = vpop.f32.mrf.mxu0
        %v3376 = vadd.f32 0.0, %v3375
        %3377 = vmatmul.bf16.gmra.mxu0 %v3345
        %v3378 = vpop.f32.mrf.mxu0
        %v3379 = vadd.f32 0.0, %v3378
        %v3380 = vpop.f32.mrf.mxu0
        %v3381 = vadd.f32 0.0, %v3380
        %3382 = vmatmul.bf16.gmra.mxu0 %v3346
        %v3383 = vpop.f32.mrf.mxu0
        %v3384 = vadd.f32 0.0, %v3383
        %v3385 = vpop.f32.mrf.mxu0
        %v3386 = vadd.f32 0.0, %v3385
        %3387 = vmatmul.bf16.gmra.mxu0 %v3347
        %v3388 = vpop.f32.mrf.mxu0
        %v3389 = vadd.f32 0.0, %v3388
        %v3390 = vpop.f32.mrf.mxu0
        %v3391 = vadd.f32 0.0, %v3390
        %3392 = vmatmul.bf16.gmra.mxu0 %v3348
        %v3393 = vpop.f32.mrf.mxu0
        %v3394 = vadd.f32 0.0, %v3393
        %v3395 = vpop.f32.mrf.mxu0
        %v3396 = vadd.f32 0.0, %v3395
        %3397 = vdwg.mxu0
        %v3398 = vld [vmem:[%s2] sm:$0xff]
        %v3399 = vld [vmem:[%s2 + $0x8] sm:$0xf]
        %v3400 = vld [vmem:[%s2 + $0xc] sm:$0xff]
        %v3401 = vld [vmem:[%s2 + $0x14] sm:$0xf]
        %v3402 = vld [vmem:[%s2 + $0x18] sm:$0xff]
        %v3403 = vld [vmem:[%s2 + $0x20] sm:$0xf]
        %v3404 = vld [vmem:[%s2 + $0x24] sm:$0xff]
        %v3405 = vld [vmem:[%s2 + $0x2c] sm:$0xf]
        %v3406 = vld [vmem:[%s2 + $0x30] sm:$0xff]
        %v3407 = vld [vmem:[%s2 + $0x38] sm:$0xf]
        %v3408 = vld [vmem:[%s2 + $0x3c] sm:$0xff]
        %v3409 = vld [vmem:[%s2 + $0x44] sm:$0xf]
        %v3410 = vld [vmem:[%s2 + $0x48] sm:$0xff]
        %v3411 = vld [vmem:[%s2 + $0x50] sm:$0xf]
        %v3412 = vld [vmem:[%s2 + $0x54] sm:$0xff]
        %v3413 = vld [vmem:[%s2 + $0x5c] sm:$0xf]
        %v3414 = vpack.c.bf16 %v3361, %v3359
        %v3415 = vpack.c.bf16 %v3366, %v3364
        %v3416 = vpack.c.bf16 %v3371, %v3369
        %v3417 = vpack.c.bf16 %v3376, %v3374
        %v3418 = vpack.c.bf16 %v3381, %v3379
        %v3419 = vpack.c.bf16 %v3386, %v3384
        %v3420 = vpack.c.bf16 %v3391, %v3389
        %v3421 = vpack.c.bf16 %v3396, %v3394
        %3430 = vrot.lane.b32.xlu0 %v3059, 64
        %v3431 = vpop.permute.xlu0 %3430
        %3432 = vrot.lane.b32.xlu0 %v3060, 64
        %v3433 = vpop.permute.xlu0 %3432
        %3434 = vrot.lane.b32.xlu0 %v3061, 64
        %v3435 = vpop.permute.xlu0 %3434
        %3436 = vrot.lane.b32.xlu0 %v3062, 64
        %v3437 = vpop.permute.xlu0 %3436
        %3438 = vrot.lane.b32.xlu0 %v3063, 64
        %v3439 = vpop.permute.xlu0 %3438
        %3440 = vrot.lane.b32.xlu0 %v3064, 64
        %v3441 = vpop.permute.xlu0 %3440
        %3442 = vrot.lane.b32.xlu0 %v3065, 64
        %v3443 = vpop.permute.xlu0 %3442
        %3444 = vrot.lane.b32.xlu0 %v3066, 64
        %v3445 = vpop.permute.xlu0 %3444
        %3454 = vrot.lane.b32.xlu0 %v3067, 64
        %v3455 = vpop.permute.xlu0 %3454
        %3456 = vrot.lane.b32.xlu0 %v3068, 64
        %v3457 = vpop.permute.xlu0 %3456
        %3458 = vrot.lane.b32.xlu0 %v3069, 64
        %v3459 = vpop.permute.xlu0 %3458
        %3460 = vrot.lane.b32.xlu0 %v3070, 64
        %v3461 = vpop.permute.xlu0 %3460
        %3462 = vrot.lane.b32.xlu0 %v3071, 64
        %v3463 = vpop.permute.xlu0 %3462
        %3464 = vrot.lane.b32.xlu0 %v3072, 64
        %v3465 = vpop.permute.xlu0 %3464
        %3466 = vrot.lane.b32.xlu0 %v3073, 64
        %v3467 = vpop.permute.xlu0 %3466
        %3468 = vrot.lane.b32.xlu0 %v3074, 64
        %v3469 = vpop.permute.xlu0 %3468
        %v3471 = vsel %vm3083, %v3431, 0
        %v3474 = vsel %vm3083, %v3433, 0
        %v3477 = vsel %vm3083, %v3435, 0
        %v3480 = vsel %vm3083, %v3437, 0
        %v3483 = vsel %vm3083, %v3439, 0
        %v3486 = vsel %vm3083, %v3441, 0
        %v3489 = vsel %vm3083, %v3443, 0
        %v3492 = vsel %vm3083, %v3445, 0
        %v3495 = vsel %vm3083, %v3455, 0
        %v3498 = vsel %vm3083, %v3457, 0
        %v3501 = vsel %vm3083, %v3459, 0
        %v3504 = vsel %vm3083, %v3461, 0
        %v3507 = vsel %vm3083, %v3463, 0
        %v3510 = vsel %vm3083, %v3465, 0
        %v3513 = vsel %vm3083, %v3467, 0
        %v3516 = vsel %vm3083, %v3469, 0
        %3518 = vmatpush.bf16.xpose.msra.mxu0 %v3516
        %3519 = vmatpush.bf16.xpose.msra.mxu0 %v3513
        %3520 = vmatpush.bf16.xpose.msra.mxu0 %v3510
        %3521 = vmatpush.bf16.xpose.msra.mxu0 %v3507
        %3522 = vmatpush.bf16.xpose.msra.mxu0 %v3504
        %3523 = vmatpush.bf16.xpose.msra.mxu0 %v3501
        %3524 = vmatpush.bf16.xpose.msra.mxu0 %v3498
        %3525 = vmatpush.bf16.xpose.msra.mxu0 %v3495
        %3526 = vmatmul.bf16.gmra.mxu0 %v3471
        %v3527 = vpop.f32.mrf.mxu0
        %v3528 = vadd.f32 0.0, %v3527
        %v3529 = vpop.f32.mrf.mxu0
        %v3530 = vadd.f32 0.0, %v3529
        %3531 = vmatmul.bf16.gmra.mxu0 %v3474
        %v3532 = vpop.f32.mrf.mxu0
        %v3533 = vadd.f32 0.0, %v3532
        %v3534 = vpop.f32.mrf.mxu0
        %v3535 = vadd.f32 0.0, %v3534
        %3536 = vmatmul.bf16.gmra.mxu0 %v3477
        %v3537 = vpop.f32.mrf.mxu0
        %v3538 = vadd.f32 0.0, %v3537
        %v3539 = vpop.f32.mrf.mxu0
        %v3540 = vadd.f32 0.0, %v3539
        %3541 = vmatmul.bf16.gmra.mxu0 %v3480
        %v3542 = vpop.f32.mrf.mxu0
        %v3543 = vadd.f32 0.0, %v3542
        %v3544 = vpop.f32.mrf.mxu0
        %v3545 = vadd.f32 0.0, %v3544
        %3546 = vmatmul.bf16.gmra.mxu0 %v3483
        %v3547 = vpop.f32.mrf.mxu0
        %v3548 = vadd.f32 0.0, %v3547
        %v3549 = vpop.f32.mrf.mxu0
        %v3550 = vadd.f32 0.0, %v3549
        %3551 = vmatmul.bf16.gmra.mxu0 %v3486
        %v3552 = vpop.f32.mrf.mxu0
        %v3553 = vadd.f32 0.0, %v3552
        %v3554 = vpop.f32.mrf.mxu0
        %v3555 = vadd.f32 0.0, %v3554
        %3556 = vmatmul.bf16.gmra.mxu0 %v3489
        %v3557 = vpop.f32.mrf.mxu0
        %v3558 = vadd.f32 0.0, %v3557
        %v3559 = vpop.f32.mrf.mxu0
        %v3560 = vadd.f32 0.0, %v3559
        %3561 = vmatmul.bf16.gmra.mxu0 %v3492
        %v3562 = vpop.f32.mrf.mxu0
        %v3563 = vadd.f32 0.0, %v3562
        %v3564 = vpop.f32.mrf.mxu0
        %v3565 = vadd.f32 0.0, %v3564
        %3566 = vdwg.mxu0
        %v3567 = vsel %vm3043, %v3528, -inf
        %v3568 = vsel %vm3044, %v3530, -inf
        %v3569 = vsel %vm3045, %v3533, -inf
        %v3570 = vsel %vm3046, %v3535, -inf
        %v3571 = vsel %vm3047, %v3538, -inf
        %v3572 = vsel %vm3048, %v3540, -inf
        %v3573 = vsel %vm3049, %v3543, -inf
        %v3574 = vsel %vm3050, %v3545, -inf
        %v3575 = vsel %vm3051, %v3548, -inf
        %v3576 = vsel %vm3052, %v3550, -inf
        %v3577 = vsel %vm3053, %v3553, -inf
        %v3578 = vsel %vm3054, %v3555, -inf
        %v3579 = vsel %vm3055, %v3558, -inf
        %v3580 = vsel %vm3056, %v3560, -inf
        %v3581 = vsel %vm3057, %v3563, -inf
        %v3582 = vsel %vm3058, %v3565, -inf
        %3583 = vmax.xlane.f32.xlu0 %v3567
        %v3584 = vpop.xlane.xlu0 %3583
        %3585 = vmax.xlane.f32.xlu0 %v3568
        %v3586 = vpop.xlane.xlu0 %3585
        %3587 = vmax.xlane.f32.xlu0 %v3569
        %v3588 = vpop.xlane.xlu0 %3587
        %3589 = vmax.xlane.f32.xlu0 %v3570
        %v3590 = vpop.xlane.xlu0 %3589
        %3591 = vmax.xlane.f32.xlu0 %v3571
        %v3592 = vpop.xlane.xlu0 %3591
        %3593 = vmax.xlane.f32.xlu0 %v3572
        %v3594 = vpop.xlane.xlu0 %3593
        %3595 = vmax.xlane.f32.xlu0 %v3573
        %v3596 = vpop.xlane.xlu0 %3595
        %3597 = vmax.xlane.f32.xlu0 %v3574
        %v3598 = vpop.xlane.xlu0 %3597
        %3599 = vmax.xlane.f32.xlu0 %v3575
        %v3600 = vpop.xlane.xlu0 %3599
        %3601 = vmax.xlane.f32.xlu0 %v3576
        %v3602 = vpop.xlane.xlu0 %3601
        %3603 = vmax.xlane.f32.xlu0 %v3577
        %v3604 = vpop.xlane.xlu0 %3603
        %3605 = vmax.xlane.f32.xlu0 %v3578
        %v3606 = vpop.xlane.xlu0 %3605
        %3607 = vmax.xlane.f32.xlu0 %v3579
        %v3608 = vpop.xlane.xlu0 %3607
        %3609 = vmax.xlane.f32.xlu0 %v3580
        %v3610 = vpop.xlane.xlu0 %3609
        %3611 = vmax.xlane.f32.xlu0 %v3581
        %v3612 = vpop.xlane.xlu0 %3611
        %3613 = vmax.xlane.f32.xlu0 %v3582
        %v3614 = vpop.xlane.xlu0 %3613
        %v3615 = vsub.f32 %v3567, %v3584
        %v3616 = vsub.f32 %v3568, %v3586
        %v3617 = vsub.f32 %v3569, %v3588
        %v3618 = vsub.f32 %v3570, %v3590
        %v3619 = vsub.f32 %v3571, %v3592
        %v3620 = vsub.f32 %v3572, %v3594
        %v3621 = vsub.f32 %v3573, %v3596
        %v3622 = vsub.f32 %v3574, %v3598
        %v3623 = vsub.f32 %v3575, %v3600
        %v3624 = vsub.f32 %v3576, %v3602
        %v3625 = vsub.f32 %v3577, %v3604
        %v3626 = vsub.f32 %v3578, %v3606
        %v3627 = vsub.f32 %v3579, %v3608
        %v3628 = vsub.f32 %v3580, %v3610
        %v3629 = vsub.f32 %v3581, %v3612
        %v3630 = vsub.f32 %v3582, %v3614
        %v3631 = vmul.f32 %v3615, 1.442695
        %v3632 = vpow.pop %v3631
        %v3633 = vmul.f32 %v3616, 1.442695
        %v3634 = vpow.pop %v3633
        %v3635 = vmul.f32 %v3617, 1.442695
        %v3636 = vpow.pop %v3635
        %v3637 = vmul.f32 %v3618, 1.442695
        %v3638 = vpow.pop %v3637
        %v3639 = vmul.f32 %v3619, 1.442695
        %v3640 = vpow.pop %v3639
        %v3641 = vmul.f32 %v3620, 1.442695
        %v3642 = vpow.pop %v3641
        %v3643 = vmul.f32 %v3621, 1.442695
        %v3644 = vpow.pop %v3643
        %v3645 = vmul.f32 %v3622, 1.442695
        %v3646 = vpow.pop %v3645
        %v3647 = vmul.f32 %v3623, 1.442695
        %v3648 = vpow.pop %v3647
        %v3649 = vmul.f32 %v3624, 1.442695
        %v3650 = vpow.pop %v3649
        %v3651 = vmul.f32 %v3625, 1.442695
        %v3652 = vpow.pop %v3651
        %v3653 = vmul.f32 %v3626, 1.442695
        %v3654 = vpow.pop %v3653
        %v3655 = vmul.f32 %v3627, 1.442695
        %v3656 = vpow.pop %v3655
        %v3657 = vmul.f32 %v3628, 1.442695
        %v3658 = vpow.pop %v3657
        %v3659 = vmul.f32 %v3629, 1.442695
        %v3660 = vpow.pop %v3659
        %v3661 = vmul.f32 %v3630, 1.442695
        %v3662 = vpow.pop %v3661
        %3663 = vadd.xlane.f32.xlu0 %v3632
        %v3664 = vpop.xlane.xlu0 %3663
        %3665 = vadd.xlane.f32.xlu0 %v3634
        %v3666 = vpop.xlane.xlu0 %3665
        %3667 = vadd.xlane.f32.xlu0 %v3636
        %v3668 = vpop.xlane.xlu0 %3667
        %3669 = vadd.xlane.f32.xlu0 %v3638
        %v3670 = vpop.xlane.xlu0 %3669
        %3671 = vadd.xlane.f32.xlu0 %v3640
        %v3672 = vpop.xlane.xlu0 %3671
        %3673 = vadd.xlane.f32.xlu0 %v3642
        %v3674 = vpop.xlane.xlu0 %3673
        %3675 = vadd.xlane.f32.xlu0 %v3644
        %v3676 = vpop.xlane.xlu0 %3675
        %3677 = vadd.xlane.f32.xlu0 %v3646
        %v3678 = vpop.xlane.xlu0 %3677
        %3679 = vadd.xlane.f32.xlu0 %v3648
        %v3680 = vpop.xlane.xlu0 %3679
        %3681 = vadd.xlane.f32.xlu0 %v3650
        %v3682 = vpop.xlane.xlu0 %3681
        %3683 = vadd.xlane.f32.xlu0 %v3652
        %v3684 = vpop.xlane.xlu0 %3683
        %3685 = vadd.xlane.f32.xlu0 %v3654
        %v3686 = vpop.xlane.xlu0 %3685
        %3687 = vadd.xlane.f32.xlu0 %v3656
        %v3688 = vpop.xlane.xlu0 %3687
        %3689 = vadd.xlane.f32.xlu0 %v3658
        %v3690 = vpop.xlane.xlu0 %3689
        %3691 = vadd.xlane.f32.xlu0 %v3660
        %v3692 = vpop.xlane.xlu0 %3691
        %3693 = vadd.xlane.f32.xlu0 %v3662
        %v3694 = vpop.xlane.xlu0 %3693
        %v3695 = vrcp.pop %v3664
        %v3696 = vrcp.pop %v3666
        %v3697 = vrcp.pop %v3668
        %v3698 = vrcp.pop %v3670
        %v3699 = vrcp.pop %v3672
        %v3700 = vrcp.pop %v3674
        %v3701 = vrcp.pop %v3676
        %v3702 = vrcp.pop %v3678
        %v3703 = vrcp.pop %v3680
        %v3704 = vrcp.pop %v3682
        %v3705 = vrcp.pop %v3684
        %v3706 = vrcp.pop %v3686
        %v3707 = vrcp.pop %v3688
        %v3708 = vrcp.pop %v3690
        %v3709 = vrcp.pop %v3692
        %v3710 = vrcp.pop %v3694
        %v3711 = vmul.f32 %v3632, %v3695
        %v3712 = vmul.f32 %v3634, %v3696
        %v3713 = vmul.f32 %v3636, %v3697
        %v3714 = vmul.f32 %v3638, %v3698
        %v3715 = vmul.f32 %v3640, %v3699
        %v3716 = vmul.f32 %v3642, %v3700
        %v3717 = vmul.f32 %v3644, %v3701
        %v3718 = vmul.f32 %v3646, %v3702
        %v3719 = vmul.f32 %v3648, %v3703
        %v3720 = vmul.f32 %v3650, %v3704
        %v3721 = vmul.f32 %v3652, %v3705
        %v3722 = vmul.f32 %v3654, %v3706
        %v3723 = vmul.f32 %v3656, %v3707
        %v3724 = vmul.f32 %v3658, %v3708
        %v3725 = vmul.f32 %v3660, %v3709
        %v3726 = vmul.f32 %v3662, %v3710
        %v3727 = vpack.c.bf16 %v3712, %v3711
        %v3728 = vpack.c.bf16 %v3714, %v3713
        %v3729 = vpack.c.bf16 %v3716, %v3715
        %v3730 = vpack.c.bf16 %v3718, %v3717
        %v3731 = vpack.c.bf16 %v3720, %v3719
        %v3732 = vpack.c.bf16 %v3722, %v3721
        %v3733 = vpack.c.bf16 %v3724, %v3723
        %v3734 = vpack.c.bf16 %v3726, %v3725
        %3743 = vrot.lane.b32.xlu0 %v3075, 64
        %v3744 = vpop.permute.xlu0 %3743
        %3745 = vrot.lane.b32.xlu0 %v3076, 64
        %v3746 = vpop.permute.xlu0 %3745
        %3747 = vrot.lane.b32.xlu0 %v3077, 64
        %v3748 = vpop.permute.xlu0 %3747
        %3749 = vrot.lane.b32.xlu0 %v3078, 64
        %v3750 = vpop.permute.xlu0 %3749
        %3751 = vrot.lane.b32.xlu0 %v3079, 64
        %v3752 = vpop.permute.xlu0 %3751
        %3753 = vrot.lane.b32.xlu0 %v3080, 64
        %v3754 = vpop.permute.xlu0 %3753
        %3755 = vrot.lane.b32.xlu0 %v3081, 64
        %v3756 = vpop.permute.xlu0 %3755
        %3757 = vrot.lane.b32.xlu0 %v3082, 64
        %v3758 = vpop.permute.xlu0 %3757
        %3767 = vmatpush.bf16.msra.mxu0 %v3758
        %3768 = vmatpush.bf16.msra.mxu0 %v3756
        %3769 = vmatpush.bf16.msra.mxu0 %v3754
        %3770 = vmatpush.bf16.msra.mxu0 %v3752
        %3771 = vmatpush.bf16.msra.mxu0 %v3750
        %3772 = vmatpush.bf16.msra.mxu0 %v3748
        %3773 = vmatpush.bf16.msra.mxu0 %v3746
        %3774 = vmatpush.bf16.msra.mxu0 %v3744
        %3775 = vmatmul.bf16.gmra.mxu0 %v3727
        %v3776 = vpop.f32.mrf.mxu0
        %v3777 = vadd.f32 0.0, %v3776
        %v3778 = vpop.f32.mrf.mxu0
        %v3779 = vadd.f32 0.0, %v3778
        %3780 = vmatmul.bf16.gmra.mxu0 %v3728
        %v3781 = vpop.f32.mrf.mxu0
        %v3782 = vadd.f32 0.0, %v3781
        %v3783 = vpop.f32.mrf.mxu0
        %v3784 = vadd.f32 0.0, %v3783
        %3785 = vmatmul.bf16.gmra.mxu0 %v3729
        %v3786 = vpop.f32.mrf.mxu0
        %v3787 = vadd.f32 0.0, %v3786
        %v3788 = vpop.f32.mrf.mxu0
        %v3789 = vadd.f32 0.0, %v3788
        %3790 = vmatmul.bf16.gmra.mxu0 %v3730
        %v3791 = vpop.f32.mrf.mxu0
        %v3792 = vadd.f32 0.0, %v3791
        %v3793 = vpop.f32.mrf.mxu0
        %v3794 = vadd.f32 0.0, %v3793
        %3795 = vmatmul.bf16.gmra.mxu0 %v3731
        %v3796 = vpop.f32.mrf.mxu0
        %v3797 = vadd.f32 0.0, %v3796
        %v3798 = vpop.f32.mrf.mxu0
        %v3799 = vadd.f32 0.0, %v3798
        %3800 = vmatmul.bf16.gmra.mxu0 %v3732
        %v3801 = vpop.f32.mrf.mxu0
        %v3802 = vadd.f32 0.0, %v3801
        %v3803 = vpop.f32.mrf.mxu0
        %v3804 = vadd.f32 0.0, %v3803
        %3805 = vmatmul.bf16.gmra.mxu0 %v3733
        %v3806 = vpop.f32.mrf.mxu0
        %v3807 = vadd.f32 0.0, %v3806
        %v3808 = vpop.f32.mrf.mxu0
        %v3809 = vadd.f32 0.0, %v3808
        %3810 = vmatmul.bf16.gmra.mxu0 %v3734
        %v3811 = vpop.f32.mrf.mxu0
        %v3812 = vadd.f32 0.0, %v3811
        %v3813 = vpop.f32.mrf.mxu0
        %v3814 = vadd.f32 0.0, %v3813
        %3815 = vdwg.mxu0
        %v3816 = vld [vmem:[%s2 + $0x60] sm:$0xff]
        %v3817 = vld [vmem:[%s2 + $0x68] sm:$0xf]
        %v3818 = vld [vmem:[%s2 + $0x6c] sm:$0xff]
        %v3819 = vld [vmem:[%s2 + $0x74] sm:$0xf]
        %v3820 = vld [vmem:[%s2 + $0x78] sm:$0xff]
        %v3821 = vld [vmem:[%s2 + $0x80] sm:$0xf]
        %v3822 = vld [vmem:[%s2 + $0x84] sm:$0xff]
        %v3823 = vld [vmem:[%s2 + $0x8c] sm:$0xf]
        %v3824 = vld [vmem:[%s2 + $0x90] sm:$0xff]
        %v3825 = vld [vmem:[%s2 + $0x98] sm:$0xf]
        %v3826 = vld [vmem:[%s2 + $0x9c] sm:$0xff]
        %v3827 = vld [vmem:[%s2 + $0xa4] sm:$0xf]
        %v3828 = vld [vmem:[%s2 + $0xa8] sm:$0xff]
        %v3829 = vld [vmem:[%s2 + $0xb0] sm:$0xf]
        %v3830 = vld [vmem:[%s2 + $0xb4] sm:$0xff]
        %v3831 = vld [vmem:[%s2 + $0xbc] sm:$0xf]
        %v3832 = vpack.c.bf16 %v3779, %v3777
        %v3833 = vpack.c.bf16 %v3784, %v3782
        %v3834 = vpack.c.bf16 %v3789, %v3787
        %v3835 = vpack.c.bf16 %v3794, %v3792
        %v3836 = vpack.c.bf16 %v3799, %v3797
        %v3837 = vpack.c.bf16 %v3804, %v3802
        %v3838 = vpack.c.bf16 %v3809, %v3807
        %v3839 = vpack.c.bf16 %v3814, %v3812
        %v3856 = vunpack.c.l.b16 %v3816
        %v3857 = vunpack.c.h.b16 %v3816
        %v3858 = vunpack.c.l.b16 %v3817
        %v3859 = vunpack.c.l.b16 %v3818
        %v3860 = vunpack.c.h.b16 %v3818
        %v3861 = vunpack.c.l.b16 %v3819
        %v3862 = vunpack.c.l.b16 %v3820
        %v3863 = vunpack.c.h.b16 %v3820
        %v3864 = vunpack.c.l.b16 %v3821
        %v3865 = vunpack.c.l.b16 %v3822
        %v3866 = vunpack.c.h.b16 %v3822
        %v3867 = vunpack.c.l.b16 %v3823
        %v3868 = vunpack.c.l.b16 %v3824
        %v3869 = vunpack.c.h.b16 %v3824
        %v3870 = vunpack.c.l.b16 %v3825
        %v3871 = vunpack.c.l.b16 %v3826
        %v3872 = vunpack.c.h.b16 %v3826
        %v3873 = vunpack.c.l.b16 %v3827
        %v3874 = vunpack.c.l.b16 %v3828
        %v3875 = vunpack.c.h.b16 %v3828
        %v3876 = vunpack.c.l.b16 %v3829
        %v3877 = vunpack.c.l.b16 %v3830
        %v3878 = vunpack.c.h.b16 %v3830
        %v3879 = vunpack.c.l.b16 %v3831
        %v3880 = vpack.c.b16 %v3859, %v3856
        %v3881 = vpack.c.b16 %v3860, %v3857
        %v3882 = vpack.c.b16 %v3861, %v3858
        %v3883 = vpack.c.b16 %v3865, %v3862
        %v3884 = vpack.c.b16 %v3866, %v3863
        %v3885 = vpack.c.b16 %v3867, %v3864
        %v3886 = vpack.c.b16 %v3871, %v3868
        %v3887 = vpack.c.b16 %v3872, %v3869
        %v3888 = vpack.c.b16 %v3873, %v3870
        %v3889 = vpack.c.b16 %v3877, %v3874
        %v3890 = vpack.c.b16 %v3878, %v3875
        %v3891 = vpack.c.b16 %v3879, %v3876
        %v3905 = vsel %vm3083, %v3832, 0
        %v3908 = vsel %vm3083, %v3833, 0
        %v3911 = vsel %vm3083, %v3834, 0
        %v3914 = vsel %vm3083, %v3835, 0
        %v3917 = vsel %vm3083, %v3836, 0
        %v3920 = vsel %vm3083, %v3837, 0
        %v3923 = vsel %vm3083, %v3838, 0
        %v3926 = vsel %vm3083, %v3839, 0
        %3928 = vmatpush.bf16.msra.mxu0 0
        %3929 = vmatpush.bf16.msra.mxu0 0
        %3930 = vmatpush.bf16.msra.mxu0 0
        %3931 = vmatpush.bf16.msra.mxu0 0
        %3932 = vmatpush.bf16.msra.mxu0 %v3889
        %3933 = vmatpush.bf16.msra.mxu0 %v3886
        %3934 = vmatpush.bf16.msra.mxu0 %v3883
        %3935 = vmatpush.bf16.msra.mxu0 %v3880
        %3936 = vmatmul.bf16.gmra.mxu0 %v3905
        %v3937 = vpop.f32.mrf.mxu0
        %v3938 = vadd.f32 0.0, %v3937
        %v3939 = vpop.f32.mrf.mxu0
        %v3940 = vadd.f32 0.0, %v3939
        %3941 = vmatmul.bf16.gmra.mxu0 %v3908
        %v3942 = vpop.f32.mrf.mxu0
        %v3943 = vadd.f32 0.0, %v3942
        %v3944 = vpop.f32.mrf.mxu0
        %v3945 = vadd.f32 0.0, %v3944
        %3946 = vmatmul.bf16.gmra.mxu0 %v3911
        %v3947 = vpop.f32.mrf.mxu0
        %v3948 = vadd.f32 0.0, %v3947
        %v3949 = vpop.f32.mrf.mxu0
        %v3950 = vadd.f32 0.0, %v3949
        %3951 = vmatmul.bf16.gmra.mxu0 %v3914
        %v3952 = vpop.f32.mrf.mxu0
        %v3953 = vadd.f32 0.0, %v3952
        %v3954 = vpop.f32.mrf.mxu0
        %v3955 = vadd.f32 0.0, %v3954
        %3956 = vmatmul.bf16.gmra.mxu0 %v3917
        %v3957 = vpop.f32.mrf.mxu0
        %v3958 = vadd.f32 0.0, %v3957
        %v3959 = vpop.f32.mrf.mxu0
        %v3960 = vadd.f32 0.0, %v3959
        %3961 = vmatmul.bf16.gmra.mxu0 %v3920
        %v3962 = vpop.f32.mrf.mxu0
        %v3963 = vadd.f32 0.0, %v3962
        %v3964 = vpop.f32.mrf.mxu0
        %v3965 = vadd.f32 0.0, %v3964
        %3966 = vmatmul.bf16.gmra.mxu0 %v3923
        %v3967 = vpop.f32.mrf.mxu0
        %v3968 = vadd.f32 0.0, %v3967
        %v3969 = vpop.f32.mrf.mxu0
        %v3970 = vadd.f32 0.0, %v3969
        %3971 = vmatmul.bf16.gmra.mxu0 %v3926
        %v3972 = vpop.f32.mrf.mxu0
        %v3973 = vadd.f32 0.0, %v3972
        %v3974 = vpop.f32.mrf.mxu0
        %v3975 = vadd.f32 0.0, %v3974
        %3976 = vdwg.mxu0
        %3977 = vmatpush.bf16.msra.mxu0 0
        %3978 = vmatpush.bf16.msra.mxu0 0
        %3979 = vmatpush.bf16.msra.mxu0 0
        %3980 = vmatpush.bf16.msra.mxu0 0
        %3981 = vmatpush.bf16.msra.mxu0 %v3890
        %3982 = vmatpush.bf16.msra.mxu0 %v3887
        %3983 = vmatpush.bf16.msra.mxu0 %v3884
        %3984 = vmatpush.bf16.msra.mxu0 %v3881
        %3985 = vmatmul.bf16.gmra.mxu0 %v3905
        %v3986 = vpop.f32.mrf.mxu0
        %v3987 = vadd.f32 0.0, %v3986
        %v3988 = vpop.f32.mrf.mxu0
        %v3989 = vadd.f32 0.0, %v3988
        %3990 = vmatmul.bf16.gmra.mxu0 %v3908
        %v3991 = vpop.f32.mrf.mxu0
        %v3992 = vadd.f32 0.0, %v3991
        %v3993 = vpop.f32.mrf.mxu0
        %v3994 = vadd.f32 0.0, %v3993
        %3995 = vmatmul.bf16.gmra.mxu0 %v3911
        %v3996 = vpop.f32.mrf.mxu0
        %v3997 = vadd.f32 0.0, %v3996
        %v3998 = vpop.f32.mrf.mxu0
        %v3999 = vadd.f32 0.0, %v3998
        %4000 = vmatmul.bf16.gmra.mxu0 %v3914
        %v4001 = vpop.f32.mrf.mxu0
        %v4002 = vadd.f32 0.0, %v4001
        %v4003 = vpop.f32.mrf.mxu0
        %v4004 = vadd.f32 0.0, %v4003
        %4005 = vmatmul.bf16.gmra.mxu0 %v3917
        %v4006 = vpop.f32.mrf.mxu0
        %v4007 = vadd.f32 0.0, %v4006
        %v4008 = vpop.f32.mrf.mxu0
        %v4009 = vadd.f32 0.0, %v4008
        %4010 = vmatmul.bf16.gmra.mxu0 %v3920
        %v4011 = vpop.f32.mrf.mxu0
        %v4012 = vadd.f32 0.0, %v4011
        %v4013 = vpop.f32.mrf.mxu0
        %v4014 = vadd.f32 0.0, %v4013
        %4015 = vmatmul.bf16.gmra.mxu0 %v3923
        %v4016 = vpop.f32.mrf.mxu0
        %v4017 = vadd.f32 0.0, %v4016
        %v4018 = vpop.f32.mrf.mxu0
        %v4019 = vadd.f32 0.0, %v4018
        %4020 = vmatmul.bf16.gmra.mxu0 %v3926
        %v4021 = vpop.f32.mrf.mxu0
        %v4022 = vadd.f32 0.0, %v4021
        %v4023 = vpop.f32.mrf.mxu0
        %v4024 = vadd.f32 0.0, %v4023
        %4025 = vdwg.mxu0
        %4026 = vmatpush.bf16.msra.mxu0 0
        %4027 = vmatpush.bf16.msra.mxu0 0
        %4028 = vmatpush.bf16.msra.mxu0 0
        %4029 = vmatpush.bf16.msra.mxu0 0
        %4030 = vmatpush.bf16.msra.mxu0 %v3891
        %4031 = vmatpush.bf16.msra.mxu0 %v3888
        %4032 = vmatpush.bf16.msra.mxu0 %v3885
        %4033 = vmatpush.bf16.msra.mxu0 %v3882
        %4034 = vmatmul.bf16.gmra.mxu0 %v3905
        %v4035 = vpop.f32.mrf.mxu0
        %v4036 = vadd.f32 0.0, %v4035
        %v4037 = vpop.f32.mrf.mxu0
        %v4038 = vadd.f32 0.0, %v4037
        %4039 = vmatmul.bf16.gmra.mxu0 %v3908
        %v4040 = vpop.f32.mrf.mxu0
        %v4041 = vadd.f32 0.0, %v4040
        %v4042 = vpop.f32.mrf.mxu0
        %v4043 = vadd.f32 0.0, %v4042
        %4044 = vmatmul.bf16.gmra.mxu0 %v3911
        %v4045 = vpop.f32.mrf.mxu0
        %v4046 = vadd.f32 0.0, %v4045
        %v4047 = vpop.f32.mrf.mxu0
        %v4048 = vadd.f32 0.0, %v4047
        %4049 = vmatmul.bf16.gmra.mxu0 %v3914
        %v4050 = vpop.f32.mrf.mxu0
        %v4051 = vadd.f32 0.0, %v4050
        %v4052 = vpop.f32.mrf.mxu0
        %v4053 = vadd.f32 0.0, %v4052
        %4054 = vmatmul.bf16.gmra.mxu0 %v3917
        %v4055 = vpop.f32.mrf.mxu0
        %v4056 = vadd.f32 0.0, %v4055
        %v4057 = vpop.f32.mrf.mxu0
        %v4058 = vadd.f32 0.0, %v4057
        %4059 = vmatmul.bf16.gmra.mxu0 %v3920
        %v4060 = vpop.f32.mrf.mxu0
        %v4061 = vadd.f32 0.0, %v4060
        %v4062 = vpop.f32.mrf.mxu0
        %v4063 = vadd.f32 0.0, %v4062
        %4064 = vmatmul.bf16.gmra.mxu0 %v3923
        %v4065 = vpop.f32.mrf.mxu0
        %v4066 = vadd.f32 0.0, %v4065
        %v4067 = vpop.f32.mrf.mxu0
        %v4068 = vadd.f32 0.0, %v4067
        %4069 = vmatmul.bf16.gmra.mxu0 %v3926
        %v4070 = vpop.f32.mrf.mxu0
        %v4071 = vadd.f32 0.0, %v4070
        %v4072 = vpop.f32.mrf.mxu0
        %v4073 = vadd.f32 0.0, %v4072
        %4074 = vdwg.mxu0
        %v4091 = vunpack.c.l.b16 %v3398
        %v4092 = vunpack.c.h.b16 %v3398
        %v4093 = vunpack.c.l.b16 %v3399
        %v4094 = vunpack.c.l.b16 %v3400
        %v4095 = vunpack.c.h.b16 %v3400
        %v4096 = vunpack.c.l.b16 %v3401
        %v4097 = vunpack.c.l.b16 %v3402
        %v4098 = vunpack.c.h.b16 %v3402
        %v4099 = vunpack.c.l.b16 %v3403
        %v4100 = vunpack.c.l.b16 %v3404
        %v4101 = vunpack.c.h.b16 %v3404
        %v4102 = vunpack.c.l.b16 %v3405
        %v4103 = vunpack.c.l.b16 %v3406
        %v4104 = vunpack.c.h.b16 %v3406
        %v4105 = vunpack.c.l.b16 %v3407
        %v4106 = vunpack.c.l.b16 %v3408
        %v4107 = vunpack.c.h.b16 %v3408
        %v4108 = vunpack.c.l.b16 %v3409
        %v4109 = vunpack.c.l.b16 %v3410
        %v4110 = vunpack.c.h.b16 %v3410
        %v4111 = vunpack.c.l.b16 %v3411
        %v4112 = vunpack.c.l.b16 %v3412
        %v4113 = vunpack.c.h.b16 %v3412
        %v4114 = vunpack.c.l.b16 %v3413
        %v4115 = vpack.c.b16 %v4094, %v4091
        %v4116 = vpack.c.b16 %v4095, %v4092
        %v4117 = vpack.c.b16 %v4096, %v4093
        %v4118 = vpack.c.b16 %v4100, %v4097
        %v4119 = vpack.c.b16 %v4101, %v4098
        %v4120 = vpack.c.b16 %v4102, %v4099
        %v4121 = vpack.c.b16 %v4106, %v4103
        %v4122 = vpack.c.b16 %v4107, %v4104
        %v4123 = vpack.c.b16 %v4108, %v4105
        %v4124 = vpack.c.b16 %v4112, %v4109
        %v4125 = vpack.c.b16 %v4113, %v4110
        %v4126 = vpack.c.b16 %v4114, %v4111
        %v4140 = vsel %vm3083, %v3414, 0
        %v4143 = vsel %vm3083, %v3415, 0
        %v4146 = vsel %vm3083, %v3416, 0
        %v4149 = vsel %vm3083, %v3417, 0
        %v4152 = vsel %vm3083, %v3418, 0
        %v4155 = vsel %vm3083, %v3419, 0
        %v4158 = vsel %vm3083, %v3420, 0
        %v4161 = vsel %vm3083, %v3421, 0
        %4163 = vmatpush.bf16.msra.mxu0 0
        %4164 = vmatpush.bf16.msra.mxu0 0
        %4165 = vmatpush.bf16.msra.mxu0 0
        %4166 = vmatpush.bf16.msra.mxu0 0
        %4167 = vmatpush.bf16.msra.mxu0 %v4124
        %4168 = vmatpush.bf16.msra.mxu0 %v4121
        %4169 = vmatpush.bf16.msra.mxu0 %v4118
        %4170 = vmatpush.bf16.msra.mxu0 %v4115
        %4171 = vmatmul.bf16.gmra.mxu0 %v4140
        %v4172 = vpop.f32.mrf.mxu0
        %v4173 = vadd.f32 %v3938, %v4172
        %v4174 = vpop.f32.mrf.mxu0
        %v4175 = vadd.f32 %v3940, %v4174
        %4176 = vmatmul.bf16.gmra.mxu0 %v4143
        %v4177 = vpop.f32.mrf.mxu0
        %v4178 = vadd.f32 %v3943, %v4177
        %v4179 = vpop.f32.mrf.mxu0
        %v4180 = vadd.f32 %v3945, %v4179
        %4181 = vmatmul.bf16.gmra.mxu0 %v4146
        %v4182 = vpop.f32.mrf.mxu0
        %v4183 = vadd.f32 %v3948, %v4182
        %v4184 = vpop.f32.mrf.mxu0
        %v4185 = vadd.f32 %v3950, %v4184
        %4186 = vmatmul.bf16.gmra.mxu0 %v4149
        %v4187 = vpop.f32.mrf.mxu0
        %v4188 = vadd.f32 %v3953, %v4187
        %v4189 = vpop.f32.mrf.mxu0
        %v4190 = vadd.f32 %v3955, %v4189
        %4191 = vmatmul.bf16.gmra.mxu0 %v4152
        %v4192 = vpop.f32.mrf.mxu0
        %v4193 = vadd.f32 %v3958, %v4192
        %v4194 = vpop.f32.mrf.mxu0
        %v4195 = vadd.f32 %v3960, %v4194
        %4196 = vmatmul.bf16.gmra.mxu0 %v4155
        %v4197 = vpop.f32.mrf.mxu0
        %v4198 = vadd.f32 %v3963, %v4197
        %v4199 = vpop.f32.mrf.mxu0
        %v4200 = vadd.f32 %v3965, %v4199
        %4201 = vmatmul.bf16.gmra.mxu0 %v4158
        %v4202 = vpop.f32.mrf.mxu0
        %v4203 = vadd.f32 %v3968, %v4202
        %v4204 = vpop.f32.mrf.mxu0
        %v4205 = vadd.f32 %v3970, %v4204
        %4206 = vmatmul.bf16.gmra.mxu0 %v4161
        %v4207 = vpop.f32.mrf.mxu0
        %v4208 = vadd.f32 %v3973, %v4207
        %v4209 = vpop.f32.mrf.mxu0
        %v4210 = vadd.f32 %v3975, %v4209
        %4211 = vdwg.mxu0
        %4212 = vmatpush.bf16.msra.mxu0 0
        %4213 = vmatpush.bf16.msra.mxu0 0
        %4214 = vmatpush.bf16.msra.mxu0 0
        %4215 = vmatpush.bf16.msra.mxu0 0
        %4216 = vmatpush.bf16.msra.mxu0 %v4125
        %4217 = vmatpush.bf16.msra.mxu0 %v4122
        %4218 = vmatpush.bf16.msra.mxu0 %v4119
        %4219 = vmatpush.bf16.msra.mxu0 %v4116
        %4220 = vmatmul.bf16.gmra.mxu0 %v4140
        %v4221 = vpop.f32.mrf.mxu0
        %v4222 = vadd.f32 %v3987, %v4221
        %v4223 = vpop.f32.mrf.mxu0
        %v4224 = vadd.f32 %v3989, %v4223
        %4225 = vmatmul.bf16.gmra.mxu0 %v4143
        %v4226 = vpop.f32.mrf.mxu0
        %v4227 = vadd.f32 %v3992, %v4226
        %v4228 = vpop.f32.mrf.mxu0
        %v4229 = vadd.f32 %v3994, %v4228
        %4230 = vmatmul.bf16.gmra.mxu0 %v4146
        %v4231 = vpop.f32.mrf.mxu0
        %v4232 = vadd.f32 %v3997, %v4231
        %v4233 = vpop.f32.mrf.mxu0
        %v4234 = vadd.f32 %v3999, %v4233
        %4235 = vmatmul.bf16.gmra.mxu0 %v4149
        %v4236 = vpop.f32.mrf.mxu0
        %v4237 = vadd.f32 %v4002, %v4236
        %v4238 = vpop.f32.mrf.mxu0
        %v4239 = vadd.f32 %v4004, %v4238
        %4240 = vmatmul.bf16.gmra.mxu0 %v4152
        %v4241 = vpop.f32.mrf.mxu0
        %v4242 = vadd.f32 %v4007, %v4241
        %v4243 = vpop.f32.mrf.mxu0
        %v4244 = vadd.f32 %v4009, %v4243
        %4245 = vmatmul.bf16.gmra.mxu0 %v4155
        %v4246 = vpop.f32.mrf.mxu0
        %v4247 = vadd.f32 %v4012, %v4246
        %v4248 = vpop.f32.mrf.mxu0
        %v4249 = vadd.f32 %v4014, %v4248
        %4250 = vmatmul.bf16.gmra.mxu0 %v4158
        %v4251 = vpop.f32.mrf.mxu0
        %v4252 = vadd.f32 %v4017, %v4251
        %v4253 = vpop.f32.mrf.mxu0
        %v4254 = vadd.f32 %v4019, %v4253
        %4255 = vmatmul.bf16.gmra.mxu0 %v4161
        %v4256 = vpop.f32.mrf.mxu0
        %v4257 = vadd.f32 %v4022, %v4256
        %v4258 = vpop.f32.mrf.mxu0
        %v4259 = vadd.f32 %v4024, %v4258
        %4260 = vdwg.mxu0
        %4261 = vmatpush.bf16.msra.mxu0 0
        %4262 = vmatpush.bf16.msra.mxu0 0
        %4263 = vmatpush.bf16.msra.mxu0 0
        %4264 = vmatpush.bf16.msra.mxu0 0
        %4265 = vmatpush.bf16.msra.mxu0 %v4126
        %4266 = vmatpush.bf16.msra.mxu0 %v4123
        %4267 = vmatpush.bf16.msra.mxu0 %v4120
        %4268 = vmatpush.bf16.msra.mxu0 %v4117
        %4269 = vmatmul.bf16.gmra.mxu0 %v4140
        %v4270 = vpop.f32.mrf.mxu0
        %v4271 = vadd.f32 %v4036, %v4270
        %v4272 = vpop.f32.mrf.mxu0
        %v4273 = vadd.f32 %v4038, %v4272
        %4274 = vmatmul.bf16.gmra.mxu0 %v4143
        %v4275 = vpop.f32.mrf.mxu0
        %v4276 = vadd.f32 %v4041, %v4275
        %v4277 = vpop.f32.mrf.mxu0
        %v4278 = vadd.f32 %v4043, %v4277
        %4279 = vmatmul.bf16.gmra.mxu0 %v4146
        %v4280 = vpop.f32.mrf.mxu0
        %v4281 = vadd.f32 %v4046, %v4280
        %v4282 = vpop.f32.mrf.mxu0
        %v4283 = vadd.f32 %v4048, %v4282
        %4284 = vmatmul.bf16.gmra.mxu0 %v4149
        %v4285 = vpop.f32.mrf.mxu0
        %v4286 = vadd.f32 %v4051, %v4285
        %v4287 = vpop.f32.mrf.mxu0
        %v4288 = vadd.f32 %v4053, %v4287
        %4289 = vmatmul.bf16.gmra.mxu0 %v4152
        %v4290 = vpop.f32.mrf.mxu0
        %v4291 = vadd.f32 %v4056, %v4290
        %v4292 = vpop.f32.mrf.mxu0
        %v4293 = vadd.f32 %v4058, %v4292
        %4294 = vmatmul.bf16.gmra.mxu0 %v4155
        %v4295 = vpop.f32.mrf.mxu0
        %v4296 = vadd.f32 %v4061, %v4295
        %v4297 = vpop.f32.mrf.mxu0
        %v4298 = vadd.f32 %v4063, %v4297
        %4299 = vmatmul.bf16.gmra.mxu0 %v4158
        %v4300 = vpop.f32.mrf.mxu0
        %v4301 = vadd.f32 %v4066, %v4300
        %v4302 = vpop.f32.mrf.mxu0
        %v4303 = vadd.f32 %v4068, %v4302
        %4304 = vmatmul.bf16.gmra.mxu0 %v4161
        %v4305 = vpop.f32.mrf.mxu0
        %v4306 = vadd.f32 %v4071, %v4305
        %v4307 = vpop.f32.mrf.mxu0
        %v4308 = vadd.f32 %v4073, %v4307
        %4309 = vdwg.mxu0
        %v4310 = vpack.c.bf16 %v1958, %v1956
        %v4311 = vpack.c.bf16 %v1963, %v1961
        %v4312 = vpack.c.bf16 %v1968, %v1966
        %v4313 = vpack.c.bf16 %v1973, %v1971
        %v4314 = vpack.c.bf16 %v1978, %v1976
        %v4315 = vpack.c.bf16 %v1983, %v1981
        %v4316 = vpack.c.bf16 %v1988, %v1986
        %v4317 = vpack.c.bf16 %v1993, %v1991
        %v4318 = vpack.c.bf16 %v2399, %v2397
        %v4319 = vpack.c.bf16 %v2404, %v2402
        %v4320 = vpack.c.bf16 %v2409, %v2407
        %v4321 = vpack.c.bf16 %v2414, %v2412
        %v4322 = vpack.c.bf16 %v2419, %v2417
        %v4323 = vpack.c.bf16 %v2424, %v2422
        %v4324 = vpack.c.bf16 %v2429, %v2427
        %v4325 = vpack.c.bf16 %v2434, %v2432
        %v4326 = vpack.c.bf16 %v2840, %v2838
        %v4327 = vpack.c.bf16 %v2845, %v2843
        %v4328 = vpack.c.bf16 %v2850, %v2848
        %v4329 = vpack.c.bf16 %v2855, %v2853
        %v4330 = vpack.c.bf16 %v2860, %v2858
        %v4331 = vpack.c.bf16 %v2865, %v2863
        %v4332 = vpack.c.bf16 %v2870, %v2868
        %v4333 = vpack.c.bf16 %v2875, %v2873
        %v4335 = vsel %vm3083, %v4310, 0
        %v4338 = vsel %vm3083, %v4311, 0
        %v4341 = vsel %vm3083, %v4312, 0
        %v4344 = vsel %vm3083, %v4313, 0
        %v4347 = vsel %vm3083, %v4314, 0
        %v4350 = vsel %vm3083, %v4315, 0
        %v4353 = vsel %vm3083, %v4316, 0
        %v4356 = vsel %vm3083, %v4317, 0
        %v4359 = vsel %vm3083, %v4318, 0
        %v4362 = vsel %vm3083, %v4319, 0
        %v4365 = vsel %vm3083, %v4320, 0
        %v4368 = vsel %vm3083, %v4321, 0
        %v4371 = vsel %vm3083, %v4322, 0
        %v4374 = vsel %vm3083, %v4323, 0
        %v4377 = vsel %vm3083, %v4324, 0
        %v4380 = vsel %vm3083, %v4325, 0
        %4382 = vmatpush.bf16.xpose.msra.mxu0 %v4380
        %4383 = vmatpush.bf16.xpose.msra.mxu0 %v4377
        %4384 = vmatpush.bf16.xpose.msra.mxu0 %v4374
        %4385 = vmatpush.bf16.xpose.msra.mxu0 %v4371
        %4386 = vmatpush.bf16.xpose.msra.mxu0 %v4368
        %4387 = vmatpush.bf16.xpose.msra.mxu0 %v4365
        %4388 = vmatpush.bf16.xpose.msra.mxu0 %v4362
        %4389 = vmatpush.bf16.xpose.msra.mxu0 %v4359
        %4390 = vmatmul.bf16.gmra.mxu0 %v4335
        %v4391 = vpop.f32.mrf.mxu0
        %v4392 = vadd.f32 0.0, %v4391
        %v4393 = vpop.f32.mrf.mxu0
        %v4394 = vadd.f32 0.0, %v4393
        %4395 = vmatmul.bf16.gmra.mxu0 %v4338
        %v4396 = vpop.f32.mrf.mxu0
        %v4397 = vadd.f32 0.0, %v4396
        %v4398 = vpop.f32.mrf.mxu0
        %v4399 = vadd.f32 0.0, %v4398
        %4400 = vmatmul.bf16.gmra.mxu0 %v4341
        %v4401 = vpop.f32.mrf.mxu0
        %v4402 = vadd.f32 0.0, %v4401
        %v4403 = vpop.f32.mrf.mxu0
        %v4404 = vadd.f32 0.0, %v4403
        %4405 = vmatmul.bf16.gmra.mxu0 %v4344
        %v4406 = vpop.f32.mrf.mxu0
        %v4407 = vadd.f32 0.0, %v4406
        %v4408 = vpop.f32.mrf.mxu0
        %v4409 = vadd.f32 0.0, %v4408
        %4410 = vmatmul.bf16.gmra.mxu0 %v4347
        %v4411 = vpop.f32.mrf.mxu0
        %v4412 = vadd.f32 0.0, %v4411
        %v4413 = vpop.f32.mrf.mxu0
        %v4414 = vadd.f32 0.0, %v4413
        %4415 = vmatmul.bf16.gmra.mxu0 %v4350
        %v4416 = vpop.f32.mrf.mxu0
        %v4417 = vadd.f32 0.0, %v4416
        %v4418 = vpop.f32.mrf.mxu0
        %v4419 = vadd.f32 0.0, %v4418
        %4420 = vmatmul.bf16.gmra.mxu0 %v4353
        %v4421 = vpop.f32.mrf.mxu0
        %v4422 = vadd.f32 0.0, %v4421
        %v4423 = vpop.f32.mrf.mxu0
        %v4424 = vadd.f32 0.0, %v4423
        %4425 = vmatmul.bf16.gmra.mxu0 %v4356
        %v4426 = vpop.f32.mrf.mxu0
        %v4427 = vadd.f32 0.0, %v4426
        %v4428 = vpop.f32.mrf.mxu0
        %v4429 = vadd.f32 0.0, %v4428
        %4430 = vdwg.mxu0
        %v4431 = vsel %vm3043, %v4392, -inf
        %v4432 = vsel %vm3044, %v4394, -inf
        %v4433 = vsel %vm3045, %v4397, -inf
        %v4434 = vsel %vm3046, %v4399, -inf
        %v4435 = vsel %vm3047, %v4402, -inf
        %v4436 = vsel %vm3048, %v4404, -inf
        %v4437 = vsel %vm3049, %v4407, -inf
        %v4438 = vsel %vm3050, %v4409, -inf
        %v4439 = vsel %vm3051, %v4412, -inf
        %v4440 = vsel %vm3052, %v4414, -inf
        %v4441 = vsel %vm3053, %v4417, -inf
        %v4442 = vsel %vm3054, %v4419, -inf
        %v4443 = vsel %vm3055, %v4422, -inf
        %v4444 = vsel %vm3056, %v4424, -inf
        %v4445 = vsel %vm3057, %v4427, -inf
        %v4446 = vsel %vm3058, %v4429, -inf
        %4447 = vmax.xlane.f32.xlu0 %v4431
        %v4448 = vpop.xlane.xlu0 %4447
        %4449 = vmax.xlane.f32.xlu0 %v4432
        %v4450 = vpop.xlane.xlu0 %4449
        %4451 = vmax.xlane.f32.xlu0 %v4433
        %v4452 = vpop.xlane.xlu0 %4451
        %4453 = vmax.xlane.f32.xlu0 %v4434
        %v4454 = vpop.xlane.xlu0 %4453
        %4455 = vmax.xlane.f32.xlu0 %v4435
        %v4456 = vpop.xlane.xlu0 %4455
        %4457 = vmax.xlane.f32.xlu0 %v4436
        %v4458 = vpop.xlane.xlu0 %4457
        %4459 = vmax.xlane.f32.xlu0 %v4437
        %v4460 = vpop.xlane.xlu0 %4459
        %4461 = vmax.xlane.f32.xlu0 %v4438
        %v4462 = vpop.xlane.xlu0 %4461
        %4463 = vmax.xlane.f32.xlu0 %v4439
        %v4464 = vpop.xlane.xlu0 %4463
        %4465 = vmax.xlane.f32.xlu0 %v4440
        %v4466 = vpop.xlane.xlu0 %4465
        %4467 = vmax.xlane.f32.xlu0 %v4441
        %v4468 = vpop.xlane.xlu0 %4467
        %4469 = vmax.xlane.f32.xlu0 %v4442
        %v4470 = vpop.xlane.xlu0 %4469
        %4471 = vmax.xlane.f32.xlu0 %v4443
        %v4472 = vpop.xlane.xlu0 %4471
        %4473 = vmax.xlane.f32.xlu0 %v4444
        %v4474 = vpop.xlane.xlu0 %4473
        %4475 = vmax.xlane.f32.xlu0 %v4445
        %v4476 = vpop.xlane.xlu0 %4475
        %4477 = vmax.xlane.f32.xlu0 %v4446
        %v4478 = vpop.xlane.xlu0 %4477
        %v4479 = vsub.f32 %v4431, %v4448
        %v4480 = vsub.f32 %v4432, %v4450
        %v4481 = vsub.f32 %v4433, %v4452
        %v4482 = vsub.f32 %v4434, %v4454
        %v4483 = vsub.f32 %v4435, %v4456
        %v4484 = vsub.f32 %v4436, %v4458
        %v4485 = vsub.f32 %v4437, %v4460
        %v4486 = vsub.f32 %v4438, %v4462
        %v4487 = vsub.f32 %v4439, %v4464
        %v4488 = vsub.f32 %v4440, %v4466
        %v4489 = vsub.f32 %v4441, %v4468
        %v4490 = vsub.f32 %v4442, %v4470
        %v4491 = vsub.f32 %v4443, %v4472
        %v4492 = vsub.f32 %v4444, %v4474
        %v4493 = vsub.f32 %v4445, %v4476
        %v4494 = vsub.f32 %v4446, %v4478
        %v4495 = vmul.f32 %v4479, 1.442695
        %v4496 = vpow.pop %v4495
        %v4497 = vmul.f32 %v4480, 1.442695
        %v4498 = vpow.pop %v4497
        %v4499 = vmul.f32 %v4481, 1.442695
        %v4500 = vpow.pop %v4499
        %v4501 = vmul.f32 %v4482, 1.442695
        %v4502 = vpow.pop %v4501
        %v4503 = vmul.f32 %v4483, 1.442695
        %v4504 = vpow.pop %v4503
        %v4505 = vmul.f32 %v4484, 1.442695
        %v4506 = vpow.pop %v4505
        %v4507 = vmul.f32 %v4485, 1.442695
        %v4508 = vpow.pop %v4507
        %v4509 = vmul.f32 %v4486, 1.442695
        %v4510 = vpow.pop %v4509
        %v4511 = vmul.f32 %v4487, 1.442695
        %v4512 = vpow.pop %v4511
        %v4513 = vmul.f32 %v4488, 1.442695
        %v4514 = vpow.pop %v4513
        %v4515 = vmul.f32 %v4489, 1.442695
        %v4516 = vpow.pop %v4515
        %v4517 = vmul.f32 %v4490, 1.442695
        %v4518 = vpow.pop %v4517
        %v4519 = vmul.f32 %v4491, 1.442695
        %v4520 = vpow.pop %v4519
        %v4521 = vmul.f32 %v4492, 1.442695
        %v4522 = vpow.pop %v4521
        %v4523 = vmul.f32 %v4493, 1.442695
        %v4524 = vpow.pop %v4523
        %v4525 = vmul.f32 %v4494, 1.442695
        %v4526 = vpow.pop %v4525
        %4527 = vadd.xlane.f32.xlu0 %v4496
        %v4528 = vpop.xlane.xlu0 %4527
        %4529 = vadd.xlane.f32.xlu0 %v4498
        %v4530 = vpop.xlane.xlu0 %4529
        %4531 = vadd.xlane.f32.xlu0 %v4500
        %v4532 = vpop.xlane.xlu0 %4531
        %4533 = vadd.xlane.f32.xlu0 %v4502
        %v4534 = vpop.xlane.xlu0 %4533
        %4535 = vadd.xlane.f32.xlu0 %v4504
        %v4536 = vpop.xlane.xlu0 %4535
        %4537 = vadd.xlane.f32.xlu0 %v4506
        %v4538 = vpop.xlane.xlu0 %4537
        %4539 = vadd.xlane.f32.xlu0 %v4508
        %v4540 = vpop.xlane.xlu0 %4539
        %4541 = vadd.xlane.f32.xlu0 %v4510
        %v4542 = vpop.xlane.xlu0 %4541
        %4543 = vadd.xlane.f32.xlu0 %v4512
        %v4544 = vpop.xlane.xlu0 %4543
        %4545 = vadd.xlane.f32.xlu0 %v4514
        %v4546 = vpop.xlane.xlu0 %4545
        %4547 = vadd.xlane.f32.xlu0 %v4516
        %v4548 = vpop.xlane.xlu0 %4547
        %4549 = vadd.xlane.f32.xlu0 %v4518
        %v4550 = vpop.xlane.xlu0 %4549
        %4551 = vadd.xlane.f32.xlu0 %v4520
        %v4552 = vpop.xlane.xlu0 %4551
        %4553 = vadd.xlane.f32.xlu0 %v4522
        %v4554 = vpop.xlane.xlu0 %4553
        %4555 = vadd.xlane.f32.xlu0 %v4524
        %v4556 = vpop.xlane.xlu0 %4555
        %4557 = vadd.xlane.f32.xlu0 %v4526
        %v4558 = vpop.xlane.xlu0 %4557
        %v4559 = vrcp.pop %v4528
        %v4560 = vrcp.pop %v4530
        %v4561 = vrcp.pop %v4532
        %v4562 = vrcp.pop %v4534
        %v4563 = vrcp.pop %v4536
        %v4564 = vrcp.pop %v4538
        %v4565 = vrcp.pop %v4540
        %v4566 = vrcp.pop %v4542
        %v4567 = vrcp.pop %v4544
        %v4568 = vrcp.pop %v4546
        %v4569 = vrcp.pop %v4548
        %v4570 = vrcp.pop %v4550
        %v4571 = vrcp.pop %v4552
        %v4572 = vrcp.pop %v4554
        %v4573 = vrcp.pop %v4556
        %v4574 = vrcp.pop %v4558
        %v4575 = vmul.f32 %v4496, %v4559
        %v4576 = vmul.f32 %v4498, %v4560
        %v4577 = vmul.f32 %v4500, %v4561
        %v4578 = vmul.f32 %v4502, %v4562
        %v4579 = vmul.f32 %v4504, %v4563
        %v4580 = vmul.f32 %v4506, %v4564
        %v4581 = vmul.f32 %v4508, %v4565
        %v4582 = vmul.f32 %v4510, %v4566
        %v4583 = vmul.f32 %v4512, %v4567
        %v4584 = vmul.f32 %v4514, %v4568
        %v4585 = vmul.f32 %v4516, %v4569
        %v4586 = vmul.f32 %v4518, %v4570
        %v4587 = vmul.f32 %v4520, %v4571
        %v4588 = vmul.f32 %v4522, %v4572
        %v4589 = vmul.f32 %v4524, %v4573
        %v4590 = vmul.f32 %v4526, %v4574
        %v4591 = vpack.c.bf16 %v4576, %v4575
        %v4592 = vpack.c.bf16 %v4578, %v4577
        %v4593 = vpack.c.bf16 %v4580, %v4579
        %v4594 = vpack.c.bf16 %v4582, %v4581
        %v4595 = vpack.c.bf16 %v4584, %v4583
        %v4596 = vpack.c.bf16 %v4586, %v4585
        %v4597 = vpack.c.bf16 %v4588, %v4587
        %v4598 = vpack.c.bf16 %v4590, %v4589
        %4599 = vmatpush.bf16.msra.mxu0 %v4333
        %4600 = vmatpush.bf16.msra.mxu0 %v4332
        %4601 = vmatpush.bf16.msra.mxu0 %v4331
        %4602 = vmatpush.bf16.msra.mxu0 %v4330
        %4603 = vmatpush.bf16.msra.mxu0 %v4329
        %4604 = vmatpush.bf16.msra.mxu0 %v4328
        %4605 = vmatpush.bf16.msra.mxu0 %v4327
        %4606 = vmatpush.bf16.msra.mxu0 %v4326
        %4607 = vmatmul.bf16.gmra.mxu0 %v4591
        %v4608 = vpop.f32.mrf.mxu0
        %v4609 = vadd.f32 0.0, %v4608
        %v4610 = vpop.f32.mrf.mxu0
        %v4611 = vadd.f32 0.0, %v4610
        %4612 = vmatmul.bf16.gmra.mxu0 %v4592
        %v4613 = vpop.f32.mrf.mxu0
        %v4614 = vadd.f32 0.0, %v4613
        %v4615 = vpop.f32.mrf.mxu0
        %v4616 = vadd.f32 0.0, %v4615
        %4617 = vmatmul.bf16.gmra.mxu0 %v4593
        %v4618 = vpop.f32.mrf.mxu0
        %v4619 = vadd.f32 0.0, %v4618
        %v4620 = vpop.f32.mrf.mxu0
        %v4621 = vadd.f32 0.0, %v4620
        %4622 = vmatmul.bf16.gmra.mxu0 %v4594
        %v4623 = vpop.f32.mrf.mxu0
        %v4624 = vadd.f32 0.0, %v4623
        %v4625 = vpop.f32.mrf.mxu0
        %v4626 = vadd.f32 0.0, %v4625
        %4627 = vmatmul.bf16.gmra.mxu0 %v4595
        %v4628 = vpop.f32.mrf.mxu0
        %v4629 = vadd.f32 0.0, %v4628
        %v4630 = vpop.f32.mrf.mxu0
        %v4631 = vadd.f32 0.0, %v4630
        %4632 = vmatmul.bf16.gmra.mxu0 %v4596
        %v4633 = vpop.f32.mrf.mxu0
        %v4634 = vadd.f32 0.0, %v4633
        %v4635 = vpop.f32.mrf.mxu0
        %v4636 = vadd.f32 0.0, %v4635
        %4637 = vmatmul.bf16.gmra.mxu0 %v4597
        %v4638 = vpop.f32.mrf.mxu0
        %v4639 = vadd.f32 0.0, %v4638
        %v4640 = vpop.f32.mrf.mxu0
        %v4641 = vadd.f32 0.0, %v4640
        %4642 = vmatmul.bf16.gmra.mxu0 %v4598
        %v4643 = vpop.f32.mrf.mxu0
        %v4644 = vadd.f32 0.0, %v4643
        %v4645 = vpop.f32.mrf.mxu0
        %v4646 = vadd.f32 0.0, %v4645
        %4647 = vdwg.mxu0
        %v4648 = vld [vmem:[%s2 + $0xc0] sm:$0xff]
        %v4649 = vld [vmem:[%s2 + $0xc8] sm:$0xf]
        %v4650 = vld [vmem:[%s2 + $0xcc] sm:$0xff]
        %v4651 = vld [vmem:[%s2 + $0xd4] sm:$0xf]
        %v4652 = vld [vmem:[%s2 + $0xd8] sm:$0xff]
        %v4653 = vld [vmem:[%s2 + $0xe0] sm:$0xf]
        %v4654 = vld [vmem:[%s2 + $0xe4] sm:$0xff]
        %v4655 = vld [vmem:[%s2 + $0xec] sm:$0xf]
        %v4656 = vld [vmem:[%s2 + $0xf0] sm:$0xff]
        %v4657 = vld [vmem:[%s2 + $0xf8] sm:$0xf]
        %v4658 = vld [vmem:[%s2 + $0xfc] sm:$0xff]
        %v4659 = vld [vmem:[%s2 + $0x104] sm:$0xf]
        %v4660 = vld [vmem:[%s2 + $0x108] sm:$0xff]
        %v4661 = vld [vmem:[%s2 + $0x110] sm:$0xf]
        %v4662 = vld [vmem:[%s2 + $0x114] sm:$0xff]
        %v4663 = vld [vmem:[%s2 + $0x11c] sm:$0xf]
        %v4664 = vpack.c.bf16 %v4611, %v4609
        %v4665 = vpack.c.bf16 %v4616, %v4614
        %v4666 = vpack.c.bf16 %v4621, %v4619
        %v4667 = vpack.c.bf16 %v4626, %v4624
        %v4668 = vpack.c.bf16 %v4631, %v4629
        %v4669 = vpack.c.bf16 %v4636, %v4634
        %v4670 = vpack.c.bf16 %v4641, %v4639
        %v4671 = vpack.c.bf16 %v4646, %v4644
        %v4688 = vunpack.c.l.b16 %v4648
        %v4689 = vunpack.c.h.b16 %v4648
        %v4690 = vunpack.c.l.b16 %v4649
        %v4691 = vunpack.c.l.b16 %v4650
        %v4692 = vunpack.c.h.b16 %v4650
        %v4693 = vunpack.c.l.b16 %v4651
        %v4694 = vunpack.c.l.b16 %v4652
        %v4695 = vunpack.c.h.b16 %v4652
        %v4696 = vunpack.c.l.b16 %v4653
        %v4697 = vunpack.c.l.b16 %v4654
        %v4698 = vunpack.c.h.b16 %v4654
        %v4699 = vunpack.c.l.b16 %v4655
        %v4700 = vunpack.c.l.b16 %v4656
        %v4701 = vunpack.c.h.b16 %v4656
        %v4702 = vunpack.c.l.b16 %v4657
        %v4703 = vunpack.c.l.b16 %v4658
        %v4704 = vunpack.c.h.b16 %v4658
        %v4705 = vunpack.c.l.b16 %v4659
        %v4706 = vunpack.c.l.b16 %v4660
        %v4707 = vunpack.c.h.b16 %v4660
        %v4708 = vunpack.c.l.b16 %v4661
        %v4709 = vunpack.c.l.b16 %v4662
        %v4710 = vunpack.c.h.b16 %v4662
        %v4711 = vunpack.c.l.b16 %v4663
        %v4712 = vpack.c.b16 %v4691, %v4688
        %v4713 = vpack.c.b16 %v4692, %v4689
        %v4714 = vpack.c.b16 %v4693, %v4690
        %v4715 = vpack.c.b16 %v4697, %v4694
        %v4716 = vpack.c.b16 %v4698, %v4695
        %v4717 = vpack.c.b16 %v4699, %v4696
        %v4718 = vpack.c.b16 %v4703, %v4700
        %v4719 = vpack.c.b16 %v4704, %v4701
        %v4720 = vpack.c.b16 %v4705, %v4702
        %v4721 = vpack.c.b16 %v4709, %v4706
        %v4722 = vpack.c.b16 %v4710, %v4707
        %v4723 = vpack.c.b16 %v4711, %v4708
        %v4737 = vsel %vm3083, %v4664, 0
        %v4740 = vsel %vm3083, %v4665, 0
        %v4743 = vsel %vm3083, %v4666, 0
        %v4746 = vsel %vm3083, %v4667, 0
        %v4749 = vsel %vm3083, %v4668, 0
        %v4752 = vsel %vm3083, %v4669, 0
        %v4755 = vsel %vm3083, %v4670, 0
        %v4758 = vsel %vm3083, %v4671, 0
        %4760 = vmatpush.bf16.msra.mxu0 0
        %4761 = vmatpush.bf16.msra.mxu0 0
        %4762 = vmatpush.bf16.msra.mxu0 0
        %4763 = vmatpush.bf16.msra.mxu0 0
        %4764 = vmatpush.bf16.msra.mxu0 %v4721
        %4765 = vmatpush.bf16.msra.mxu0 %v4718
        %4766 = vmatpush.bf16.msra.mxu0 %v4715
        %4767 = vmatpush.bf16.msra.mxu0 %v4712
        %4768 = vmatmul.bf16.gmra.mxu0 %v4737
        %v4769 = vpop.f32.mrf.mxu0
        %v4770 = vadd.f32 0.0, %v4769
        %v4771 = vpop.f32.mrf.mxu0
        %v4772 = vadd.f32 0.0, %v4771
        %4773 = vmatmul.bf16.gmra.mxu0 %v4740
        %v4774 = vpop.f32.mrf.mxu0
        %v4775 = vadd.f32 0.0, %v4774
        %v4776 = vpop.f32.mrf.mxu0
        %v4777 = vadd.f32 0.0, %v4776
        %4778 = vmatmul.bf16.gmra.mxu0 %v4743
        %v4779 = vpop.f32.mrf.mxu0
        %v4780 = vadd.f32 0.0, %v4779
        %v4781 = vpop.f32.mrf.mxu0
        %v4782 = vadd.f32 0.0, %v4781
        %4783 = vmatmul.bf16.gmra.mxu0 %v4746
        %v4784 = vpop.f32.mrf.mxu0
        %v4785 = vadd.f32 0.0, %v4784
        %v4786 = vpop.f32.mrf.mxu0
        %v4787 = vadd.f32 0.0, %v4786
        %4788 = vmatmul.bf16.gmra.mxu0 %v4749
        %v4789 = vpop.f32.mrf.mxu0
        %v4790 = vadd.f32 0.0, %v4789
        %v4791 = vpop.f32.mrf.mxu0
        %v4792 = vadd.f32 0.0, %v4791
        %4793 = vmatmul.bf16.gmra.mxu0 %v4752
        %v4794 = vpop.f32.mrf.mxu0
        %v4795 = vadd.f32 0.0, %v4794
        %v4796 = vpop.f32.mrf.mxu0
        %v4797 = vadd.f32 0.0, %v4796
        %4798 = vmatmul.bf16.gmra.mxu0 %v4755
        %v4799 = vpop.f32.mrf.mxu0
        %v4800 = vadd.f32 0.0, %v4799
        %v4801 = vpop.f32.mrf.mxu0
        %v4802 = vadd.f32 0.0, %v4801
        %4803 = vmatmul.bf16.gmra.mxu0 %v4758
        %v4804 = vpop.f32.mrf.mxu0
        %v4805 = vadd.f32 0.0, %v4804
        %v4806 = vpop.f32.mrf.mxu0
        %v4807 = vadd.f32 0.0, %v4806
        %4808 = vdwg.mxu0
        %4809 = vmatpush.bf16.msra.mxu0 0
        %4810 = vmatpush.bf16.msra.mxu0 0
        %4811 = vmatpush.bf16.msra.mxu0 0
        %4812 = vmatpush.bf16.msra.mxu0 0
        %4813 = vmatpush.bf16.msra.mxu0 %v4722
        %4814 = vmatpush.bf16.msra.mxu0 %v4719
        %4815 = vmatpush.bf16.msra.mxu0 %v4716
        %4816 = vmatpush.bf16.msra.mxu0 %v4713
        %4817 = vmatmul.bf16.gmra.mxu0 %v4737
        %v4818 = vpop.f32.mrf.mxu0
        %v4819 = vadd.f32 0.0, %v4818
        %v4820 = vpop.f32.mrf.mxu0
        %v4821 = vadd.f32 0.0, %v4820
        %4822 = vmatmul.bf16.gmra.mxu0 %v4740
        %v4823 = vpop.f32.mrf.mxu0
        %v4824 = vadd.f32 0.0, %v4823
        %v4825 = vpop.f32.mrf.mxu0
        %v4826 = vadd.f32 0.0, %v4825
        %4827 = vmatmul.bf16.gmra.mxu0 %v4743
        %v4828 = vpop.f32.mrf.mxu0
        %v4829 = vadd.f32 0.0, %v4828
        %v4830 = vpop.f32.mrf.mxu0
        %v4831 = vadd.f32 0.0, %v4830
        %4832 = vmatmul.bf16.gmra.mxu0 %v4746
        %v4833 = vpop.f32.mrf.mxu0
        %v4834 = vadd.f32 0.0, %v4833
        %v4835 = vpop.f32.mrf.mxu0
        %v4836 = vadd.f32 0.0, %v4835
        %4837 = vmatmul.bf16.gmra.mxu0 %v4749
        %v4838 = vpop.f32.mrf.mxu0
        %v4839 = vadd.f32 0.0, %v4838
        %v4840 = vpop.f32.mrf.mxu0
        %v4841 = vadd.f32 0.0, %v4840
        %4842 = vmatmul.bf16.gmra.mxu0 %v4752
        %v4843 = vpop.f32.mrf.mxu0
        %v4844 = vadd.f32 0.0, %v4843
        %v4845 = vpop.f32.mrf.mxu0
        %v4846 = vadd.f32 0.0, %v4845
        %4847 = vmatmul.bf16.gmra.mxu0 %v4755
        %v4848 = vpop.f32.mrf.mxu0
        %v4849 = vadd.f32 0.0, %v4848
        %v4850 = vpop.f32.mrf.mxu0
        %v4851 = vadd.f32 0.0, %v4850
        %4852 = vmatmul.bf16.gmra.mxu0 %v4758
        %v4853 = vpop.f32.mrf.mxu0
        %v4854 = vadd.f32 0.0, %v4853
        %v4855 = vpop.f32.mrf.mxu0
        %v4856 = vadd.f32 0.0, %v4855
        %4857 = vdwg.mxu0
        %4858 = vmatpush.bf16.msra.mxu0 0
        %4859 = vmatpush.bf16.msra.mxu0 0
        %4860 = vmatpush.bf16.msra.mxu0 0
        %4861 = vmatpush.bf16.msra.mxu0 0
        %4862 = vmatpush.bf16.msra.mxu0 %v4723
        %4863 = vmatpush.bf16.msra.mxu0 %v4720
        %4864 = vmatpush.bf16.msra.mxu0 %v4717
        %4865 = vmatpush.bf16.msra.mxu0 %v4714
        %4866 = vmatmul.bf16.gmra.mxu0 %v4737
        %v4867 = vpop.f32.mrf.mxu0
        %v4868 = vadd.f32 0.0, %v4867
        %v4869 = vpop.f32.mrf.mxu0
        %v4870 = vadd.f32 0.0, %v4869
        %4871 = vmatmul.bf16.gmra.mxu0 %v4740
        %v4872 = vpop.f32.mrf.mxu0
        %v4873 = vadd.f32 0.0, %v4872
        %v4874 = vpop.f32.mrf.mxu0
        %v4875 = vadd.f32 0.0, %v4874
        %4876 = vmatmul.bf16.gmra.mxu0 %v4743
        %v4877 = vpop.f32.mrf.mxu0
        %v4878 = vadd.f32 0.0, %v4877
        %v4879 = vpop.f32.mrf.mxu0
        %v4880 = vadd.f32 0.0, %v4879
        %4881 = vmatmul.bf16.gmra.mxu0 %v4746
        %v4882 = vpop.f32.mrf.mxu0
        %v4883 = vadd.f32 0.0, %v4882
        %v4884 = vpop.f32.mrf.mxu0
        %v4885 = vadd.f32 0.0, %v4884
        %4886 = vmatmul.bf16.gmra.mxu0 %v4749
        %v4887 = vpop.f32.mrf.mxu0
        %v4888 = vadd.f32 0.0, %v4887
        %v4889 = vpop.f32.mrf.mxu0
        %v4890 = vadd.f32 0.0, %v4889
        %4891 = vmatmul.bf16.gmra.mxu0 %v4752
        %v4892 = vpop.f32.mrf.mxu0
        %v4893 = vadd.f32 0.0, %v4892
        %v4894 = vpop.f32.mrf.mxu0
        %v4895 = vadd.f32 0.0, %v4894
        %4896 = vmatmul.bf16.gmra.mxu0 %v4755
        %v4897 = vpop.f32.mrf.mxu0
        %v4898 = vadd.f32 0.0, %v4897
        %v4899 = vpop.f32.mrf.mxu0
        %v4900 = vadd.f32 0.0, %v4899
        %4901 = vmatmul.bf16.gmra.mxu0 %v4758
        %v4902 = vpop.f32.mrf.mxu0
        %v4903 = vadd.f32 0.0, %v4902
        %v4904 = vpop.f32.mrf.mxu0
        %v4905 = vadd.f32 0.0, %v4904
        %4906 = vdwg.mxu0
        %v4907 = vadd.f32 %v4173, %v4770
        %v4908 = vadd.f32 %v4222, %v4819
        %v4909 = vadd.f32 %v4271, %v4868
        %v4910 = vadd.f32 %v4175, %v4772
        %v4911 = vadd.f32 %v4224, %v4821
        %v4912 = vadd.f32 %v4273, %v4870
        %v4913 = vadd.f32 %v4178, %v4775
        %v4914 = vadd.f32 %v4227, %v4824
        %v4915 = vadd.f32 %v4276, %v4873
        %v4916 = vadd.f32 %v4180, %v4777
        %v4917 = vadd.f32 %v4229, %v4826
        %v4918 = vadd.f32 %v4278, %v4875
        %v4919 = vadd.f32 %v4183, %v4780
        %v4920 = vadd.f32 %v4232, %v4829
        %v4921 = vadd.f32 %v4281, %v4878
        %v4922 = vadd.f32 %v4185, %v4782
        %v4923 = vadd.f32 %v4234, %v4831
        %v4924 = vadd.f32 %v4283, %v4880
        %v4925 = vadd.f32 %v4188, %v4785
        %v4926 = vadd.f32 %v4237, %v4834
        %v4927 = vadd.f32 %v4286, %v4883
        %v4928 = vadd.f32 %v4190, %v4787
        %v4929 = vadd.f32 %v4239, %v4836
        %v4930 = vadd.f32 %v4288, %v4885
        %v4931 = vadd.f32 %v4193, %v4790
        %v4932 = vadd.f32 %v4242, %v4839
        %v4933 = vadd.f32 %v4291, %v4888
        %v4934 = vadd.f32 %v4195, %v4792
        %v4935 = vadd.f32 %v4244, %v4841
        %v4936 = vadd.f32 %v4293, %v4890
        %v4937 = vadd.f32 %v4198, %v4795
        %v4938 = vadd.f32 %v4247, %v4844
        %v4939 = vadd.f32 %v4296, %v4893
        %v4940 = vadd.f32 %v4200, %v4797
        %v4941 = vadd.f32 %v4249, %v4846
        %v4942 = vadd.f32 %v4298, %v4895
        %v4943 = vadd.f32 %v4203, %v4800
        %v4944 = vadd.f32 %v4252, %v4849
        %v4945 = vadd.f32 %v4301, %v4898
        %v4946 = vadd.f32 %v4205, %v4802
        %v4947 = vadd.f32 %v4254, %v4851
        %v4948 = vadd.f32 %v4303, %v4900
        %v4949 = vadd.f32 %v4208, %v4805
        %v4950 = vadd.f32 %v4257, %v4854
        %v4951 = vadd.f32 %v4306, %v4903
        %v4952 = vadd.f32 %v4210, %v4807
        %v4953 = vadd.f32 %v4259, %v4856
        %v4954 = vadd.f32 %v4308, %v4905
        %4963 = vrot.lane.b32.xlu0 %v4310, 64
        %v4964 = vpop.permute.xlu0 %4963
        %4965 = vrot.lane.b32.xlu0 %v4311, 64
        %v4966 = vpop.permute.xlu0 %4965
        %4967 = vrot.lane.b32.xlu0 %v4312, 64
        %v4968 = vpop.permute.xlu0 %4967
        %4969 = vrot.lane.b32.xlu0 %v4313, 64
        %v4970 = vpop.permute.xlu0 %4969
        %4971 = vrot.lane.b32.xlu0 %v4314, 64
        %v4972 = vpop.permute.xlu0 %4971
        %4973 = vrot.lane.b32.xlu0 %v4315, 64
        %v4974 = vpop.permute.xlu0 %4973
        %4975 = vrot.lane.b32.xlu0 %v4316, 64
        %v4976 = vpop.permute.xlu0 %4975
        %4977 = vrot.lane.b32.xlu0 %v4317, 64
        %v4978 = vpop.permute.xlu0 %4977
        %4987 = vrot.lane.b32.xlu0 %v4318, 64
        %v4988 = vpop.permute.xlu0 %4987
        %4989 = vrot.lane.b32.xlu0 %v4319, 64
        %v4990 = vpop.permute.xlu0 %4989
        %4991 = vrot.lane.b32.xlu0 %v4320, 64
        %v4992 = vpop.permute.xlu0 %4991
        %4993 = vrot.lane.b32.xlu0 %v4321, 64
        %v4994 = vpop.permute.xlu0 %4993
        %4995 = vrot.lane.b32.xlu0 %v4322, 64
        %v4996 = vpop.permute.xlu0 %4995
        %4997 = vrot.lane.b32.xlu0 %v4323, 64
        %v4998 = vpop.permute.xlu0 %4997
        %4999 = vrot.lane.b32.xlu0 %v4324, 64
        %v5000 = vpop.permute.xlu0 %4999
        %5001 = vrot.lane.b32.xlu0 %v4325, 64
        %v5002 = vpop.permute.xlu0 %5001
        %v5004 = vsel %vm3083, %v4964, 0
        %v5007 = vsel %vm3083, %v4966, 0
        %v5010 = vsel %vm3083, %v4968, 0
        %v5013 = vsel %vm3083, %v4970, 0
        %v5016 = vsel %vm3083, %v4972, 0
        %v5019 = vsel %vm3083, %v4974, 0
        %v5022 = vsel %vm3083, %v4976, 0
        %v5025 = vsel %vm3083, %v4978, 0
        %v5028 = vsel %vm3083, %v4988, 0
        %v5031 = vsel %vm3083, %v4990, 0
        %v5034 = vsel %vm3083, %v4992, 0
        %v5037 = vsel %vm3083, %v4994, 0
        %v5040 = vsel %vm3083, %v4996, 0
        %v5043 = vsel %vm3083, %v4998, 0
        %v5046 = vsel %vm3083, %v5000, 0
        %v5049 = vsel %vm3083, %v5002, 0
        %5051 = vmatpush.bf16.xpose.msra.mxu0 %v5049
        %5052 = vmatpush.bf16.xpose.msra.mxu0 %v5046
        %5053 = vmatpush.bf16.xpose.msra.mxu0 %v5043
        %5054 = vmatpush.bf16.xpose.msra.mxu0 %v5040
        %5055 = vmatpush.bf16.xpose.msra.mxu0 %v5037
        %5056 = vmatpush.bf16.xpose.msra.mxu0 %v5034
        %5057 = vmatpush.bf16.xpose.msra.mxu0 %v5031
        %5058 = vmatpush.bf16.xpose.msra.mxu0 %v5028
        %5059 = vmatmul.bf16.gmra.mxu0 %v5004
        %v5060 = vpop.f32.mrf.mxu0
        %v5061 = vadd.f32 0.0, %v5060
        %v5062 = vpop.f32.mrf.mxu0
        %v5063 = vadd.f32 0.0, %v5062
        %5064 = vmatmul.bf16.gmra.mxu0 %v5007
        %v5065 = vpop.f32.mrf.mxu0
        %v5066 = vadd.f32 0.0, %v5065
        %v5067 = vpop.f32.mrf.mxu0
        %v5068 = vadd.f32 0.0, %v5067
        %5069 = vmatmul.bf16.gmra.mxu0 %v5010
        %v5070 = vpop.f32.mrf.mxu0
        %v5071 = vadd.f32 0.0, %v5070
        %v5072 = vpop.f32.mrf.mxu0
        %v5073 = vadd.f32 0.0, %v5072
        %5074 = vmatmul.bf16.gmra.mxu0 %v5013
        %v5075 = vpop.f32.mrf.mxu0
        %v5076 = vadd.f32 0.0, %v5075
        %v5077 = vpop.f32.mrf.mxu0
        %v5078 = vadd.f32 0.0, %v5077
        %5079 = vmatmul.bf16.gmra.mxu0 %v5016
        %v5080 = vpop.f32.mrf.mxu0
        %v5081 = vadd.f32 0.0, %v5080
        %v5082 = vpop.f32.mrf.mxu0
        %v5083 = vadd.f32 0.0, %v5082
        %5084 = vmatmul.bf16.gmra.mxu0 %v5019
        %v5085 = vpop.f32.mrf.mxu0
        %v5086 = vadd.f32 0.0, %v5085
        %v5087 = vpop.f32.mrf.mxu0
        %v5088 = vadd.f32 0.0, %v5087
        %5089 = vmatmul.bf16.gmra.mxu0 %v5022
        %v5090 = vpop.f32.mrf.mxu0
        %v5091 = vadd.f32 0.0, %v5090
        %v5092 = vpop.f32.mrf.mxu0
        %v5093 = vadd.f32 0.0, %v5092
        %5094 = vmatmul.bf16.gmra.mxu0 %v5025
        %v5095 = vpop.f32.mrf.mxu0
        %v5096 = vadd.f32 0.0, %v5095
        %v5097 = vpop.f32.mrf.mxu0
        %v5098 = vadd.f32 0.0, %v5097
        %5099 = vdwg.mxu0
        %v5100 = vsel %vm3043, %v5061, -inf
        %v5101 = vsel %vm3044, %v5063, -inf
        %v5102 = vsel %vm3045, %v5066, -inf
        %v5103 = vsel %vm3046, %v5068, -inf
        %v5104 = vsel %vm3047, %v5071, -inf
        %v5105 = vsel %vm3048, %v5073, -inf
        %v5106 = vsel %vm3049, %v5076, -inf
        %v5107 = vsel %vm3050, %v5078, -inf
        %v5108 = vsel %vm3051, %v5081, -inf
        %v5109 = vsel %vm3052, %v5083, -inf
        %v5110 = vsel %vm3053, %v5086, -inf
        %v5111 = vsel %vm3054, %v5088, -inf
        %v5112 = vsel %vm3055, %v5091, -inf
        %v5113 = vsel %vm3056, %v5093, -inf
        %v5114 = vsel %vm3057, %v5096, -inf
        %v5115 = vsel %vm3058, %v5098, -inf
        %5116 = vmax.xlane.f32.xlu0 %v5100
        %v5117 = vpop.xlane.xlu0 %5116
        %5118 = vmax.xlane.f32.xlu0 %v5101
        %v5119 = vpop.xlane.xlu0 %5118
        %5120 = vmax.xlane.f32.xlu0 %v5102
        %v5121 = vpop.xlane.xlu0 %5120
        %5122 = vmax.xlane.f32.xlu0 %v5103
        %v5123 = vpop.xlane.xlu0 %5122
        %5124 = vmax.xlane.f32.xlu0 %v5104
        %v5125 = vpop.xlane.xlu0 %5124
        %5126 = vmax.xlane.f32.xlu0 %v5105
        %v5127 = vpop.xlane.xlu0 %5126
        %5128 = vmax.xlane.f32.xlu0 %v5106
        %v5129 = vpop.xlane.xlu0 %5128
        %5130 = vmax.xlane.f32.xlu0 %v5107
        %v5131 = vpop.xlane.xlu0 %5130
        %5132 = vmax.xlane.f32.xlu0 %v5108
        %v5133 = vpop.xlane.xlu0 %5132
        %5134 = vmax.xlane.f32.xlu0 %v5109
        %v5135 = vpop.xlane.xlu0 %5134
        %5136 = vmax.xlane.f32.xlu0 %v5110
        %v5137 = vpop.xlane.xlu0 %5136
        %5138 = vmax.xlane.f32.xlu0 %v5111
        %v5139 = vpop.xlane.xlu0 %5138
        %5140 = vmax.xlane.f32.xlu0 %v5112
        %v5141 = vpop.xlane.xlu0 %5140
        %5142 = vmax.xlane.f32.xlu0 %v5113
        %v5143 = vpop.xlane.xlu0 %5142
        %5144 = vmax.xlane.f32.xlu0 %v5114
        %v5145 = vpop.xlane.xlu0 %5144
        %5146 = vmax.xlane.f32.xlu0 %v5115
        %v5147 = vpop.xlane.xlu0 %5146
        %v5148 = vsub.f32 %v5100, %v5117
        %v5149 = vsub.f32 %v5101, %v5119
        %v5150 = vsub.f32 %v5102, %v5121
        %v5151 = vsub.f32 %v5103, %v5123
        %v5152 = vsub.f32 %v5104, %v5125
        %v5153 = vsub.f32 %v5105, %v5127
        %v5154 = vsub.f32 %v5106, %v5129
        %v5155 = vsub.f32 %v5107, %v5131
        %v5156 = vsub.f32 %v5108, %v5133
        %v5157 = vsub.f32 %v5109, %v5135
        %v5158 = vsub.f32 %v5110, %v5137
        %v5159 = vsub.f32 %v5111, %v5139
        %v5160 = vsub.f32 %v5112, %v5141
        %v5161 = vsub.f32 %v5113, %v5143
        %v5162 = vsub.f32 %v5114, %v5145
        %v5163 = vsub.f32 %v5115, %v5147
        %v5164 = vmul.f32 %v5148, 1.442695
        %v5165 = vpow.pop %v5164
        %v5166 = vmul.f32 %v5149, 1.442695
        %v5167 = vpow.pop %v5166
        %v5168 = vmul.f32 %v5150, 1.442695
        %v5169 = vpow.pop %v5168
        %v5170 = vmul.f32 %v5151, 1.442695
        %v5171 = vpow.pop %v5170
        %v5172 = vmul.f32 %v5152, 1.442695
        %v5173 = vpow.pop %v5172
        %v5174 = vmul.f32 %v5153, 1.442695
        %v5175 = vpow.pop %v5174
        %v5176 = vmul.f32 %v5154, 1.442695
        %v5177 = vpow.pop %v5176
        %v5178 = vmul.f32 %v5155, 1.442695
        %v5179 = vpow.pop %v5178
        %v5180 = vmul.f32 %v5156, 1.442695
        %v5181 = vpow.pop %v5180
        %v5182 = vmul.f32 %v5157, 1.442695
        %v5183 = vpow.pop %v5182
        %v5184 = vmul.f32 %v5158, 1.442695
        %v5185 = vpow.pop %v5184
        %v5186 = vmul.f32 %v5159, 1.442695
        %v5187 = vpow.pop %v5186
        %v5188 = vmul.f32 %v5160, 1.442695
        %v5189 = vpow.pop %v5188
        %v5190 = vmul.f32 %v5161, 1.442695
        %v5191 = vpow.pop %v5190
        %v5192 = vmul.f32 %v5162, 1.442695
        %v5193 = vpow.pop %v5192
        %v5194 = vmul.f32 %v5163, 1.442695
        %v5195 = vpow.pop %v5194
        %5196 = vadd.xlane.f32.xlu0 %v5165
        %v5197 = vpop.xlane.xlu0 %5196
        %5198 = vadd.xlane.f32.xlu0 %v5167
        %v5199 = vpop.xlane.xlu0 %5198
        %5200 = vadd.xlane.f32.xlu0 %v5169
        %v5201 = vpop.xlane.xlu0 %5200
        %5202 = vadd.xlane.f32.xlu0 %v5171
        %v5203 = vpop.xlane.xlu0 %5202
        %5204 = vadd.xlane.f32.xlu0 %v5173
        %v5205 = vpop.xlane.xlu0 %5204
        %5206 = vadd.xlane.f32.xlu0 %v5175
        %v5207 = vpop.xlane.xlu0 %5206
        %5208 = vadd.xlane.f32.xlu0 %v5177
        %v5209 = vpop.xlane.xlu0 %5208
        %5210 = vadd.xlane.f32.xlu0 %v5179
        %v5211 = vpop.xlane.xlu0 %5210
        %5212 = vadd.xlane.f32.xlu0 %v5181
        %v5213 = vpop.xlane.xlu0 %5212
        %5214 = vadd.xlane.f32.xlu0 %v5183
        %v5215 = vpop.xlane.xlu0 %5214
        %5216 = vadd.xlane.f32.xlu0 %v5185
        %v5217 = vpop.xlane.xlu0 %5216
        %5218 = vadd.xlane.f32.xlu0 %v5187
        %v5219 = vpop.xlane.xlu0 %5218
        %5220 = vadd.xlane.f32.xlu0 %v5189
        %v5221 = vpop.xlane.xlu0 %5220
        %5222 = vadd.xlane.f32.xlu0 %v5191
        %v5223 = vpop.xlane.xlu0 %5222
        %5224 = vadd.xlane.f32.xlu0 %v5193
        %v5225 = vpop.xlane.xlu0 %5224
        %5226 = vadd.xlane.f32.xlu0 %v5195
        %v5227 = vpop.xlane.xlu0 %5226
        %v5228 = vrcp.pop %v5197
        %v5229 = vrcp.pop %v5199
        %v5230 = vrcp.pop %v5201
        %v5231 = vrcp.pop %v5203
        %v5232 = vrcp.pop %v5205
        %v5233 = vrcp.pop %v5207
        %v5234 = vrcp.pop %v5209
        %v5235 = vrcp.pop %v5211
        %v5236 = vrcp.pop %v5213
        %v5237 = vrcp.pop %v5215
        %v5238 = vrcp.pop %v5217
        %v5239 = vrcp.pop %v5219
        %v5240 = vrcp.pop %v5221
        %v5241 = vrcp.pop %v5223
        %v5242 = vrcp.pop %v5225
        %v5243 = vrcp.pop %v5227
        %v5244 = vmul.f32 %v5165, %v5228
        %v5245 = vmul.f32 %v5167, %v5229
        %v5246 = vmul.f32 %v5169, %v5230
        %v5247 = vmul.f32 %v5171, %v5231
        %v5248 = vmul.f32 %v5173, %v5232
        %v5249 = vmul.f32 %v5175, %v5233
        %v5250 = vmul.f32 %v5177, %v5234
        %v5251 = vmul.f32 %v5179, %v5235
        %v5252 = vmul.f32 %v5181, %v5236
        %v5253 = vmul.f32 %v5183, %v5237
        %v5254 = vmul.f32 %v5185, %v5238
        %v5255 = vmul.f32 %v5187, %v5239
        %v5256 = vmul.f32 %v5189, %v5240
        %v5257 = vmul.f32 %v5191, %v5241
        %v5258 = vmul.f32 %v5193, %v5242
        %v5259 = vmul.f32 %v5195, %v5243
        %v5260 = vpack.c.bf16 %v5245, %v5244
        %v5261 = vpack.c.bf16 %v5247, %v5246
        %v5262 = vpack.c.bf16 %v5249, %v5248
        %v5263 = vpack.c.bf16 %v5251, %v5250
        %v5264 = vpack.c.bf16 %v5253, %v5252
        %v5265 = vpack.c.bf16 %v5255, %v5254
        %v5266 = vpack.c.bf16 %v5257, %v5256
        %v5267 = vpack.c.bf16 %v5259, %v5258
        %5276 = vrot.lane.b32.xlu0 %v4326, 64
        %v5277 = vpop.permute.xlu0 %5276
        %5278 = vrot.lane.b32.xlu0 %v4327, 64
        %v5279 = vpop.permute.xlu0 %5278
        %5280 = vrot.lane.b32.xlu0 %v4328, 64
        %v5281 = vpop.permute.xlu0 %5280
        %5282 = vrot.lane.b32.xlu0 %v4329, 64
        %v5283 = vpop.permute.xlu0 %5282
        %5284 = vrot.lane.b32.xlu0 %v4330, 64
        %v5285 = vpop.permute.xlu0 %5284
        %5286 = vrot.lane.b32.xlu0 %v4331, 64
        %v5287 = vpop.permute.xlu0 %5286
        %5288 = vrot.lane.b32.xlu0 %v4332, 64
        %v5289 = vpop.permute.xlu0 %5288
        %5290 = vrot.lane.b32.xlu0 %v4333, 64
        %v5291 = vpop.permute.xlu0 %5290
        %5300 = vmatpush.bf16.msra.mxu0 %v5291
        %5301 = vmatpush.bf16.msra.mxu0 %v5289
        %5302 = vmatpush.bf16.msra.mxu0 %v5287
        %5303 = vmatpush.bf16.msra.mxu0 %v5285
        %5304 = vmatpush.bf16.msra.mxu0 %v5283
        %5305 = vmatpush.bf16.msra.mxu0 %v5281
        %5306 = vmatpush.bf16.msra.mxu0 %v5279
        %5307 = vmatpush.bf16.msra.mxu0 %v5277
        %5308 = vmatmul.bf16.gmra.mxu0 %v5260
        %v5309 = vpop.f32.mrf.mxu0
        %v5310 = vadd.f32 0.0, %v5309
        %v5311 = vpop.f32.mrf.mxu0
        %v5312 = vadd.f32 0.0, %v5311
        %5313 = vmatmul.bf16.gmra.mxu0 %v5261
        %v5314 = vpop.f32.mrf.mxu0
        %v5315 = vadd.f32 0.0, %v5314
        %v5316 = vpop.f32.mrf.mxu0
        %v5317 = vadd.f32 0.0, %v5316
        %5318 = vmatmul.bf16.gmra.mxu0 %v5262
        %v5319 = vpop.f32.mrf.mxu0
        %v5320 = vadd.f32 0.0, %v5319
        %v5321 = vpop.f32.mrf.mxu0
        %v5322 = vadd.f32 0.0, %v5321
        %5323 = vmatmul.bf16.gmra.mxu0 %v5263
        %v5324 = vpop.f32.mrf.mxu0
        %v5325 = vadd.f32 0.0, %v5324
        %v5326 = vpop.f32.mrf.mxu0
        %v5327 = vadd.f32 0.0, %v5326
        %5328 = vmatmul.bf16.gmra.mxu0 %v5264
        %v5329 = vpop.f32.mrf.mxu0
        %v5330 = vadd.f32 0.0, %v5329
        %v5331 = vpop.f32.mrf.mxu0
        %v5332 = vadd.f32 0.0, %v5331
        %5333 = vmatmul.bf16.gmra.mxu0 %v5265
        %v5334 = vpop.f32.mrf.mxu0
        %v5335 = vadd.f32 0.0, %v5334
        %v5336 = vpop.f32.mrf.mxu0
        %v5337 = vadd.f32 0.0, %v5336
        %5338 = vmatmul.bf16.gmra.mxu0 %v5266
        %v5339 = vpop.f32.mrf.mxu0
        %v5340 = vadd.f32 0.0, %v5339
        %v5341 = vpop.f32.mrf.mxu0
        %v5342 = vadd.f32 0.0, %v5341
        %5343 = vmatmul.bf16.gmra.mxu0 %v5267
        %v5344 = vpop.f32.mrf.mxu0
        %v5345 = vadd.f32 0.0, %v5344
        %v5346 = vpop.f32.mrf.mxu0
        %v5347 = vadd.f32 0.0, %v5346
        %5348 = vdwg.mxu0
        %v5349 = vld [vmem:[%s2 + $0x120] sm:$0xff]
        %v5350 = vld [vmem:[%s2 + $0x128] sm:$0xf]
        %v5351 = vld [vmem:[%s2 + $0x12c] sm:$0xff]
        %v5352 = vld [vmem:[%s2 + $0x134] sm:$0xf]
        %v5353 = vld [vmem:[%s2 + $0x138] sm:$0xff]
        %v5354 = vld [vmem:[%s2 + $0x140] sm:$0xf]
        %v5355 = vld [vmem:[%s2 + $0x144] sm:$0xff]
        %v5356 = vld [vmem:[%s2 + $0x14c] sm:$0xf]
        %v5357 = vld [vmem:[%s2 + $0x150] sm:$0xff]
        %v5358 = vld [vmem:[%s2 + $0x158] sm:$0xf]
        %v5359 = vld [vmem:[%s2 + $0x15c] sm:$0xff]
        %v5360 = vld [vmem:[%s2 + $0x164] sm:$0xf]
        %v5361 = vld [vmem:[%s2 + $0x168] sm:$0xff]
        %v5362 = vld [vmem:[%s2 + $0x170] sm:$0xf]
        %v5363 = vld [vmem:[%s2 + $0x174] sm:$0xff]
        %v5364 = vld [vmem:[%s2 + $0x17c] sm:$0xf]
        %v5365 = vpack.c.bf16 %v5312, %v5310
        %v5366 = vpack.c.bf16 %v5317, %v5315
        %v5367 = vpack.c.bf16 %v5322, %v5320
        %v5368 = vpack.c.bf16 %v5327, %v5325
        %v5369 = vpack.c.bf16 %v5332, %v5330
        %v5370 = vpack.c.bf16 %v5337, %v5335
        %v5371 = vpack.c.bf16 %v5342, %v5340
        %v5372 = vpack.c.bf16 %v5347, %v5345
        %v5389 = vunpack.c.l.b16 %v5349
        %v5390 = vunpack.c.h.b16 %v5349
        %v5391 = vunpack.c.l.b16 %v5350
        %v5392 = vunpack.c.l.b16 %v5351
        %v5393 = vunpack.c.h.b16 %v5351
        %v5394 = vunpack.c.l.b16 %v5352
        %v5395 = vunpack.c.l.b16 %v5353
        %v5396 = vunpack.c.h.b16 %v5353
        %v5397 = vunpack.c.l.b16 %v5354
        %v5398 = vunpack.c.l.b16 %v5355
        %v5399 = vunpack.c.h.b16 %v5355
        %v5400 = vunpack.c.l.b16 %v5356
        %v5401 = vunpack.c.l.b16 %v5357
        %v5402 = vunpack.c.h.b16 %v5357
        %v5403 = vunpack.c.l.b16 %v5358
        %v5404 = vunpack.c.l.b16 %v5359
        %v5405 = vunpack.c.h.b16 %v5359
        %v5406 = vunpack.c.l.b16 %v5360
        %v5407 = vunpack.c.l.b16 %v5361
        %v5408 = vunpack.c.h.b16 %v5361
        %v5409 = vunpack.c.l.b16 %v5362
        %v5410 = vunpack.c.l.b16 %v5363
        %v5411 = vunpack.c.h.b16 %v5363
        %v5412 = vunpack.c.l.b16 %v5364
        %v5413 = vpack.c.b16 %v5392, %v5389
        %v5414 = vpack.c.b16 %v5393, %v5390
        %v5415 = vpack.c.b16 %v5394, %v5391
        %v5416 = vpack.c.b16 %v5398, %v5395
        %v5417 = vpack.c.b16 %v5399, %v5396
        %v5418 = vpack.c.b16 %v5400, %v5397
        %v5419 = vpack.c.b16 %v5404, %v5401
        %v5420 = vpack.c.b16 %v5405, %v5402
        %v5421 = vpack.c.b16 %v5406, %v5403
        %v5422 = vpack.c.b16 %v5410, %v5407
        %v5423 = vpack.c.b16 %v5411, %v5408
        %v5424 = vpack.c.b16 %v5412, %v5409
        %v5438 = vsel %vm3083, %v5365, 0
        %v5441 = vsel %vm3083, %v5366, 0
        %v5444 = vsel %vm3083, %v5367, 0
        %v5447 = vsel %vm3083, %v5368, 0
        %v5450 = vsel %vm3083, %v5369, 0
        %v5453 = vsel %vm3083, %v5370, 0
        %v5456 = vsel %vm3083, %v5371, 0
        %v5459 = vsel %vm3083, %v5372, 0
        %5461 = vmatpush.bf16.msra.mxu0 0
        %5462 = vmatpush.bf16.msra.mxu0 0
        %5463 = vmatpush.bf16.msra.mxu0 0
        %5464 = vmatpush.bf16.msra.mxu0 0
        %5465 = vmatpush.bf16.msra.mxu0 %v5422
        %5466 = vmatpush.bf16.msra.mxu0 %v5419
        %5467 = vmatpush.bf16.msra.mxu0 %v5416
        %5468 = vmatpush.bf16.msra.mxu0 %v5413
        %5469 = vmatmul.bf16.gmra.mxu0 %v5438
        %v5470 = vpop.f32.mrf.mxu0
        %v5471 = vadd.f32 0.0, %v5470
        %v5472 = vpop.f32.mrf.mxu0
        %v5473 = vadd.f32 0.0, %v5472
        %5474 = vmatmul.bf16.gmra.mxu0 %v5441
        %v5475 = vpop.f32.mrf.mxu0
        %v5476 = vadd.f32 0.0, %v5475
        %v5477 = vpop.f32.mrf.mxu0
        %v5478 = vadd.f32 0.0, %v5477
        %5479 = vmatmul.bf16.gmra.mxu0 %v5444
        %v5480 = vpop.f32.mrf.mxu0
        %v5481 = vadd.f32 0.0, %v5480
        %v5482 = vpop.f32.mrf.mxu0
        %v5483 = vadd.f32 0.0, %v5482
        %5484 = vmatmul.bf16.gmra.mxu0 %v5447
        %v5485 = vpop.f32.mrf.mxu0
        %v5486 = vadd.f32 0.0, %v5485
        %v5487 = vpop.f32.mrf.mxu0
        %v5488 = vadd.f32 0.0, %v5487
        %5489 = vmatmul.bf16.gmra.mxu0 %v5450
        %v5490 = vpop.f32.mrf.mxu0
        %v5491 = vadd.f32 0.0, %v5490
        %v5492 = vpop.f32.mrf.mxu0
        %v5493 = vadd.f32 0.0, %v5492
        %5494 = vmatmul.bf16.gmra.mxu0 %v5453
        %v5495 = vpop.f32.mrf.mxu0
        %v5496 = vadd.f32 0.0, %v5495
        %v5497 = vpop.f32.mrf.mxu0
        %v5498 = vadd.f32 0.0, %v5497
        %5499 = vmatmul.bf16.gmra.mxu0 %v5456
        %v5500 = vpop.f32.mrf.mxu0
        %v5501 = vadd.f32 0.0, %v5500
        %v5502 = vpop.f32.mrf.mxu0
        %v5503 = vadd.f32 0.0, %v5502
        %5504 = vmatmul.bf16.gmra.mxu0 %v5459
        %v5505 = vpop.f32.mrf.mxu0
        %v5506 = vadd.f32 0.0, %v5505
        %v5507 = vpop.f32.mrf.mxu0
        %v5508 = vadd.f32 0.0, %v5507
        %5509 = vdwg.mxu0
        %5510 = vmatpush.bf16.msra.mxu0 0
        %5511 = vmatpush.bf16.msra.mxu0 0
        %5512 = vmatpush.bf16.msra.mxu0 0
        %5513 = vmatpush.bf16.msra.mxu0 0
        %5514 = vmatpush.bf16.msra.mxu0 %v5423
        %5515 = vmatpush.bf16.msra.mxu0 %v5420
        %5516 = vmatpush.bf16.msra.mxu0 %v5417
        %5517 = vmatpush.bf16.msra.mxu0 %v5414
        %5518 = vmatmul.bf16.gmra.mxu0 %v5438
        %v5519 = vpop.f32.mrf.mxu0
        %v5520 = vadd.f32 0.0, %v5519
        %v5521 = vpop.f32.mrf.mxu0
        %v5522 = vadd.f32 0.0, %v5521
        %5523 = vmatmul.bf16.gmra.mxu0 %v5441
        %v5524 = vpop.f32.mrf.mxu0
        %v5525 = vadd.f32 0.0, %v5524
        %v5526 = vpop.f32.mrf.mxu0
        %v5527 = vadd.f32 0.0, %v5526
        %5528 = vmatmul.bf16.gmra.mxu0 %v5444
        %v5529 = vpop.f32.mrf.mxu0
        %v5530 = vadd.f32 0.0, %v5529
        %v5531 = vpop.f32.mrf.mxu0
        %v5532 = vadd.f32 0.0, %v5531
        %5533 = vmatmul.bf16.gmra.mxu0 %v5447
        %v5534 = vpop.f32.mrf.mxu0
        %v5535 = vadd.f32 0.0, %v5534
        %v5536 = vpop.f32.mrf.mxu0
        %v5537 = vadd.f32 0.0, %v5536
        %5538 = vmatmul.bf16.gmra.mxu0 %v5450
        %v5539 = vpop.f32.mrf.mxu0
        %v5540 = vadd.f32 0.0, %v5539
        %v5541 = vpop.f32.mrf.mxu0
        %v5542 = vadd.f32 0.0, %v5541
        %5543 = vmatmul.bf16.gmra.mxu0 %v5453
        %v5544 = vpop.f32.mrf.mxu0
        %v5545 = vadd.f32 0.0, %v5544
        %v5546 = vpop.f32.mrf.mxu0
        %v5547 = vadd.f32 0.0, %v5546
        %5548 = vmatmul.bf16.gmra.mxu0 %v5456
        %v5549 = vpop.f32.mrf.mxu0
        %v5550 = vadd.f32 0.0, %v5549
        %v5551 = vpop.f32.mrf.mxu0
        %v5552 = vadd.f32 0.0, %v5551
        %5553 = vmatmul.bf16.gmra.mxu0 %v5459
        %v5554 = vpop.f32.mrf.mxu0
        %v5555 = vadd.f32 0.0, %v5554
        %v5556 = vpop.f32.mrf.mxu0
        %v5557 = vadd.f32 0.0, %v5556
        %5558 = vdwg.mxu0
        %5559 = vmatpush.bf16.msra.mxu0 0
        %5560 = vmatpush.bf16.msra.mxu0 0
        %5561 = vmatpush.bf16.msra.mxu0 0
        %5562 = vmatpush.bf16.msra.mxu0 0
        %5563 = vmatpush.bf16.msra.mxu0 %v5424
        %5564 = vmatpush.bf16.msra.mxu0 %v5421
        %5565 = vmatpush.bf16.msra.mxu0 %v5418
        %5566 = vmatpush.bf16.msra.mxu0 %v5415
        %5567 = vmatmul.bf16.gmra.mxu0 %v5438
        %v5568 = vpop.f32.mrf.mxu0
        %v5569 = vadd.f32 0.0, %v5568
        %v5570 = vpop.f32.mrf.mxu0
        %v5571 = vadd.f32 0.0, %v5570
        %5572 = vmatmul.bf16.gmra.mxu0 %v5441
        %v5573 = vpop.f32.mrf.mxu0
        %v5574 = vadd.f32 0.0, %v5573
        %v5575 = vpop.f32.mrf.mxu0
        %v5576 = vadd.f32 0.0, %v5575
        %5577 = vmatmul.bf16.gmra.mxu0 %v5444
        %v5578 = vpop.f32.mrf.mxu0
        %v5579 = vadd.f32 0.0, %v5578
        %v5580 = vpop.f32.mrf.mxu0
        %v5581 = vadd.f32 0.0, %v5580
        %5582 = vmatmul.bf16.gmra.mxu0 %v5447
        %v5583 = vpop.f32.mrf.mxu0
        %v5584 = vadd.f32 0.0, %v5583
        %v5585 = vpop.f32.mrf.mxu0
        %v5586 = vadd.f32 0.0, %v5585
        %5587 = vmatmul.bf16.gmra.mxu0 %v5450
        %v5588 = vpop.f32.mrf.mxu0
        %v5589 = vadd.f32 0.0, %v5588
        %v5590 = vpop.f32.mrf.mxu0
        %v5591 = vadd.f32 0.0, %v5590
        %5592 = vmatmul.bf16.gmra.mxu0 %v5453
        %v5593 = vpop.f32.mrf.mxu0
        %v5594 = vadd.f32 0.0, %v5593
        %v5595 = vpop.f32.mrf.mxu0
        %v5596 = vadd.f32 0.0, %v5595
        %5597 = vmatmul.bf16.gmra.mxu0 %v5456
        %v5598 = vpop.f32.mrf.mxu0
        %v5599 = vadd.f32 0.0, %v5598
        %v5600 = vpop.f32.mrf.mxu0
        %v5601 = vadd.f32 0.0, %v5600
        %5602 = vmatmul.bf16.gmra.mxu0 %v5459
        %v5603 = vpop.f32.mrf.mxu0
        %v5604 = vadd.f32 0.0, %v5603
        %v5605 = vpop.f32.mrf.mxu0
        %v5606 = vadd.f32 0.0, %v5605
        %5607 = vdwg.mxu0
        %v5608 = vadd.f32 %v4907, %v5471
        %v5609 = vadd.f32 %v4908, %v5520
        %v5610 = vadd.f32 %v4909, %v5569
        %v5611 = vadd.f32 %v4910, %v5473
        %v5612 = vadd.f32 %v4911, %v5522
        %v5613 = vadd.f32 %v4912, %v5571
        %v5614 = vadd.f32 %v4913, %v5476
        %v5615 = vadd.f32 %v4914, %v5525
        %v5616 = vadd.f32 %v4915, %v5574
        %v5617 = vadd.f32 %v4916, %v5478
        %v5618 = vadd.f32 %v4917, %v5527
        %v5619 = vadd.f32 %v4918, %v5576
        %v5620 = vadd.f32 %v4919, %v5481
        %v5621 = vadd.f32 %v4920, %v5530
        %v5622 = vadd.f32 %v4921, %v5579
        %v5623 = vadd.f32 %v4922, %v5483
        %v5624 = vadd.f32 %v4923, %v5532
        %v5625 = vadd.f32 %v4924, %v5581
        %v5626 = vadd.f32 %v4925, %v5486
        %v5627 = vadd.f32 %v4926, %v5535
        %v5628 = vadd.f32 %v4927, %v5584
        %v5629 = vadd.f32 %v4928, %v5488
        %v5630 = vadd.f32 %v4929, %v5537
        %v5631 = vadd.f32 %v4930, %v5586
        %v5632 = vadd.f32 %v4931, %v5491
        %v5633 = vadd.f32 %v4932, %v5540
        %v5634 = vadd.f32 %v4933, %v5589
        %v5635 = vadd.f32 %v4934, %v5493
        %v5636 = vadd.f32 %v4935, %v5542
        %v5637 = vadd.f32 %v4936, %v5591
        %v5638 = vadd.f32 %v4937, %v5496
        %v5639 = vadd.f32 %v4938, %v5545
        %v5640 = vadd.f32 %v4939, %v5594
        %v5641 = vadd.f32 %v4940, %v5498
        %v5642 = vadd.f32 %v4941, %v5547
        %v5643 = vadd.f32 %v4942, %v5596
        %v5644 = vadd.f32 %v4943, %v5501
        %v5645 = vadd.f32 %v4944, %v5550
        %v5646 = vadd.f32 %v4945, %v5599
        %v5647 = vadd.f32 %v4946, %v5503
        %v5648 = vadd.f32 %v4947, %v5552
        %v5649 = vadd.f32 %v4948, %v5601
        %v5650 = vadd.f32 %v4949, %v5506
        %v5651 = vadd.f32 %v4950, %v5555
        %v5652 = vadd.f32 %v4951, %v5604
        %v5653 = vadd.f32 %v4952, %v5508
        %v5654 = vadd.f32 %v4953, %v5557
        %v5655 = vadd.f32 %v4954, %v5606
        %v5656 = vpack.c.bf16 %v2105, %v2103
        %v5657 = vpack.c.bf16 %v2110, %v2108
        %v5658 = vpack.c.bf16 %v2115, %v2113
        %v5659 = vpack.c.bf16 %v2120, %v2118
        %v5660 = vpack.c.bf16 %v2125, %v2123
        %v5661 = vpack.c.bf16 %v2130, %v2128
        %v5662 = vpack.c.bf16 %v2135, %v2133
        %v5663 = vpack.c.bf16 %v2140, %v2138
        %v5664 = vpack.c.bf16 %v2546, %v2544
        %v5665 = vpack.c.bf16 %v2551, %v2549
        %v5666 = vpack.c.bf16 %v2556, %v2554
        %v5667 = vpack.c.bf16 %v2561, %v2559
        %v5668 = vpack.c.bf16 %v2566, %v2564
        %v5669 = vpack.c.bf16 %v2571, %v2569
        %v5670 = vpack.c.bf16 %v2576, %v2574
        %v5671 = vpack.c.bf16 %v2581, %v2579
        %v5672 = vpack.c.bf16 %v2987, %v2985
        %v5673 = vpack.c.bf16 %v2992, %v2990
        %v5674 = vpack.c.bf16 %v2997, %v2995
        %v5675 = vpack.c.bf16 %v3002, %v3000
        %v5676 = vpack.c.bf16 %v3007, %v3005
        %v5677 = vpack.c.bf16 %v3012, %v3010
        %v5678 = vpack.c.bf16 %v3017, %v3015
        %v5679 = vpack.c.bf16 %v3022, %v3020
        %v5681 = vsel %vm3083, %v5656, 0
        %v5684 = vsel %vm3083, %v5657, 0
        %v5687 = vsel %vm3083, %v5658, 0
        %v5690 = vsel %vm3083, %v5659, 0
        %v5693 = vsel %vm3083, %v5660, 0
        %v5696 = vsel %vm3083, %v5661, 0
        %v5699 = vsel %vm3083, %v5662, 0
        %v5702 = vsel %vm3083, %v5663, 0
        %v5705 = vsel %vm3083, %v5664, 0
        %v5708 = vsel %vm3083, %v5665, 0
        %v5711 = vsel %vm3083, %v5666, 0
        %v5714 = vsel %vm3083, %v5667, 0
        %v5717 = vsel %vm3083, %v5668, 0
        %v5720 = vsel %vm3083, %v5669, 0
        %v5723 = vsel %vm3083, %v5670, 0
        %v5726 = vsel %vm3083, %v5671, 0
        %5728 = vmatpush.bf16.xpose.msra.mxu0 %v5726
        %5729 = vmatpush.bf16.xpose.msra.mxu0 %v5723
        %5730 = vmatpush.bf16.xpose.msra.mxu0 %v5720
        %5731 = vmatpush.bf16.xpose.msra.mxu0 %v5717
        %5732 = vmatpush.bf16.xpose.msra.mxu0 %v5714
        %5733 = vmatpush.bf16.xpose.msra.mxu0 %v5711
        %5734 = vmatpush.bf16.xpose.msra.mxu0 %v5708
        %5735 = vmatpush.bf16.xpose.msra.mxu0 %v5705
        %5736 = vmatmul.bf16.gmra.mxu0 %v5681
        %v5737 = vpop.f32.mrf.mxu0
        %v5738 = vadd.f32 0.0, %v5737
        %v5739 = vpop.f32.mrf.mxu0
        %v5740 = vadd.f32 0.0, %v5739
        %5741 = vmatmul.bf16.gmra.mxu0 %v5684
        %v5742 = vpop.f32.mrf.mxu0
        %v5743 = vadd.f32 0.0, %v5742
        %v5744 = vpop.f32.mrf.mxu0
        %v5745 = vadd.f32 0.0, %v5744
        %5746 = vmatmul.bf16.gmra.mxu0 %v5687
        %v5747 = vpop.f32.mrf.mxu0
        %v5748 = vadd.f32 0.0, %v5747
        %v5749 = vpop.f32.mrf.mxu0
        %v5750 = vadd.f32 0.0, %v5749
        %5751 = vmatmul.bf16.gmra.mxu0 %v5690
        %v5752 = vpop.f32.mrf.mxu0
        %v5753 = vadd.f32 0.0, %v5752
        %v5754 = vpop.f32.mrf.mxu0
        %v5755 = vadd.f32 0.0, %v5754
        %5756 = vmatmul.bf16.gmra.mxu0 %v5693
        %v5757 = vpop.f32.mrf.mxu0
        %v5758 = vadd.f32 0.0, %v5757
        %v5759 = vpop.f32.mrf.mxu0
        %v5760 = vadd.f32 0.0, %v5759
        %5761 = vmatmul.bf16.gmra.mxu0 %v5696
        %v5762 = vpop.f32.mrf.mxu0
        %v5763 = vadd.f32 0.0, %v5762
        %v5764 = vpop.f32.mrf.mxu0
        %v5765 = vadd.f32 0.0, %v5764
        %5766 = vmatmul.bf16.gmra.mxu0 %v5699
        %v5767 = vpop.f32.mrf.mxu0
        %v5768 = vadd.f32 0.0, %v5767
        %v5769 = vpop.f32.mrf.mxu0
        %v5770 = vadd.f32 0.0, %v5769
        %5771 = vmatmul.bf16.gmra.mxu0 %v5702
        %v5772 = vpop.f32.mrf.mxu0
        %v5773 = vadd.f32 0.0, %v5772
        %v5774 = vpop.f32.mrf.mxu0
        %v5775 = vadd.f32 0.0, %v5774
        %5776 = vdwg.mxu0
        %v5777 = vsel %vm3043, %v5738, -inf
        %v5778 = vsel %vm3044, %v5740, -inf
        %v5779 = vsel %vm3045, %v5743, -inf
        %v5780 = vsel %vm3046, %v5745, -inf
        %v5781 = vsel %vm3047, %v5748, -inf
        %v5782 = vsel %vm3048, %v5750, -inf
        %v5783 = vsel %vm3049, %v5753, -inf
        %v5784 = vsel %vm3050, %v5755, -inf
        %v5785 = vsel %vm3051, %v5758, -inf
        %v5786 = vsel %vm3052, %v5760, -inf
        %v5787 = vsel %vm3053, %v5763, -inf
        %v5788 = vsel %vm3054, %v5765, -inf
        %v5789 = vsel %vm3055, %v5768, -inf
        %v5790 = vsel %vm3056, %v5770, -inf
        %v5791 = vsel %vm3057, %v5773, -inf
        %v5792 = vsel %vm3058, %v5775, -inf
        %5793 = vmax.xlane.f32.xlu0 %v5777
        %v5794 = vpop.xlane.xlu0 %5793
        %5795 = vmax.xlane.f32.xlu0 %v5778
        %v5796 = vpop.xlane.xlu0 %5795
        %5797 = vmax.xlane.f32.xlu0 %v5779
        %v5798 = vpop.xlane.xlu0 %5797
        %5799 = vmax.xlane.f32.xlu0 %v5780
        %v5800 = vpop.xlane.xlu0 %5799
        %5801 = vmax.xlane.f32.xlu0 %v5781
        %v5802 = vpop.xlane.xlu0 %5801
        %5803 = vmax.xlane.f32.xlu0 %v5782
        %v5804 = vpop.xlane.xlu0 %5803
        %5805 = vmax.xlane.f32.xlu0 %v5783
        %v5806 = vpop.xlane.xlu0 %5805
        %5807 = vmax.xlane.f32.xlu0 %v5784
        %v5808 = vpop.xlane.xlu0 %5807
        %5809 = vmax.xlane.f32.xlu0 %v5785
        %v5810 = vpop.xlane.xlu0 %5809
        %5811 = vmax.xlane.f32.xlu0 %v5786
        %v5812 = vpop.xlane.xlu0 %5811
        %5813 = vmax.xlane.f32.xlu0 %v5787
        %v5814 = vpop.xlane.xlu0 %5813
        %5815 = vmax.xlane.f32.xlu0 %v5788
        %v5816 = vpop.xlane.xlu0 %5815
        %5817 = vmax.xlane.f32.xlu0 %v5789
        %v5818 = vpop.xlane.xlu0 %5817
        %5819 = vmax.xlane.f32.xlu0 %v5790
        %v5820 = vpop.xlane.xlu0 %5819
        %5821 = vmax.xlane.f32.xlu0 %v5791
        %v5822 = vpop.xlane.xlu0 %5821
        %5823 = vmax.xlane.f32.xlu0 %v5792
        %v5824 = vpop.xlane.xlu0 %5823
        %v5825 = vsub.f32 %v5777, %v5794
        %v5826 = vsub.f32 %v5778, %v5796
        %v5827 = vsub.f32 %v5779, %v5798
        %v5828 = vsub.f32 %v5780, %v5800
        %v5829 = vsub.f32 %v5781, %v5802
        %v5830 = vsub.f32 %v5782, %v5804
        %v5831 = vsub.f32 %v5783, %v5806
        %v5832 = vsub.f32 %v5784, %v5808
        %v5833 = vsub.f32 %v5785, %v5810
        %v5834 = vsub.f32 %v5786, %v5812
        %v5835 = vsub.f32 %v5787, %v5814
        %v5836 = vsub.f32 %v5788, %v5816
        %v5837 = vsub.f32 %v5789, %v5818
        %v5838 = vsub.f32 %v5790, %v5820
        %v5839 = vsub.f32 %v5791, %v5822
        %v5840 = vsub.f32 %v5792, %v5824
        %v5841 = vmul.f32 %v5825, 1.442695
        %v5842 = vpow.pop %v5841
        %v5843 = vmul.f32 %v5826, 1.442695
        %v5844 = vpow.pop %v5843
        %v5845 = vmul.f32 %v5827, 1.442695
        %v5846 = vpow.pop %v5845
        %v5847 = vmul.f32 %v5828, 1.442695
        %v5848 = vpow.pop %v5847
        %v5849 = vmul.f32 %v5829, 1.442695
        %v5850 = vpow.pop %v5849
        %v5851 = vmul.f32 %v5830, 1.442695
        %v5852 = vpow.pop %v5851
        %v5853 = vmul.f32 %v5831, 1.442695
        %v5854 = vpow.pop %v5853
        %v5855 = vmul.f32 %v5832, 1.442695
        %v5856 = vpow.pop %v5855
        %v5857 = vmul.f32 %v5833, 1.442695
        %v5858 = vpow.pop %v5857
        %v5859 = vmul.f32 %v5834, 1.442695
        %v5860 = vpow.pop %v5859
        %v5861 = vmul.f32 %v5835, 1.442695
        %v5862 = vpow.pop %v5861
        %v5863 = vmul.f32 %v5836, 1.442695
        %v5864 = vpow.pop %v5863
        %v5865 = vmul.f32 %v5837, 1.442695
        %v5866 = vpow.pop %v5865
        %v5867 = vmul.f32 %v5838, 1.442695
        %v5868 = vpow.pop %v5867
        %v5869 = vmul.f32 %v5839, 1.442695
        %v5870 = vpow.pop %v5869
        %v5871 = vmul.f32 %v5840, 1.442695
        %v5872 = vpow.pop %v5871
        %5873 = vadd.xlane.f32.xlu0 %v5842
        %v5874 = vpop.xlane.xlu0 %5873
        %5875 = vadd.xlane.f32.xlu0 %v5844
        %v5876 = vpop.xlane.xlu0 %5875
        %5877 = vadd.xlane.f32.xlu0 %v5846
        %v5878 = vpop.xlane.xlu0 %5877
        %5879 = vadd.xlane.f32.xlu0 %v5848
        %v5880 = vpop.xlane.xlu0 %5879
        %5881 = vadd.xlane.f32.xlu0 %v5850
        %v5882 = vpop.xlane.xlu0 %5881
        %5883 = vadd.xlane.f32.xlu0 %v5852
        %v5884 = vpop.xlane.xlu0 %5883
        %5885 = vadd.xlane.f32.xlu0 %v5854
        %v5886 = vpop.xlane.xlu0 %5885
        %5887 = vadd.xlane.f32.xlu0 %v5856
        %v5888 = vpop.xlane.xlu0 %5887
        %5889 = vadd.xlane.f32.xlu0 %v5858
        %v5890 = vpop.xlane.xlu0 %5889
        %5891 = vadd.xlane.f32.xlu0 %v5860
        %v5892 = vpop.xlane.xlu0 %5891
        %5893 = vadd.xlane.f32.xlu0 %v5862
        %v5894 = vpop.xlane.xlu0 %5893
        %5895 = vadd.xlane.f32.xlu0 %v5864
        %v5896 = vpop.xlane.xlu0 %5895
        %5897 = vadd.xlane.f32.xlu0 %v5866
        %v5898 = vpop.xlane.xlu0 %5897
        %5899 = vadd.xlane.f32.xlu0 %v5868
        %v5900 = vpop.xlane.xlu0 %5899
        %5901 = vadd.xlane.f32.xlu0 %v5870
        %v5902 = vpop.xlane.xlu0 %5901
        %5903 = vadd.xlane.f32.xlu0 %v5872
        %v5904 = vpop.xlane.xlu0 %5903
        %v5905 = vrcp.pop %v5874
        %v5906 = vrcp.pop %v5876
        %v5907 = vrcp.pop %v5878
        %v5908 = vrcp.pop %v5880
        %v5909 = vrcp.pop %v5882
        %v5910 = vrcp.pop %v5884
        %v5911 = vrcp.pop %v5886
        %v5912 = vrcp.pop %v5888
        %v5913 = vrcp.pop %v5890
        %v5914 = vrcp.pop %v5892
        %v5915 = vrcp.pop %v5894
        %v5916 = vrcp.pop %v5896
        %v5917 = vrcp.pop %v5898
        %v5918 = vrcp.pop %v5900
        %v5919 = vrcp.pop %v5902
        %v5920 = vrcp.pop %v5904
        %v5921 = vmul.f32 %v5842, %v5905
        %v5922 = vmul.f32 %v5844, %v5906
        %v5923 = vmul.f32 %v5846, %v5907
        %v5924 = vmul.f32 %v5848, %v5908
        %v5925 = vmul.f32 %v5850, %v5909
        %v5926 = vmul.f32 %v5852, %v5910
        %v5927 = vmul.f32 %v5854, %v5911
        %v5928 = vmul.f32 %v5856, %v5912
        %v5929 = vmul.f32 %v5858, %v5913
        %v5930 = vmul.f32 %v5860, %v5914
        %v5931 = vmul.f32 %v5862, %v5915
        %v5932 = vmul.f32 %v5864, %v5916
        %v5933 = vmul.f32 %v5866, %v5917
        %v5934 = vmul.f32 %v5868, %v5918
        %v5935 = vmul.f32 %v5870, %v5919
        %v5936 = vmul.f32 %v5872, %v5920
        %v5937 = vpack.c.bf16 %v5922, %v5921
        %v5938 = vpack.c.bf16 %v5924, %v5923
        %v5939 = vpack.c.bf16 %v5926, %v5925
        %v5940 = vpack.c.bf16 %v5928, %v5927
        %v5941 = vpack.c.bf16 %v5930, %v5929
        %v5942 = vpack.c.bf16 %v5932, %v5931
        %v5943 = vpack.c.bf16 %v5934, %v5933
        %v5944 = vpack.c.bf16 %v5936, %v5935
        %5945 = vmatpush.bf16.msra.mxu0 %v5679
        %5946 = vmatpush.bf16.msra.mxu0 %v5678
        %5947 = vmatpush.bf16.msra.mxu0 %v5677
        %5948 = vmatpush.bf16.msra.mxu0 %v5676
        %5949 = vmatpush.bf16.msra.mxu0 %v5675
        %5950 = vmatpush.bf16.msra.mxu0 %v5674
        %5951 = vmatpush.bf16.msra.mxu0 %v5673
        %5952 = vmatpush.bf16.msra.mxu0 %v5672
        %5953 = vmatmul.bf16.gmra.mxu0 %v5937
        %v5954 = vpop.f32.mrf.mxu0
        %v5955 = vadd.f32 0.0, %v5954
        %v5956 = vpop.f32.mrf.mxu0
        %v5957 = vadd.f32 0.0, %v5956
        %5958 = vmatmul.bf16.gmra.mxu0 %v5938
        %v5959 = vpop.f32.mrf.mxu0
        %v5960 = vadd.f32 0.0, %v5959
        %v5961 = vpop.f32.mrf.mxu0
        %v5962 = vadd.f32 0.0, %v5961
        %5963 = vmatmul.bf16.gmra.mxu0 %v5939
        %v5964 = vpop.f32.mrf.mxu0
        %v5965 = vadd.f32 0.0, %v5964
        %v5966 = vpop.f32.mrf.mxu0
        %v5967 = vadd.f32 0.0, %v5966
        %5968 = vmatmul.bf16.gmra.mxu0 %v5940
        %v5969 = vpop.f32.mrf.mxu0
        %v5970 = vadd.f32 0.0, %v5969
        %v5971 = vpop.f32.mrf.mxu0
        %v5972 = vadd.f32 0.0, %v5971
        %5973 = vmatmul.bf16.gmra.mxu0 %v5941
        %v5974 = vpop.f32.mrf.mxu0
        %v5975 = vadd.f32 0.0, %v5974
        %v5976 = vpop.f32.mrf.mxu0
        %v5977 = vadd.f32 0.0, %v5976
        %5978 = vmatmul.bf16.gmra.mxu0 %v5942
        %v5979 = vpop.f32.mrf.mxu0
        %v5980 = vadd.f32 0.0, %v5979
        %v5981 = vpop.f32.mrf.mxu0
        %v5982 = vadd.f32 0.0, %v5981
        %5983 = vmatmul.bf16.gmra.mxu0 %v5943
        %v5984 = vpop.f32.mrf.mxu0
        %v5985 = vadd.f32 0.0, %v5984
        %v5986 = vpop.f32.mrf.mxu0
        %v5987 = vadd.f32 0.0, %v5986
        %5988 = vmatmul.bf16.gmra.mxu0 %v5944
        %v5989 = vpop.f32.mrf.mxu0
        %v5990 = vadd.f32 0.0, %v5989
        %v5991 = vpop.f32.mrf.mxu0
        %v5992 = vadd.f32 0.0, %v5991
        %5993 = vdwg.mxu0
        %v5994 = vld [vmem:[%s2 + $0x180] sm:$0xff]
        %v5995 = vld [vmem:[%s2 + $0x188] sm:$0xf]
        %v5996 = vld [vmem:[%s2 + $0x18c] sm:$0xff]
        %v5997 = vld [vmem:[%s2 + $0x194] sm:$0xf]
        %v5998 = vld [vmem:[%s2 + $0x198] sm:$0xff]
        %v5999 = vld [vmem:[%s2 + $0x1a0] sm:$0xf]
        %v6000 = vld [vmem:[%s2 + $0x1a4] sm:$0xff]
        %v6001 = vld [vmem:[%s2 + $0x1ac] sm:$0xf]
        %v6002 = vld [vmem:[%s2 + $0x1b0] sm:$0xff]
        %v6003 = vld [vmem:[%s2 + $0x1b8] sm:$0xf]
        %v6004 = vld [vmem:[%s2 + $0x1bc] sm:$0xff]
        %v6005 = vld [vmem:[%s2 + $0x1c4] sm:$0xf]
        %v6006 = vld [vmem:[%s2 + $0x1c8] sm:$0xff]
        %v6007 = vld [vmem:[%s2 + $0x1d0] sm:$0xf]
        %v6008 = vld [vmem:[%s2 + $0x1d4] sm:$0xff]
        %v6009 = vld [vmem:[%s2 + $0x1dc] sm:$0xf]
        %v6010 = vpack.c.bf16 %v5957, %v5955
        %v6011 = vpack.c.bf16 %v5962, %v5960
        %v6012 = vpack.c.bf16 %v5967, %v5965
        %v6013 = vpack.c.bf16 %v5972, %v5970
        %v6014 = vpack.c.bf16 %v5977, %v5975
        %v6015 = vpack.c.bf16 %v5982, %v5980
        %v6016 = vpack.c.bf16 %v5987, %v5985
        %v6017 = vpack.c.bf16 %v5992, %v5990
        %v6034 = vunpack.c.l.b16 %v5994
        %v6035 = vunpack.c.h.b16 %v5994
        %v6036 = vunpack.c.l.b16 %v5995
        %v6037 = vunpack.c.l.b16 %v5996
        %v6038 = vunpack.c.h.b16 %v5996
        %v6039 = vunpack.c.l.b16 %v5997
        %v6040 = vunpack.c.l.b16 %v5998
        %v6041 = vunpack.c.h.b16 %v5998
        %v6042 = vunpack.c.l.b16 %v5999
        %v6043 = vunpack.c.l.b16 %v6000
        %v6044 = vunpack.c.h.b16 %v6000
        %v6045 = vunpack.c.l.b16 %v6001
        %v6046 = vunpack.c.l.b16 %v6002
        %v6047 = vunpack.c.h.b16 %v6002
        %v6048 = vunpack.c.l.b16 %v6003
        %v6049 = vunpack.c.l.b16 %v6004
        %v6050 = vunpack.c.h.b16 %v6004
        %v6051 = vunpack.c.l.b16 %v6005
        %v6052 = vunpack.c.l.b16 %v6006
        %v6053 = vunpack.c.h.b16 %v6006
        %v6054 = vunpack.c.l.b16 %v6007
        %v6055 = vunpack.c.l.b16 %v6008
        %v6056 = vunpack.c.h.b16 %v6008
        %v6057 = vunpack.c.l.b16 %v6009
        %v6058 = vpack.c.b16 %v6037, %v6034
        %v6059 = vpack.c.b16 %v6038, %v6035
        %v6060 = vpack.c.b16 %v6039, %v6036
        %v6061 = vpack.c.b16 %v6043, %v6040
        %v6062 = vpack.c.b16 %v6044, %v6041
        %v6063 = vpack.c.b16 %v6045, %v6042
        %v6064 = vpack.c.b16 %v6049, %v6046
        %v6065 = vpack.c.b16 %v6050, %v6047
        %v6066 = vpack.c.b16 %v6051, %v6048
        %v6067 = vpack.c.b16 %v6055, %v6052
        %v6068 = vpack.c.b16 %v6056, %v6053
        %v6069 = vpack.c.b16 %v6057, %v6054
        %v6083 = vsel %vm3083, %v6010, 0
        %v6086 = vsel %vm3083, %v6011, 0
        %v6089 = vsel %vm3083, %v6012, 0
        %v6092 = vsel %vm3083, %v6013, 0
        %v6095 = vsel %vm3083, %v6014, 0
        %v6098 = vsel %vm3083, %v6015, 0
        %v6101 = vsel %vm3083, %v6016, 0
        %v6104 = vsel %vm3083, %v6017, 0
        %6106 = vmatpush.bf16.msra.mxu0 0
        %6107 = vmatpush.bf16.msra.mxu0 0
        %6108 = vmatpush.bf16.msra.mxu0 0
        %6109 = vmatpush.bf16.msra.mxu0 0
        %6110 = vmatpush.bf16.msra.mxu0 %v6067
        %6111 = vmatpush.bf16.msra.mxu0 %v6064
        %6112 = vmatpush.bf16.msra.mxu0 %v6061
        %6113 = vmatpush.bf16.msra.mxu0 %v6058
        %6114 = vmatmul.bf16.gmra.mxu0 %v6083
        %v6115 = vpop.f32.mrf.mxu0
        %v6116 = vadd.f32 0.0, %v6115
        %v6117 = vpop.f32.mrf.mxu0
        %v6118 = vadd.f32 0.0, %v6117
        %6119 = vmatmul.bf16.gmra.mxu0 %v6086
        %v6120 = vpop.f32.mrf.mxu0
        %v6121 = vadd.f32 0.0, %v6120
        %v6122 = vpop.f32.mrf.mxu0
        %v6123 = vadd.f32 0.0, %v6122
        %6124 = vmatmul.bf16.gmra.mxu0 %v6089
        %v6125 = vpop.f32.mrf.mxu0
        %v6126 = vadd.f32 0.0, %v6125
        %v6127 = vpop.f32.mrf.mxu0
        %v6128 = vadd.f32 0.0, %v6127
        %6129 = vmatmul.bf16.gmra.mxu0 %v6092
        %v6130 = vpop.f32.mrf.mxu0
        %v6131 = vadd.f32 0.0, %v6130
        %v6132 = vpop.f32.mrf.mxu0
        %v6133 = vadd.f32 0.0, %v6132
        %6134 = vmatmul.bf16.gmra.mxu0 %v6095
        %v6135 = vpop.f32.mrf.mxu0
        %v6136 = vadd.f32 0.0, %v6135
        %v6137 = vpop.f32.mrf.mxu0
        %v6138 = vadd.f32 0.0, %v6137
        %6139 = vmatmul.bf16.gmra.mxu0 %v6098
        %v6140 = vpop.f32.mrf.mxu0
        %v6141 = vadd.f32 0.0, %v6140
        %v6142 = vpop.f32.mrf.mxu0
        %v6143 = vadd.f32 0.0, %v6142
        %6144 = vmatmul.bf16.gmra.mxu0 %v6101
        %v6145 = vpop.f32.mrf.mxu0
        %v6146 = vadd.f32 0.0, %v6145
        %v6147 = vpop.f32.mrf.mxu0
        %v6148 = vadd.f32 0.0, %v6147
        %6149 = vmatmul.bf16.gmra.mxu0 %v6104
        %v6150 = vpop.f32.mrf.mxu0
        %v6151 = vadd.f32 0.0, %v6150
        %v6152 = vpop.f32.mrf.mxu0
        %v6153 = vadd.f32 0.0, %v6152
        %6154 = vdwg.mxu0
        %6155 = vmatpush.bf16.msra.mxu0 0
        %6156 = vmatpush.bf16.msra.mxu0 0
        %6157 = vmatpush.bf16.msra.mxu0 0
        %6158 = vmatpush.bf16.msra.mxu0 0
        %6159 = vmatpush.bf16.msra.mxu0 %v6068
        %6160 = vmatpush.bf16.msra.mxu0 %v6065
        %6161 = vmatpush.bf16.msra.mxu0 %v6062
        %6162 = vmatpush.bf16.msra.mxu0 %v6059
        %6163 = vmatmul.bf16.gmra.mxu0 %v6083
        %v6164 = vpop.f32.mrf.mxu0
        %v6165 = vadd.f32 0.0, %v6164
        %v6166 = vpop.f32.mrf.mxu0
        %v6167 = vadd.f32 0.0, %v6166
        %6168 = vmatmul.bf16.gmra.mxu0 %v6086
        %v6169 = vpop.f32.mrf.mxu0
        %v6170 = vadd.f32 0.0, %v6169
        %v6171 = vpop.f32.mrf.mxu0
        %v6172 = vadd.f32 0.0, %v6171
        %6173 = vmatmul.bf16.gmra.mxu0 %v6089
        %v6174 = vpop.f32.mrf.mxu0
        %v6175 = vadd.f32 0.0, %v6174
        %v6176 = vpop.f32.mrf.mxu0
        %v6177 = vadd.f32 0.0, %v6176
        %6178 = vmatmul.bf16.gmra.mxu0 %v6092
        %v6179 = vpop.f32.mrf.mxu0
        %v6180 = vadd.f32 0.0, %v6179
        %v6181 = vpop.f32.mrf.mxu0
        %v6182 = vadd.f32 0.0, %v6181
        %6183 = vmatmul.bf16.gmra.mxu0 %v6095
        %v6184 = vpop.f32.mrf.mxu0
        %v6185 = vadd.f32 0.0, %v6184
        %v6186 = vpop.f32.mrf.mxu0
        %v6187 = vadd.f32 0.0, %v6186
        %6188 = vmatmul.bf16.gmra.mxu0 %v6098
        %v6189 = vpop.f32.mrf.mxu0
        %v6190 = vadd.f32 0.0, %v6189
        %v6191 = vpop.f32.mrf.mxu0
        %v6192 = vadd.f32 0.0, %v6191
        %6193 = vmatmul.bf16.gmra.mxu0 %v6101
        %v6194 = vpop.f32.mrf.mxu0
        %v6195 = vadd.f32 0.0, %v6194
        %v6196 = vpop.f32.mrf.mxu0
        %v6197 = vadd.f32 0.0, %v6196
        %6198 = vmatmul.bf16.gmra.mxu0 %v6104
        %v6199 = vpop.f32.mrf.mxu0
        %v6200 = vadd.f32 0.0, %v6199
        %v6201 = vpop.f32.mrf.mxu0
        %v6202 = vadd.f32 0.0, %v6201
        %6203 = vdwg.mxu0
        %6204 = vmatpush.bf16.msra.mxu0 0
        %6205 = vmatpush.bf16.msra.mxu0 0
        %6206 = vmatpush.bf16.msra.mxu0 0
        %6207 = vmatpush.bf16.msra.mxu0 0
        %6208 = vmatpush.bf16.msra.mxu0 %v6069
        %6209 = vmatpush.bf16.msra.mxu0 %v6066
        %6210 = vmatpush.bf16.msra.mxu0 %v6063
        %6211 = vmatpush.bf16.msra.mxu0 %v6060
        %6212 = vmatmul.bf16.gmra.mxu0 %v6083
        %v6213 = vpop.f32.mrf.mxu0
        %v6214 = vadd.f32 0.0, %v6213
        %v6215 = vpop.f32.mrf.mxu0
        %v6216 = vadd.f32 0.0, %v6215
        %6217 = vmatmul.bf16.gmra.mxu0 %v6086
        %v6218 = vpop.f32.mrf.mxu0
        %v6219 = vadd.f32 0.0, %v6218
        %v6220 = vpop.f32.mrf.mxu0
        %v6221 = vadd.f32 0.0, %v6220
        %6222 = vmatmul.bf16.gmra.mxu0 %v6089
        %v6223 = vpop.f32.mrf.mxu0
        %v6224 = vadd.f32 0.0, %v6223
        %v6225 = vpop.f32.mrf.mxu0
        %v6226 = vadd.f32 0.0, %v6225
        %6227 = vmatmul.bf16.gmra.mxu0 %v6092
        %v6228 = vpop.f32.mrf.mxu0
        %v6229 = vadd.f32 0.0, %v6228
        %v6230 = vpop.f32.mrf.mxu0
        %v6231 = vadd.f32 0.0, %v6230
        %6232 = vmatmul.bf16.gmra.mxu0 %v6095
        %v6233 = vpop.f32.mrf.mxu0
        %v6234 = vadd.f32 0.0, %v6233
        %v6235 = vpop.f32.mrf.mxu0
        %v6236 = vadd.f32 0.0, %v6235
        %6237 = vmatmul.bf16.gmra.mxu0 %v6098
        %v6238 = vpop.f32.mrf.mxu0
        %v6239 = vadd.f32 0.0, %v6238
        %v6240 = vpop.f32.mrf.mxu0
        %v6241 = vadd.f32 0.0, %v6240
        %6242 = vmatmul.bf16.gmra.mxu0 %v6101
        %v6243 = vpop.f32.mrf.mxu0
        %v6244 = vadd.f32 0.0, %v6243
        %v6245 = vpop.f32.mrf.mxu0
        %v6246 = vadd.f32 0.0, %v6245
        %6247 = vmatmul.bf16.gmra.mxu0 %v6104
        %v6248 = vpop.f32.mrf.mxu0
        %v6249 = vadd.f32 0.0, %v6248
        %v6250 = vpop.f32.mrf.mxu0
        %v6251 = vadd.f32 0.0, %v6250
        %6252 = vdwg.mxu0
        %v6253 = vadd.f32 %v5608, %v6116
        %v6254 = vadd.f32 %v5609, %v6165
        %v6255 = vadd.f32 %v5610, %v6214
        %v6256 = vadd.f32 %v5611, %v6118
        %v6257 = vadd.f32 %v5612, %v6167
        %v6258 = vadd.f32 %v5613, %v6216
        %v6259 = vadd.f32 %v5614, %v6121
        %v6260 = vadd.f32 %v5615, %v6170
        %v6261 = vadd.f32 %v5616, %v6219
        %v6262 = vadd.f32 %v5617, %v6123
        %v6263 = vadd.f32 %v5618, %v6172
        %v6264 = vadd.f32 %v5619, %v6221
        %v6265 = vadd.f32 %v5620, %v6126
        %v6266 = vadd.f32 %v5621, %v6175
        %v6267 = vadd.f32 %v5622, %v6224
        %v6268 = vadd.f32 %v5623, %v6128
        %v6269 = vadd.f32 %v5624, %v6177
        %v6270 = vadd.f32 %v5625, %v6226
        %v6271 = vadd.f32 %v5626, %v6131
        %v6272 = vadd.f32 %v5627, %v6180
        %v6273 = vadd.f32 %v5628, %v6229
        %v6274 = vadd.f32 %v5629, %v6133
        %v6275 = vadd.f32 %v5630, %v6182
        %v6276 = vadd.f32 %v5631, %v6231
        %v6277 = vadd.f32 %v5632, %v6136
        %v6278 = vadd.f32 %v5633, %v6185
        %v6279 = vadd.f32 %v5634, %v6234
        %v6280 = vadd.f32 %v5635, %v6138
        %v6281 = vadd.f32 %v5636, %v6187
        %v6282 = vadd.f32 %v5637, %v6236
        %v6283 = vadd.f32 %v5638, %v6141
        %v6284 = vadd.f32 %v5639, %v6190
        %v6285 = vadd.f32 %v5640, %v6239
        %v6286 = vadd.f32 %v5641, %v6143
        %v6287 = vadd.f32 %v5642, %v6192
        %v6288 = vadd.f32 %v5643, %v6241
        %v6289 = vadd.f32 %v5644, %v6146
        %v6290 = vadd.f32 %v5645, %v6195
        %v6291 = vadd.f32 %v5646, %v6244
        %v6292 = vadd.f32 %v5647, %v6148
        %v6293 = vadd.f32 %v5648, %v6197
        %v6294 = vadd.f32 %v5649, %v6246
        %v6295 = vadd.f32 %v5650, %v6151
        %v6296 = vadd.f32 %v5651, %v6200
        %v6297 = vadd.f32 %v5652, %v6249
        %v6298 = vadd.f32 %v5653, %v6153
        %v6299 = vadd.f32 %v5654, %v6202
        %v6300 = vadd.f32 %v5655, %v6251
        %6309 = vrot.lane.b32.xlu0 %v5656, 64
        %v6310 = vpop.permute.xlu0 %6309
        %6311 = vrot.lane.b32.xlu0 %v5657, 64
        %v6312 = vpop.permute.xlu0 %6311
        %6313 = vrot.lane.b32.xlu0 %v5658, 64
        %v6314 = vpop.permute.xlu0 %6313
        %6315 = vrot.lane.b32.xlu0 %v5659, 64
        %v6316 = vpop.permute.xlu0 %6315
        %6317 = vrot.lane.b32.xlu0 %v5660, 64
        %v6318 = vpop.permute.xlu0 %6317
        %6319 = vrot.lane.b32.xlu0 %v5661, 64
        %v6320 = vpop.permute.xlu0 %6319
        %6321 = vrot.lane.b32.xlu0 %v5662, 64
        %v6322 = vpop.permute.xlu0 %6321
        %6323 = vrot.lane.b32.xlu0 %v5663, 64
        %v6324 = vpop.permute.xlu0 %6323
        %6333 = vrot.lane.b32.xlu0 %v5664, 64
        %v6334 = vpop.permute.xlu0 %6333
        %6335 = vrot.lane.b32.xlu0 %v5665, 64
        %v6336 = vpop.permute.xlu0 %6335
        %6337 = vrot.lane.b32.xlu0 %v5666, 64
        %v6338 = vpop.permute.xlu0 %6337
        %6339 = vrot.lane.b32.xlu0 %v5667, 64
        %v6340 = vpop.permute.xlu0 %6339
        %6341 = vrot.lane.b32.xlu0 %v5668, 64
        %v6342 = vpop.permute.xlu0 %6341
        %6343 = vrot.lane.b32.xlu0 %v5669, 64
        %v6344 = vpop.permute.xlu0 %6343
        %6345 = vrot.lane.b32.xlu0 %v5670, 64
        %v6346 = vpop.permute.xlu0 %6345
        %6347 = vrot.lane.b32.xlu0 %v5671, 64
        %v6348 = vpop.permute.xlu0 %6347
        %v6350 = vsel %vm3083, %v6310, 0
        %v6353 = vsel %vm3083, %v6312, 0
        %v6356 = vsel %vm3083, %v6314, 0
        %v6359 = vsel %vm3083, %v6316, 0
        %v6362 = vsel %vm3083, %v6318, 0
        %v6365 = vsel %vm3083, %v6320, 0
        %v6368 = vsel %vm3083, %v6322, 0
        %v6371 = vsel %vm3083, %v6324, 0
        %v6374 = vsel %vm3083, %v6334, 0
        %v6377 = vsel %vm3083, %v6336, 0
        %v6380 = vsel %vm3083, %v6338, 0
        %v6383 = vsel %vm3083, %v6340, 0
        %v6386 = vsel %vm3083, %v6342, 0
        %v6389 = vsel %vm3083, %v6344, 0
        %v6392 = vsel %vm3083, %v6346, 0
        %v6395 = vsel %vm3083, %v6348, 0
        %6397 = vmatpush.bf16.xpose.msra.mxu0 %v6395
        %6398 = vmatpush.bf16.xpose.msra.mxu0 %v6392
        %6399 = vmatpush.bf16.xpose.msra.mxu0 %v6389
        %6400 = vmatpush.bf16.xpose.msra.mxu0 %v6386
        %6401 = vmatpush.bf16.xpose.msra.mxu0 %v6383
        %6402 = vmatpush.bf16.xpose.msra.mxu0 %v6380
        %6403 = vmatpush.bf16.xpose.msra.mxu0 %v6377
        %6404 = vmatpush.bf16.xpose.msra.mxu0 %v6374
        %6405 = vmatmul.bf16.gmra.mxu0 %v6350
        %v6406 = vpop.f32.mrf.mxu0
        %v6407 = vadd.f32 0.0, %v6406
        %v6408 = vpop.f32.mrf.mxu0
        %v6409 = vadd.f32 0.0, %v6408
        %6410 = vmatmul.bf16.gmra.mxu0 %v6353
        %v6411 = vpop.f32.mrf.mxu0
        %v6412 = vadd.f32 0.0, %v6411
        %v6413 = vpop.f32.mrf.mxu0
        %v6414 = vadd.f32 0.0, %v6413
        %6415 = vmatmul.bf16.gmra.mxu0 %v6356
        %v6416 = vpop.f32.mrf.mxu0
        %v6417 = vadd.f32 0.0, %v6416
        %v6418 = vpop.f32.mrf.mxu0
        %v6419 = vadd.f32 0.0, %v6418
        %6420 = vmatmul.bf16.gmra.mxu0 %v6359
        %v6421 = vpop.f32.mrf.mxu0
        %v6422 = vadd.f32 0.0, %v6421
        %v6423 = vpop.f32.mrf.mxu0
        %v6424 = vadd.f32 0.0, %v6423
        %6425 = vmatmul.bf16.gmra.mxu0 %v6362
        %v6426 = vpop.f32.mrf.mxu0
        %v6427 = vadd.f32 0.0, %v6426
        %v6428 = vpop.f32.mrf.mxu0
        %v6429 = vadd.f32 0.0, %v6428
        %6430 = vmatmul.bf16.gmra.mxu0 %v6365
        %v6431 = vpop.f32.mrf.mxu0
        %v6432 = vadd.f32 0.0, %v6431
        %v6433 = vpop.f32.mrf.mxu0
        %v6434 = vadd.f32 0.0, %v6433
        %6435 = vmatmul.bf16.gmra.mxu0 %v6368
        %v6436 = vpop.f32.mrf.mxu0
        %v6437 = vadd.f32 0.0, %v6436
        %v6438 = vpop.f32.mrf.mxu0
        %v6439 = vadd.f32 0.0, %v6438
        %6440 = vmatmul.bf16.gmra.mxu0 %v6371
        %v6441 = vpop.f32.mrf.mxu0
        %v6442 = vadd.f32 0.0, %v6441
        %v6443 = vpop.f32.mrf.mxu0
        %v6444 = vadd.f32 0.0, %v6443
        %6445 = vdwg.mxu0
        %v6446 = vsel %vm3043, %v6407, -inf
        %v6447 = vsel %vm3044, %v6409, -inf
        %v6448 = vsel %vm3045, %v6412, -inf
        %v6449 = vsel %vm3046, %v6414, -inf
        %v6450 = vsel %vm3047, %v6417, -inf
        %v6451 = vsel %vm3048, %v6419, -inf
        %v6452 = vsel %vm3049, %v6422, -inf
        %v6453 = vsel %vm3050, %v6424, -inf
        %v6454 = vsel %vm3051, %v6427, -inf
        %v6455 = vsel %vm3052, %v6429, -inf
        %v6456 = vsel %vm3053, %v6432, -inf
        %v6457 = vsel %vm3054, %v6434, -inf
        %v6458 = vsel %vm3055, %v6437, -inf
        %v6459 = vsel %vm3056, %v6439, -inf
        %v6460 = vsel %vm3057, %v6442, -inf
        %v6461 = vsel %vm3058, %v6444, -inf
        %6462 = vmax.xlane.f32.xlu0 %v6446
        %v6463 = vpop.xlane.xlu0 %6462
        %6464 = vmax.xlane.f32.xlu0 %v6447
        %v6465 = vpop.xlane.xlu0 %6464
        %6466 = vmax.xlane.f32.xlu0 %v6448
        %v6467 = vpop.xlane.xlu0 %6466
        %6468 = vmax.xlane.f32.xlu0 %v6449
        %v6469 = vpop.xlane.xlu0 %6468
        %6470 = vmax.xlane.f32.xlu0 %v6450
        %v6471 = vpop.xlane.xlu0 %6470
        %6472 = vmax.xlane.f32.xlu0 %v6451
        %v6473 = vpop.xlane.xlu0 %6472
        %6474 = vmax.xlane.f32.xlu0 %v6452
        %v6475 = vpop.xlane.xlu0 %6474
        %6476 = vmax.xlane.f32.xlu0 %v6453
        %v6477 = vpop.xlane.xlu0 %6476
        %6478 = vmax.xlane.f32.xlu0 %v6454
        %v6479 = vpop.xlane.xlu0 %6478
        %6480 = vmax.xlane.f32.xlu0 %v6455
        %v6481 = vpop.xlane.xlu0 %6480
        %6482 = vmax.xlane.f32.xlu0 %v6456
        %v6483 = vpop.xlane.xlu0 %6482
        %6484 = vmax.xlane.f32.xlu0 %v6457
        %v6485 = vpop.xlane.xlu0 %6484
        %6486 = vmax.xlane.f32.xlu0 %v6458
        %v6487 = vpop.xlane.xlu0 %6486
        %6488 = vmax.xlane.f32.xlu0 %v6459
        %v6489 = vpop.xlane.xlu0 %6488
        %6490 = vmax.xlane.f32.xlu0 %v6460
        %v6491 = vpop.xlane.xlu0 %6490
        %6492 = vmax.xlane.f32.xlu0 %v6461
        %v6493 = vpop.xlane.xlu0 %6492
        %v6494 = vsub.f32 %v6446, %v6463
        %v6495 = vsub.f32 %v6447, %v6465
        %v6496 = vsub.f32 %v6448, %v6467
        %v6497 = vsub.f32 %v6449, %v6469
        %v6498 = vsub.f32 %v6450, %v6471
        %v6499 = vsub.f32 %v6451, %v6473
        %v6500 = vsub.f32 %v6452, %v6475
        %v6501 = vsub.f32 %v6453, %v6477
        %v6502 = vsub.f32 %v6454, %v6479
        %v6503 = vsub.f32 %v6455, %v6481
        %v6504 = vsub.f32 %v6456, %v6483
        %v6505 = vsub.f32 %v6457, %v6485
        %v6506 = vsub.f32 %v6458, %v6487
        %v6507 = vsub.f32 %v6459, %v6489
        %v6508 = vsub.f32 %v6460, %v6491
        %v6509 = vsub.f32 %v6461, %v6493
        %v6510 = vmul.f32 %v6494, 1.442695
        %v6511 = vpow.pop %v6510
        %v6512 = vmul.f32 %v6495, 1.442695
        %v6513 = vpow.pop %v6512
        %v6514 = vmul.f32 %v6496, 1.442695
        %v6515 = vpow.pop %v6514
        %v6516 = vmul.f32 %v6497, 1.442695
        %v6517 = vpow.pop %v6516
        %v6518 = vmul.f32 %v6498, 1.442695
        %v6519 = vpow.pop %v6518
        %v6520 = vmul.f32 %v6499, 1.442695
        %v6521 = vpow.pop %v6520
        %v6522 = vmul.f32 %v6500, 1.442695
        %v6523 = vpow.pop %v6522
        %v6524 = vmul.f32 %v6501, 1.442695
        %v6525 = vpow.pop %v6524
        %v6526 = vmul.f32 %v6502, 1.442695
        %v6527 = vpow.pop %v6526
        %v6528 = vmul.f32 %v6503, 1.442695
        %v6529 = vpow.pop %v6528
        %v6530 = vmul.f32 %v6504, 1.442695
        %v6531 = vpow.pop %v6530
        %v6532 = vmul.f32 %v6505, 1.442695
        %v6533 = vpow.pop %v6532
        %v6534 = vmul.f32 %v6506, 1.442695
        %v6535 = vpow.pop %v6534
        %v6536 = vmul.f32 %v6507, 1.442695
        %v6537 = vpow.pop %v6536
        %v6538 = vmul.f32 %v6508, 1.442695
        %v6539 = vpow.pop %v6538
        %v6540 = vmul.f32 %v6509, 1.442695
        %v6541 = vpow.pop %v6540
        %6542 = vadd.xlane.f32.xlu0 %v6511
        %v6543 = vpop.xlane.xlu0 %6542
        %6544 = vadd.xlane.f32.xlu0 %v6513
        %v6545 = vpop.xlane.xlu0 %6544
        %6546 = vadd.xlane.f32.xlu0 %v6515
        %v6547 = vpop.xlane.xlu0 %6546
        %6548 = vadd.xlane.f32.xlu0 %v6517
        %v6549 = vpop.xlane.xlu0 %6548
        %6550 = vadd.xlane.f32.xlu0 %v6519
        %v6551 = vpop.xlane.xlu0 %6550
        %6552 = vadd.xlane.f32.xlu0 %v6521
        %v6553 = vpop.xlane.xlu0 %6552
        %6554 = vadd.xlane.f32.xlu0 %v6523
        %v6555 = vpop.xlane.xlu0 %6554
        %6556 = vadd.xlane.f32.xlu0 %v6525
        %v6557 = vpop.xlane.xlu0 %6556
        %6558 = vadd.xlane.f32.xlu0 %v6527
        %v6559 = vpop.xlane.xlu0 %6558
        %6560 = vadd.xlane.f32.xlu0 %v6529
        %v6561 = vpop.xlane.xlu0 %6560
        %6562 = vadd.xlane.f32.xlu0 %v6531
        %v6563 = vpop.xlane.xlu0 %6562
        %6564 = vadd.xlane.f32.xlu0 %v6533
        %v6565 = vpop.xlane.xlu0 %6564
        %6566 = vadd.xlane.f32.xlu0 %v6535
        %v6567 = vpop.xlane.xlu0 %6566
        %6568 = vadd.xlane.f32.xlu0 %v6537
        %v6569 = vpop.xlane.xlu0 %6568
        %6570 = vadd.xlane.f32.xlu0 %v6539
        %v6571 = vpop.xlane.xlu0 %6570
        %6572 = vadd.xlane.f32.xlu0 %v6541
        %v6573 = vpop.xlane.xlu0 %6572
        %v6574 = vrcp.pop %v6543
        %v6575 = vrcp.pop %v6545
        %v6576 = vrcp.pop %v6547
        %v6577 = vrcp.pop %v6549
        %v6578 = vrcp.pop %v6551
        %v6579 = vrcp.pop %v6553
        %v6580 = vrcp.pop %v6555
        %v6581 = vrcp.pop %v6557
        %v6582 = vrcp.pop %v6559
        %v6583 = vrcp.pop %v6561
        %v6584 = vrcp.pop %v6563
        %v6585 = vrcp.pop %v6565
        %v6586 = vrcp.pop %v6567
        %v6587 = vrcp.pop %v6569
        %v6588 = vrcp.pop %v6571
        %v6589 = vrcp.pop %v6573
        %v6590 = vmul.f32 %v6511, %v6574
        %v6591 = vmul.f32 %v6513, %v6575
        %v6592 = vmul.f32 %v6515, %v6576
        %v6593 = vmul.f32 %v6517, %v6577
        %v6594 = vmul.f32 %v6519, %v6578
        %v6595 = vmul.f32 %v6521, %v6579
        %v6596 = vmul.f32 %v6523, %v6580
        %v6597 = vmul.f32 %v6525, %v6581
        %v6598 = vmul.f32 %v6527, %v6582
        %v6599 = vmul.f32 %v6529, %v6583
        %v6600 = vmul.f32 %v6531, %v6584
        %v6601 = vmul.f32 %v6533, %v6585
        %v6602 = vmul.f32 %v6535, %v6586
        %v6603 = vmul.f32 %v6537, %v6587
        %v6604 = vmul.f32 %v6539, %v6588
        %v6605 = vmul.f32 %v6541, %v6589
        %v6606 = vpack.c.bf16 %v6591, %v6590
        %v6607 = vpack.c.bf16 %v6593, %v6592
        %v6608 = vpack.c.bf16 %v6595, %v6594
        %v6609 = vpack.c.bf16 %v6597, %v6596
        %v6610 = vpack.c.bf16 %v6599, %v6598
        %v6611 = vpack.c.bf16 %v6601, %v6600
        %v6612 = vpack.c.bf16 %v6603, %v6602
        %v6613 = vpack.c.bf16 %v6605, %v6604
        %6622 = vrot.lane.b32.xlu0 %v5672, 64
        %v6623 = vpop.permute.xlu0 %6622
        %6624 = vrot.lane.b32.xlu0 %v5673, 64
        %v6625 = vpop.permute.xlu0 %6624
        %6626 = vrot.lane.b32.xlu0 %v5674, 64
        %v6627 = vpop.permute.xlu0 %6626
        %6628 = vrot.lane.b32.xlu0 %v5675, 64
        %v6629 = vpop.permute.xlu0 %6628
        %6630 = vrot.lane.b32.xlu0 %v5676, 64
        %v6631 = vpop.permute.xlu0 %6630
        %6632 = vrot.lane.b32.xlu0 %v5677, 64
        %v6633 = vpop.permute.xlu0 %6632
        %6634 = vrot.lane.b32.xlu0 %v5678, 64
        %v6635 = vpop.permute.xlu0 %6634
        %6636 = vrot.lane.b32.xlu0 %v5679, 64
        %v6637 = vpop.permute.xlu0 %6636
        %6646 = vmatpush.bf16.msra.mxu0 %v6637
        %6647 = vmatpush.bf16.msra.mxu0 %v6635
        %6648 = vmatpush.bf16.msra.mxu0 %v6633
        %6649 = vmatpush.bf16.msra.mxu0 %v6631
        %6650 = vmatpush.bf16.msra.mxu0 %v6629
        %6651 = vmatpush.bf16.msra.mxu0 %v6627
        %6652 = vmatpush.bf16.msra.mxu0 %v6625
        %6653 = vmatpush.bf16.msra.mxu0 %v6623
        %6654 = vmatmul.bf16.gmra.mxu0 %v6606
        %v6655 = vpop.f32.mrf.mxu0
        %v6656 = vadd.f32 0.0, %v6655
        %v6657 = vpop.f32.mrf.mxu0
        %v6658 = vadd.f32 0.0, %v6657
        %6659 = vmatmul.bf16.gmra.mxu0 %v6607
        %v6660 = vpop.f32.mrf.mxu0
        %v6661 = vadd.f32 0.0, %v6660
        %v6662 = vpop.f32.mrf.mxu0
        %v6663 = vadd.f32 0.0, %v6662
        %6664 = vmatmul.bf16.gmra.mxu0 %v6608
        %v6665 = vpop.f32.mrf.mxu0
        %v6666 = vadd.f32 0.0, %v6665
        %v6667 = vpop.f32.mrf.mxu0
        %v6668 = vadd.f32 0.0, %v6667
        %6669 = vmatmul.bf16.gmra.mxu0 %v6609
        %v6670 = vpop.f32.mrf.mxu0
        %v6671 = vadd.f32 0.0, %v6670
        %v6672 = vpop.f32.mrf.mxu0
        %v6673 = vadd.f32 0.0, %v6672
        %6674 = vmatmul.bf16.gmra.mxu0 %v6610
        %v6675 = vpop.f32.mrf.mxu0
        %v6676 = vadd.f32 0.0, %v6675
        %v6677 = vpop.f32.mrf.mxu0
        %v6678 = vadd.f32 0.0, %v6677
        %6679 = vmatmul.bf16.gmra.mxu0 %v6611
        %v6680 = vpop.f32.mrf.mxu0
        %v6681 = vadd.f32 0.0, %v6680
        %v6682 = vpop.f32.mrf.mxu0
        %v6683 = vadd.f32 0.0, %v6682
        %6684 = vmatmul.bf16.gmra.mxu0 %v6612
        %v6685 = vpop.f32.mrf.mxu0
        %v6686 = vadd.f32 0.0, %v6685
        %v6687 = vpop.f32.mrf.mxu0
        %v6688 = vadd.f32 0.0, %v6687
        %6689 = vmatmul.bf16.gmra.mxu0 %v6613
        %v6690 = vpop.f32.mrf.mxu0
        %v6691 = vadd.f32 0.0, %v6690
        %v6692 = vpop.f32.mrf.mxu0
        %v6693 = vadd.f32 0.0, %v6692
        %6694 = vdwg.mxu0
        %v6695 = vld [vmem:[%s2 + $0x1e0] sm:$0xff]
        %v6696 = vld [vmem:[%s2 + $0x1e8] sm:$0xf]
        %v6697 = vld [vmem:[%s2 + $0x1ec] sm:$0xff]
        %v6698 = vld [vmem:[%s2 + $0x1f4] sm:$0xf]
        %v6699 = vld [vmem:[%s2 + $0x1f8] sm:$0xff]
        %v6700 = vld [vmem:[%s2 + $0x200] sm:$0xf]
        %v6701 = vld [vmem:[%s2 + $0x204] sm:$0xff]
        %v6702 = vld [vmem:[%s2 + $0x20c] sm:$0xf]
        %v6703 = vld [vmem:[%s2 + $0x210] sm:$0xff]
        %v6704 = vld [vmem:[%s2 + $0x218] sm:$0xf]
        %v6705 = vld [vmem:[%s2 + $0x21c] sm:$0xff]
        %v6706 = vld [vmem:[%s2 + $0x224] sm:$0xf]
        %v6707 = vld [vmem:[%s2 + $0x228] sm:$0xff]
        %v6708 = vld [vmem:[%s2 + $0x230] sm:$0xf]
        %v6709 = vld [vmem:[%s2 + $0x234] sm:$0xff]
        %v6710 = vld [vmem:[%s2 + $0x23c] sm:$0xf]
        %v6711 = vpack.c.bf16 %v6658, %v6656
        %v6712 = vpack.c.bf16 %v6663, %v6661
        %v6713 = vpack.c.bf16 %v6668, %v6666
        %v6714 = vpack.c.bf16 %v6673, %v6671
        %v6715 = vpack.c.bf16 %v6678, %v6676
        %v6716 = vpack.c.bf16 %v6683, %v6681
        %v6717 = vpack.c.bf16 %v6688, %v6686
        %v6718 = vpack.c.bf16 %v6693, %v6691
        %v6735 = vunpack.c.l.b16 %v6695
        %v6736 = vunpack.c.h.b16 %v6695
        %v6737 = vunpack.c.l.b16 %v6696
        %v6738 = vunpack.c.l.b16 %v6697
        %v6739 = vunpack.c.h.b16 %v6697
        %v6740 = vunpack.c.l.b16 %v6698
        %v6741 = vunpack.c.l.b16 %v6699
        %v6742 = vunpack.c.h.b16 %v6699
        %v6743 = vunpack.c.l.b16 %v6700
        %v6744 = vunpack.c.l.b16 %v6701
        %v6745 = vunpack.c.h.b16 %v6701
        %v6746 = vunpack.c.l.b16 %v6702
        %v6747 = vunpack.c.l.b16 %v6703
        %v6748 = vunpack.c.h.b16 %v6703
        %v6749 = vunpack.c.l.b16 %v6704
        %v6750 = vunpack.c.l.b16 %v6705
        %v6751 = vunpack.c.h.b16 %v6705
        %v6752 = vunpack.c.l.b16 %v6706
        %v6753 = vunpack.c.l.b16 %v6707
        %v6754 = vunpack.c.h.b16 %v6707
        %v6755 = vunpack.c.l.b16 %v6708
        %v6756 = vunpack.c.l.b16 %v6709
        %v6757 = vunpack.c.h.b16 %v6709
        %v6758 = vunpack.c.l.b16 %v6710
        %v6759 = vpack.c.b16 %v6738, %v6735
        %v6760 = vpack.c.b16 %v6739, %v6736
        %v6761 = vpack.c.b16 %v6740, %v6737
        %v6762 = vpack.c.b16 %v6744, %v6741
        %v6763 = vpack.c.b16 %v6745, %v6742
        %v6764 = vpack.c.b16 %v6746, %v6743
        %v6765 = vpack.c.b16 %v6750, %v6747
        %v6766 = vpack.c.b16 %v6751, %v6748
        %v6767 = vpack.c.b16 %v6752, %v6749
        %v6768 = vpack.c.b16 %v6756, %v6753
        %v6769 = vpack.c.b16 %v6757, %v6754
        %v6770 = vpack.c.b16 %v6758, %v6755
        %v6784 = vsel %vm3083, %v6711, 0
        %v6787 = vsel %vm3083, %v6712, 0
        %v6790 = vsel %vm3083, %v6713, 0
        %v6793 = vsel %vm3083, %v6714, 0
        %v6796 = vsel %vm3083, %v6715, 0
        %v6799 = vsel %vm3083, %v6716, 0
        %v6802 = vsel %vm3083, %v6717, 0
        %v6805 = vsel %vm3083, %v6718, 0
        %6807 = vmatpush.bf16.msra.mxu0 0
        %6808 = vmatpush.bf16.msra.mxu0 0
        %6809 = vmatpush.bf16.msra.mxu0 0
        %6810 = vmatpush.bf16.msra.mxu0 0
        %6811 = vmatpush.bf16.msra.mxu0 %v6768
        %6812 = vmatpush.bf16.msra.mxu0 %v6765
        %6813 = vmatpush.bf16.msra.mxu0 %v6762
        %6814 = vmatpush.bf16.msra.mxu0 %v6759
        %6815 = vmatmul.bf16.gmra.mxu0 %v6784
        %v6816 = vpop.f32.mrf.mxu0
        %v6817 = vadd.f32 0.0, %v6816
        %v6818 = vpop.f32.mrf.mxu0
        %v6819 = vadd.f32 0.0, %v6818
        %6820 = vmatmul.bf16.gmra.mxu0 %v6787
        %v6821 = vpop.f32.mrf.mxu0
        %v6822 = vadd.f32 0.0, %v6821
        %v6823 = vpop.f32.mrf.mxu0
        %v6824 = vadd.f32 0.0, %v6823
        %6825 = vmatmul.bf16.gmra.mxu0 %v6790
        %v6826 = vpop.f32.mrf.mxu0
        %v6827 = vadd.f32 0.0, %v6826
        %v6828 = vpop.f32.mrf.mxu0
        %v6829 = vadd.f32 0.0, %v6828
        %6830 = vmatmul.bf16.gmra.mxu0 %v6793
        %v6831 = vpop.f32.mrf.mxu0
        %v6832 = vadd.f32 0.0, %v6831
        %v6833 = vpop.f32.mrf.mxu0
        %v6834 = vadd.f32 0.0, %v6833
        %6835 = vmatmul.bf16.gmra.mxu0 %v6796
        %v6836 = vpop.f32.mrf.mxu0
        %v6837 = vadd.f32 0.0, %v6836
        %v6838 = vpop.f32.mrf.mxu0
        %v6839 = vadd.f32 0.0, %v6838
        %6840 = vmatmul.bf16.gmra.mxu0 %v6799
        %v6841 = vpop.f32.mrf.mxu0
        %v6842 = vadd.f32 0.0, %v6841
        %v6843 = vpop.f32.mrf.mxu0
        %v6844 = vadd.f32 0.0, %v6843
        %6845 = vmatmul.bf16.gmra.mxu0 %v6802
        %v6846 = vpop.f32.mrf.mxu0
        %v6847 = vadd.f32 0.0, %v6846
        %v6848 = vpop.f32.mrf.mxu0
        %v6849 = vadd.f32 0.0, %v6848
        %6850 = vmatmul.bf16.gmra.mxu0 %v6805
        %v6851 = vpop.f32.mrf.mxu0
        %v6852 = vadd.f32 0.0, %v6851
        %v6853 = vpop.f32.mrf.mxu0
        %v6854 = vadd.f32 0.0, %v6853
        %6855 = vdwg.mxu0
        %6856 = vmatpush.bf16.msra.mxu0 0
        %6857 = vmatpush.bf16.msra.mxu0 0
        %6858 = vmatpush.bf16.msra.mxu0 0
        %6859 = vmatpush.bf16.msra.mxu0 0
        %6860 = vmatpush.bf16.msra.mxu0 %v6769
        %6861 = vmatpush.bf16.msra.mxu0 %v6766
        %6862 = vmatpush.bf16.msra.mxu0 %v6763
        %6863 = vmatpush.bf16.msra.mxu0 %v6760
        %6864 = vmatmul.bf16.gmra.mxu0 %v6784
        %v6865 = vpop.f32.mrf.mxu0
        %v6866 = vadd.f32 0.0, %v6865
        %v6867 = vpop.f32.mrf.mxu0
        %v6868 = vadd.f32 0.0, %v6867
        %6869 = vmatmul.bf16.gmra.mxu0 %v6787
        %v6870 = vpop.f32.mrf.mxu0
        %v6871 = vadd.f32 0.0, %v6870
        %v6872 = vpop.f32.mrf.mxu0
        %v6873 = vadd.f32 0.0, %v6872
        %6874 = vmatmul.bf16.gmra.mxu0 %v6790
        %v6875 = vpop.f32.mrf.mxu0
        %v6876 = vadd.f32 0.0, %v6875
        %v6877 = vpop.f32.mrf.mxu0
        %v6878 = vadd.f32 0.0, %v6877
        %6879 = vmatmul.bf16.gmra.mxu0 %v6793
        %v6880 = vpop.f32.mrf.mxu0
        %v6881 = vadd.f32 0.0, %v6880
        %v6882 = vpop.f32.mrf.mxu0
        %v6883 = vadd.f32 0.0, %v6882
        %6884 = vmatmul.bf16.gmra.mxu0 %v6796
        %v6885 = vpop.f32.mrf.mxu0
        %v6886 = vadd.f32 0.0, %v6885
        %v6887 = vpop.f32.mrf.mxu0
        %v6888 = vadd.f32 0.0, %v6887
        %6889 = vmatmul.bf16.gmra.mxu0 %v6799
        %v6890 = vpop.f32.mrf.mxu0
        %v6891 = vadd.f32 0.0, %v6890
        %v6892 = vpop.f32.mrf.mxu0
        %v6893 = vadd.f32 0.0, %v6892
        %6894 = vmatmul.bf16.gmra.mxu0 %v6802
        %v6895 = vpop.f32.mrf.mxu0
        %v6896 = vadd.f32 0.0, %v6895
        %v6897 = vpop.f32.mrf.mxu0
        %v6898 = vadd.f32 0.0, %v6897
        %6899 = vmatmul.bf16.gmra.mxu0 %v6805
        %v6900 = vpop.f32.mrf.mxu0
        %v6901 = vadd.f32 0.0, %v6900
        %v6902 = vpop.f32.mrf.mxu0
        %v6903 = vadd.f32 0.0, %v6902
        %6904 = vdwg.mxu0
        %6905 = vmatpush.bf16.msra.mxu0 0
        %6906 = vmatpush.bf16.msra.mxu0 0
        %6907 = vmatpush.bf16.msra.mxu0 0
        %6908 = vmatpush.bf16.msra.mxu0 0
        %6909 = vmatpush.bf16.msra.mxu0 %v6770
        %6910 = vmatpush.bf16.msra.mxu0 %v6767
        %6911 = vmatpush.bf16.msra.mxu0 %v6764
        %6912 = vmatpush.bf16.msra.mxu0 %v6761
        %6913 = vmatmul.bf16.gmra.mxu0 %v6784
        %v6914 = vpop.f32.mrf.mxu0
        %v6915 = vadd.f32 0.0, %v6914
        %v6916 = vpop.f32.mrf.mxu0
        %v6917 = vadd.f32 0.0, %v6916
        %6918 = vmatmul.bf16.gmra.mxu0 %v6787
        %v6919 = vpop.f32.mrf.mxu0
        %v6920 = vadd.f32 0.0, %v6919
        %v6921 = vpop.f32.mrf.mxu0
        %v6922 = vadd.f32 0.0, %v6921
        %6923 = vmatmul.bf16.gmra.mxu0 %v6790
        %v6924 = vpop.f32.mrf.mxu0
        %v6925 = vadd.f32 0.0, %v6924
        %v6926 = vpop.f32.mrf.mxu0
        %v6927 = vadd.f32 0.0, %v6926
        %6928 = vmatmul.bf16.gmra.mxu0 %v6793
        %v6929 = vpop.f32.mrf.mxu0
        %v6930 = vadd.f32 0.0, %v6929
        %v6931 = vpop.f32.mrf.mxu0
        %v6932 = vadd.f32 0.0, %v6931
        %6933 = vmatmul.bf16.gmra.mxu0 %v6796
        %v6934 = vpop.f32.mrf.mxu0
        %v6935 = vadd.f32 0.0, %v6934
        %v6936 = vpop.f32.mrf.mxu0
        %v6937 = vadd.f32 0.0, %v6936
        %6938 = vmatmul.bf16.gmra.mxu0 %v6799
        %v6939 = vpop.f32.mrf.mxu0
        %v6940 = vadd.f32 0.0, %v6939
        %v6941 = vpop.f32.mrf.mxu0
        %v6942 = vadd.f32 0.0, %v6941
        %6943 = vmatmul.bf16.gmra.mxu0 %v6802
        %v6944 = vpop.f32.mrf.mxu0
        %v6945 = vadd.f32 0.0, %v6944
        %v6946 = vpop.f32.mrf.mxu0
        %v6947 = vadd.f32 0.0, %v6946
        %6948 = vmatmul.bf16.gmra.mxu0 %v6805
        %v6949 = vpop.f32.mrf.mxu0
        %v6950 = vadd.f32 0.0, %v6949
        %v6951 = vpop.f32.mrf.mxu0
        %v6952 = vadd.f32 0.0, %v6951
        %6953 = vdwg.mxu0
        %v6954 = vadd.f32 %v6253, %v6817
        %v6955 = vadd.f32 %v6254, %v6866
        %v6956 = vadd.f32 %v6255, %v6915
        %v6957 = vadd.f32 %v6256, %v6819
        %v6958 = vadd.f32 %v6257, %v6868
        %v6959 = vadd.f32 %v6258, %v6917
        %v6960 = vadd.f32 %v6259, %v6822
        %v6961 = vadd.f32 %v6260, %v6871
        %v6962 = vadd.f32 %v6261, %v6920
        %v6963 = vadd.f32 %v6262, %v6824
        %v6964 = vadd.f32 %v6263, %v6873
        %v6965 = vadd.f32 %v6264, %v6922
        %v6966 = vadd.f32 %v6265, %v6827
        %v6967 = vadd.f32 %v6266, %v6876
        %v6968 = vadd.f32 %v6267, %v6925
        %v6969 = vadd.f32 %v6268, %v6829
        %v6970 = vadd.f32 %v6269, %v6878
        %v6971 = vadd.f32 %v6270, %v6927
        %v6972 = vadd.f32 %v6271, %v6832
        %v6973 = vadd.f32 %v6272, %v6881
        %v6974 = vadd.f32 %v6273, %v6930
        %v6975 = vadd.f32 %v6274, %v6834
        %v6976 = vadd.f32 %v6275, %v6883
        %v6977 = vadd.f32 %v6276, %v6932
        %v6978 = vadd.f32 %v6277, %v6837
        %v6979 = vadd.f32 %v6278, %v6886
        %v6980 = vadd.f32 %v6279, %v6935
        %v6981 = vadd.f32 %v6280, %v6839
        %v6982 = vadd.f32 %v6281, %v6888
        %v6983 = vadd.f32 %v6282, %v6937
        %v6984 = vadd.f32 %v6283, %v6842
        %v6985 = vadd.f32 %v6284, %v6891
        %v6986 = vadd.f32 %v6285, %v6940
        %v6987 = vadd.f32 %v6286, %v6844
        %v6988 = vadd.f32 %v6287, %v6893
        %v6989 = vadd.f32 %v6288, %v6942
        %v6990 = vadd.f32 %v6289, %v6847
        %v6991 = vadd.f32 %v6290, %v6896
        %v6992 = vadd.f32 %v6291, %v6945
        %v6993 = vadd.f32 %v6292, %v6849
        %v6994 = vadd.f32 %v6293, %v6898
        %v6995 = vadd.f32 %v6294, %v6947
        %v6996 = vadd.f32 %v6295, %v6852
        %v6997 = vadd.f32 %v6296, %v6901
        %v6998 = vadd.f32 %v6297, %v6950
        %v6999 = vadd.f32 %v6298, %v6854
        %v7000 = vadd.f32 %v6299, %v6903
        %v7001 = vadd.f32 %v6300, %v6952
        %v7002 = vld [vmem:[%s3] sm:$0x7]
        %v7004 = vperm.slane %v7002, 0
        %v7005 = vperm.slane %v7002, 1
        %v7006 = vperm.slane %v7002, 2
        %v7010 = vadd.f32 %v6954, %v7004
        %v7011 = vadd.f32 %v6955, %v7005
        %v7012 = vadd.f32 %v6956, %v7006
        %v7013 = vadd.f32 %v6957, %v7004
        %v7014 = vadd.f32 %v6958, %v7005
        %v7015 = vadd.f32 %v6959, %v7006
        %v7016 = vadd.f32 %v6960, %v7004
        %v7017 = vadd.f32 %v6961, %v7005
        %v7018 = vadd.f32 %v6962, %v7006
        %v7019 = vadd.f32 %v6963, %v7004
        %v7020 = vadd.f32 %v6964, %v7005
        %v7021 = vadd.f32 %v6965, %v7006
        %v7022 = vadd.f32 %v6966, %v7004
        %v7023 = vadd.f32 %v6967, %v7005
        %v7024 = vadd.f32 %v6968, %v7006
        %v7025 = vadd.f32 %v6969, %v7004
        %v7026 = vadd.f32 %v6970, %v7005
        %v7027 = vadd.f32 %v6971, %v7006
        %v7028 = vadd.f32 %v6972, %v7004
        %v7029 = vadd.f32 %v6973, %v7005
        %v7030 = vadd.f32 %v6974, %v7006
        %v7031 = vadd.f32 %v6975, %v7004
        %v7032 = vadd.f32 %v6976, %v7005
        %v7033 = vadd.f32 %v6977, %v7006
        %v7034 = vadd.f32 %v6978, %v7004
        %v7035 = vadd.f32 %v6979, %v7005
        %v7036 = vadd.f32 %v6980, %v7006
        %v7037 = vadd.f32 %v6981, %v7004
        %v7038 = vadd.f32 %v6982, %v7005
        %v7039 = vadd.f32 %v6983, %v7006
        %v7040 = vadd.f32 %v6984, %v7004
        %v7041 = vadd.f32 %v6985, %v7005
        %v7042 = vadd.f32 %v6986, %v7006
        %v7043 = vadd.f32 %v6987, %v7004
        %v7044 = vadd.f32 %v6988, %v7005
        %v7045 = vadd.f32 %v6989, %v7006
        %v7046 = vadd.f32 %v6990, %v7004
        %v7047 = vadd.f32 %v6991, %v7005
        %v7048 = vadd.f32 %v6992, %v7006
        %v7049 = vadd.f32 %v6993, %v7004
        %v7050 = vadd.f32 %v6994, %v7005
        %v7051 = vadd.f32 %v6995, %v7006
        %v7052 = vadd.f32 %v6996, %v7004
        %v7053 = vadd.f32 %v6997, %v7005
        %v7054 = vadd.f32 %v6998, %v7006
        %v7055 = vadd.f32 %v6999, %v7004
        %v7056 = vadd.f32 %v7000, %v7005
        %v7057 = vadd.f32 %v7001, %v7006
        %7058 = vst [vmem:[%s190] sm:$0xff] %v7010
        %7059 = vst [vmem:[%s190 + $0x8] sm:$0xff] %v7011
        %7060 = vst [vmem:[%s190 + $0x10] sm:$0xff] %v7012
        %7061 = vst [vmem:[%s190 + $0x18] sm:$0xff] %v7013
        %7062 = vst [vmem:[%s190 + $0x20] sm:$0xff] %v7014
        %7063 = vst [vmem:[%s190 + $0x28] sm:$0xff] %v7015
        %7064 = vst [vmem:[%s190 + $0x30] sm:$0xff] %v7016
        %7065 = vst [vmem:[%s190 + $0x38] sm:$0xff] %v7017
        %7066 = vst [vmem:[%s190 + $0x40] sm:$0xff] %v7018
        %7067 = vst [vmem:[%s190 + $0x48] sm:$0xff] %v7019
        %7068 = vst [vmem:[%s190 + $0x50] sm:$0xff] %v7020
        %7069 = vst [vmem:[%s190 + $0x58] sm:$0xff] %v7021
        %7070 = vst [vmem:[%s190 + $0x60] sm:$0xff] %v7022
        %7071 = vst [vmem:[%s190 + $0x68] sm:$0xff] %v7023
        %7072 = vst [vmem:[%s190 + $0x70] sm:$0xff] %v7024
        %7073 = vst [vmem:[%s190 + $0x78] sm:$0xff] %v7025
        %7074 = vst [vmem:[%s190 + $0x80] sm:$0xff] %v7026
        %7075 = vst [vmem:[%s190 + $0x88] sm:$0xff] %v7027
        %7076 = vst [vmem:[%s190 + $0x90] sm:$0xff] %v7028
        %7077 = vst [vmem:[%s190 + $0x98] sm:$0xff] %v7029
        %7078 = vst [vmem:[%s190 + $0xa0] sm:$0xff] %v7030
        %7079 = vst [vmem:[%s190 + $0xa8] sm:$0xff] %v7031
        %7080 = vst [vmem:[%s190 + $0xb0] sm:$0xff] %v7032
        %7081 = vst [vmem:[%s190 + $0xb8] sm:$0xff] %v7033
        %7082 = vst [vmem:[%s190 + $0xc0] sm:$0xff] %v7034
        %7083 = vst [vmem:[%s190 + $0xc8] sm:$0xff] %v7035
        %7084 = vst [vmem:[%s190 + $0xd0] sm:$0xff] %v7036
        %7085 = vst [vmem:[%s190 + $0xd8] sm:$0xff] %v7037
        %7086 = vst [vmem:[%s190 + $0xe0] sm:$0xff] %v7038
        %7087 = vst [vmem:[%s190 + $0xe8] sm:$0xff] %v7039
        %7088 = vst [vmem:[%s190 + $0xf0] sm:$0xff] %v7040
        %7089 = vst [vmem:[%s190 + $0xf8] sm:$0xff] %v7041
        %7090 = vst [vmem:[%s190 + $0x100] sm:$0xff] %v7042
        %7091 = vst [vmem:[%s190 + $0x108] sm:$0xff] %v7043
        %7092 = vst [vmem:[%s190 + $0x110] sm:$0xff] %v7044
        %7093 = vst [vmem:[%s190 + $0x118] sm:$0xff] %v7045
        %7094 = vst [vmem:[%s190 + $0x120] sm:$0xff] %v7046
        %7095 = vst [vmem:[%s190 + $0x128] sm:$0xff] %v7047
        %7096 = vst [vmem:[%s190 + $0x130] sm:$0xff] %v7048
        %7097 = vst [vmem:[%s190 + $0x138] sm:$0xff] %v7049
        %7098 = vst [vmem:[%s190 + $0x140] sm:$0xff] %v7050
        %7099 = vst [vmem:[%s190 + $0x148] sm:$0xff] %v7051
        %7100 = vst [vmem:[%s190 + $0x150] sm:$0xff] %v7052
        %7101 = vst [vmem:[%s190 + $0x158] sm:$0xff] %v7053
        %7102 = vst [vmem:[%s190 + $0x160] sm:$0xff] %v7054
        %7103 = vst [vmem:[%s190 + $0x168] sm:$0xff] %v7055
        %7104 = vst [vmem:[%s190 + $0x170] sm:$0xff] %v7056
        %7105 = vst [vmem:[%s190 + $0x178] sm:$0xff] %v7057
        %s7106 = sand.u32 %s115, 1
        %s7107 = scalar_lea.sflag [#allocation3], %s7106
        %s7108 = sand.u32 %s115, 1
        %s7109 = smul.addr %s7108, 384
        %s7110 = scalar_lea.vmem [#allocation2], %s7109
        // Predicated region
        $region37: #{multi_head_attention.1} parent=35 // pred_check
          %p7111 = pneg %p125
        $region38: #{multi_head_attention.1} parent=35 // pred_check_branch
          %7113 = sbr.rel (%p7111) target = $region40
        $region39: #{multi_head_attention.1} parent=35 // pred_region
          %7115 = vsyncadd %s7107, 0
          %s7116 = smul.addr %s18, 48
          %s7117 = smul.addr %s7116, 8
          %s7118 = scalar_lea.hbm %s4, %s7117
          %s7119 = sshll.u32 %s7110, 4
          %s7120 = int_to_ptr.vmem [resolvable:$true] %s7119
          %s7121 = sshll.u32 %s7118, 4
          %s7122 = int_to_ptr.hbm [resolvable:$true] %s7121
          %7127 = dma.vmem_to_hbm [thread:$0]  %s7120, 6144, %s7122, %s7107, 384, 384, 24
        $region40: #{multi_head_attention.1} parent=35 // pred_fallthru
          _
      $region36: #{multi_head_attention.1} parent=5 // pred_fallthru
        _
      %p7128 = scmp.le.s32.totalorder 2, %s13
      // Predicated region
      $region41: #{multi_head_attention.1} parent=5 // pred_check
        %p7129 = pneg %p7128
      $region42: #{multi_head_attention.1} parent=5 // pred_check_branch
        %7131 = sbr.rel (%p7129) target = $region44
      $region43: #{multi_head_attention.1} parent=5 // pred_region
        %s7132 = ssub.s32 %s13, 2
        // Predicated region
        $region45: #{multi_head_attention.1} parent=43 // pred_check
          %p7133 = pneg %p131
        $region46: #{multi_head_attention.1} parent=43 // pred_check_branch
          %7135 = sbr.rel (%p7133) target = $region48
        $region47: #{multi_head_attention.1} parent=43 // pred_region
          %s7136 = sand.u32 %s116, 1
          %s7137 = scalar_lea.sflag [#allocation3], %s7136
          %s7138 = sand.u32 %s116, 1
          %s7139 = smul.addr %s7138, 384
          %s7140 = scalar_lea.vmem [#allocation2], %s7139
          %7142 = dma.done %s7137, 6144
        $region48: #{multi_head_attention.1} parent=43 // pred_fallthru
          _
      $region44: #{multi_head_attention.1} parent=5 // pred_fallthru
        _
    $region6: #{multi_head_attention.1} parent=1 // loop_footer
      %s17 = sadd.s32 1, %s13
    $region7: #{multi_head_attention.1} parent=1 // loop_footer_branch
      %12 = sbr.rel target = $region3
    $region8: #{multi_head_attention.1} parent=1 // loop_exit
      _
    %7143 = vsyncpa [#allocation3], 1
    %s7144 = scalar_lea.sflag [#allocation3], 1
    %7145 = vsyncpa %s7144, 1

</llo_original>
